<compile_context>
chip_gen: v7x
topology: tpu7x:2x2x1
jax: 0.10.0
libtpu: 0.0.40
codegen_flags: <defaults>
</compile_context>

<pallas_src>
import functools

import jax
import jax.numpy as jnp
from jax.experimental import pallas as pl
from jax.experimental.pallas import tpu as pltpu


# ---------------------------------------------------------------------------
# In-kernel helpers
# ---------------------------------------------------------------------------
def _col_masks(W, C):
    """Left/right column validity masks for a flat (W*W, C) square activation."""
    col = jax.lax.broadcasted_iota(jnp.int32, (W * W, C), 0) % W
    return col >= 1, col <= W - 2          # (valid for kx==0 taps, kx==2 taps)


def _conv3x3(x, w9, bias, masks, *, W, act):
    """3x3 same-padding cross-correlation on a flat NHWC activation.

    x:     (H*W, Cin) f32 value, rows ordered r = h*W + w (H == W here).
    w9:    (9*Cin, Cout) bf16 value, rows ordered (ky, kx, cin).
    bias:  (1, Cout) f32 value.
    masks: precomputed (not_left, not_right) column masks of shape (H*W, Cin).
    """
    HW, Cin = x.shape
    not_left, not_right = masks
    # Zero halo: one (W+1)-row zero slab on each side of the flat image makes
    # every tap a static contiguous row slice; only the left / right image
    # columns still need masking.
    z = jnp.zeros((W + 1, Cin), x.dtype)
    xz = jnp.concatenate([z, x, z], axis=0)                    # (HW + 2W + 2, Cin)

    taps = []
    for ky in range(3):
        for kx in range(3):
            s = ky * W + kx      # start row of tap (ky, kx) in the padded flat image
            t = xz[s:s + HW, :]
            if kx == 0:
                t = jnp.where(not_left, t, 0.0)
            elif kx == 2:
                t = jnp.where(not_right, t, 0.0)
            taps.append(t.astype(jnp.bfloat16))                # per-tap bf16 cast

    patches = jnp.concatenate(taps, axis=1)                    # (HW, 9*Cin) bf16
    acc = jnp.dot(patches, w9, preferred_element_type=jnp.float32) + bias
    if act == "elu":
        # ELU(alpha=1): x if x > 0 else exp(x) - 1  (overflow-safe)
        acc = jnp.where(acc > 0, acc, jnp.exp(jnp.minimum(acc, 0.0)) - 1.0)
    else:  # tanh
        acc = jnp.tanh(acc)
    return acc                                                  # f32 (HW, Cout)


def _decoder_kernel(noise_ref, fcw_ref, fcb_ref, w6_ref, b6_ref,
                    wout_ref, bout_ref, s1_ref, s2_ref, out_ref,
                    *, m, noise_size):
    b = pl.program_id(0)
    hidden = fcb_ref.shape[1]

    # Column masks per resolution, computed once and reused by every conv.
    mk1 = _col_masks(m, hidden)
    mk2 = _col_masks(2 * m, hidden)
    mk3 = _col_masks(4 * m, hidden)

    # ---- fc (fused): x[r, c] = bias[r, c] + sum_n noise[b, n] * W3[n, r, c]
    # (noise lives in SMEM; weights were pre-permuted so rows are NHWC order,
    # avoiding any lane-splitting reshape of the fc output.)
    x = fcb_ref[...]                                           # (m*m, hidden) f32
    for n in range(noise_size):
        x = x + noise_ref[b, n] * fcw_ref[n]

    # ---- first layer @ (m x m), then fused 2x nearest upsample (bf16 MXU select)
    x = _conv3x3(x, w6_ref[0], b6_ref[0], mk1, W=m, act="elu")
    x = _conv3x3(x, w6_ref[1], b6_ref[1], mk1, W=m, act="elu")
    x = jnp.dot(s1_ref[...], x.astype(jnp.bfloat16),
                preferred_element_type=jnp.float32)            # (4m^2, hidden) f32

    # ---- second layer @ (2m x 2m), then fused 2x nearest upsample
    x = _conv3x3(x, w6_ref[2], b6_ref[2], mk2, W=2 * m, act="elu")
    x = _conv3x3(x, w6_ref[3], b6_ref[3], mk2, W=2 * m, act="elu")
    x = jnp.dot(s2_ref[...], x.astype(jnp.bfloat16),
                preferred_element_type=jnp.float32)            # (16m^2, hidden) f32

    # ---- third layer @ (4m x 4m): conv+ELU, conv+ELU, conv+tanh (128-padded Cout)
    x = _conv3x3(x, w6_ref[4], b6_ref[4], mk3, W=4 * m, act="elu")
    x = _conv3x3(x, w6_ref[5], b6_ref[5], mk3, W=4 * m, act="elu")
    x = _conv3x3(x, wout_ref[...], bout_ref[...], mk3, W=4 * m, act="tanh")

    out_ref[0] = x                                             # (16m^2, 128) lane-dense


# ---------------------------------------------------------------------------
# Wrapper: one pallas_call for the whole decoder
# ---------------------------------------------------------------------------
def decoder_forward(kp, noise, *, num_channels, hidden_size, noise_size, image_size):
    m = image_size // 4
    B = noise.shape[0]
    HW = (4 * m) ** 2
    cpad = kp["w_out"].shape[-1]

    kernel = functools.partial(_decoder_kernel, m=m, noise_size=noise_size)
    out = pl.pallas_call(
        kernel,
        out_shape=jax.ShapeDtypeStruct((B, HW, cpad), jnp.float32),
        grid=(B,),
        in_specs=[
            pl.BlockSpec(memory_space=pltpu.MemorySpace.SMEM),          # noise (B, noise)
            pl.BlockSpec(kp["fc_w3"].shape, lambda b: (0, 0, 0)),       # fc weights
            pl.BlockSpec(kp["fc_b2"].shape, lambda b: (0, 0)),          # fc bias
            pl.BlockSpec(kp["w6"].shape, lambda b: (0, 0, 0)),          # 6 hidden conv w (bf16)
            pl.BlockSpec(kp["b6"].shape, lambda b: (0, 0, 0)),          # 6 hidden conv b
            pl.BlockSpec(kp["w_out"].shape, lambda b: (0, 0)),          # final conv w (bf16, padded)
            pl.BlockSpec(kp["b_out"].shape, lambda b: (0, 0)),          # final conv b (padded)
            pl.BlockSpec(kp["s1"].shape, lambda b: (0, 0)),             # upsample select 1 (bf16)
            pl.BlockSpec(kp["s2"].shape, lambda b: (0, 0)),             # upsample select 2 (bf16)
        ],
        out_specs=pl.BlockSpec((1, HW, cpad), lambda b: (b, 0, 0)),
        compiler_params=pltpu.CompilerParams(
            dimension_semantics=("parallel",)),
    )(noise, kp["fc_w3"], kp["fc_b2"], kp["w6"], kp["b6"],
      kp["w_out"], kp["b_out"], kp["s1"], kp["s2"])

    # XLA glue: drop channel padding, NHWC -> NCHW (pure layout, negligible).
    img = out[:, :, :num_channels].reshape(B, 4 * m, 4 * m, num_channels)
    return img.transpose(0, 3, 1, 2)


# ---------------------------------------------------------------------------
# Parameters (deterministic synthetic init, PyTorch-like fan_in uniform bounds)
# ---------------------------------------------------------------------------
def init_decoder_params(key, num_channels, hidden_size, noise_size, image_size):
    m = image_size // 4
    keys = jax.random.split(key, 16)

    def u(k, shape, fan_in):
        bound = 1.0 / float(fan_in) ** 0.5
        return jax.random.uniform(k, shape, jnp.float32, -bound, bound)

    params = {
        # fc output columns ordered (c, h, w), matching PyTorch view(B, C, m, m)
        "fc_w": u(keys[0], (noise_size, hidden_size * m * m), noise_size),
        "fc_b": u(keys[1], (1, hidden_size * m * m), noise_size),
    }
    convs = []
    ki = 2
    chans = [(hidden_size, hidden_size)] * 6 + [(hidden_size, num_channels)]
    for cin, cout in chans:
        fan_in = cin * 9
        w = u(keys[ki], (3, 3, cin, cout), fan_in)   # (ky, kx, cin, cout)
        bb = u(keys[ki + 1], (1, cout), fan_in)
        ki += 2
        convs.append((w, bb))
    params["convs"] = convs
    return params


def _upsample_matrix(H, W):
    """0/1 row-selection matrix: flat (2H,2W) row p <- flat (H,W) row p-source."""
    p = jnp.arange(4 * H * W)
    i, j = p // (2 * W), p % (2 * W)
    src = (i // 2) * W + (j // 2)
    # bf16 is exact for 0/1 entries -> selection matmul is exact on the MXU.
    return jax.nn.one_hot(src, H * W, dtype=jnp.bfloat16)      # (4HW, HW)


def prepare_kernel_params(params, num_channels, hidden_size, noise_size, image_size):
    """Re-layout PyTorch-convention params into kernel-friendly shapes (done once)."""
    m = image_size // 4
    # fc: reorder output columns from (c, h, w) to (h, w, c) so the in-kernel
    # fc result is directly the flat NHWC activation (no lane reshape needed).
    fc_w3 = (params["fc_w"].reshape(noise_size, hidden_size, m, m)
             .transpose(0, 2, 3, 1).reshape(noise_size, m * m, hidden_size))
    fc_b2 = (params["fc_b"].reshape(hidden_size, m, m)
             .transpose(1, 2, 0).reshape(m * m, hidden_size))

    # 6 hidden convs: (3,3,Cin,Cout) -> (9*Cin, Cout), stacked, bf16 MXU operands.
    w6 = jnp.stack([w.reshape(9 * hidden_size, hidden_size)
                    for (w, _b) in params["convs"][:6]]).astype(jnp.bfloat16)
    b6 = jnp.stack([bb.reshape(1, hidden_size) for (_w, bb) in params["convs"][:6]])

    # Final conv: pad Cout to a lane-dense multiple of 128 (zeros -> tanh(0)=0).
    w_last, b_last = params["convs"][6]
    cpad = 128 * ((num_channels + 127) // 128)
    w_out = (jnp.zeros((9 * hidden_size, cpad), jnp.float32)
             .at[:, :num_channels].set(w_last.reshape(9 * hidden_size, num_channels))
             .astype(jnp.bfloat16))
    b_out = (jnp.zeros((1, cpad), jnp.float32)
             .at[:, :num_channels].set(b_last.reshape(1, num_channels)))

    return dict(fc_w3=fc_w3, fc_b2=fc_b2, w6=w6, b6=b6, w_out=w_out, b_out=b_out,
                s1=_upsample_matrix(m, m), s2=_upsample_matrix(2 * m, 2 * m))


# ---------------------------------------------------------------------------
# Pure-JAX reference (f32) for a loose correctness check
# ---------------------------------------------------------------------------
def decoder_reference(params, noise, num_channels, hidden_size, image_size):
    m = image_size // 4
    B = noise.shape[0]
    out = noise @ params["fc_w"] + params["fc_b"]
    x = out.reshape(B, hidden_size, m, m).transpose(0, 2, 3, 1)   # NHWC

    def conv(x, w, bb, act):
        y = jax.lax.conv_general_dilated(
            x, w, window_strides=(1, 1), padding="SAME",
            dimension_numbers=("NHWC", "HWIO", "NHWC"))
        y = y + bb.reshape(1, 1, 1, -1)
        if act == "elu":
            return jnp.where(y > 0, y, jnp.exp(jnp.minimum(y, 0.0)) - 1.0)
        return jnp.tanh(y)

    def up(x):
        return jnp.repeat(jnp.repeat(x, 2, axis=1), 2, axis=2)

    cw = params["convs"]
    x = conv(x, cw[0][0], cw[0][1], "elu"); x = conv(x, cw[1][0], cw[1][1], "elu"); x = up(x)
    x = conv(x, cw[2][0], cw[2][1], "elu"); x = conv(x, cw[3][0], cw[3][1], "elu"); x = up(x)
    x = conv(x, cw[4][0], cw[4][1], "elu"); x = conv(x, cw[5][0], cw[5][1], "elu")
    x = conv(x, cw[6][0], cw[6][1], "tanh")
    return x.transpose(0, 3, 1, 2)


if __name__ == "__main__":
    num_channels, hidden_size, noise_size, image_size = 3, 32, 16, 16
    batch = 2

    key = jax.random.PRNGKey(0)
    pkey, nkey = jax.random.split(key)
    params = init_decoder_params(pkey, num_channels, hidden_size, noise_size, image_size)
    kparams = prepare_kernel_params(params, num_channels, hidden_size, noise_size, image_size)
    noise = jax.random.normal(nkey, (batch, noise_size), jnp.float32)

    fwd = jax.jit(functools.partial(
        decoder_forward, num_channels=num_channels, hidden_size=hidden_size,
        noise_size=noise_size, image_size=image_size))
    out = jax.block_until_ready(fwd(kparams, noise))

    assert out.shape == (batch, num_channels, image_size, image_size), out.shape
    assert bool(jnp.all(jnp.isfinite(out)))
    assert bool(jnp.all(jnp.abs(out) <= 1.0 + 1e-6))  # tanh output range

    # Loose check vs f32 reference (kernel uses bf16 MXU operands).
    ref = decoder_reference(params, noise, num_channels, hidden_size, image_size)
    assert float(jnp.max(jnp.abs(out - ref))) < 8e-2

    print("KERNEL_OK")
</pallas_src>

<mosaic_0001>
module attributes {stable_mosaic.version = 11 : i64} {
  func.func @_decoder_kernel(%arg0: i32, %arg1: memref<2x16xf32, #tpu.memory_space<smem>>, %arg2: memref<16x16x32xf32, #tpu.memory_space<vmem>>, %arg3: memref<16x32xf32, #tpu.memory_space<vmem>>, %arg4: memref<6x288x32xbf16, #tpu.memory_space<vmem>>, %arg5: memref<6x1x32xf32, #tpu.memory_space<vmem>>, %arg6: memref<288x128xbf16, #tpu.memory_space<vmem>>, %arg7: memref<1x128xf32, #tpu.memory_space<vmem>>, %arg8: memref<64x16xbf16, #tpu.memory_space<vmem>>, %arg9: memref<256x64xbf16, #tpu.memory_space<vmem>>, %arg10: memref<1x256x128xf32, #tpu.memory_space<vmem>>) attributes {dimension_semantics = [#tpu.dimension_semantics<parallel>], iteration_bounds = array<i64: 2>, scalar_prefetch = 0 : i64, scratch_operands = 0 : i64, tpu.core_type = #tpu.core_type<tc>, window_params = [{transform_indices = @transform_0, window_bounds = array<i64: 2, 16>}, {pipeline_mode = #tpu.pipeline_mode<synchronous>, transform_indices = @transform_1, window_bounds = array<i64: 16, 16, 32>}, {pipeline_mode = #tpu.pipeline_mode<synchronous>, transform_indices = @transform_2, window_bounds = array<i64: 16, 32>}, {pipeline_mode = #tpu.pipeline_mode<synchronous>, transform_indices = @transform_3, window_bounds = array<i64: 6, 288, 32>}, {pipeline_mode = #tpu.pipeline_mode<synchronous>, transform_indices = @transform_4, window_bounds = array<i64: 6, 1, 32>}, {pipeline_mode = #tpu.pipeline_mode<synchronous>, transform_indices = @transform_5, window_bounds = array<i64: 288, 128>}, {pipeline_mode = #tpu.pipeline_mode<synchronous>, transform_indices = @transform_6, window_bounds = array<i64: 1, 128>}, {pipeline_mode = #tpu.pipeline_mode<synchronous>, transform_indices = @transform_7, window_bounds = array<i64: 64, 16>}, {pipeline_mode = #tpu.pipeline_mode<synchronous>, transform_indices = @transform_8, window_bounds = array<i64: 256, 64>}, {transform_indices = @transform_9, window_bounds = array<i64: 1, 256, 128>}]} {
    %0 = tpu.iota {dimensions = array<i32: 0>} : vector<16x32xi32>
    %c4_i32 = arith.constant 4 : i32
    %c0_i32 = arith.constant 0 : i32
    %1 = arith.cmpi eq, %c4_i32, %c0_i32 : i32
    %c1_i32 = arith.constant 1 : i32
    %2 = arith.select %1, %c1_i32, %c4_i32 : i32
    %3 = vector.broadcast %2 : i32 to vector<16x32xi32>
    %4 = arith.remsi %0, %3 : vector<16x32xi32>
    %c0_i32_0 = arith.constant 0 : i32
    %5 = vector.broadcast %c0_i32_0 : i32 to vector<16x32xi32>
    %6 = arith.cmpi ne, %4, %5 : vector<16x32xi32>
    %c0_i32_1 = arith.constant 0 : i32
    %7 = vector.broadcast %c0_i32_1 : i32 to vector<16x32xi32>
    %8 = arith.cmpi slt, %4, %7 : vector<16x32xi32>
    %c0_i32_2 = arith.constant 0 : i32
    %9 = arith.cmpi slt, %2, %c0_i32_2 : i32
    %10 = vector.broadcast %9 : i1 to vector<16x32xi1>
    %11 = vector.broadcast %10 : vector<16x32xi1> to vector<16x32xi1>
    %12 = arith.xori %8, %11 : vector<16x32xi1>
    %13 = arith.andi %12, %6 : vector<16x32xi1>
    %14 = vector.broadcast %2 : i32 to vector<16x32xi32>
    %15 = arith.addi %4, %14 : vector<16x32xi32>
    %16 = arith.select %13, %15, %4 : vector<16x32xi1>, vector<16x32xi32>
    %c1_i32_3 = arith.constant 1 : i32
    %17 = vector.broadcast %c1_i32_3 : i32 to vector<16x32xi32>
    %18 = arith.cmpi sge, %16, %17 : vector<16x32xi32>
    %c2_i32 = arith.constant 2 : i32
    %19 = vector.broadcast %c2_i32 : i32 to vector<16x32xi32>
    %20 = arith.cmpi sle, %16, %19 : vector<16x32xi32>
    %21 = tpu.iota {dimensions = array<i32: 0>} : vector<64x32xi32>
    %c8_i32 = arith.constant 8 : i32
    %c0_i32_4 = arith.constant 0 : i32
    %22 = arith.cmpi eq, %c8_i32, %c0_i32_4 : i32
    %c1_i32_5 = arith.constant 1 : i32
    %23 = arith.select %22, %c1_i32_5, %c8_i32 : i32
    %24 = vector.broadcast %23 : i32 to vector<64x32xi32>
    %25 = arith.remsi %21, %24 : vector<64x32xi32>
    %c0_i32_6 = arith.constant 0 : i32
    %26 = vector.broadcast %c0_i32_6 : i32 to vector<64x32xi32>
    %27 = arith.cmpi ne, %25, %26 : vector<64x32xi32>
    %c0_i32_7 = arith.constant 0 : i32
    %28 = vector.broadcast %c0_i32_7 : i32 to vector<64x32xi32>
    %29 = arith.cmpi slt, %25, %28 : vector<64x32xi32>
    %c0_i32_8 = arith.constant 0 : i32
    %30 = arith.cmpi slt, %23, %c0_i32_8 : i32
    %31 = vector.broadcast %30 : i1 to vector<64x32xi1>
    %32 = vector.broadcast %31 : vector<64x32xi1> to vector<64x32xi1>
    %33 = arith.xori %29, %32 : vector<64x32xi1>
    %34 = arith.andi %33, %27 : vector<64x32xi1>
    %35 = vector.broadcast %23 : i32 to vector<64x32xi32>
    %36 = arith.addi %25, %35 : vector<64x32xi32>
    %37 = arith.select %34, %36, %25 : vector<64x32xi1>, vector<64x32xi32>
    %c1_i32_9 = arith.constant 1 : i32
    %38 = vector.broadcast %c1_i32_9 : i32 to vector<64x32xi32>
    %39 = arith.cmpi sge, %37, %38 : vector<64x32xi32>
    %c6_i32 = arith.constant 6 : i32
    %40 = vector.broadcast %c6_i32 : i32 to vector<64x32xi32>
    %41 = arith.cmpi sle, %37, %40 : vector<64x32xi32>
    %42 = tpu.iota {dimensions = array<i32: 0>} : vector<256x32xi32>
    %c16_i32 = arith.constant 16 : i32
    %c0_i32_10 = arith.constant 0 : i32
    %43 = arith.cmpi eq, %c16_i32, %c0_i32_10 : i32
    %c1_i32_11 = arith.constant 1 : i32
    %44 = arith.select %43, %c1_i32_11, %c16_i32 : i32
    %45 = vector.broadcast %44 : i32 to vector<256x32xi32>
    %46 = arith.remsi %42, %45 : vector<256x32xi32>
    %c0_i32_12 = arith.constant 0 : i32
    %47 = vector.broadcast %c0_i32_12 : i32 to vector<256x32xi32>
    %48 = arith.cmpi ne, %46, %47 : vector<256x32xi32>
    %c0_i32_13 = arith.constant 0 : i32
    %49 = vector.broadcast %c0_i32_13 : i32 to vector<256x32xi32>
    %50 = arith.cmpi slt, %46, %49 : vector<256x32xi32>
    %c0_i32_14 = arith.constant 0 : i32
    %51 = arith.cmpi slt, %44, %c0_i32_14 : i32
    %52 = vector.broadcast %51 : i1 to vector<256x32xi1>
    %53 = vector.broadcast %52 : vector<256x32xi1> to vector<256x32xi1>
    %54 = arith.xori %50, %53 : vector<256x32xi1>
    %55 = arith.andi %54, %48 : vector<256x32xi1>
    %56 = vector.broadcast %44 : i32 to vector<256x32xi32>
    %57 = arith.addi %46, %56 : vector<256x32xi32>
    %58 = arith.select %55, %57, %46 : vector<256x32xi1>, vector<256x32xi32>
    %c1_i32_15 = arith.constant 1 : i32
    %59 = vector.broadcast %c1_i32_15 : i32 to vector<256x32xi32>
    %60 = arith.cmpi sge, %58, %59 : vector<256x32xi32>
    %c14_i32 = arith.constant 14 : i32
    %61 = vector.broadcast %c14_i32 : i32 to vector<256x32xi32>
    %62 = arith.cmpi sle, %58, %61 : vector<256x32xi32>
    %c0 = arith.constant 0 : index
    %c0_16 = arith.constant 0 : index
    %63 = vector.load %arg3[%c0, %c0_16] : memref<16x32xf32, #tpu.memory_space<vmem>>, vector<16x32xf32>
    %64 = arith.index_cast %arg0 : i32 to index
    %c0_17 = arith.constant 0 : index
    %65 = memref.load %arg1[%64, %c0_17] : memref<2x16xf32, #tpu.memory_space<smem>>
    %c0_18 = arith.constant 0 : index
    %c0_19 = arith.constant 0 : index
    %c0_20 = arith.constant 0 : index
    %66 = vector.load %arg2[%c0_18, %c0_19, %c0_20] : memref<16x16x32xf32, #tpu.memory_space<vmem>>, vector<1x16x32xf32>
    %67 = vector.shape_cast %66 : vector<1x16x32xf32> to vector<16x32xf32>
    %68 = vector.broadcast %65 : f32 to vector<16x32xf32>
    %69 = arith.mulf %68, %67 : vector<16x32xf32>
    %70 = arith.addf %63, %69 : vector<16x32xf32>
    %71 = arith.index_cast %arg0 : i32 to index
    %c1 = arith.constant 1 : index
    %72 = memref.load %arg1[%71, %c1] : memref<2x16xf32, #tpu.memory_space<smem>>
    %c1_21 = arith.constant 1 : index
    %c0_22 = arith.constant 0 : index
    %c0_23 = arith.constant 0 : index
    %73 = vector.load %arg2[%c1_21, %c0_22, %c0_23] : memref<16x16x32xf32, #tpu.memory_space<vmem>>, vector<1x16x32xf32>
    %74 = vector.shape_cast %73 : vector<1x16x32xf32> to vector<16x32xf32>
    %75 = vector.broadcast %72 : f32 to vector<16x32xf32>
    %76 = arith.mulf %75, %74 : vector<16x32xf32>
    %77 = arith.addf %70, %76 : vector<16x32xf32>
    %78 = arith.index_cast %arg0 : i32 to index
    %c2 = arith.constant 2 : index
    %79 = memref.load %arg1[%78, %c2] : memref<2x16xf32, #tpu.memory_space<smem>>
    %c2_24 = arith.constant 2 : index
    %c0_25 = arith.constant 0 : index
    %c0_26 = arith.constant 0 : index
    %80 = vector.load %arg2[%c2_24, %c0_25, %c0_26] : memref<16x16x32xf32, #tpu.memory_space<vmem>>, vector<1x16x32xf32>
    %81 = vector.shape_cast %80 : vector<1x16x32xf32> to vector<16x32xf32>
    %82 = vector.broadcast %79 : f32 to vector<16x32xf32>
    %83 = arith.mulf %82, %81 : vector<16x32xf32>
    %84 = arith.addf %77, %83 : vector<16x32xf32>
    %85 = arith.index_cast %arg0 : i32 to index
    %c3 = arith.constant 3 : index
    %86 = memref.load %arg1[%85, %c3] : memref<2x16xf32, #tpu.memory_space<smem>>
    %c3_27 = arith.constant 3 : index
    %c0_28 = arith.constant 0 : index
    %c0_29 = arith.constant 0 : index
    %87 = vector.load %arg2[%c3_27, %c0_28, %c0_29] : memref<16x16x32xf32, #tpu.memory_space<vmem>>, vector<1x16x32xf32>
    %88 = vector.shape_cast %87 : vector<1x16x32xf32> to vector<16x32xf32>
    %89 = vector.broadcast %86 : f32 to vector<16x32xf32>
    %90 = arith.mulf %89, %88 : vector<16x32xf32>
    %91 = arith.addf %84, %90 : vector<16x32xf32>
    %92 = arith.index_cast %arg0 : i32 to index
    %c4 = arith.constant 4 : index
    %93 = memref.load %arg1[%92, %c4] : memref<2x16xf32, #tpu.memory_space<smem>>
    %c4_30 = arith.constant 4 : index
    %c0_31 = arith.constant 0 : index
    %c0_32 = arith.constant 0 : index
    %94 = vector.load %arg2[%c4_30, %c0_31, %c0_32] : memref<16x16x32xf32, #tpu.memory_space<vmem>>, vector<1x16x32xf32>
    %95 = vector.shape_cast %94 : vector<1x16x32xf32> to vector<16x32xf32>
    %96 = vector.broadcast %93 : f32 to vector<16x32xf32>
    %97 = arith.mulf %96, %95 : vector<16x32xf32>
    %98 = arith.addf %91, %97 : vector<16x32xf32>
    %99 = arith.index_cast %arg0 : i32 to index
    %c5 = arith.constant 5 : index
    %100 = memref.load %arg1[%99, %c5] : memref<2x16xf32, #tpu.memory_space<smem>>
    %c5_33 = arith.constant 5 : index
    %c0_34 = arith.constant 0 : index
    %c0_35 = arith.constant 0 : index
    %101 = vector.load %arg2[%c5_33, %c0_34, %c0_35] : memref<16x16x32xf32, #tpu.memory_space<vmem>>, vector<1x16x32xf32>
    %102 = vector.shape_cast %101 : vector<1x16x32xf32> to vector<16x32xf32>
    %103 = vector.broadcast %100 : f32 to vector<16x32xf32>
    %104 = arith.mulf %103, %102 : vector<16x32xf32>
    %105 = arith.addf %98, %104 : vector<16x32xf32>
    %106 = arith.index_cast %arg0 : i32 to index
    %c6 = arith.constant 6 : index
    %107 = memref.load %arg1[%106, %c6] : memref<2x16xf32, #tpu.memory_space<smem>>
    %c6_36 = arith.constant 6 : index
    %c0_37 = arith.constant 0 : index
    %c0_38 = arith.constant 0 : index
    %108 = vector.load %arg2[%c6_36, %c0_37, %c0_38] : memref<16x16x32xf32, #tpu.memory_space<vmem>>, vector<1x16x32xf32>
    %109 = vector.shape_cast %108 : vector<1x16x32xf32> to vector<16x32xf32>
    %110 = vector.broadcast %107 : f32 to vector<16x32xf32>
    %111 = arith.mulf %110, %109 : vector<16x32xf32>
    %112 = arith.addf %105, %111 : vector<16x32xf32>
    %113 = arith.index_cast %arg0 : i32 to index
    %c7 = arith.constant 7 : index
    %114 = memref.load %arg1[%113, %c7] : memref<2x16xf32, #tpu.memory_space<smem>>
    %c7_39 = arith.constant 7 : index
    %c0_40 = arith.constant 0 : index
    %c0_41 = arith.constant 0 : index
    %115 = vector.load %arg2[%c7_39, %c0_40, %c0_41] : memref<16x16x32xf32, #tpu.memory_space<vmem>>, vector<1x16x32xf32>
    %116 = vector.shape_cast %115 : vector<1x16x32xf32> to vector<16x32xf32>
    %117 = vector.broadcast %114 : f32 to vector<16x32xf32>
    %118 = arith.mulf %117, %116 : vector<16x32xf32>
    %119 = arith.addf %112, %118 : vector<16x32xf32>
    %120 = arith.index_cast %arg0 : i32 to index
    %c8 = arith.constant 8 : index
    %121 = memref.load %arg1[%120, %c8] : memref<2x16xf32, #tpu.memory_space<smem>>
    %c8_42 = arith.constant 8 : index
    %c0_43 = arith.constant 0 : index
    %c0_44 = arith.constant 0 : index
    %122 = vector.load %arg2[%c8_42, %c0_43, %c0_44] : memref<16x16x32xf32, #tpu.memory_space<vmem>>, vector<1x16x32xf32>
    %123 = vector.shape_cast %122 : vector<1x16x32xf32> to vector<16x32xf32>
    %124 = vector.broadcast %121 : f32 to vector<16x32xf32>
    %125 = arith.mulf %124, %123 : vector<16x32xf32>
    %126 = arith.addf %119, %125 : vector<16x32xf32>
    %127 = arith.index_cast %arg0 : i32 to index
    %c9 = arith.constant 9 : index
    %128 = memref.load %arg1[%127, %c9] : memref<2x16xf32, #tpu.memory_space<smem>>
    %c9_45 = arith.constant 9 : index
    %c0_46 = arith.constant 0 : index
    %c0_47 = arith.constant 0 : index
    %129 = vector.load %arg2[%c9_45, %c0_46, %c0_47] : memref<16x16x32xf32, #tpu.memory_space<vmem>>, vector<1x16x32xf32>
    %130 = vector.shape_cast %129 : vector<1x16x32xf32> to vector<16x32xf32>
    %131 = vector.broadcast %128 : f32 to vector<16x32xf32>
    %132 = arith.mulf %131, %130 : vector<16x32xf32>
    %133 = arith.addf %126, %132 : vector<16x32xf32>
    %134 = arith.index_cast %arg0 : i32 to index
    %c10 = arith.constant 10 : index
    %135 = memref.load %arg1[%134, %c10] : memref<2x16xf32, #tpu.memory_space<smem>>
    %c10_48 = arith.constant 10 : index
    %c0_49 = arith.constant 0 : index
    %c0_50 = arith.constant 0 : index
    %136 = vector.load %arg2[%c10_48, %c0_49, %c0_50] : memref<16x16x32xf32, #tpu.memory_space<vmem>>, vector<1x16x32xf32>
    %137 = vector.shape_cast %136 : vector<1x16x32xf32> to vector<16x32xf32>
    %138 = vector.broadcast %135 : f32 to vector<16x32xf32>
    %139 = arith.mulf %138, %137 : vector<16x32xf32>
    %140 = arith.addf %133, %139 : vector<16x32xf32>
    %141 = arith.index_cast %arg0 : i32 to index
    %c11 = arith.constant 11 : index
    %142 = memref.load %arg1[%141, %c11] : memref<2x16xf32, #tpu.memory_space<smem>>
    %c11_51 = arith.constant 11 : index
    %c0_52 = arith.constant 0 : index
    %c0_53 = arith.constant 0 : index
    %143 = vector.load %arg2[%c11_51, %c0_52, %c0_53] : memref<16x16x32xf32, #tpu.memory_space<vmem>>, vector<1x16x32xf32>
    %144 = vector.shape_cast %143 : vector<1x16x32xf32> to vector<16x32xf32>
    %145 = vector.broadcast %142 : f32 to vector<16x32xf32>
    %146 = arith.mulf %145, %144 : vector<16x32xf32>
    %147 = arith.addf %140, %146 : vector<16x32xf32>
    %148 = arith.index_cast %arg0 : i32 to index
    %c12 = arith.constant 12 : index
    %149 = memref.load %arg1[%148, %c12] : memref<2x16xf32, #tpu.memory_space<smem>>
    %c12_54 = arith.constant 12 : index
    %c0_55 = arith.constant 0 : index
    %c0_56 = arith.constant 0 : index
    %150 = vector.load %arg2[%c12_54, %c0_55, %c0_56] : memref<16x16x32xf32, #tpu.memory_space<vmem>>, vector<1x16x32xf32>
    %151 = vector.shape_cast %150 : vector<1x16x32xf32> to vector<16x32xf32>
    %152 = vector.broadcast %149 : f32 to vector<16x32xf32>
    %153 = arith.mulf %152, %151 : vector<16x32xf32>
    %154 = arith.addf %147, %153 : vector<16x32xf32>
    %155 = arith.index_cast %arg0 : i32 to index
    %c13 = arith.constant 13 : index
    %156 = memref.load %arg1[%155, %c13] : memref<2x16xf32, #tpu.memory_space<smem>>
    %c13_57 = arith.constant 13 : index
    %c0_58 = arith.constant 0 : index
    %c0_59 = arith.constant 0 : index
    %157 = vector.load %arg2[%c13_57, %c0_58, %c0_59] : memref<16x16x32xf32, #tpu.memory_space<vmem>>, vector<1x16x32xf32>
    %158 = vector.shape_cast %157 : vector<1x16x32xf32> to vector<16x32xf32>
    %159 = vector.broadcast %156 : f32 to vector<16x32xf32>
    %160 = arith.mulf %159, %158 : vector<16x32xf32>
    %161 = arith.addf %154, %160 : vector<16x32xf32>
    %162 = arith.index_cast %arg0 : i32 to index
    %c14 = arith.constant 14 : index
    %163 = memref.load %arg1[%162, %c14] : memref<2x16xf32, #tpu.memory_space<smem>>
    %c14_60 = arith.constant 14 : index
    %c0_61 = arith.constant 0 : index
    %c0_62 = arith.constant 0 : index
    %164 = vector.load %arg2[%c14_60, %c0_61, %c0_62] : memref<16x16x32xf32, #tpu.memory_space<vmem>>, vector<1x16x32xf32>
    %165 = vector.shape_cast %164 : vector<1x16x32xf32> to vector<16x32xf32>
    %166 = vector.broadcast %163 : f32 to vector<16x32xf32>
    %167 = arith.mulf %166, %165 : vector<16x32xf32>
    %168 = arith.addf %161, %167 : vector<16x32xf32>
    %169 = arith.index_cast %arg0 : i32 to index
    %c15 = arith.constant 15 : index
    %170 = memref.load %arg1[%169, %c15] : memref<2x16xf32, #tpu.memory_space<smem>>
    %c15_63 = arith.constant 15 : index
    %c0_64 = arith.constant 0 : index
    %c0_65 = arith.constant 0 : index
    %171 = vector.load %arg2[%c15_63, %c0_64, %c0_65] : memref<16x16x32xf32, #tpu.memory_space<vmem>>, vector<1x16x32xf32>
    %172 = vector.shape_cast %171 : vector<1x16x32xf32> to vector<16x32xf32>
    %173 = vector.broadcast %170 : f32 to vector<16x32xf32>
    %174 = arith.mulf %173, %172 : vector<16x32xf32>
    %175 = arith.addf %168, %174 : vector<16x32xf32>
    %c0_66 = arith.constant 0 : index
    %c0_67 = arith.constant 0 : index
    %c0_68 = arith.constant 0 : index
    %176 = vector.load %arg4[%c0_66, %c0_67, %c0_68] : memref<6x288x32xbf16, #tpu.memory_space<vmem>>, vector<1x288x32xbf16>
    %177 = vector.shape_cast %176 : vector<1x288x32xbf16> to vector<288x32xbf16>
    %c0_69 = arith.constant 0 : index
    %c0_70 = arith.constant 0 : index
    %c0_71 = arith.constant 0 : index
    %178 = vector.load %arg5[%c0_69, %c0_70, %c0_71] : memref<6x1x32xf32, #tpu.memory_space<vmem>>, vector<1x1x32xf32>
    %179 = vector.shape_cast %178 : vector<1x1x32xf32> to vector<1x32xf32>
    %cst = arith.constant 0.000000e+00 : f32
    %180 = vector.broadcast %cst : f32 to vector<5x32xf32>
    %181 = tpu.concatenate %180, %175, %180 in 0 : vector<5x32xf32>, vector<16x32xf32>, vector<5x32xf32> -> vector<26x32xf32>
    %182 = vector.extract_strided_slice %181 {offsets = [0, 0], sizes = [16, 32], strides = [1, 1]} : vector<26x32xf32> to vector<16x32xf32>
    %cst_72 = arith.constant 0.000000e+00 : f32
    %183 = vector.broadcast %cst_72 : f32 to vector<16x32xf32>
    %184 = arith.select %18, %182, %183 : vector<16x32xi1>, vector<16x32xf32>
    %185 = arith.truncf %184 : vector<16x32xf32> to vector<16x32xbf16>
    %186 = vector.extract_strided_slice %181 {offsets = [1, 0], sizes = [16, 32], strides = [1, 1]} : vector<26x32xf32> to vector<16x32xf32>
    %187 = arith.truncf %186 : vector<16x32xf32> to vector<16x32xbf16>
    %188 = vector.extract_strided_slice %181 {offsets = [2, 0], sizes = [16, 32], strides = [1, 1]} : vector<26x32xf32> to vector<16x32xf32>
    %cst_73 = arith.constant 0.000000e+00 : f32
    %189 = vector.broadcast %cst_73 : f32 to vector<16x32xf32>
    %190 = arith.select %20, %188, %189 : vector<16x32xi1>, vector<16x32xf32>
    %191 = arith.truncf %190 : vector<16x32xf32> to vector<16x32xbf16>
    %192 = vector.extract_strided_slice %181 {offsets = [4, 0], sizes = [16, 32], strides = [1, 1]} : vector<26x32xf32> to vector<16x32xf32>
    %cst_74 = arith.constant 0.000000e+00 : f32
    %193 = vector.broadcast %cst_74 : f32 to vector<16x32xf32>
    %194 = arith.select %18, %192, %193 : vector<16x32xi1>, vector<16x32xf32>
    %195 = arith.truncf %194 : vector<16x32xf32> to vector<16x32xbf16>
    %196 = vector.extract_strided_slice %181 {offsets = [5, 0], sizes = [16, 32], strides = [1, 1]} : vector<26x32xf32> to vector<16x32xf32>
    %197 = arith.truncf %196 : vector<16x32xf32> to vector<16x32xbf16>
    %198 = vector.extract_strided_slice %181 {offsets = [6, 0], sizes = [16, 32], strides = [1, 1]} : vector<26x32xf32> to vector<16x32xf32>
    %cst_75 = arith.constant 0.000000e+00 : f32
    %199 = vector.broadcast %cst_75 : f32 to vector<16x32xf32>
    %200 = arith.select %20, %198, %199 : vector<16x32xi1>, vector<16x32xf32>
    %201 = arith.truncf %200 : vector<16x32xf32> to vector<16x32xbf16>
    %202 = vector.extract_strided_slice %181 {offsets = [8, 0], sizes = [16, 32], strides = [1, 1]} : vector<26x32xf32> to vector<16x32xf32>
    %cst_76 = arith.constant 0.000000e+00 : f32
    %203 = vector.broadcast %cst_76 : f32 to vector<16x32xf32>
    %204 = arith.select %18, %202, %203 : vector<16x32xi1>, vector<16x32xf32>
    %205 = arith.truncf %204 : vector<16x32xf32> to vector<16x32xbf16>
    %206 = vector.extract_strided_slice %181 {offsets = [9, 0], sizes = [16, 32], strides = [1, 1]} : vector<26x32xf32> to vector<16x32xf32>
    %207 = arith.truncf %206 : vector<16x32xf32> to vector<16x32xbf16>
    %208 = vector.extract_strided_slice %181 {offsets = [10, 0], sizes = [16, 32], strides = [1, 1]} : vector<26x32xf32> to vector<16x32xf32>
    %cst_77 = arith.constant 0.000000e+00 : f32
    %209 = vector.broadcast %cst_77 : f32 to vector<16x32xf32>
    %210 = arith.select %20, %208, %209 : vector<16x32xi1>, vector<16x32xf32>
    %211 = arith.truncf %210 : vector<16x32xf32> to vector<16x32xbf16>
    %212 = tpu.concatenate %185, %187, %191, %195, %197, %201, %205, %207, %211 in 1 : vector<16x32xbf16>, vector<16x32xbf16>, vector<16x32xbf16>, vector<16x32xbf16>, vector<16x32xbf16>, vector<16x32xbf16>, vector<16x32xbf16>, vector<16x32xbf16>, vector<16x32xbf16> -> vector<16x288xbf16>
    %cst_78 = arith.constant dense<0.000000e+00> : vector<16x32xf32>
    %213 = tpu.matmul %212, %177, %cst_78 {dimension_numbers = #tpu.dot_dimension_numbers<[1], [0], [0], [1], [0, 0, 1, 1], [], []>} : vector<16x288xbf16>, vector<288x32xbf16>, vector<16x32xf32> -> vector<16x32xf32>
    %214 = vector.broadcast %179 : vector<1x32xf32> to vector<16x32xf32>
    %215 = arith.addf %213, %214 : vector<16x32xf32>
    %cst_79 = arith.constant 0.000000e+00 : f32
    %216 = vector.broadcast %cst_79 : f32 to vector<16x32xf32>
    %217 = arith.cmpf ogt, %215, %216 : vector<16x32xf32>
    %cst_80 = arith.constant 0.000000e+00 : f32
    %218 = vector.broadcast %cst_80 : f32 to vector<16x32xf32>
    %219 = arith.minimumf %215, %218 : vector<16x32xf32>
    %220 = math.exp %219 : vector<16x32xf32>
    %cst_81 = arith.constant 1.000000e+00 : f32
    %221 = vector.broadcast %cst_81 : f32 to vector<16x32xf32>
    %222 = arith.subf %220, %221 : vector<16x32xf32>
    %223 = arith.select %217, %215, %222 : vector<16x32xi1>, vector<16x32xf32>
    %c1_82 = arith.constant 1 : index
    %c0_83 = arith.constant 0 : index
    %c0_84 = arith.constant 0 : index
    %224 = vector.load %arg4[%c1_82, %c0_83, %c0_84] : memref<6x288x32xbf16, #tpu.memory_space<vmem>>, vector<1x288x32xbf16>
    %225 = vector.shape_cast %224 : vector<1x288x32xbf16> to vector<288x32xbf16>
    %c1_85 = arith.constant 1 : index
    %c0_86 = arith.constant 0 : index
    %c0_87 = arith.constant 0 : index
    %226 = vector.load %arg5[%c1_85, %c0_86, %c0_87] : memref<6x1x32xf32, #tpu.memory_space<vmem>>, vector<1x1x32xf32>
    %227 = vector.shape_cast %226 : vector<1x1x32xf32> to vector<1x32xf32>
    %cst_88 = arith.constant 0.000000e+00 : f32
    %228 = vector.broadcast %cst_88 : f32 to vector<5x32xf32>
    %229 = tpu.concatenate %228, %223, %228 in 0 : vector<5x32xf32>, vector<16x32xf32>, vector<5x32xf32> -> vector<26x32xf32>
    %230 = vector.extract_strided_slice %229 {offsets = [0, 0], sizes = [16, 32], strides = [1, 1]} : vector<26x32xf32> to vector<16x32xf32>
    %cst_89 = arith.constant 0.000000e+00 : f32
    %231 = vector.broadcast %cst_89 : f32 to vector<16x32xf32>
    %232 = arith.select %18, %230, %231 : vector<16x32xi1>, vector<16x32xf32>
    %233 = arith.truncf %232 : vector<16x32xf32> to vector<16x32xbf16>
    %234 = vector.extract_strided_slice %229 {offsets = [1, 0], sizes = [16, 32], strides = [1, 1]} : vector<26x32xf32> to vector<16x32xf32>
    %235 = arith.truncf %234 : vector<16x32xf32> to vector<16x32xbf16>
    %236 = vector.extract_strided_slice %229 {offsets = [2, 0], sizes = [16, 32], strides = [1, 1]} : vector<26x32xf32> to vector<16x32xf32>
    %cst_90 = arith.constant 0.000000e+00 : f32
    %237 = vector.broadcast %cst_90 : f32 to vector<16x32xf32>
    %238 = arith.select %20, %236, %237 : vector<16x32xi1>, vector<16x32xf32>
    %239 = arith.truncf %238 : vector<16x32xf32> to vector<16x32xbf16>
    %240 = vector.extract_strided_slice %229 {offsets = [4, 0], sizes = [16, 32], strides = [1, 1]} : vector<26x32xf32> to vector<16x32xf32>
    %cst_91 = arith.constant 0.000000e+00 : f32
    %241 = vector.broadcast %cst_91 : f32 to vector<16x32xf32>
    %242 = arith.select %18, %240, %241 : vector<16x32xi1>, vector<16x32xf32>
    %243 = arith.truncf %242 : vector<16x32xf32> to vector<16x32xbf16>
    %244 = vector.extract_strided_slice %229 {offsets = [5, 0], sizes = [16, 32], strides = [1, 1]} : vector<26x32xf32> to vector<16x32xf32>
    %245 = arith.truncf %244 : vector<16x32xf32> to vector<16x32xbf16>
    %246 = vector.extract_strided_slice %229 {offsets = [6, 0], sizes = [16, 32], strides = [1, 1]} : vector<26x32xf32> to vector<16x32xf32>
    %cst_92 = arith.constant 0.000000e+00 : f32
    %247 = vector.broadcast %cst_92 : f32 to vector<16x32xf32>
    %248 = arith.select %20, %246, %247 : vector<16x32xi1>, vector<16x32xf32>
    %249 = arith.truncf %248 : vector<16x32xf32> to vector<16x32xbf16>
    %250 = vector.extract_strided_slice %229 {offsets = [8, 0], sizes = [16, 32], strides = [1, 1]} : vector<26x32xf32> to vector<16x32xf32>
    %cst_93 = arith.constant 0.000000e+00 : f32
    %251 = vector.broadcast %cst_93 : f32 to vector<16x32xf32>
    %252 = arith.select %18, %250, %251 : vector<16x32xi1>, vector<16x32xf32>
    %253 = arith.truncf %252 : vector<16x32xf32> to vector<16x32xbf16>
    %254 = vector.extract_strided_slice %229 {offsets = [9, 0], sizes = [16, 32], strides = [1, 1]} : vector<26x32xf32> to vector<16x32xf32>
    %255 = arith.truncf %254 : vector<16x32xf32> to vector<16x32xbf16>
    %256 = vector.extract_strided_slice %229 {offsets = [10, 0], sizes = [16, 32], strides = [1, 1]} : vector<26x32xf32> to vector<16x32xf32>
    %cst_94 = arith.constant 0.000000e+00 : f32
    %257 = vector.broadcast %cst_94 : f32 to vector<16x32xf32>
    %258 = arith.select %20, %256, %257 : vector<16x32xi1>, vector<16x32xf32>
    %259 = arith.truncf %258 : vector<16x32xf32> to vector<16x32xbf16>
    %260 = tpu.concatenate %233, %235, %239, %243, %245, %249, %253, %255, %259 in 1 : vector<16x32xbf16>, vector<16x32xbf16>, vector<16x32xbf16>, vector<16x32xbf16>, vector<16x32xbf16>, vector<16x32xbf16>, vector<16x32xbf16>, vector<16x32xbf16>, vector<16x32xbf16> -> vector<16x288xbf16>
    %cst_95 = arith.constant dense<0.000000e+00> : vector<16x32xf32>
    %261 = tpu.matmul %260, %225, %cst_95 {dimension_numbers = #tpu.dot_dimension_numbers<[1], [0], [0], [1], [0, 0, 1, 1], [], []>} : vector<16x288xbf16>, vector<288x32xbf16>, vector<16x32xf32> -> vector<16x32xf32>
    %262 = vector.broadcast %227 : vector<1x32xf32> to vector<16x32xf32>
    %263 = arith.addf %261, %262 : vector<16x32xf32>
    %cst_96 = arith.constant 0.000000e+00 : f32
    %264 = vector.broadcast %cst_96 : f32 to vector<16x32xf32>
    %265 = arith.cmpf ogt, %263, %264 : vector<16x32xf32>
    %cst_97 = arith.constant 0.000000e+00 : f32
    %266 = vector.broadcast %cst_97 : f32 to vector<16x32xf32>
    %267 = arith.minimumf %263, %266 : vector<16x32xf32>
    %268 = math.exp %267 : vector<16x32xf32>
    %cst_98 = arith.constant 1.000000e+00 : f32
    %269 = vector.broadcast %cst_98 : f32 to vector<16x32xf32>
    %270 = arith.subf %268, %269 : vector<16x32xf32>
    %271 = arith.select %265, %263, %270 : vector<16x32xi1>, vector<16x32xf32>
    %c0_99 = arith.constant 0 : index
    %c0_100 = arith.constant 0 : index
    %272 = vector.load %arg8[%c0_99, %c0_100] : memref<64x16xbf16, #tpu.memory_space<vmem>>, vector<64x16xbf16>
    %273 = arith.truncf %271 : vector<16x32xf32> to vector<16x32xbf16>
    %cst_101 = arith.constant dense<0.000000e+00> : vector<64x32xf32>
    %274 = tpu.matmul %272, %273, %cst_101 {dimension_numbers = #tpu.dot_dimension_numbers<[1], [0], [0], [1], [0, 0, 1, 1], [], []>} : vector<64x16xbf16>, vector<16x32xbf16>, vector<64x32xf32> -> vector<64x32xf32>
    %c2_102 = arith.constant 2 : index
    %c0_103 = arith.constant 0 : index
    %c0_104 = arith.constant 0 : index
    %275 = vector.load %arg4[%c2_102, %c0_103, %c0_104] : memref<6x288x32xbf16, #tpu.memory_space<vmem>>, vector<1x288x32xbf16>
    %276 = vector.shape_cast %275 : vector<1x288x32xbf16> to vector<288x32xbf16>
    %c2_105 = arith.constant 2 : index
    %c0_106 = arith.constant 0 : index
    %c0_107 = arith.constant 0 : index
    %277 = vector.load %arg5[%c2_105, %c0_106, %c0_107] : memref<6x1x32xf32, #tpu.memory_space<vmem>>, vector<1x1x32xf32>
    %278 = vector.shape_cast %277 : vector<1x1x32xf32> to vector<1x32xf32>
    %cst_108 = arith.constant 0.000000e+00 : f32
    %279 = vector.broadcast %cst_108 : f32 to vector<9x32xf32>
    %280 = tpu.concatenate %279, %274, %279 in 0 : vector<9x32xf32>, vector<64x32xf32>, vector<9x32xf32> -> vector<82x32xf32>
    %281 = vector.extract_strided_slice %280 {offsets = [0, 0], sizes = [64, 32], strides = [1, 1]} : vector<82x32xf32> to vector<64x32xf32>
    %cst_109 = arith.constant 0.000000e+00 : f32
    %282 = vector.broadcast %cst_109 : f32 to vector<64x32xf32>
    %283 = arith.select %39, %281, %282 : vector<64x32xi1>, vector<64x32xf32>
    %284 = arith.truncf %283 : vector<64x32xf32> to vector<64x32xbf16>
    %285 = vector.extract_strided_slice %280 {offsets = [1, 0], sizes = [64, 32], strides = [1, 1]} : vector<82x32xf32> to vector<64x32xf32>
    %286 = arith.truncf %285 : vector<64x32xf32> to vector<64x32xbf16>
    %287 = vector.extract_strided_slice %280 {offsets = [2, 0], sizes = [64, 32], strides = [1, 1]} : vector<82x32xf32> to vector<64x32xf32>
    %cst_110 = arith.constant 0.000000e+00 : f32
    %288 = vector.broadcast %cst_110 : f32 to vector<64x32xf32>
    %289 = arith.select %41, %287, %288 : vector<64x32xi1>, vector<64x32xf32>
    %290 = arith.truncf %289 : vector<64x32xf32> to vector<64x32xbf16>
    %291 = vector.extract_strided_slice %280 {offsets = [8, 0], sizes = [64, 32], strides = [1, 1]} : vector<82x32xf32> to vector<64x32xf32>
    %cst_111 = arith.constant 0.000000e+00 : f32
    %292 = vector.broadcast %cst_111 : f32 to vector<64x32xf32>
    %293 = arith.select %39, %291, %292 : vector<64x32xi1>, vector<64x32xf32>
    %294 = arith.truncf %293 : vector<64x32xf32> to vector<64x32xbf16>
    %295 = vector.extract_strided_slice %280 {offsets = [9, 0], sizes = [64, 32], strides = [1, 1]} : vector<82x32xf32> to vector<64x32xf32>
    %296 = arith.truncf %295 : vector<64x32xf32> to vector<64x32xbf16>
    %297 = vector.extract_strided_slice %280 {offsets = [10, 0], sizes = [64, 32], strides = [1, 1]} : vector<82x32xf32> to vector<64x32xf32>
    %cst_112 = arith.constant 0.000000e+00 : f32
    %298 = vector.broadcast %cst_112 : f32 to vector<64x32xf32>
    %299 = arith.select %41, %297, %298 : vector<64x32xi1>, vector<64x32xf32>
    %300 = arith.truncf %299 : vector<64x32xf32> to vector<64x32xbf16>
    %301 = vector.extract_strided_slice %280 {offsets = [16, 0], sizes = [64, 32], strides = [1, 1]} : vector<82x32xf32> to vector<64x32xf32>
    %cst_113 = arith.constant 0.000000e+00 : f32
    %302 = vector.broadcast %cst_113 : f32 to vector<64x32xf32>
    %303 = arith.select %39, %301, %302 : vector<64x32xi1>, vector<64x32xf32>
    %304 = arith.truncf %303 : vector<64x32xf32> to vector<64x32xbf16>
    %305 = vector.extract_strided_slice %280 {offsets = [17, 0], sizes = [64, 32], strides = [1, 1]} : vector<82x32xf32> to vector<64x32xf32>
    %306 = arith.truncf %305 : vector<64x32xf32> to vector<64x32xbf16>
    %307 = vector.extract_strided_slice %280 {offsets = [18, 0], sizes = [64, 32], strides = [1, 1]} : vector<82x32xf32> to vector<64x32xf32>
    %cst_114 = arith.constant 0.000000e+00 : f32
    %308 = vector.broadcast %cst_114 : f32 to vector<64x32xf32>
    %309 = arith.select %41, %307, %308 : vector<64x32xi1>, vector<64x32xf32>
    %310 = arith.truncf %309 : vector<64x32xf32> to vector<64x32xbf16>
    %311 = tpu.concatenate %284, %286, %290, %294, %296, %300, %304, %306, %310 in 1 : vector<64x32xbf16>, vector<64x32xbf16>, vector<64x32xbf16>, vector<64x32xbf16>, vector<64x32xbf16>, vector<64x32xbf16>, vector<64x32xbf16>, vector<64x32xbf16>, vector<64x32xbf16> -> vector<64x288xbf16>
    %cst_115 = arith.constant dense<0.000000e+00> : vector<64x32xf32>
    %312 = tpu.matmul %311, %276, %cst_115 {dimension_numbers = #tpu.dot_dimension_numbers<[1], [0], [0], [1], [0, 0, 1, 1], [], []>} : vector<64x288xbf16>, vector<288x32xbf16>, vector<64x32xf32> -> vector<64x32xf32>
    %313 = vector.broadcast %278 : vector<1x32xf32> to vector<64x32xf32>
    %314 = arith.addf %312, %313 : vector<64x32xf32>
    %cst_116 = arith.constant 0.000000e+00 : f32
    %315 = vector.broadcast %cst_116 : f32 to vector<64x32xf32>
    %316 = arith.cmpf ogt, %314, %315 : vector<64x32xf32>
    %cst_117 = arith.constant 0.000000e+00 : f32
    %317 = vector.broadcast %cst_117 : f32 to vector<64x32xf32>
    %318 = arith.minimumf %314, %317 : vector<64x32xf32>
    %319 = math.exp %318 : vector<64x32xf32>
    %cst_118 = arith.constant 1.000000e+00 : f32
    %320 = vector.broadcast %cst_118 : f32 to vector<64x32xf32>
    %321 = arith.subf %319, %320 : vector<64x32xf32>
    %322 = arith.select %316, %314, %321 : vector<64x32xi1>, vector<64x32xf32>
    %c3_119 = arith.constant 3 : index
    %c0_120 = arith.constant 0 : index
    %c0_121 = arith.constant 0 : index
    %323 = vector.load %arg4[%c3_119, %c0_120, %c0_121] : memref<6x288x32xbf16, #tpu.memory_space<vmem>>, vector<1x288x32xbf16>
    %324 = vector.shape_cast %323 : vector<1x288x32xbf16> to vector<288x32xbf16>
    %c3_122 = arith.constant 3 : index
    %c0_123 = arith.constant 0 : index
    %c0_124 = arith.constant 0 : index
    %325 = vector.load %arg5[%c3_122, %c0_123, %c0_124] : memref<6x1x32xf32, #tpu.memory_space<vmem>>, vector<1x1x32xf32>
    %326 = vector.shape_cast %325 : vector<1x1x32xf32> to vector<1x32xf32>
    %cst_125 = arith.constant 0.000000e+00 : f32
    %327 = vector.broadcast %cst_125 : f32 to vector<9x32xf32>
    %328 = tpu.concatenate %327, %322, %327 in 0 : vector<9x32xf32>, vector<64x32xf32>, vector<9x32xf32> -> vector<82x32xf32>
    %329 = vector.extract_strided_slice %328 {offsets = [0, 0], sizes = [64, 32], strides = [1, 1]} : vector<82x32xf32> to vector<64x32xf32>
    %cst_126 = arith.constant 0.000000e+00 : f32
    %330 = vector.broadcast %cst_126 : f32 to vector<64x32xf32>
    %331 = arith.select %39, %329, %330 : vector<64x32xi1>, vector<64x32xf32>
    %332 = arith.truncf %331 : vector<64x32xf32> to vector<64x32xbf16>
    %333 = vector.extract_strided_slice %328 {offsets = [1, 0], sizes = [64, 32], strides = [1, 1]} : vector<82x32xf32> to vector<64x32xf32>
    %334 = arith.truncf %333 : vector<64x32xf32> to vector<64x32xbf16>
    %335 = vector.extract_strided_slice %328 {offsets = [2, 0], sizes = [64, 32], strides = [1, 1]} : vector<82x32xf32> to vector<64x32xf32>
    %cst_127 = arith.constant 0.000000e+00 : f32
    %336 = vector.broadcast %cst_127 : f32 to vector<64x32xf32>
    %337 = arith.select %41, %335, %336 : vector<64x32xi1>, vector<64x32xf32>
    %338 = arith.truncf %337 : vector<64x32xf32> to vector<64x32xbf16>
    %339 = vector.extract_strided_slice %328 {offsets = [8, 0], sizes = [64, 32], strides = [1, 1]} : vector<82x32xf32> to vector<64x32xf32>
    %cst_128 = arith.constant 0.000000e+00 : f32
    %340 = vector.broadcast %cst_128 : f32 to vector<64x32xf32>
    %341 = arith.select %39, %339, %340 : vector<64x32xi1>, vector<64x32xf32>
    %342 = arith.truncf %341 : vector<64x32xf32> to vector<64x32xbf16>
    %343 = vector.extract_strided_slice %328 {offsets = [9, 0], sizes = [64, 32], strides = [1, 1]} : vector<82x32xf32> to vector<64x32xf32>
    %344 = arith.truncf %343 : vector<64x32xf32> to vector<64x32xbf16>
    %345 = vector.extract_strided_slice %328 {offsets = [10, 0], sizes = [64, 32], strides = [1, 1]} : vector<82x32xf32> to vector<64x32xf32>
    %cst_129 = arith.constant 0.000000e+00 : f32
    %346 = vector.broadcast %cst_129 : f32 to vector<64x32xf32>
    %347 = arith.select %41, %345, %346 : vector<64x32xi1>, vector<64x32xf32>
    %348 = arith.truncf %347 : vector<64x32xf32> to vector<64x32xbf16>
    %349 = vector.extract_strided_slice %328 {offsets = [16, 0], sizes = [64, 32], strides = [1, 1]} : vector<82x32xf32> to vector<64x32xf32>
    %cst_130 = arith.constant 0.000000e+00 : f32
    %350 = vector.broadcast %cst_130 : f32 to vector<64x32xf32>
    %351 = arith.select %39, %349, %350 : vector<64x32xi1>, vector<64x32xf32>
    %352 = arith.truncf %351 : vector<64x32xf32> to vector<64x32xbf16>
    %353 = vector.extract_strided_slice %328 {offsets = [17, 0], sizes = [64, 32], strides = [1, 1]} : vector<82x32xf32> to vector<64x32xf32>
    %354 = arith.truncf %353 : vector<64x32xf32> to vector<64x32xbf16>
    %355 = vector.extract_strided_slice %328 {offsets = [18, 0], sizes = [64, 32], strides = [1, 1]} : vector<82x32xf32> to vector<64x32xf32>
    %cst_131 = arith.constant 0.000000e+00 : f32
    %356 = vector.broadcast %cst_131 : f32 to vector<64x32xf32>
    %357 = arith.select %41, %355, %356 : vector<64x32xi1>, vector<64x32xf32>
    %358 = arith.truncf %357 : vector<64x32xf32> to vector<64x32xbf16>
    %359 = tpu.concatenate %332, %334, %338, %342, %344, %348, %352, %354, %358 in 1 : vector<64x32xbf16>, vector<64x32xbf16>, vector<64x32xbf16>, vector<64x32xbf16>, vector<64x32xbf16>, vector<64x32xbf16>, vector<64x32xbf16>, vector<64x32xbf16>, vector<64x32xbf16> -> vector<64x288xbf16>
    %cst_132 = arith.constant dense<0.000000e+00> : vector<64x32xf32>
    %360 = tpu.matmul %359, %324, %cst_132 {dimension_numbers = #tpu.dot_dimension_numbers<[1], [0], [0], [1], [0, 0, 1, 1], [], []>} : vector<64x288xbf16>, vector<288x32xbf16>, vector<64x32xf32> -> vector<64x32xf32>
    %361 = vector.broadcast %326 : vector<1x32xf32> to vector<64x32xf32>
    %362 = arith.addf %360, %361 : vector<64x32xf32>
    %cst_133 = arith.constant 0.000000e+00 : f32
    %363 = vector.broadcast %cst_133 : f32 to vector<64x32xf32>
    %364 = arith.cmpf ogt, %362, %363 : vector<64x32xf32>
    %cst_134 = arith.constant 0.000000e+00 : f32
    %365 = vector.broadcast %cst_134 : f32 to vector<64x32xf32>
    %366 = arith.minimumf %362, %365 : vector<64x32xf32>
    %367 = math.exp %366 : vector<64x32xf32>
    %cst_135 = arith.constant 1.000000e+00 : f32
    %368 = vector.broadcast %cst_135 : f32 to vector<64x32xf32>
    %369 = arith.subf %367, %368 : vector<64x32xf32>
    %370 = arith.select %364, %362, %369 : vector<64x32xi1>, vector<64x32xf32>
    %c0_136 = arith.constant 0 : index
    %c0_137 = arith.constant 0 : index
    %371 = vector.load %arg9[%c0_136, %c0_137] : memref<256x64xbf16, #tpu.memory_space<vmem>>, vector<256x64xbf16>
    %372 = arith.truncf %370 : vector<64x32xf32> to vector<64x32xbf16>
    %cst_138 = arith.constant dense<0.000000e+00> : vector<256x32xf32>
    %373 = tpu.matmul %371, %372, %cst_138 {dimension_numbers = #tpu.dot_dimension_numbers<[1], [0], [0], [1], [0, 0, 1, 1], [], []>} : vector<256x64xbf16>, vector<64x32xbf16>, vector<256x32xf32> -> vector<256x32xf32>
    %c4_139 = arith.constant 4 : index
    %c0_140 = arith.constant 0 : index
    %c0_141 = arith.constant 0 : index
    %374 = vector.load %arg4[%c4_139, %c0_140, %c0_141] : memref<6x288x32xbf16, #tpu.memory_space<vmem>>, vector<1x288x32xbf16>
    %375 = vector.shape_cast %374 : vector<1x288x32xbf16> to vector<288x32xbf16>
    %c4_142 = arith.constant 4 : index
    %c0_143 = arith.constant 0 : index
    %c0_144 = arith.constant 0 : index
    %376 = vector.load %arg5[%c4_142, %c0_143, %c0_144] : memref<6x1x32xf32, #tpu.memory_space<vmem>>, vector<1x1x32xf32>
    %377 = vector.shape_cast %376 : vector<1x1x32xf32> to vector<1x32xf32>
    %cst_145 = arith.constant 0.000000e+00 : f32
    %378 = vector.broadcast %cst_145 : f32 to vector<17x32xf32>
    %379 = tpu.concatenate %378, %373, %378 in 0 : vector<17x32xf32>, vector<256x32xf32>, vector<17x32xf32> -> vector<290x32xf32>
    %380 = vector.extract_strided_slice %379 {offsets = [0, 0], sizes = [256, 32], strides = [1, 1]} : vector<290x32xf32> to vector<256x32xf32>
    %cst_146 = arith.constant 0.000000e+00 : f32
    %381 = vector.broadcast %cst_146 : f32 to vector<256x32xf32>
    %382 = arith.select %60, %380, %381 : vector<256x32xi1>, vector<256x32xf32>
    %383 = arith.truncf %382 : vector<256x32xf32> to vector<256x32xbf16>
    %384 = vector.extract_strided_slice %379 {offsets = [1, 0], sizes = [256, 32], strides = [1, 1]} : vector<290x32xf32> to vector<256x32xf32>
    %385 = arith.truncf %384 : vector<256x32xf32> to vector<256x32xbf16>
    %386 = vector.extract_strided_slice %379 {offsets = [2, 0], sizes = [256, 32], strides = [1, 1]} : vector<290x32xf32> to vector<256x32xf32>
    %cst_147 = arith.constant 0.000000e+00 : f32
    %387 = vector.broadcast %cst_147 : f32 to vector<256x32xf32>
    %388 = arith.select %62, %386, %387 : vector<256x32xi1>, vector<256x32xf32>
    %389 = arith.truncf %388 : vector<256x32xf32> to vector<256x32xbf16>
    %390 = vector.extract_strided_slice %379 {offsets = [16, 0], sizes = [256, 32], strides = [1, 1]} : vector<290x32xf32> to vector<256x32xf32>
    %cst_148 = arith.constant 0.000000e+00 : f32
    %391 = vector.broadcast %cst_148 : f32 to vector<256x32xf32>
    %392 = arith.select %60, %390, %391 : vector<256x32xi1>, vector<256x32xf32>
    %393 = arith.truncf %392 : vector<256x32xf32> to vector<256x32xbf16>
    %394 = vector.extract_strided_slice %379 {offsets = [17, 0], sizes = [256, 32], strides = [1, 1]} : vector<290x32xf32> to vector<256x32xf32>
    %395 = arith.truncf %394 : vector<256x32xf32> to vector<256x32xbf16>
    %396 = vector.extract_strided_slice %379 {offsets = [18, 0], sizes = [256, 32], strides = [1, 1]} : vector<290x32xf32> to vector<256x32xf32>
    %cst_149 = arith.constant 0.000000e+00 : f32
    %397 = vector.broadcast %cst_149 : f32 to vector<256x32xf32>
    %398 = arith.select %62, %396, %397 : vector<256x32xi1>, vector<256x32xf32>
    %399 = arith.truncf %398 : vector<256x32xf32> to vector<256x32xbf16>
    %400 = vector.extract_strided_slice %379 {offsets = [32, 0], sizes = [256, 32], strides = [1, 1]} : vector<290x32xf32> to vector<256x32xf32>
    %cst_150 = arith.constant 0.000000e+00 : f32
    %401 = vector.broadcast %cst_150 : f32 to vector<256x32xf32>
    %402 = arith.select %60, %400, %401 : vector<256x32xi1>, vector<256x32xf32>
    %403 = arith.truncf %402 : vector<256x32xf32> to vector<256x32xbf16>
    %404 = vector.extract_strided_slice %379 {offsets = [33, 0], sizes = [256, 32], strides = [1, 1]} : vector<290x32xf32> to vector<256x32xf32>
    %405 = arith.truncf %404 : vector<256x32xf32> to vector<256x32xbf16>
    %406 = vector.extract_strided_slice %379 {offsets = [34, 0], sizes = [256, 32], strides = [1, 1]} : vector<290x32xf32> to vector<256x32xf32>
    %cst_151 = arith.constant 0.000000e+00 : f32
    %407 = vector.broadcast %cst_151 : f32 to vector<256x32xf32>
    %408 = arith.select %62, %406, %407 : vector<256x32xi1>, vector<256x32xf32>
    %409 = arith.truncf %408 : vector<256x32xf32> to vector<256x32xbf16>
    %410 = tpu.concatenate %383, %385, %389, %393, %395, %399, %403, %405, %409 in 1 : vector<256x32xbf16>, vector<256x32xbf16>, vector<256x32xbf16>, vector<256x32xbf16>, vector<256x32xbf16>, vector<256x32xbf16>, vector<256x32xbf16>, vector<256x32xbf16>, vector<256x32xbf16> -> vector<256x288xbf16>
    %cst_152 = arith.constant dense<0.000000e+00> : vector<256x32xf32>
    %411 = tpu.matmul %410, %375, %cst_152 {dimension_numbers = #tpu.dot_dimension_numbers<[1], [0], [0], [1], [0, 0, 1, 1], [], []>} : vector<256x288xbf16>, vector<288x32xbf16>, vector<256x32xf32> -> vector<256x32xf32>
    %412 = vector.broadcast %377 : vector<1x32xf32> to vector<256x32xf32>
    %413 = arith.addf %411, %412 : vector<256x32xf32>
    %cst_153 = arith.constant 0.000000e+00 : f32
    %414 = vector.broadcast %cst_153 : f32 to vector<256x32xf32>
    %415 = arith.cmpf ogt, %413, %414 : vector<256x32xf32>
    %cst_154 = arith.constant 0.000000e+00 : f32
    %416 = vector.broadcast %cst_154 : f32 to vector<256x32xf32>
    %417 = arith.minimumf %413, %416 : vector<256x32xf32>
    %418 = math.exp %417 : vector<256x32xf32>
    %cst_155 = arith.constant 1.000000e+00 : f32
    %419 = vector.broadcast %cst_155 : f32 to vector<256x32xf32>
    %420 = arith.subf %418, %419 : vector<256x32xf32>
    %421 = arith.select %415, %413, %420 : vector<256x32xi1>, vector<256x32xf32>
    %c5_156 = arith.constant 5 : index
    %c0_157 = arith.constant 0 : index
    %c0_158 = arith.constant 0 : index
    %422 = vector.load %arg4[%c5_156, %c0_157, %c0_158] : memref<6x288x32xbf16, #tpu.memory_space<vmem>>, vector<1x288x32xbf16>
    %423 = vector.shape_cast %422 : vector<1x288x32xbf16> to vector<288x32xbf16>
    %c5_159 = arith.constant 5 : index
    %c0_160 = arith.constant 0 : index
    %c0_161 = arith.constant 0 : index
    %424 = vector.load %arg5[%c5_159, %c0_160, %c0_161] : memref<6x1x32xf32, #tpu.memory_space<vmem>>, vector<1x1x32xf32>
    %425 = vector.shape_cast %424 : vector<1x1x32xf32> to vector<1x32xf32>
    %cst_162 = arith.constant 0.000000e+00 : f32
    %426 = vector.broadcast %cst_162 : f32 to vector<17x32xf32>
    %427 = tpu.concatenate %426, %421, %426 in 0 : vector<17x32xf32>, vector<256x32xf32>, vector<17x32xf32> -> vector<290x32xf32>
    %428 = vector.extract_strided_slice %427 {offsets = [0, 0], sizes = [256, 32], strides = [1, 1]} : vector<290x32xf32> to vector<256x32xf32>
    %cst_163 = arith.constant 0.000000e+00 : f32
    %429 = vector.broadcast %cst_163 : f32 to vector<256x32xf32>
    %430 = arith.select %60, %428, %429 : vector<256x32xi1>, vector<256x32xf32>
    %431 = arith.truncf %430 : vector<256x32xf32> to vector<256x32xbf16>
    %432 = vector.extract_strided_slice %427 {offsets = [1, 0], sizes = [256, 32], strides = [1, 1]} : vector<290x32xf32> to vector<256x32xf32>
    %433 = arith.truncf %432 : vector<256x32xf32> to vector<256x32xbf16>
    %434 = vector.extract_strided_slice %427 {offsets = [2, 0], sizes = [256, 32], strides = [1, 1]} : vector<290x32xf32> to vector<256x32xf32>
    %cst_164 = arith.constant 0.000000e+00 : f32
    %435 = vector.broadcast %cst_164 : f32 to vector<256x32xf32>
    %436 = arith.select %62, %434, %435 : vector<256x32xi1>, vector<256x32xf32>
    %437 = arith.truncf %436 : vector<256x32xf32> to vector<256x32xbf16>
    %438 = vector.extract_strided_slice %427 {offsets = [16, 0], sizes = [256, 32], strides = [1, 1]} : vector<290x32xf32> to vector<256x32xf32>
    %cst_165 = arith.constant 0.000000e+00 : f32
    %439 = vector.broadcast %cst_165 : f32 to vector<256x32xf32>
    %440 = arith.select %60, %438, %439 : vector<256x32xi1>, vector<256x32xf32>
    %441 = arith.truncf %440 : vector<256x32xf32> to vector<256x32xbf16>
    %442 = vector.extract_strided_slice %427 {offsets = [17, 0], sizes = [256, 32], strides = [1, 1]} : vector<290x32xf32> to vector<256x32xf32>
    %443 = arith.truncf %442 : vector<256x32xf32> to vector<256x32xbf16>
    %444 = vector.extract_strided_slice %427 {offsets = [18, 0], sizes = [256, 32], strides = [1, 1]} : vector<290x32xf32> to vector<256x32xf32>
    %cst_166 = arith.constant 0.000000e+00 : f32
    %445 = vector.broadcast %cst_166 : f32 to vector<256x32xf32>
    %446 = arith.select %62, %444, %445 : vector<256x32xi1>, vector<256x32xf32>
    %447 = arith.truncf %446 : vector<256x32xf32> to vector<256x32xbf16>
    %448 = vector.extract_strided_slice %427 {offsets = [32, 0], sizes = [256, 32], strides = [1, 1]} : vector<290x32xf32> to vector<256x32xf32>
    %cst_167 = arith.constant 0.000000e+00 : f32
    %449 = vector.broadcast %cst_167 : f32 to vector<256x32xf32>
    %450 = arith.select %60, %448, %449 : vector<256x32xi1>, vector<256x32xf32>
    %451 = arith.truncf %450 : vector<256x32xf32> to vector<256x32xbf16>
    %452 = vector.extract_strided_slice %427 {offsets = [33, 0], sizes = [256, 32], strides = [1, 1]} : vector<290x32xf32> to vector<256x32xf32>
    %453 = arith.truncf %452 : vector<256x32xf32> to vector<256x32xbf16>
    %454 = vector.extract_strided_slice %427 {offsets = [34, 0], sizes = [256, 32], strides = [1, 1]} : vector<290x32xf32> to vector<256x32xf32>
    %cst_168 = arith.constant 0.000000e+00 : f32
    %455 = vector.broadcast %cst_168 : f32 to vector<256x32xf32>
    %456 = arith.select %62, %454, %455 : vector<256x32xi1>, vector<256x32xf32>
    %457 = arith.truncf %456 : vector<256x32xf32> to vector<256x32xbf16>
    %458 = tpu.concatenate %431, %433, %437, %441, %443, %447, %451, %453, %457 in 1 : vector<256x32xbf16>, vector<256x32xbf16>, vector<256x32xbf16>, vector<256x32xbf16>, vector<256x32xbf16>, vector<256x32xbf16>, vector<256x32xbf16>, vector<256x32xbf16>, vector<256x32xbf16> -> vector<256x288xbf16>
    %cst_169 = arith.constant dense<0.000000e+00> : vector<256x32xf32>
    %459 = tpu.matmul %458, %423, %cst_169 {dimension_numbers = #tpu.dot_dimension_numbers<[1], [0], [0], [1], [0, 0, 1, 1], [], []>} : vector<256x288xbf16>, vector<288x32xbf16>, vector<256x32xf32> -> vector<256x32xf32>
    %460 = vector.broadcast %425 : vector<1x32xf32> to vector<256x32xf32>
    %461 = arith.addf %459, %460 : vector<256x32xf32>
    %cst_170 = arith.constant 0.000000e+00 : f32
    %462 = vector.broadcast %cst_170 : f32 to vector<256x32xf32>
    %463 = arith.cmpf ogt, %461, %462 : vector<256x32xf32>
    %cst_171 = arith.constant 0.000000e+00 : f32
    %464 = vector.broadcast %cst_171 : f32 to vector<256x32xf32>
    %465 = arith.minimumf %461, %464 : vector<256x32xf32>
    %466 = math.exp %465 : vector<256x32xf32>
    %cst_172 = arith.constant 1.000000e+00 : f32
    %467 = vector.broadcast %cst_172 : f32 to vector<256x32xf32>
    %468 = arith.subf %466, %467 : vector<256x32xf32>
    %469 = arith.select %463, %461, %468 : vector<256x32xi1>, vector<256x32xf32>
    %c0_173 = arith.constant 0 : index
    %c0_174 = arith.constant 0 : index
    %470 = vector.load %arg6[%c0_173, %c0_174] : memref<288x128xbf16, #tpu.memory_space<vmem>>, vector<288x128xbf16>
    %c0_175 = arith.constant 0 : index
    %c0_176 = arith.constant 0 : index
    %471 = vector.load %arg7[%c0_175, %c0_176] : memref<1x128xf32, #tpu.memory_space<vmem>>, vector<1x128xf32>
    %cst_177 = arith.constant 0.000000e+00 : f32
    %472 = vector.broadcast %cst_177 : f32 to vector<17x32xf32>
    %473 = tpu.concatenate %472, %469, %472 in 0 : vector<17x32xf32>, vector<256x32xf32>, vector<17x32xf32> -> vector<290x32xf32>
    %474 = vector.extract_strided_slice %473 {offsets = [0, 0], sizes = [256, 32], strides = [1, 1]} : vector<290x32xf32> to vector<256x32xf32>
    %cst_178 = arith.constant 0.000000e+00 : f32
    %475 = vector.broadcast %cst_178 : f32 to vector<256x32xf32>
    %476 = arith.select %60, %474, %475 : vector<256x32xi1>, vector<256x32xf32>
    %477 = arith.truncf %476 : vector<256x32xf32> to vector<256x32xbf16>
    %478 = vector.extract_strided_slice %473 {offsets = [1, 0], sizes = [256, 32], strides = [1, 1]} : vector<290x32xf32> to vector<256x32xf32>
    %479 = arith.truncf %478 : vector<256x32xf32> to vector<256x32xbf16>
    %480 = vector.extract_strided_slice %473 {offsets = [2, 0], sizes = [256, 32], strides = [1, 1]} : vector<290x32xf32> to vector<256x32xf32>
    %cst_179 = arith.constant 0.000000e+00 : f32
    %481 = vector.broadcast %cst_179 : f32 to vector<256x32xf32>
    %482 = arith.select %62, %480, %481 : vector<256x32xi1>, vector<256x32xf32>
    %483 = arith.truncf %482 : vector<256x32xf32> to vector<256x32xbf16>
    %484 = vector.extract_strided_slice %473 {offsets = [16, 0], sizes = [256, 32], strides = [1, 1]} : vector<290x32xf32> to vector<256x32xf32>
    %cst_180 = arith.constant 0.000000e+00 : f32
    %485 = vector.broadcast %cst_180 : f32 to vector<256x32xf32>
    %486 = arith.select %60, %484, %485 : vector<256x32xi1>, vector<256x32xf32>
    %487 = arith.truncf %486 : vector<256x32xf32> to vector<256x32xbf16>
    %488 = vector.extract_strided_slice %473 {offsets = [17, 0], sizes = [256, 32], strides = [1, 1]} : vector<290x32xf32> to vector<256x32xf32>
    %489 = arith.truncf %488 : vector<256x32xf32> to vector<256x32xbf16>
    %490 = vector.extract_strided_slice %473 {offsets = [18, 0], sizes = [256, 32], strides = [1, 1]} : vector<290x32xf32> to vector<256x32xf32>
    %cst_181 = arith.constant 0.000000e+00 : f32
    %491 = vector.broadcast %cst_181 : f32 to vector<256x32xf32>
    %492 = arith.select %62, %490, %491 : vector<256x32xi1>, vector<256x32xf32>
    %493 = arith.truncf %492 : vector<256x32xf32> to vector<256x32xbf16>
    %494 = vector.extract_strided_slice %473 {offsets = [32, 0], sizes = [256, 32], strides = [1, 1]} : vector<290x32xf32> to vector<256x32xf32>
    %cst_182 = arith.constant 0.000000e+00 : f32
    %495 = vector.broadcast %cst_182 : f32 to vector<256x32xf32>
    %496 = arith.select %60, %494, %495 : vector<256x32xi1>, vector<256x32xf32>
    %497 = arith.truncf %496 : vector<256x32xf32> to vector<256x32xbf16>
    %498 = vector.extract_strided_slice %473 {offsets = [33, 0], sizes = [256, 32], strides = [1, 1]} : vector<290x32xf32> to vector<256x32xf32>
    %499 = arith.truncf %498 : vector<256x32xf32> to vector<256x32xbf16>
    %500 = vector.extract_strided_slice %473 {offsets = [34, 0], sizes = [256, 32], strides = [1, 1]} : vector<290x32xf32> to vector<256x32xf32>
    %cst_183 = arith.constant 0.000000e+00 : f32
    %501 = vector.broadcast %cst_183 : f32 to vector<256x32xf32>
    %502 = arith.select %62, %500, %501 : vector<256x32xi1>, vector<256x32xf32>
    %503 = arith.truncf %502 : vector<256x32xf32> to vector<256x32xbf16>
    %504 = tpu.concatenate %477, %479, %483, %487, %489, %493, %497, %499, %503 in 1 : vector<256x32xbf16>, vector<256x32xbf16>, vector<256x32xbf16>, vector<256x32xbf16>, vector<256x32xbf16>, vector<256x32xbf16>, vector<256x32xbf16>, vector<256x32xbf16>, vector<256x32xbf16> -> vector<256x288xbf16>
    %cst_184 = arith.constant dense<0.000000e+00> : vector<256x128xf32>
    %505 = tpu.matmul %504, %470, %cst_184 {dimension_numbers = #tpu.dot_dimension_numbers<[1], [0], [0], [1], [0, 0, 1, 1], [], []>} : vector<256x288xbf16>, vector<288x128xbf16>, vector<256x128xf32> -> vector<256x128xf32>
    %506 = vector.broadcast %471 : vector<1x128xf32> to vector<256x128xf32>
    %507 = arith.addf %505, %506 : vector<256x128xf32>
    %508 = math.tanh %507 : vector<256x128xf32>
    %c0_185 = arith.constant 0 : index
    %c0_186 = arith.constant 0 : index
    %c0_187 = arith.constant 0 : index
    %509 = vector.load %arg10[%c0_185, %c0_186, %c0_187] : memref<1x256x128xf32, #tpu.memory_space<vmem>>, vector<1x256x128xf32>
    %510 = vector.shape_cast %509 : vector<1x256x128xf32> to vector<256x128xf32>
    %511 = vector.shape_cast %508 : vector<256x128xf32> to vector<1x256x128xf32>
    tpu.vector_store %arg10[%c0_185, %c0_186, %c0_187], %511 {strides = array<i32>} : memref<1x256x128xf32, #tpu.memory_space<vmem>>, vector<1x256x128xf32>,
    return
  }
  func.func @transform_0(%arg0: i32) -> (i32, i32) {
    %c0_i32 = arith.constant 0 : i32
    %c0_i32_0 = arith.constant 0 : i32
    %c0_i32_1 = arith.constant 0 : i32
    return %c0_i32, %c0_i32_0 : i32, i32
  }
  func.func @transform_1(%arg0: i32) -> (i32, i32, i32) {
    %c0_i32 = arith.constant 0 : i32
    %c0_i32_0 = arith.constant 0 : i32
    %c0_i32_1 = arith.constant 0 : i32
    %c0_i32_2 = arith.constant 0 : i32
    return %c0_i32, %c0_i32_0, %c0_i32_1 : i32, i32, i32
  }
  func.func @transform_2(%arg0: i32) -> (i32, i32) {
    %c0_i32 = arith.constant 0 : i32
    %c0_i32_0 = arith.constant 0 : i32
    %c0_i32_1 = arith.constant 0 : i32
    return %c0_i32, %c0_i32_0 : i32, i32
  }
  func.func @transform_3(%arg0: i32) -> (i32, i32, i32) {
    %c0_i32 = arith.constant 0 : i32
    %c0_i32_0 = arith.constant 0 : i32
    %c0_i32_1 = arith.constant 0 : i32
    %c0_i32_2 = arith.constant 0 : i32
    return %c0_i32, %c0_i32_0, %c0_i32_1 : i32, i32, i32
  }
  func.func @transform_4(%arg0: i32) -> (i32, i32, i32) {
    %c0_i32 = arith.constant 0 : i32
    %c0_i32_0 = arith.constant 0 : i32
    %c0_i32_1 = arith.constant 0 : i32
    %c0_i32_2 = arith.constant 0 : i32
    return %c0_i32, %c0_i32_0, %c0_i32_1 : i32, i32, i32
  }
  func.func @transform_5(%arg0: i32) -> (i32, i32) {
    %c0_i32 = arith.constant 0 : i32
    %c0_i32_0 = arith.constant 0 : i32
    %c0_i32_1 = arith.constant 0 : i32
    return %c0_i32, %c0_i32_0 : i32, i32
  }
  func.func @transform_6(%arg0: i32) -> (i32, i32) {
    %c0_i32 = arith.constant 0 : i32
    %c0_i32_0 = arith.constant 0 : i32
    %c0_i32_1 = arith.constant 0 : i32
    return %c0_i32, %c0_i32_0 : i32, i32
  }
  func.func @transform_7(%arg0: i32) -> (i32, i32) {
    %c0_i32 = arith.constant 0 : i32
    %c0_i32_0 = arith.constant 0 : i32
    %c0_i32_1 = arith.constant 0 : i32
    return %c0_i32, %c0_i32_0 : i32, i32
  }
  func.func @transform_8(%arg0: i32) -> (i32, i32) {
    %c0_i32 = arith.constant 0 : i32
    %c0_i32_0 = arith.constant 0 : i32
    %c0_i32_1 = arith.constant 0 : i32
    return %c0_i32, %c0_i32_0 : i32, i32
  }
  func.func @transform_9(%arg0: i32) -> (i32, i32, i32) {
    %c0_i32 = arith.constant 0 : i32
    %c0_i32_0 = arith.constant 0 : i32
    %c0_i32_1 = arith.constant 0 : i32
    return %arg0, %c0_i32, %c0_i32_0 : i32, i32, i32
  }
}

</mosaic_0001>

<llo_original>
// kernel: decoder_forward.1
$region0: #{decoder_forward.1}
  #allocation0 [shape = 'u32[]', space=smem, size = 0x4, offset = 0x4, fixed_abs, tag = 'smem constant byte address 0x4 - core index']
  #allocation1 [shape = 'u32[144,128]{1,0:T(1,128)}', space=vmem, size = 0x12000, scoped, tag = 'internal scratch']
  %s0 = inlined_call_operand.vmem [shape: f32[2,16], index: 0, kind: input, shape index: {}]
  %s1 = inlined_call_operand.vmem [shape: f32[16,16,32], index: 1, kind: input, shape index: {}]
  %s2 = inlined_call_operand.vmem [shape: f32[16,32], index: 2, kind: input, shape index: {}]
  %s3 = inlined_call_operand.vmem [shape: bf16[6,288,32], index: 3, kind: input, shape index: {}]
  %s4 = inlined_call_operand.vmem [shape: f32[6,1,32], index: 4, kind: input, shape index: {}]
  %s5 = inlined_call_operand.vmem [shape: bf16[288,128], index: 5, kind: input, shape index: {}]
  %s6 = inlined_call_operand.vmem [shape: f32[1,128], index: 6, kind: input, shape index: {}]
  %s7 = inlined_call_operand.vmem [shape: bf16[64,16], index: 7, kind: input, shape index: {}]
  %s8 = inlined_call_operand.vmem [shape: bf16[256,64], index: 8, kind: input, shape index: {}]
  %s9 = inlined_call_operand.vmem [shape: f32[2,256,128], index: 9, kind: output, shape index: {}]
  %s10 = sld [smem:[#allocation0]]
  $region73: #{decoder_forward.1} parent=0
    _
  %s12 = ssub.s32 1, %s10
  %s13 = scalar_select 0, %s12, %s10
  $region1: #{decoder_forward.1} parent=0
    #allocation2 [shape = 'u8[1024]{0}', space=smem, size = 0x400, scoped, tag = 'input window, operand 0, single buffered']
    #allocation3 [shape = 's32[2]{0}', space=sflag, size = 0x8, scoped, tag = 'scoped memory for decoder_forward.1']
    %14 = vsyncpa [#allocation3], 0
    loop: start=0, step=1, limit=4
    $region2: #{decoder_forward.1} parent=1 // loop_pre_header
      _
    $region3: #{decoder_forward.1} parent=1 // loop_header
      %s16 = sphi 0, %s20
      %p17 = scmp.ge.s32.totalorder %s16, 4
      %s24 = sphi 0, %s24
      %s26 = sphi 0, %s24
      %s27 = sphi 0, %s26
      %s41 = sphi 0, %s27
      %s45 = sphi 0, %s45
      %s47 = sphi 0, %s45
      %s48 = sphi 0, %s47
      %s62 = sphi 0, %s48
      %s66 = sphi 0, %s66
      %s68 = sphi 0, %s66
      %s69 = sphi 0, %s68
      %s83 = sphi 0, %s69
      %s87 = sphi 0, %s87
      %s89 = sphi 0, %s87
      %s90 = sphi 0, %s89
      %s104 = sphi 0, %s90
      %s108 = sphi 0, %s108
      %s110 = sphi 0, %s108
      %s111 = sphi 0, %s110
      %s125 = sphi 0, %s111
      %s129 = sphi 0, %s129
      %s131 = sphi 0, %s129
      %s132 = sphi 0, %s131
      %s146 = sphi 0, %s132
      %s150 = sphi 0, %s150
      %s152 = sphi 0, %s150
      %s153 = sphi 0, %s152
      %s167 = sphi 0, %s153
      %s171 = sphi 0, %s171
      %s173 = sphi 0, %s171
      %s174 = sphi 0, %s173
      %s188 = sphi 0, %s174
      %s192 = sphi 0, %s192
      %s194 = sphi 0, %s192
      %s195 = sphi 0, %s194
      %s209 = sphi 0, %s195
      %s215 = sphi 0, %s217
      %s218 = sphi 0, %s215
      %s219 = sphi 0, %s218
      %s235 = sphi 0, %s219
    $region4: #{decoder_forward.1} parent=1 // loop_header_branch
      %19 = sbr.rel (%p17) target = $region8
    $region5: #{decoder_forward.1} parent=1 // loop_body
      %s21 = ssub.s32 %s16, 1
      %s22 = ssub.s32 %s16, 2
      %s23 = sadd.s32 %s16, 1
      %s25 = sadd.s32 %s24, 1
      %p28 = scmp.eq.s32.totalorder %s16, 1
      %p29 = scmp.ne.s32.totalorder %s24, %s26
      %p30 = scmp.eq.s32.totalorder %s16, 0
      %p31 = por %p29, %p30
      %p32 = scmp.ne.s32.totalorder %s24, %s26
      %p33 = scmp.eq.s32.totalorder %s21, 1
      %p34 = por %p32, %p33
      %p35 = scmp.ne.s32.totalorder %s26, %s27
      %p36 = scmp.eq.s32.totalorder %s21, 0
      %p37 = por %p35, %p36
      %p38 = scmp.ne.s32.totalorder %s26, %s27
      %p39 = scmp.eq.s32.totalorder %s22, 1
      %p40 = por %p38, %p39
      %p42 = scmp.ne.s32.totalorder %s27, %s41
      %p43 = scmp.eq.s32.totalorder %s22, 0
      %p44 = por %p42, %p43
      %s46 = sadd.s32 %s45, 1
      %p49 = scmp.eq.s32.totalorder %s16, 1
      %p50 = scmp.ne.s32.totalorder %s45, %s47
      %p51 = scmp.eq.s32.totalorder %s16, 0
      %p52 = por %p50, %p51
      %p53 = scmp.ne.s32.totalorder %s45, %s47
      %p54 = scmp.eq.s32.totalorder %s21, 1
      %p55 = por %p53, %p54
      %p56 = scmp.ne.s32.totalorder %s47, %s48
      %p57 = scmp.eq.s32.totalorder %s21, 0
      %p58 = por %p56, %p57
      %p59 = scmp.ne.s32.totalorder %s47, %s48
      %p60 = scmp.eq.s32.totalorder %s22, 1
      %p61 = por %p59, %p60
      %p63 = scmp.ne.s32.totalorder %s48, %s62
      %p64 = scmp.eq.s32.totalorder %s22, 0
      %p65 = por %p63, %p64
      %s67 = sadd.s32 %s66, 1
      %p70 = scmp.eq.s32.totalorder %s16, 1
      %p71 = scmp.ne.s32.totalorder %s66, %s68
      %p72 = scmp.eq.s32.totalorder %s16, 0
      %p73 = por %p71, %p72
      %p74 = scmp.ne.s32.totalorder %s66, %s68
      %p75 = scmp.eq.s32.totalorder %s21, 1
      %p76 = por %p74, %p75
      %p77 = scmp.ne.s32.totalorder %s68, %s69
      %p78 = scmp.eq.s32.totalorder %s21, 0
      %p79 = por %p77, %p78
      %p80 = scmp.ne.s32.totalorder %s68, %s69
      %p81 = scmp.eq.s32.totalorder %s22, 1
      %p82 = por %p80, %p81
      %p84 = scmp.ne.s32.totalorder %s69, %s83
      %p85 = scmp.eq.s32.totalorder %s22, 0
      %p86 = por %p84, %p85
      %s88 = sadd.s32 %s87, 1
      %p91 = scmp.eq.s32.totalorder %s16, 1
      %p92 = scmp.ne.s32.totalorder %s87, %s89
      %p93 = scmp.eq.s32.totalorder %s16, 0
      %p94 = por %p92, %p93
      %p95 = scmp.ne.s32.totalorder %s87, %s89
      %p96 = scmp.eq.s32.totalorder %s21, 1
      %p97 = por %p95, %p96
      %p98 = scmp.ne.s32.totalorder %s89, %s90
      %p99 = scmp.eq.s32.totalorder %s21, 0
      %p100 = por %p98, %p99
      %p101 = scmp.ne.s32.totalorder %s89, %s90
      %p102 = scmp.eq.s32.totalorder %s22, 1
      %p103 = por %p101, %p102
      %p105 = scmp.ne.s32.totalorder %s90, %s104
      %p106 = scmp.eq.s32.totalorder %s22, 0
      %p107 = por %p105, %p106
      %s109 = sadd.s32 %s108, 1
      %p112 = scmp.eq.s32.totalorder %s16, 1
      %p113 = scmp.ne.s32.totalorder %s108, %s110
      %p114 = scmp.eq.s32.totalorder %s16, 0
      %p115 = por %p113, %p114
      %p116 = scmp.ne.s32.totalorder %s108, %s110
      %p117 = scmp.eq.s32.totalorder %s21, 1
      %p118 = por %p116, %p117
      %p119 = scmp.ne.s32.totalorder %s110, %s111
      %p120 = scmp.eq.s32.totalorder %s21, 0
      %p121 = por %p119, %p120
      %p122 = scmp.ne.s32.totalorder %s110, %s111
      %p123 = scmp.eq.s32.totalorder %s22, 1
      %p124 = por %p122, %p123
      %p126 = scmp.ne.s32.totalorder %s111, %s125
      %p127 = scmp.eq.s32.totalorder %s22, 0
      %p128 = por %p126, %p127
      %s130 = sadd.s32 %s129, 1
      %p133 = scmp.eq.s32.totalorder %s16, 1
      %p134 = scmp.ne.s32.totalorder %s129, %s131
      %p135 = scmp.eq.s32.totalorder %s16, 0
      %p136 = por %p134, %p135
      %p137 = scmp.ne.s32.totalorder %s129, %s131
      %p138 = scmp.eq.s32.totalorder %s21, 1
      %p139 = por %p137, %p138
      %p140 = scmp.ne.s32.totalorder %s131, %s132
      %p141 = scmp.eq.s32.totalorder %s21, 0
      %p142 = por %p140, %p141
      %p143 = scmp.ne.s32.totalorder %s131, %s132
      %p144 = scmp.eq.s32.totalorder %s22, 1
      %p145 = por %p143, %p144
      %p147 = scmp.ne.s32.totalorder %s132, %s146
      %p148 = scmp.eq.s32.totalorder %s22, 0
      %p149 = por %p147, %p148
      %s151 = sadd.s32 %s150, 1
      %p154 = scmp.eq.s32.totalorder %s16, 1
      %p155 = scmp.ne.s32.totalorder %s150, %s152
      %p156 = scmp.eq.s32.totalorder %s16, 0
      %p157 = por %p155, %p156
      %p158 = scmp.ne.s32.totalorder %s150, %s152
      %p159 = scmp.eq.s32.totalorder %s21, 1
      %p160 = por %p158, %p159
      %p161 = scmp.ne.s32.totalorder %s152, %s153
      %p162 = scmp.eq.s32.totalorder %s21, 0
      %p163 = por %p161, %p162
      %p164 = scmp.ne.s32.totalorder %s152, %s153
      %p165 = scmp.eq.s32.totalorder %s22, 1
      %p166 = por %p164, %p165
      %p168 = scmp.ne.s32.totalorder %s153, %s167
      %p169 = scmp.eq.s32.totalorder %s22, 0
      %p170 = por %p168, %p169
      %s172 = sadd.s32 %s171, 1
      %p175 = scmp.eq.s32.totalorder %s16, 1
      %p176 = scmp.ne.s32.totalorder %s171, %s173
      %p177 = scmp.eq.s32.totalorder %s16, 0
      %p178 = por %p176, %p177
      %p179 = scmp.ne.s32.totalorder %s171, %s173
      %p180 = scmp.eq.s32.totalorder %s21, 1
      %p181 = por %p179, %p180
      %p182 = scmp.ne.s32.totalorder %s173, %s174
      %p183 = scmp.eq.s32.totalorder %s21, 0
      %p184 = por %p182, %p183
      %p185 = scmp.ne.s32.totalorder %s173, %s174
      %p186 = scmp.eq.s32.totalorder %s22, 1
      %p187 = por %p185, %p186
      %p189 = scmp.ne.s32.totalorder %s174, %s188
      %p190 = scmp.eq.s32.totalorder %s22, 0
      %p191 = por %p189, %p190
      %s193 = sadd.s32 %s192, 1
      %p196 = scmp.eq.s32.totalorder %s16, 1
      %p197 = scmp.ne.s32.totalorder %s192, %s194
      %p198 = scmp.eq.s32.totalorder %s16, 0
      %p199 = por %p197, %p198
      %p200 = scmp.ne.s32.totalorder %s192, %s194
      %p201 = scmp.eq.s32.totalorder %s21, 1
      %p202 = por %p200, %p201
      %p203 = scmp.ne.s32.totalorder %s194, %s195
      %p204 = scmp.eq.s32.totalorder %s21, 0
      %p205 = por %p203, %p204
      %p206 = scmp.ne.s32.totalorder %s194, %s195
      %p207 = scmp.eq.s32.totalorder %s22, 1
      %p208 = por %p206, %p207
      %p210 = scmp.ne.s32.totalorder %s195, %s209
      %p211 = scmp.eq.s32.totalorder %s22, 0
      %p212 = por %p210, %p211
      %s213 = ssub.s32 %s16, %s23
      %p214 = scmp.eq.s32.totalorder %s213, 0
      %s216 = sadd.s32 %s215, 1
      %s217 = scalar_select %p214, %s215, %s216
      %p220 = pneg %p214
      %p221 = scmp.eq.s32.totalorder %s16, 1
      %p222 = por %p220, %p221
      %p223 = scmp.ne.s32.totalorder %s215, %s218
      %p224 = scmp.eq.s32.totalorder %s16, 0
      %p225 = por %p223, %p224
      %p226 = scmp.ne.s32.totalorder %s215, %s218
      %p227 = scmp.eq.s32.totalorder %s21, 1
      %p228 = por %p226, %p227
      %p229 = scmp.ne.s32.totalorder %s218, %s219
      %p230 = scmp.eq.s32.totalorder %s21, 0
      %p231 = por %p229, %p230
      %p232 = scmp.ne.s32.totalorder %s218, %s219
      %p233 = scmp.eq.s32.totalorder %s22, 1
      %p234 = por %p232, %p233
      %p236 = scmp.ne.s32.totalorder %s219, %s235
      %p237 = scmp.eq.s32.totalorder %s22, 0
      %p238 = por %p236, %p237
      %p239 = scmp.le.s32.totalorder 1, %s16
      %p240 = scmp.lt.s32.totalorder %s16, 3
      %p241 = pnand %p239, %p240
      %p242 = pneg %p241
      // Predicated region
      $region9: #{decoder_forward.1} parent=5 // pred_check
        _
      $region10: #{decoder_forward.1} parent=5 // pred_check_branch
        %244 = sbr.rel (%p241) target = $region12
      $region11: #{decoder_forward.1} parent=5 // pred_region
        %s245 = ssub.s32 %s16, 1
        // Predicated region
        $region13: #{decoder_forward.1} parent=11 // pred_check
          %p246 = pneg %p37
        $region14: #{decoder_forward.1} parent=11 // pred_check_branch
          %248 = sbr.rel (%p246) target = $region16
        $region15: #{decoder_forward.1} parent=11 // pred_region
          %s250 = ssub.s32 32, 32
          %251 = vsyncadd [#allocation3], %s250
          %s253 = sshll.u32 %s0, 4
          %s254 = int_to_ptr.vmem [resolvable:$true] %s253
          %256 = dma.vmem_to_smem %s254, 32, [#allocation2], [#allocation3]
        $region16: #{decoder_forward.1} parent=11 // pred_fallthru
          _
        // Predicated region
        $region17: #{decoder_forward.1} parent=11 // pred_check
          %p257 = pneg %p58
        $region18: #{decoder_forward.1} parent=11 // pred_check_branch
          %259 = sbr.rel (%p257) target = $region20
        $region19: #{decoder_forward.1} parent=11 // pred_region
          _
        $region20: #{decoder_forward.1} parent=11 // pred_fallthru
          _
        // Predicated region
        $region21: #{decoder_forward.1} parent=11 // pred_check
          %p260 = pneg %p79
        $region22: #{decoder_forward.1} parent=11 // pred_check_branch
          %262 = sbr.rel (%p260) target = $region24
        $region23: #{decoder_forward.1} parent=11 // pred_region
          _
        $region24: #{decoder_forward.1} parent=11 // pred_fallthru
          _
        // Predicated region
        $region25: #{decoder_forward.1} parent=11 // pred_check
          %p263 = pneg %p100
        $region26: #{decoder_forward.1} parent=11 // pred_check_branch
          %265 = sbr.rel (%p263) target = $region28
        $region27: #{decoder_forward.1} parent=11 // pred_region
          _
        $region28: #{decoder_forward.1} parent=11 // pred_fallthru
          _
        // Predicated region
        $region29: #{decoder_forward.1} parent=11 // pred_check
          %p266 = pneg %p121
        $region30: #{decoder_forward.1} parent=11 // pred_check_branch
          %268 = sbr.rel (%p266) target = $region32
        $region31: #{decoder_forward.1} parent=11 // pred_region
          _
        $region32: #{decoder_forward.1} parent=11 // pred_fallthru
          _
        // Predicated region
        $region33: #{decoder_forward.1} parent=11 // pred_check
          %p269 = pneg %p142
        $region34: #{decoder_forward.1} parent=11 // pred_check_branch
          %271 = sbr.rel (%p269) target = $region36
        $region35: #{decoder_forward.1} parent=11 // pred_region
          _
        $region36: #{decoder_forward.1} parent=11 // pred_fallthru
          _
        // Predicated region
        $region37: #{decoder_forward.1} parent=11 // pred_check
          %p272 = pneg %p163
        $region38: #{decoder_forward.1} parent=11 // pred_check_branch
          %274 = sbr.rel (%p272) target = $region40
        $region39: #{decoder_forward.1} parent=11 // pred_region
          _
        $region40: #{decoder_forward.1} parent=11 // pred_fallthru
          _
        // Predicated region
        $region41: #{decoder_forward.1} parent=11 // pred_check
          %p275 = pneg %p184
        $region42: #{decoder_forward.1} parent=11 // pred_check_branch
          %277 = sbr.rel (%p275) target = $region44
        $region43: #{decoder_forward.1} parent=11 // pred_region
          _
        $region44: #{decoder_forward.1} parent=11 // pred_fallthru
          _
        // Predicated region
        $region45: #{decoder_forward.1} parent=11 // pred_check
          %p278 = pneg %p205
        $region46: #{decoder_forward.1} parent=11 // pred_check_branch
          %280 = sbr.rel (%p278) target = $region48
        $region47: #{decoder_forward.1} parent=11 // pred_region
          _
        $region48: #{decoder_forward.1} parent=11 // pred_fallthru
          _
      $region12: #{decoder_forward.1} parent=5 // pred_fallthru
        _
      %p281 = scmp.lt.s32.totalorder %s16, 2
      // Predicated region
      $region49: #{decoder_forward.1} parent=5 // pred_check
        %p282 = pneg %p281
      $region50: #{decoder_forward.1} parent=5 // pred_check_branch
        %284 = sbr.rel (%p282) target = $region52
      $region51: #{decoder_forward.1} parent=5 // pred_region
        _
      $region52: #{decoder_forward.1} parent=5 // pred_fallthru
        _
      %p285 = scmp.le.s32.totalorder 1, %s16
      %p286 = scmp.lt.s32.totalorder %s16, 3
      %p287 = pnand %p285, %p286
      %p288 = pneg %p287
      // Predicated region
      $region53: #{decoder_forward.1} parent=5 // pred_check
        _
      $region54: #{decoder_forward.1} parent=5 // pred_check_branch
        %290 = sbr.rel (%p287) target = $region56
      $region55: #{decoder_forward.1} parent=5 // pred_region
        %s291 = ssub.s32 %s16, 1
        // Predicated region
        $region57: #{decoder_forward.1} parent=55 // pred_check
          %p292 = pneg %p37
        $region58: #{decoder_forward.1} parent=55 // pred_check_branch
          %294 = sbr.rel (%p292) target = $region60
        $region59: #{decoder_forward.1} parent=55 // pred_region
          %295 = dma.done [#allocation3], 32
        $region60: #{decoder_forward.1} parent=55 // pred_fallthru
          _
        %296 = sfence
        %p297 = pneg %p37
        %p298 = pneg %p34
        %p299 = pneg %p58
        %p300 = pneg %p55
        %p301 = pneg %p79
        %p302 = pneg %p76
        %p303 = pneg %p100
        %p304 = pneg %p97
        %p305 = pneg %p121
        %p306 = pneg %p118
        %p307 = pneg %p142
        %p308 = pneg %p139
        %p309 = pneg %p163
        %p310 = pneg %p160
        %p311 = pneg %p184
        %p312 = pneg %p181
        %p313 = pneg %p205
        %p314 = pneg %p202
        %p315 = pneg %p231
        %p316 = pneg %p228
        %p317 = scmp.lt.s32.totalorder %s21, 1
        %s318 = scalar_select %p317, %s21, 1
        %s319 = smul.addr %s318, 32
        %s320 = smul.addr %s319, 8
        %s321 = scalar_lea.vmem %s9, %s320
        %p322 = scmp.lt.s32.totalorder %s21, 1
        %s323 = scalar_select %p322, %s21, 1
        %s324 = smul.addr %s323, 32
        %s325 = smul.addr %s324, 8
        %s326 = scalar_lea.vmem %s9, %s325
        %v328 = vlaneseq
        %v329 = vshrl.u32 %v328, 7
        %v330 = vadd.s32 %v329, 8
        %vm331 = vcmp.lt.s32.totalorder %v329, 0
        %v332 = vsub.s32 0, %v329
        %v333 = vsel %vm331, %v332, %v329
        %v334 = vshrl.u32 %v333, 2
        %v335 = vand.u32 %v333, 3
        %v336 = vsub.s32 0, %v335
        %v337 = vsel %vm331, %v336, %v335
        %vm338 = vcmp.lt.s32.totalorder %v330, 0
        %v339 = vsub.s32 0, %v330
        %v340 = vsel %vm338, %v339, %v330
        %v341 = vshrl.u32 %v340, 2
        %v342 = vand.u32 %v340, 3
        %v343 = vsub.s32 0, %v342
        %v344 = vsel %vm338, %v343, %v342
        %vm345 = vcmp.ne.s32.totalorder %v337, 0
        %vm346 = vcmp.ne.s32.totalorder %v344, 0
        %vm347 = vcmp.lt.s32.totalorder %v337, 0
        %vm348 = vcmp.lt.s32.totalorder %v344, 0
        %vm349 = vmand %vm347, %vm345
        %vm350 = vmand %vm348, %vm346
        %v351 = vadd.s32 %v337, 4
        %v352 = vadd.s32 %v344, 4
        %v353 = vsel %vm349, %v351, %v337
        %v354 = vsel %vm350, %v352, %v344
        %vm355 = vcmp.ge.s32.totalorder %v353, 1
        %vm356 = vcmp.ge.s32.totalorder %v354, 1
        %vm357 = vcmp.le.s32.totalorder %v353, 2
        %vm358 = vcmp.le.s32.totalorder %v354, 2
        %v359 = vadd.s32 %v329, 16
        %v360 = vadd.s32 %v329, 24
        %v361 = vadd.s32 %v329, 32
        %v362 = vadd.s32 %v329, 40
        %v363 = vadd.s32 %v329, 48
        %v364 = vadd.s32 %v329, 56
        %vm365 = vcmp.lt.s32.totalorder %v329, 0
        %v366 = vsub.s32 0, %v329
        %v367 = vsel %vm365, %v366, %v329
        %v368 = vshrl.u32 %v367, 3
        %v369 = vand.u32 %v367, 7
        %v370 = vsub.s32 0, %v369
        %v371 = vsel %vm365, %v370, %v369
        %vm372 = vcmp.lt.s32.totalorder %v330, 0
        %v373 = vsub.s32 0, %v330
        %v374 = vsel %vm372, %v373, %v330
        %v375 = vshrl.u32 %v374, 3
        %v376 = vand.u32 %v374, 7
        %v377 = vsub.s32 0, %v376
        %v378 = vsel %vm372, %v377, %v376
        %vm379 = vcmp.lt.s32.totalorder %v359, 0
        %v380 = vsub.s32 0, %v359
        %v381 = vsel %vm379, %v380, %v359
        %v382 = vshrl.u32 %v381, 3
        %v383 = vand.u32 %v381, 7
        %v384 = vsub.s32 0, %v383
        %v385 = vsel %vm379, %v384, %v383
        %vm386 = vcmp.lt.s32.totalorder %v360, 0
        %v387 = vsub.s32 0, %v360
        %v388 = vsel %vm386, %v387, %v360
        %v389 = vshrl.u32 %v388, 3
        %v390 = vand.u32 %v388, 7
        %v391 = vsub.s32 0, %v390
        %v392 = vsel %vm386, %v391, %v390
        %vm393 = vcmp.lt.s32.totalorder %v361, 0
        %v394 = vsub.s32 0, %v361
        %v395 = vsel %vm393, %v394, %v361
        %v396 = vshrl.u32 %v395, 3
        %v397 = vand.u32 %v395, 7
        %v398 = vsub.s32 0, %v397
        %v399 = vsel %vm393, %v398, %v397
        %vm400 = vcmp.lt.s32.totalorder %v362, 0
        %v401 = vsub.s32 0, %v362
        %v402 = vsel %vm400, %v401, %v362
        %v403 = vshrl.u32 %v402, 3
        %v404 = vand.u32 %v402, 7
        %v405 = vsub.s32 0, %v404
        %v406 = vsel %vm400, %v405, %v404
        %vm407 = vcmp.lt.s32.totalorder %v363, 0
        %v408 = vsub.s32 0, %v363
        %v409 = vsel %vm407, %v408, %v363
        %v410 = vshrl.u32 %v409, 3
        %v411 = vand.u32 %v409, 7
        %v412 = vsub.s32 0, %v411
        %v413 = vsel %vm407, %v412, %v411
        %vm414 = vcmp.lt.s32.totalorder %v364, 0
        %v415 = vsub.s32 0, %v364
        %v416 = vsel %vm414, %v415, %v364
        %v417 = vshrl.u32 %v416, 3
        %v418 = vand.u32 %v416, 7
        %v419 = vsub.s32 0, %v418
        %v420 = vsel %vm414, %v419, %v418
        %vm421 = vcmp.ne.s32.totalorder %v371, 0
        %vm422 = vcmp.ne.s32.totalorder %v378, 0
        %vm423 = vcmp.ne.s32.totalorder %v385, 0
        %vm424 = vcmp.ne.s32.totalorder %v392, 0
        %vm425 = vcmp.ne.s32.totalorder %v399, 0
        %vm426 = vcmp.ne.s32.totalorder %v406, 0
        %vm427 = vcmp.ne.s32.totalorder %v413, 0
        %vm428 = vcmp.ne.s32.totalorder %v420, 0
        %vm429 = vcmp.lt.s32.totalorder %v371, 0
        %vm430 = vcmp.lt.s32.totalorder %v378, 0
        %vm431 = vcmp.lt.s32.totalorder %v385, 0
        %vm432 = vcmp.lt.s32.totalorder %v392, 0
        %vm433 = vcmp.lt.s32.totalorder %v399, 0
        %vm434 = vcmp.lt.s32.totalorder %v406, 0
        %vm435 = vcmp.lt.s32.totalorder %v413, 0
        %vm436 = vcmp.lt.s32.totalorder %v420, 0
        %vm437 = vmand %vm429, %vm421
        %vm438 = vmand %vm430, %vm422
        %vm439 = vmand %vm431, %vm423
        %vm440 = vmand %vm432, %vm424
        %vm441 = vmand %vm433, %vm425
        %vm442 = vmand %vm434, %vm426
        %vm443 = vmand %vm435, %vm427
        %vm444 = vmand %vm436, %vm428
        %v445 = vadd.s32 %v371, 8
        %v446 = vadd.s32 %v378, 8
        %v447 = vadd.s32 %v385, 8
        %v448 = vadd.s32 %v392, 8
        %v449 = vadd.s32 %v399, 8
        %v450 = vadd.s32 %v406, 8
        %v451 = vadd.s32 %v413, 8
        %v452 = vadd.s32 %v420, 8
        %v453 = vsel %vm437, %v445, %v371
        %v454 = vsel %vm438, %v446, %v378
        %v455 = vsel %vm439, %v447, %v385
        %v456 = vsel %vm440, %v448, %v392
        %v457 = vsel %vm441, %v449, %v399
        %v458 = vsel %vm442, %v450, %v406
        %v459 = vsel %vm443, %v451, %v413
        %v460 = vsel %vm444, %v452, %v420
        %vm461 = vcmp.ge.s32.totalorder %v453, 1
        %vm462 = vcmp.ge.s32.totalorder %v454, 1
        %vm463 = vcmp.ge.s32.totalorder %v455, 1
        %vm464 = vcmp.ge.s32.totalorder %v456, 1
        %vm465 = vcmp.ge.s32.totalorder %v457, 1
        %vm466 = vcmp.ge.s32.totalorder %v458, 1
        %vm467 = vcmp.ge.s32.totalorder %v459, 1
        %vm468 = vcmp.ge.s32.totalorder %v460, 1
        %vm469 = vcmp.le.s32.totalorder %v453, 6
        %vm470 = vcmp.le.s32.totalorder %v454, 6
        %vm471 = vcmp.le.s32.totalorder %v455, 6
        %vm472 = vcmp.le.s32.totalorder %v456, 6
        %vm473 = vcmp.le.s32.totalorder %v457, 6
        %vm474 = vcmp.le.s32.totalorder %v458, 6
        %vm475 = vcmp.le.s32.totalorder %v459, 6
        %vm476 = vcmp.le.s32.totalorder %v460, 6
        %v477 = vadd.s32 %v329, 64
        %v478 = vadd.s32 %v329, 72
        %v479 = vadd.s32 %v329, 80
        %v480 = vadd.s32 %v329, 88
        %v481 = vadd.s32 %v329, 96
        %v482 = vadd.s32 %v329, 104
        %v483 = vadd.s32 %v329, 112
        %v484 = vadd.s32 %v329, 120
        %v485 = vadd.s32 %v329, 128
        %v486 = vadd.s32 %v329, 136
        %v487 = vadd.s32 %v329, 144
        %v488 = vadd.s32 %v329, 152
        %v489 = vadd.s32 %v329, 160
        %v490 = vadd.s32 %v329, 168
        %v491 = vadd.s32 %v329, 176
        %v492 = vadd.s32 %v329, 184
        %v493 = vadd.s32 %v329, 192
        %v494 = vadd.s32 %v329, 200
        %v495 = vadd.s32 %v329, 208
        %v496 = vadd.s32 %v329, 216
        %v497 = vadd.s32 %v329, 224
        %v498 = vadd.s32 %v329, 232
        %v499 = vadd.s32 %v329, 240
        %v500 = vadd.s32 %v329, 248
        %vm501 = vcmp.lt.s32.totalorder %v329, 0
        %v502 = vsub.s32 0, %v329
        %v503 = vsel %vm501, %v502, %v329
        %v504 = vshrl.u32 %v503, 4
        %v505 = vand.u32 %v503, 15
        %v506 = vsub.s32 0, %v505
        %v507 = vsel %vm501, %v506, %v505
        %vm508 = vcmp.lt.s32.totalorder %v330, 0
        %v509 = vsub.s32 0, %v330
        %v510 = vsel %vm508, %v509, %v330
        %v511 = vshrl.u32 %v510, 4
        %v512 = vand.u32 %v510, 15
        %v513 = vsub.s32 0, %v512
        %v514 = vsel %vm508, %v513, %v512
        %vm515 = vcmp.lt.s32.totalorder %v359, 0
        %v516 = vsub.s32 0, %v359
        %v517 = vsel %vm515, %v516, %v359
        %v518 = vshrl.u32 %v517, 4
        %v519 = vand.u32 %v517, 15
        %v520 = vsub.s32 0, %v519
        %v521 = vsel %vm515, %v520, %v519
        %vm522 = vcmp.lt.s32.totalorder %v360, 0
        %v523 = vsub.s32 0, %v360
        %v524 = vsel %vm522, %v523, %v360
        %v525 = vshrl.u32 %v524, 4
        %v526 = vand.u32 %v524, 15
        %v527 = vsub.s32 0, %v526
        %v528 = vsel %vm522, %v527, %v526
        %vm529 = vcmp.lt.s32.totalorder %v361, 0
        %v530 = vsub.s32 0, %v361
        %v531 = vsel %vm529, %v530, %v361
        %v532 = vshrl.u32 %v531, 4
        %v533 = vand.u32 %v531, 15
        %v534 = vsub.s32 0, %v533
        %v535 = vsel %vm529, %v534, %v533
        %vm536 = vcmp.lt.s32.totalorder %v362, 0
        %v537 = vsub.s32 0, %v362
        %v538 = vsel %vm536, %v537, %v362
        %v539 = vshrl.u32 %v538, 4
        %v540 = vand.u32 %v538, 15
        %v541 = vsub.s32 0, %v540
        %v542 = vsel %vm536, %v541, %v540
        %vm543 = vcmp.lt.s32.totalorder %v363, 0
        %v544 = vsub.s32 0, %v363
        %v545 = vsel %vm543, %v544, %v363
        %v546 = vshrl.u32 %v545, 4
        %v547 = vand.u32 %v545, 15
        %v548 = vsub.s32 0, %v547
        %v549 = vsel %vm543, %v548, %v547
        %vm550 = vcmp.lt.s32.totalorder %v364, 0
        %v551 = vsub.s32 0, %v364
        %v552 = vsel %vm550, %v551, %v364
        %v553 = vshrl.u32 %v552, 4
        %v554 = vand.u32 %v552, 15
        %v555 = vsub.s32 0, %v554
        %v556 = vsel %vm550, %v555, %v554
        %vm557 = vcmp.lt.s32.totalorder %v477, 0
        %v558 = vsub.s32 0, %v477
        %v559 = vsel %vm557, %v558, %v477
        %v560 = vshrl.u32 %v559, 4
        %v561 = vand.u32 %v559, 15
        %v562 = vsub.s32 0, %v561
        %v563 = vsel %vm557, %v562, %v561
        %vm564 = vcmp.lt.s32.totalorder %v478, 0
        %v565 = vsub.s32 0, %v478
        %v566 = vsel %vm564, %v565, %v478
        %v567 = vshrl.u32 %v566, 4
        %v568 = vand.u32 %v566, 15
        %v569 = vsub.s32 0, %v568
        %v570 = vsel %vm564, %v569, %v568
        %vm571 = vcmp.lt.s32.totalorder %v479, 0
        %v572 = vsub.s32 0, %v479
        %v573 = vsel %vm571, %v572, %v479
        %v574 = vshrl.u32 %v573, 4
        %v575 = vand.u32 %v573, 15
        %v576 = vsub.s32 0, %v575
        %v577 = vsel %vm571, %v576, %v575
        %vm578 = vcmp.lt.s32.totalorder %v480, 0
        %v579 = vsub.s32 0, %v480
        %v580 = vsel %vm578, %v579, %v480
        %v581 = vshrl.u32 %v580, 4
        %v582 = vand.u32 %v580, 15
        %v583 = vsub.s32 0, %v582
        %v584 = vsel %vm578, %v583, %v582
        %vm585 = vcmp.lt.s32.totalorder %v481, 0
        %v586 = vsub.s32 0, %v481
        %v587 = vsel %vm585, %v586, %v481
        %v588 = vshrl.u32 %v587, 4
        %v589 = vand.u32 %v587, 15
        %v590 = vsub.s32 0, %v589
        %v591 = vsel %vm585, %v590, %v589
        %vm592 = vcmp.lt.s32.totalorder %v482, 0
        %v593 = vsub.s32 0, %v482
        %v594 = vsel %vm592, %v593, %v482
        %v595 = vshrl.u32 %v594, 4
        %v596 = vand.u32 %v594, 15
        %v597 = vsub.s32 0, %v596
        %v598 = vsel %vm592, %v597, %v596
        %vm599 = vcmp.lt.s32.totalorder %v483, 0
        %v600 = vsub.s32 0, %v483
        %v601 = vsel %vm599, %v600, %v483
        %v602 = vshrl.u32 %v601, 4
        %v603 = vand.u32 %v601, 15
        %v604 = vsub.s32 0, %v603
        %v605 = vsel %vm599, %v604, %v603
        %vm606 = vcmp.lt.s32.totalorder %v484, 0
        %v607 = vsub.s32 0, %v484
        %v608 = vsel %vm606, %v607, %v484
        %v609 = vshrl.u32 %v608, 4
        %v610 = vand.u32 %v608, 15
        %v611 = vsub.s32 0, %v610
        %v612 = vsel %vm606, %v611, %v610
        %vm613 = vcmp.lt.s32.totalorder %v485, 0
        %v614 = vsub.s32 0, %v485
        %v615 = vsel %vm613, %v614, %v485
        %v616 = vshrl.u32 %v615, 4
        %v617 = vand.u32 %v615, 15
        %v618 = vsub.s32 0, %v617
        %v619 = vsel %vm613, %v618, %v617
        %vm620 = vcmp.lt.s32.totalorder %v486, 0
        %v621 = vsub.s32 0, %v486
        %v622 = vsel %vm620, %v621, %v486
        %v623 = vshrl.u32 %v622, 4
        %v624 = vand.u32 %v622, 15
        %v625 = vsub.s32 0, %v624
        %v626 = vsel %vm620, %v625, %v624
        %vm627 = vcmp.lt.s32.totalorder %v487, 0
        %v628 = vsub.s32 0, %v487
        %v629 = vsel %vm627, %v628, %v487
        %v630 = vshrl.u32 %v629, 4
        %v631 = vand.u32 %v629, 15
        %v632 = vsub.s32 0, %v631
        %v633 = vsel %vm627, %v632, %v631
        %vm634 = vcmp.lt.s32.totalorder %v488, 0
        %v635 = vsub.s32 0, %v488
        %v636 = vsel %vm634, %v635, %v488
        %v637 = vshrl.u32 %v636, 4
        %v638 = vand.u32 %v636, 15
        %v639 = vsub.s32 0, %v638
        %v640 = vsel %vm634, %v639, %v638
        %vm641 = vcmp.lt.s32.totalorder %v489, 0
        %v642 = vsub.s32 0, %v489
        %v643 = vsel %vm641, %v642, %v489
        %v644 = vshrl.u32 %v643, 4
        %v645 = vand.u32 %v643, 15
        %v646 = vsub.s32 0, %v645
        %v647 = vsel %vm641, %v646, %v645
        %vm648 = vcmp.lt.s32.totalorder %v490, 0
        %v649 = vsub.s32 0, %v490
        %v650 = vsel %vm648, %v649, %v490
        %v651 = vshrl.u32 %v650, 4
        %v652 = vand.u32 %v650, 15
        %v653 = vsub.s32 0, %v652
        %v654 = vsel %vm648, %v653, %v652
        %vm655 = vcmp.lt.s32.totalorder %v491, 0
        %v656 = vsub.s32 0, %v491
        %v657 = vsel %vm655, %v656, %v491
        %v658 = vshrl.u32 %v657, 4
        %v659 = vand.u32 %v657, 15
        %v660 = vsub.s32 0, %v659
        %v661 = vsel %vm655, %v660, %v659
        %vm662 = vcmp.lt.s32.totalorder %v492, 0
        %v663 = vsub.s32 0, %v492
        %v664 = vsel %vm662, %v663, %v492
        %v665 = vshrl.u32 %v664, 4
        %v666 = vand.u32 %v664, 15
        %v667 = vsub.s32 0, %v666
        %v668 = vsel %vm662, %v667, %v666
        %vm669 = vcmp.lt.s32.totalorder %v493, 0
        %v670 = vsub.s32 0, %v493
        %v671 = vsel %vm669, %v670, %v493
        %v672 = vshrl.u32 %v671, 4
        %v673 = vand.u32 %v671, 15
        %v674 = vsub.s32 0, %v673
        %v675 = vsel %vm669, %v674, %v673
        %vm676 = vcmp.lt.s32.totalorder %v494, 0
        %v677 = vsub.s32 0, %v494
        %v678 = vsel %vm676, %v677, %v494
        %v679 = vshrl.u32 %v678, 4
        %v680 = vand.u32 %v678, 15
        %v681 = vsub.s32 0, %v680
        %v682 = vsel %vm676, %v681, %v680
        %vm683 = vcmp.lt.s32.totalorder %v495, 0
        %v684 = vsub.s32 0, %v495
        %v685 = vsel %vm683, %v684, %v495
        %v686 = vshrl.u32 %v685, 4
        %v687 = vand.u32 %v685, 15
        %v688 = vsub.s32 0, %v687
        %v689 = vsel %vm683, %v688, %v687
        %vm690 = vcmp.lt.s32.totalorder %v496, 0
        %v691 = vsub.s32 0, %v496
        %v692 = vsel %vm690, %v691, %v496
        %v693 = vshrl.u32 %v692, 4
        %v694 = vand.u32 %v692, 15
        %v695 = vsub.s32 0, %v694
        %v696 = vsel %vm690, %v695, %v694
        %vm697 = vcmp.lt.s32.totalorder %v497, 0
        %v698 = vsub.s32 0, %v497
        %v699 = vsel %vm697, %v698, %v497
        %v700 = vshrl.u32 %v699, 4
        %v701 = vand.u32 %v699, 15
        %v702 = vsub.s32 0, %v701
        %v703 = vsel %vm697, %v702, %v701
        %vm704 = vcmp.lt.s32.totalorder %v498, 0
        %v705 = vsub.s32 0, %v498
        %v706 = vsel %vm704, %v705, %v498
        %v707 = vshrl.u32 %v706, 4
        %v708 = vand.u32 %v706, 15
        %v709 = vsub.s32 0, %v708
        %v710 = vsel %vm704, %v709, %v708
        %vm711 = vcmp.lt.s32.totalorder %v499, 0
        %v712 = vsub.s32 0, %v499
        %v713 = vsel %vm711, %v712, %v499
        %v714 = vshrl.u32 %v713, 4
        %v715 = vand.u32 %v713, 15
        %v716 = vsub.s32 0, %v715
        %v717 = vsel %vm711, %v716, %v715
        %vm718 = vcmp.lt.s32.totalorder %v500, 0
        %v719 = vsub.s32 0, %v500
        %v720 = vsel %vm718, %v719, %v500
        %v721 = vshrl.u32 %v720, 4
        %v722 = vand.u32 %v720, 15
        %v723 = vsub.s32 0, %v722
        %v724 = vsel %vm718, %v723, %v722
        %vm725 = vcmp.ne.s32.totalorder %v507, 0
        %vm726 = vcmp.ne.s32.totalorder %v514, 0
        %vm727 = vcmp.ne.s32.totalorder %v521, 0
        %vm728 = vcmp.ne.s32.totalorder %v528, 0
        %vm729 = vcmp.ne.s32.totalorder %v535, 0
        %vm730 = vcmp.ne.s32.totalorder %v542, 0
        %vm731 = vcmp.ne.s32.totalorder %v549, 0
        %vm732 = vcmp.ne.s32.totalorder %v556, 0
        %vm733 = vcmp.ne.s32.totalorder %v563, 0
        %vm734 = vcmp.ne.s32.totalorder %v570, 0
        %vm735 = vcmp.ne.s32.totalorder %v577, 0
        %vm736 = vcmp.ne.s32.totalorder %v584, 0
        %vm737 = vcmp.ne.s32.totalorder %v591, 0
        %vm738 = vcmp.ne.s32.totalorder %v598, 0
        %vm739 = vcmp.ne.s32.totalorder %v605, 0
        %vm740 = vcmp.ne.s32.totalorder %v612, 0
        %vm741 = vcmp.ne.s32.totalorder %v619, 0
        %vm742 = vcmp.ne.s32.totalorder %v626, 0
        %vm743 = vcmp.ne.s32.totalorder %v633, 0
        %vm744 = vcmp.ne.s32.totalorder %v640, 0
        %vm745 = vcmp.ne.s32.totalorder %v647, 0
        %vm746 = vcmp.ne.s32.totalorder %v654, 0
        %vm747 = vcmp.ne.s32.totalorder %v661, 0
        %vm748 = vcmp.ne.s32.totalorder %v668, 0
        %vm749 = vcmp.ne.s32.totalorder %v675, 0
        %vm750 = vcmp.ne.s32.totalorder %v682, 0
        %vm751 = vcmp.ne.s32.totalorder %v689, 0
        %vm752 = vcmp.ne.s32.totalorder %v696, 0
        %vm753 = vcmp.ne.s32.totalorder %v703, 0
        %vm754 = vcmp.ne.s32.totalorder %v710, 0
        %vm755 = vcmp.ne.s32.totalorder %v717, 0
        %vm756 = vcmp.ne.s32.totalorder %v724, 0
        %vm757 = vcmp.lt.s32.totalorder %v507, 0
        %vm758 = vcmp.lt.s32.totalorder %v514, 0
        %vm759 = vcmp.lt.s32.totalorder %v521, 0
        %vm760 = vcmp.lt.s32.totalorder %v528, 0
        %vm761 = vcmp.lt.s32.totalorder %v535, 0
        %vm762 = vcmp.lt.s32.totalorder %v542, 0
        %vm763 = vcmp.lt.s32.totalorder %v549, 0
        %vm764 = vcmp.lt.s32.totalorder %v556, 0
        %vm765 = vcmp.lt.s32.totalorder %v563, 0
        %vm766 = vcmp.lt.s32.totalorder %v570, 0
        %vm767 = vcmp.lt.s32.totalorder %v577, 0
        %vm768 = vcmp.lt.s32.totalorder %v584, 0
        %vm769 = vcmp.lt.s32.totalorder %v591, 0
        %vm770 = vcmp.lt.s32.totalorder %v598, 0
        %vm771 = vcmp.lt.s32.totalorder %v605, 0
        %vm772 = vcmp.lt.s32.totalorder %v612, 0
        %vm773 = vcmp.lt.s32.totalorder %v619, 0
        %vm774 = vcmp.lt.s32.totalorder %v626, 0
        %vm775 = vcmp.lt.s32.totalorder %v633, 0
        %vm776 = vcmp.lt.s32.totalorder %v640, 0
        %vm777 = vcmp.lt.s32.totalorder %v647, 0
        %vm778 = vcmp.lt.s32.totalorder %v654, 0
        %vm779 = vcmp.lt.s32.totalorder %v661, 0
        %vm780 = vcmp.lt.s32.totalorder %v668, 0
        %vm781 = vcmp.lt.s32.totalorder %v675, 0
        %vm782 = vcmp.lt.s32.totalorder %v682, 0
        %vm783 = vcmp.lt.s32.totalorder %v689, 0
        %vm784 = vcmp.lt.s32.totalorder %v696, 0
        %vm785 = vcmp.lt.s32.totalorder %v703, 0
        %vm786 = vcmp.lt.s32.totalorder %v710, 0
        %vm787 = vcmp.lt.s32.totalorder %v717, 0
        %vm788 = vcmp.lt.s32.totalorder %v724, 0
        %vm789 = vmand %vm757, %vm725
        %vm790 = vmand %vm758, %vm726
        %vm791 = vmand %vm759, %vm727
        %vm792 = vmand %vm760, %vm728
        %vm793 = vmand %vm761, %vm729
        %vm794 = vmand %vm762, %vm730
        %vm795 = vmand %vm763, %vm731
        %vm796 = vmand %vm764, %vm732
        %vm797 = vmand %vm765, %vm733
        %vm798 = vmand %vm766, %vm734
        %vm799 = vmand %vm767, %vm735
        %vm800 = vmand %vm768, %vm736
        %vm801 = vmand %vm769, %vm737
        %vm802 = vmand %vm770, %vm738
        %vm803 = vmand %vm771, %vm739
        %vm804 = vmand %vm772, %vm740
        %vm805 = vmand %vm773, %vm741
        %vm806 = vmand %vm774, %vm742
        %vm807 = vmand %vm775, %vm743
        %vm808 = vmand %vm776, %vm744
        %vm809 = vmand %vm777, %vm745
        %vm810 = vmand %vm778, %vm746
        %vm811 = vmand %vm779, %vm747
        %vm812 = vmand %vm780, %vm748
        %vm813 = vmand %vm781, %vm749
        %vm814 = vmand %vm782, %vm750
        %vm815 = vmand %vm783, %vm751
        %vm816 = vmand %vm784, %vm752
        %vm817 = vmand %vm785, %vm753
        %vm818 = vmand %vm786, %vm754
        %vm819 = vmand %vm787, %vm755
        %vm820 = vmand %vm788, %vm756
        %v821 = vadd.s32 %v507, 16
        %v822 = vadd.s32 %v514, 16
        %v823 = vadd.s32 %v521, 16
        %v824 = vadd.s32 %v528, 16
        %v825 = vadd.s32 %v535, 16
        %v826 = vadd.s32 %v542, 16
        %v827 = vadd.s32 %v549, 16
        %v828 = vadd.s32 %v556, 16
        %v829 = vadd.s32 %v563, 16
        %v830 = vadd.s32 %v570, 16
        %v831 = vadd.s32 %v577, 16
        %v832 = vadd.s32 %v584, 16
        %v833 = vadd.s32 %v591, 16
        %v834 = vadd.s32 %v598, 16
        %v835 = vadd.s32 %v605, 16
        %v836 = vadd.s32 %v612, 16
        %v837 = vadd.s32 %v619, 16
        %v838 = vadd.s32 %v626, 16
        %v839 = vadd.s32 %v633, 16
        %v840 = vadd.s32 %v640, 16
        %v841 = vadd.s32 %v647, 16
        %v842 = vadd.s32 %v654, 16
        %v843 = vadd.s32 %v661, 16
        %v844 = vadd.s32 %v668, 16
        %v845 = vadd.s32 %v675, 16
        %v846 = vadd.s32 %v682, 16
        %v847 = vadd.s32 %v689, 16
        %v848 = vadd.s32 %v696, 16
        %v849 = vadd.s32 %v703, 16
        %v850 = vadd.s32 %v710, 16
        %v851 = vadd.s32 %v717, 16
        %v852 = vadd.s32 %v724, 16
        %v853 = vsel %vm789, %v821, %v507
        %v854 = vsel %vm790, %v822, %v514
        %v855 = vsel %vm791, %v823, %v521
        %v856 = vsel %vm792, %v824, %v528
        %v857 = vsel %vm793, %v825, %v535
        %v858 = vsel %vm794, %v826, %v542
        %v859 = vsel %vm795, %v827, %v549
        %v860 = vsel %vm796, %v828, %v556
        %v861 = vsel %vm797, %v829, %v563
        %v862 = vsel %vm798, %v830, %v570
        %v863 = vsel %vm799, %v831, %v577
        %v864 = vsel %vm800, %v832, %v584
        %v865 = vsel %vm801, %v833, %v591
        %v866 = vsel %vm802, %v834, %v598
        %v867 = vsel %vm803, %v835, %v605
        %v868 = vsel %vm804, %v836, %v612
        %v869 = vsel %vm805, %v837, %v619
        %v870 = vsel %vm806, %v838, %v626
        %v871 = vsel %vm807, %v839, %v633
        %v872 = vsel %vm808, %v840, %v640
        %v873 = vsel %vm809, %v841, %v647
        %v874 = vsel %vm810, %v842, %v654
        %v875 = vsel %vm811, %v843, %v661
        %v876 = vsel %vm812, %v844, %v668
        %v877 = vsel %vm813, %v845, %v675
        %v878 = vsel %vm814, %v846, %v682
        %v879 = vsel %vm815, %v847, %v689
        %v880 = vsel %vm816, %v848, %v696
        %v881 = vsel %vm817, %v849, %v703
        %v882 = vsel %vm818, %v850, %v710
        %v883 = vsel %vm819, %v851, %v717
        %v884 = vsel %vm820, %v852, %v724
        %vm885 = vcmp.ge.s32.totalorder %v853, 1
        %vm886 = vcmp.ge.s32.totalorder %v854, 1
        %vm887 = vcmp.ge.s32.totalorder %v855, 1
        %vm888 = vcmp.ge.s32.totalorder %v856, 1
        %vm889 = vcmp.ge.s32.totalorder %v857, 1
        %vm890 = vcmp.ge.s32.totalorder %v858, 1
        %vm891 = vcmp.ge.s32.totalorder %v859, 1
        %vm892 = vcmp.ge.s32.totalorder %v860, 1
        %vm893 = vcmp.ge.s32.totalorder %v861, 1
        %vm894 = vcmp.ge.s32.totalorder %v862, 1
        %vm895 = vcmp.ge.s32.totalorder %v863, 1
        %vm896 = vcmp.ge.s32.totalorder %v864, 1
        %vm897 = vcmp.ge.s32.totalorder %v865, 1
        %vm898 = vcmp.ge.s32.totalorder %v866, 1
        %vm899 = vcmp.ge.s32.totalorder %v867, 1
        %vm900 = vcmp.ge.s32.totalorder %v868, 1
        %vm901 = vcmp.ge.s32.totalorder %v869, 1
        %vm902 = vcmp.ge.s32.totalorder %v870, 1
        %vm903 = vcmp.ge.s32.totalorder %v871, 1
        %vm904 = vcmp.ge.s32.totalorder %v872, 1
        %vm905 = vcmp.ge.s32.totalorder %v873, 1
        %vm906 = vcmp.ge.s32.totalorder %v874, 1
        %vm907 = vcmp.ge.s32.totalorder %v875, 1
        %vm908 = vcmp.ge.s32.totalorder %v876, 1
        %vm909 = vcmp.ge.s32.totalorder %v877, 1
        %vm910 = vcmp.ge.s32.totalorder %v878, 1
        %vm911 = vcmp.ge.s32.totalorder %v879, 1
        %vm912 = vcmp.ge.s32.totalorder %v880, 1
        %vm913 = vcmp.ge.s32.totalorder %v881, 1
        %vm914 = vcmp.ge.s32.totalorder %v882, 1
        %vm915 = vcmp.ge.s32.totalorder %v883, 1
        %vm916 = vcmp.ge.s32.totalorder %v884, 1
        %vm917 = vcmp.le.s32.totalorder %v853, 14
        %vm918 = vcmp.le.s32.totalorder %v854, 14
        %vm919 = vcmp.le.s32.totalorder %v855, 14
        %vm920 = vcmp.le.s32.totalorder %v856, 14
        %vm921 = vcmp.le.s32.totalorder %v857, 14
        %vm922 = vcmp.le.s32.totalorder %v858, 14
        %vm923 = vcmp.le.s32.totalorder %v859, 14
        %vm924 = vcmp.le.s32.totalorder %v860, 14
        %vm925 = vcmp.le.s32.totalorder %v861, 14
        %vm926 = vcmp.le.s32.totalorder %v862, 14
        %vm927 = vcmp.le.s32.totalorder %v863, 14
        %vm928 = vcmp.le.s32.totalorder %v864, 14
        %vm929 = vcmp.le.s32.totalorder %v865, 14
        %vm930 = vcmp.le.s32.totalorder %v866, 14
        %vm931 = vcmp.le.s32.totalorder %v867, 14
        %vm932 = vcmp.le.s32.totalorder %v868, 14
        %vm933 = vcmp.le.s32.totalorder %v869, 14
        %vm934 = vcmp.le.s32.totalorder %v870, 14
        %vm935 = vcmp.le.s32.totalorder %v871, 14
        %vm936 = vcmp.le.s32.totalorder %v872, 14
        %vm937 = vcmp.le.s32.totalorder %v873, 14
        %vm938 = vcmp.le.s32.totalorder %v874, 14
        %vm939 = vcmp.le.s32.totalorder %v875, 14
        %vm940 = vcmp.le.s32.totalorder %v876, 14
        %vm941 = vcmp.le.s32.totalorder %v877, 14
        %vm942 = vcmp.le.s32.totalorder %v878, 14
        %vm943 = vcmp.le.s32.totalorder %v879, 14
        %vm944 = vcmp.le.s32.totalorder %v880, 14
        %vm945 = vcmp.le.s32.totalorder %v881, 14
        %vm946 = vcmp.le.s32.totalorder %v882, 14
        %vm947 = vcmp.le.s32.totalorder %v883, 14
        %vm948 = vcmp.le.s32.totalorder %v884, 14
        %v949 = vld [vmem:[%s2] sm:$0xff]
        %v950 = vld [vmem:[%s2 + $0x8] sm:$0xff]
        %s951 = smul.u32 %s21, 128
        %s952 = sld [smem:[#allocation2 + %s951]]
        %v953 = vld [vmem:[%s1] sm:$0xff]
        %v954 = vld [vmem:[%s1 + $0x8] sm:$0xff]
        %v955 = vstv %s952
        %v956 = vmul.f32 %v955, %v953
        %v957 = vmul.f32 %v955, %v954
        %v958 = vadd.f32 %v949, %v956
        %v959 = vadd.f32 %v950, %v957
        %s960 = sadd.s32 %s951, 1
        %s961 = sld [smem:[#allocation2 + %s960]]
        %s962 = scalar_lea.vmem %s1, 16
        %v963 = vld [vmem:[%s962] sm:$0xff]
        %v964 = vld [vmem:[%s962 + $0x8] sm:$0xff]
        %v965 = vstv %s961
        %v966 = vmul.f32 %v965, %v963
        %v967 = vmul.f32 %v965, %v964
        %v968 = vadd.f32 %v958, %v966
        %v969 = vadd.f32 %v959, %v967
        %s970 = sadd.s32 %s951, 2
        %s971 = sld [smem:[#allocation2 + %s970]]
        %s972 = scalar_lea.vmem %s1, 32
        %v973 = vld [vmem:[%s972] sm:$0xff]
        %v974 = vld [vmem:[%s972 + $0x8] sm:$0xff]
        %v975 = vstv %s971
        %v976 = vmul.f32 %v975, %v973
        %v977 = vmul.f32 %v975, %v974
        %v978 = vadd.f32 %v968, %v976
        %v979 = vadd.f32 %v969, %v977
        %s980 = sadd.s32 %s951, 3
        %s981 = sld [smem:[#allocation2 + %s980]]
        %s982 = scalar_lea.vmem %s1, 48
        %v983 = vld [vmem:[%s982] sm:$0xff]
        %v984 = vld [vmem:[%s982 + $0x8] sm:$0xff]
        %v985 = vstv %s981
        %v986 = vmul.f32 %v985, %v983
        %v987 = vmul.f32 %v985, %v984
        %v988 = vadd.f32 %v978, %v986
        %v989 = vadd.f32 %v979, %v987
        %s990 = sadd.s32 %s951, 4
        %s991 = sld [smem:[#allocation2 + %s990]]
        %s992 = scalar_lea.vmem %s1, 64
        %v993 = vld [vmem:[%s992] sm:$0xff]
        %v994 = vld [vmem:[%s992 + $0x8] sm:$0xff]
        %v995 = vstv %s991
        %v996 = vmul.f32 %v995, %v993
        %v997 = vmul.f32 %v995, %v994
        %v998 = vadd.f32 %v988, %v996
        %v999 = vadd.f32 %v989, %v997
        %s1000 = sadd.s32 %s951, 5
        %s1001 = sld [smem:[#allocation2 + %s1000]]
        %s1002 = scalar_lea.vmem %s1, 80
        %v1003 = vld [vmem:[%s1002] sm:$0xff]
        %v1004 = vld [vmem:[%s1002 + $0x8] sm:$0xff]
        %v1005 = vstv %s1001
        %v1006 = vmul.f32 %v1005, %v1003
        %v1007 = vmul.f32 %v1005, %v1004
        %v1008 = vadd.f32 %v998, %v1006
        %v1009 = vadd.f32 %v999, %v1007
        %s1010 = sadd.s32 %s951, 6
        %s1011 = sld [smem:[#allocation2 + %s1010]]
        %s1012 = scalar_lea.vmem %s1, 96
        %v1013 = vld [vmem:[%s1012] sm:$0xff]
        %v1014 = vld [vmem:[%s1012 + $0x8] sm:$0xff]
        %v1015 = vstv %s1011
        %v1016 = vmul.f32 %v1015, %v1013
        %v1017 = vmul.f32 %v1015, %v1014
        %v1018 = vadd.f32 %v1008, %v1016
        %v1019 = vadd.f32 %v1009, %v1017
        %s1020 = sadd.s32 %s951, 7
        %s1021 = sld [smem:[#allocation2 + %s1020]]
        %s1022 = scalar_lea.vmem %s1, 112
        %v1023 = vld [vmem:[%s1022] sm:$0xff]
        %v1024 = vld [vmem:[%s1022 + $0x8] sm:$0xff]
        %v1025 = vstv %s1021
        %v1026 = vmul.f32 %v1025, %v1023
        %v1027 = vmul.f32 %v1025, %v1024
        %v1028 = vadd.f32 %v1018, %v1026
        %v1029 = vadd.f32 %v1019, %v1027
        %s1030 = sadd.s32 %s951, 8
        %s1031 = sld [smem:[#allocation2 + %s1030]]
        %s1032 = scalar_lea.vmem %s1, 128
        %v1033 = vld [vmem:[%s1032] sm:$0xff]
        %v1034 = vld [vmem:[%s1032 + $0x8] sm:$0xff]
        %v1035 = vstv %s1031
        %v1036 = vmul.f32 %v1035, %v1033
        %v1037 = vmul.f32 %v1035, %v1034
        %v1038 = vadd.f32 %v1028, %v1036
        %v1039 = vadd.f32 %v1029, %v1037
        %s1040 = sadd.s32 %s951, 9
        %s1041 = sld [smem:[#allocation2 + %s1040]]
        %s1042 = scalar_lea.vmem %s1, 144
        %v1043 = vld [vmem:[%s1042] sm:$0xff]
        %v1044 = vld [vmem:[%s1042 + $0x8] sm:$0xff]
        %v1045 = vstv %s1041
        %v1046 = vmul.f32 %v1045, %v1043
        %v1047 = vmul.f32 %v1045, %v1044
        %v1048 = vadd.f32 %v1038, %v1046
        %v1049 = vadd.f32 %v1039, %v1047
        %s1050 = sadd.s32 %s951, 10
        %s1051 = sld [smem:[#allocation2 + %s1050]]
        %s1052 = scalar_lea.vmem %s1, 160
        %v1053 = vld [vmem:[%s1052] sm:$0xff]
        %v1054 = vld [vmem:[%s1052 + $0x8] sm:$0xff]
        %v1055 = vstv %s1051
        %v1056 = vmul.f32 %v1055, %v1053
        %v1057 = vmul.f32 %v1055, %v1054
        %v1058 = vadd.f32 %v1048, %v1056
        %v1059 = vadd.f32 %v1049, %v1057
        %s1060 = sadd.s32 %s951, 11
        %s1061 = sld [smem:[#allocation2 + %s1060]]
        %s1062 = scalar_lea.vmem %s1, 176
        %v1063 = vld [vmem:[%s1062] sm:$0xff]
        %v1064 = vld [vmem:[%s1062 + $0x8] sm:$0xff]
        %v1065 = vstv %s1061
        %v1066 = vmul.f32 %v1065, %v1063
        %v1067 = vmul.f32 %v1065, %v1064
        %v1068 = vadd.f32 %v1058, %v1066
        %v1069 = vadd.f32 %v1059, %v1067
        %s1070 = sadd.s32 %s951, 12
        %s1071 = sld [smem:[#allocation2 + %s1070]]
        %s1072 = scalar_lea.vmem %s1, 192
        %v1073 = vld [vmem:[%s1072] sm:$0xff]
        %v1074 = vld [vmem:[%s1072 + $0x8] sm:$0xff]
        %v1075 = vstv %s1071
        %v1076 = vmul.f32 %v1075, %v1073
        %v1077 = vmul.f32 %v1075, %v1074
        %v1078 = vadd.f32 %v1068, %v1076
        %v1079 = vadd.f32 %v1069, %v1077
        %s1080 = sadd.s32 %s951, 13
        %s1081 = sld [smem:[#allocation2 + %s1080]]
        %s1082 = scalar_lea.vmem %s1, 208
        %v1083 = vld [vmem:[%s1082] sm:$0xff]
        %v1084 = vld [vmem:[%s1082 + $0x8] sm:$0xff]
        %v1085 = vstv %s1081
        %v1086 = vmul.f32 %v1085, %v1083
        %v1087 = vmul.f32 %v1085, %v1084
        %v1088 = vadd.f32 %v1078, %v1086
        %v1089 = vadd.f32 %v1079, %v1087
        %s1090 = sadd.s32 %s951, 14
        %s1091 = sld [smem:[#allocation2 + %s1090]]
        %s1092 = scalar_lea.vmem %s1, 224
        %v1093 = vld [vmem:[%s1092] sm:$0xff]
        %v1094 = vld [vmem:[%s1092 + $0x8] sm:$0xff]
        %v1095 = vstv %s1091
        %v1096 = vmul.f32 %v1095, %v1093
        %v1097 = vmul.f32 %v1095, %v1094
        %v1098 = vadd.f32 %v1088, %v1096
        %v1099 = vadd.f32 %v1089, %v1097
        %s1100 = sadd.s32 %s951, 15
        %s1101 = sld [smem:[#allocation2 + %s1100]]
        %s1102 = scalar_lea.vmem %s1, 240
        %v1103 = vld [vmem:[%s1102] sm:$0xff]
        %v1104 = vld [vmem:[%s1102 + $0x8] sm:$0xff]
        %v1105 = vstv %s1101
        %v1106 = vmul.f32 %v1105, %v1103
        %v1107 = vmul.f32 %v1105, %v1104
        %v1108 = vadd.f32 %v1098, %v1106
        %v1109 = vadd.f32 %v1099, %v1107
        %v1110 = vld [vmem:[%s3] sm:$0xf]
        %v1111 = vld [vmem:[%s3 + $0x4] sm:$0xf]
        %v1112 = vld [vmem:[%s3 + $0x8] sm:$0xf]
        %v1113 = vld [vmem:[%s3 + $0xc] sm:$0xf]
        %v1114 = vld [vmem:[%s3 + $0x10] sm:$0xf]
        %v1115 = vld [vmem:[%s3 + $0x14] sm:$0xf]
        %v1116 = vld [vmem:[%s3 + $0x18] sm:$0xf]
        %v1117 = vld [vmem:[%s3 + $0x1c] sm:$0xf]
        %v1118 = vld [vmem:[%s3 + $0x20] sm:$0xf]
        %v1119 = vld [vmem:[%s3 + $0x24] sm:$0xf]
        %v1120 = vld [vmem:[%s3 + $0x28] sm:$0xf]
        %v1121 = vld [vmem:[%s3 + $0x2c] sm:$0xf]
        %v1122 = vld [vmem:[%s3 + $0x30] sm:$0xf]
        %v1123 = vld [vmem:[%s3 + $0x34] sm:$0xf]
        %v1124 = vld [vmem:[%s3 + $0x38] sm:$0xf]
        %v1125 = vld [vmem:[%s3 + $0x3c] sm:$0xf]
        %v1126 = vld [vmem:[%s3 + $0x40] sm:$0xf]
        %v1127 = vld [vmem:[%s3 + $0x44] sm:$0xf]
        %v1128 = vld [vmem:[%s3 + $0x48] sm:$0xf]
        %v1129 = vld [vmem:[%s3 + $0x4c] sm:$0xf]
        %v1130 = vld [vmem:[%s3 + $0x50] sm:$0xf]
        %v1131 = vld [vmem:[%s3 + $0x54] sm:$0xf]
        %v1132 = vld [vmem:[%s3 + $0x58] sm:$0xf]
        %v1133 = vld [vmem:[%s3 + $0x5c] sm:$0xf]
        %v1134 = vld [vmem:[%s3 + $0x60] sm:$0xf]
        %v1135 = vld [vmem:[%s3 + $0x64] sm:$0xf]
        %v1136 = vld [vmem:[%s3 + $0x68] sm:$0xf]
        %v1137 = vld [vmem:[%s3 + $0x6c] sm:$0xf]
        %v1138 = vld [vmem:[%s3 + $0x70] sm:$0xf]
        %v1139 = vld [vmem:[%s3 + $0x74] sm:$0xf]
        %v1140 = vld [vmem:[%s3 + $0x78] sm:$0xf]
        %v1141 = vld [vmem:[%s3 + $0x7c] sm:$0xf]
        %v1142 = vld [vmem:[%s3 + $0x80] sm:$0xf]
        %v1143 = vld [vmem:[%s3 + $0x84] sm:$0xf]
        %v1144 = vld [vmem:[%s3 + $0x88] sm:$0xf]
        %v1145 = vld [vmem:[%s3 + $0x8c] sm:$0xf]
        %v1146 = vld [vmem:[%s4] sm:$0x1]
        %vm1149 = vcmask 1044480
        %v1150 = vrot.slane %v1108, 3
        %v1151 = vrot.slane %v1109, 3
        %v1152 = vsel %vm1149, %v1150, %v1151
        %v1156 = vsel %vm1149, 0.0, %v1150
        %v1157 = vsel %vm1149, %v1151, 0.0
        %v1158 = vsel %vm355, %v1156, 0.0
        %v1159 = vsel %vm356, %v1152, 0.0
        %v1160 = vpack.c.bf16 %v1159, %v1158
        %v1161 = vpack.c.bf16 %v1152, %v1156
        %v1162 = vpack.c.bf16 %v1157, %v1157
        %vm1165 = vcmask 1045504
        %v1166 = vrot.slane %v1156, 2
        %v1167 = vrot.slane %v1152, 2
        %v1168 = vsel %vm1165, %v1166, %v1167
        %v1169 = vrot.slane %v1157, 2
        %v1170 = vsel %vm1165, %v1167, %v1169
        %v1173 = vsel %vm357, %v1168, 0.0
        %v1174 = vsel %vm358, %v1170, 0.0
        %v1175 = vpack.c.bf16 %v1174, %v1173
        %vm1176 = vcmask 1043456
        %v1177 = vrot.slane %v1156, 4
        %v1178 = vrot.slane %v1152, 4
        %v1179 = vsel %vm1176, %v1177, %v1178
        %v1180 = vrot.slane %v1157, 4
        %v1181 = vsel %vm1176, %v1178, %v1180
        %v1184 = vsel %vm355, %v1179, 0.0
        %v1185 = vsel %vm356, %v1181, 0.0
        %v1186 = vpack.c.bf16 %v1185, %v1184
        %vm1187 = vcmask 1041408
        %v1188 = vrot.slane %v1156, 6
        %v1189 = vrot.slane %v1152, 6
        %v1190 = vsel %vm1187, %v1188, %v1189
        %v1191 = vrot.slane %v1157, 6
        %v1192 = vsel %vm1187, %v1189, %v1191
        %v1195 = vsel %vm357, %v1190, 0.0
        %v1196 = vsel %vm358, %v1192, 0.0
        %v1197 = vpack.c.bf16 %v1196, %v1195
        %v1198 = vsel %vm355, %v1152, 0.0
        %v1199 = vsel %vm356, %v1157, 0.0
        %v1200 = vpack.c.bf16 %v1199, %v1198
        %v1201 = vpack.c.bf16 %v1157, %v1152
        %v1202 = vpack.c.bf16 0.0, 0.0
        %v1204 = vrot.slane 0.0, 2
        %v1205 = vsel %vm1165, %v1169, %v1204
        %v1207 = vsel %vm357, %v1170, 0.0
        %v1208 = vsel %vm358, %v1205, 0.0
        %v1209 = vpack.c.bf16 %v1208, %v1207
        %vm1210 = vsmask.f32 7424
        %v1212 = vshrl.u32 %v1161, 16
        %v1214 = vshll.u32 %v1161, 16
        %v1216 = vrot.slane %v1214, 1
        %v1217 = vor.u32 %v1212, %v1216
        %v1219 = vshll.u32 %v1162, 16
        %v1221 = vrot.slane %v1219, 1
        %v1222 = vsel %vm1210, %v1217, %v1221
        %1223 = vrot.lane.b32.xlu0 %v1222, 32
        %v1224 = vpop.permute.xlu0 %1223
        %1226 = vrot.lane.b32.xlu0 %v1175, 64
        %v1227 = vpop.permute.xlu0 %1226
        %1229 = vrot.lane.b32.xlu0 %v1186, 96
        %v1230 = vpop.permute.xlu0 %1229
        %vm1231 = vsmask.f32 5376
        %v1232 = vrot.slane %v1212, 2
        %v1233 = vrot.slane %v1214, 3
        %v1234 = vor.u32 %v1232, %v1233
        %v1235 = vshrl.u32 %v1162, 16
        %v1237 = vrot.slane %v1235, 2
        %v1238 = vrot.slane %v1219, 3
        %v1239 = vor.u32 %v1237, %v1238
        %v1240 = vsel %vm1231, %v1234, %v1239
        %1242 = vrot.lane.b32.xlu0 %v1197, 32
        %v1243 = vpop.permute.xlu0 %1242
        %1245 = vrot.lane.b32.xlu0 %v1200, 64
        %v1246 = vpop.permute.xlu0 %1245
        %v1248 = vshrl.u32 %v1201, 16
        %v1250 = vshll.u32 %v1201, 16
        %v1252 = vrot.slane %v1250, 1
        %v1253 = vor.u32 %v1248, %v1252
        %v1255 = vshll.u32 %v1202, 16
        %v1257 = vrot.slane %v1255, 1
        %v1258 = vsel %vm1210, %v1253, %v1257
        %1259 = vrot.lane.b32.xlu0 %v1258, 96
        %v1260 = vpop.permute.xlu0 %1259
        %vm1261 = vcmask 261120
        %v1264 = vsel %vm1261, %v1160, %v1224
        %vm1265 = vcmask 523264
        %v1267 = vsel %vm1265, %v1264, %v1227
        %vm1268 = vcmask 785408
        %v1270 = vsel %vm1268, %v1267, %v1230
        %v1274 = vsel %vm1261, %v1240, %v1243
        %v1276 = vsel %vm1265, %v1274, %v1246
        %v1278 = vsel %vm1268, %v1276, %v1260
        %v1281 = vlaneseq
        %v1282 = vshrl.u32 %v1281, 7
        %v1283 = vsub.s32 0, %v1282
        %v1284 = vrot.slane %v1146, %v1283
        %v1322 = vunpack.c.l.b16 %v1110
        %v1323 = vunpack.c.l.b16 %v1111
        %v1324 = vunpack.c.l.b16 %v1112
        %v1325 = vunpack.c.l.b16 %v1113
        %v1326 = vunpack.c.l.b16 %v1114
        %v1327 = vunpack.c.l.b16 %v1115
        %v1328 = vunpack.c.l.b16 %v1116
        %v1329 = vunpack.c.l.b16 %v1117
        %v1330 = vunpack.c.l.b16 %v1118
        %v1331 = vunpack.c.l.b16 %v1119
        %v1332 = vunpack.c.l.b16 %v1120
        %v1333 = vunpack.c.l.b16 %v1121
        %v1334 = vunpack.c.l.b16 %v1122
        %v1335 = vunpack.c.l.b16 %v1123
        %v1336 = vunpack.c.l.b16 %v1124
        %v1337 = vunpack.c.l.b16 %v1125
        %v1338 = vunpack.c.l.b16 %v1126
        %v1339 = vunpack.c.l.b16 %v1127
        %v1340 = vunpack.c.l.b16 %v1128
        %v1341 = vunpack.c.l.b16 %v1129
        %v1342 = vunpack.c.l.b16 %v1130
        %v1343 = vunpack.c.l.b16 %v1131
        %v1344 = vunpack.c.l.b16 %v1132
        %v1345 = vunpack.c.l.b16 %v1133
        %v1346 = vunpack.c.l.b16 %v1134
        %v1347 = vunpack.c.l.b16 %v1135
        %v1348 = vunpack.c.l.b16 %v1136
        %v1349 = vunpack.c.l.b16 %v1137
        %v1350 = vunpack.c.l.b16 %v1138
        %v1351 = vunpack.c.l.b16 %v1139
        %v1352 = vunpack.c.l.b16 %v1140
        %v1353 = vunpack.c.l.b16 %v1141
        %v1354 = vunpack.c.l.b16 %v1142
        %v1355 = vunpack.c.l.b16 %v1143
        %v1356 = vunpack.c.l.b16 %v1144
        %v1357 = vunpack.c.l.b16 %v1145
        %v1358 = vpack.c.b16 %v1323, %v1322
        %v1359 = vpack.c.b16 %v1325, %v1324
        %v1360 = vpack.c.b16 %v1327, %v1326
        %v1361 = vpack.c.b16 %v1329, %v1328
        %v1362 = vpack.c.b16 %v1331, %v1330
        %v1363 = vpack.c.b16 %v1333, %v1332
        %v1364 = vpack.c.b16 %v1335, %v1334
        %v1365 = vpack.c.b16 %v1337, %v1336
        %v1366 = vpack.c.b16 %v1339, %v1338
        %v1367 = vpack.c.b16 %v1341, %v1340
        %v1368 = vpack.c.b16 %v1343, %v1342
        %v1369 = vpack.c.b16 %v1345, %v1344
        %v1370 = vpack.c.b16 %v1347, %v1346
        %v1371 = vpack.c.b16 %v1349, %v1348
        %v1372 = vpack.c.b16 %v1351, %v1350
        %v1373 = vpack.c.b16 %v1353, %v1352
        %v1374 = vpack.c.b16 %v1355, %v1354
        %v1375 = vpack.c.b16 %v1357, %v1356
        %v1395 = vsel %vm1261, %v1209, 0
        %1397 = vmatprep.subr.bf16.mxu0 0
        %1398 = vmatpush1.bf16.msra.mxu0 %v1358
        %1399 = vmatprep.subr.bf16.mxu0 0
        %1400 = vmatpush1.bf16.msra.mxu0 %v1359
        %1401 = vmatprep.subr.bf16.mxu0 0
        %1402 = vmatpush1.bf16.msra.mxu0 %v1360
        %1403 = vmatprep.subr.bf16.mxu0 0
        %1404 = vmatpush1.bf16.msra.mxu0 %v1361
        %1405 = vmatprep.subr.bf16.mxu0 0
        %1406 = vmatpush1.bf16.msra.mxu0 %v1362
        %1407 = vmatprep.subr.bf16.mxu0 0
        %1408 = vmatpush1.bf16.msra.mxu0 %v1363
        %1409 = vmatprep.subr.bf16.mxu0 0
        %1410 = vmatpush1.bf16.msra.mxu0 %v1364
        %1411 = vmatprep.subr.bf16.mxu0 0
        %1412 = vmatpush1.bf16.msra.mxu0 %v1365
        %1413 = vmatprep.subr.bf16.mxu0 0
        %1414 = vmatpush1.bf16.msra.mxu0 %v1366
        %1415 = vmatprep.subr.bf16.mxu0 0
        %1416 = vmatpush1.bf16.msra.mxu0 %v1367
        %1417 = vmatprep.subr.bf16.mxu0 0
        %1418 = vmatpush1.bf16.msra.mxu0 %v1368
        %1419 = vmatprep.subr.bf16.mxu0 0
        %1420 = vmatpush1.bf16.msra.mxu0 %v1369
        %1421 = vmatprep.subr.bf16.mxu0 0
        %1422 = vmatpush1.bf16.msra.mxu0 %v1370
        %1423 = vmatprep.subr.bf16.mxu0 0
        %1424 = vmatpush1.bf16.msra.mxu0 %v1371
        %1425 = vmatprep.subr.bf16.mxu0 0
        %1426 = vmatpush1.bf16.msra.mxu0 %v1372
        %1427 = vmatprep.subr.bf16.mxu0 0
        %1428 = vmatpush1.bf16.msra.mxu0 %v1373
        %1429 = vmatprep.mubr.bf16.mxu0 %v1278
        %1430 = vmatmul.mubr.bf16.gmra.mrb[0].mxu0 %v1270
        %v1431 = vpop.f32.mrb[0].mxu0
        %v1432 = vadd.f32 %v1284, %v1431
        %v1433 = vpop.f32.mrb[0].mxu0
        %v1434 = vpop.f32.mrb[0].mxu0
        %v1435 = vadd.f32 %v1284, %v1434
        %v1436 = vpop.f32.mrb[0].mxu0
        %1437 = vdwg.mxu0
        %1438 = vmatprep.subr.bf16.mxu0 0
        %1439 = vmatpush1.bf16.msra.mxu0 %v1374
        %1440 = vmatprep.subr.bf16.mxu0 0
        %1441 = vmatpush1.bf16.msra.mxu0 %v1375
        %1442 = vmatprep.subr.bf16.mxu0 0
        %1443 = vmatpush1.bf16.msra.mxu0 0
        %1444 = vmatprep.subr.bf16.mxu0 0
        %1445 = vmatpush1.bf16.msra.mxu0 0
        %1446 = vmatprep.subr.bf16.mxu0 0
        %1447 = vmatpush1.bf16.msra.mxu0 0
        %1448 = vmatprep.subr.bf16.mxu0 0
        %1449 = vmatpush1.bf16.msra.mxu0 0
        %1450 = vmatprep.subr.bf16.mxu0 0
        %1451 = vmatpush1.bf16.msra.mxu0 0
        %1452 = vmatprep.subr.bf16.mxu0 0
        %1453 = vmatpush1.bf16.msra.mxu0 0
        %1454 = vmatprep.subr.bf16.mxu0 0
        %1455 = vmatpush1.bf16.msra.mxu0 0
        %1456 = vmatprep.subr.bf16.mxu0 0
        %1457 = vmatpush1.bf16.msra.mxu0 0
        %1458 = vmatprep.subr.bf16.mxu0 0
        %1459 = vmatpush1.bf16.msra.mxu0 0
        %1460 = vmatprep.subr.bf16.mxu0 0
        %1461 = vmatpush1.bf16.msra.mxu0 0
        %1462 = vmatprep.subr.bf16.mxu0 0
        %1463 = vmatpush1.bf16.msra.mxu0 0
        %1464 = vmatprep.subr.bf16.mxu0 0
        %1465 = vmatpush1.bf16.msra.mxu0 0
        %1466 = vmatprep.subr.bf16.mxu0 0
        %1467 = vmatpush1.bf16.msra.mxu0 0
        %1468 = vmatprep.subr.bf16.mxu0 0
        %1469 = vmatpush1.bf16.msra.mxu0 0
        %1470 = vmatprep.mubr.bf16.mxu0 0
        %1471 = vmatmul.mubr.bf16.gmra.mrb[0].mxu0 %v1395
        %v1472 = vpop.f32.mrb[0].mxu0
        %v1473 = vadd.f32 %v1432, %v1472
        %v1474 = vpop.f32.mrb[0].mxu0
        %v1475 = vpop.f32.mrb[0].mxu0
        %v1476 = vadd.f32 %v1435, %v1475
        %v1477 = vpop.f32.mrb[0].mxu0
        %1478 = vdwg.mxu0
        %vm1479 = vcmp.gt.f32.partialorder %v1473, 0.0
        %vm1480 = vcmp.gt.f32.partialorder %v1476, 0.0
        %v1481 = vmin.f32 %v1473, 0.0
        %v1482 = vmin.f32 %v1476, 0.0
        %v1483 = vmul.f32 %v1481, 1.442695
        %v1484 = vpow.pop %v1483
        %v1485 = vmul.f32 %v1482, 1.442695
        %v1486 = vpow.pop %v1485
        %v1487 = vsub.f32 %v1484, 1.0
        %v1488 = vsub.f32 %v1486, 1.0
        %v1489 = vsel %vm1479, %v1473, %v1487
        %v1490 = vsel %vm1480, %v1476, %v1488
        %s1491 = scalar_lea.vmem %s3, 144
        %v1492 = vld [vmem:[%s1491] sm:$0xf]
        %v1493 = vld [vmem:[%s1491 + $0x4] sm:$0xf]
        %v1494 = vld [vmem:[%s1491 + $0x8] sm:$0xf]
        %v1495 = vld [vmem:[%s1491 + $0xc] sm:$0xf]
        %v1496 = vld [vmem:[%s1491 + $0x10] sm:$0xf]
        %v1497 = vld [vmem:[%s1491 + $0x14] sm:$0xf]
        %v1498 = vld [vmem:[%s1491 + $0x18] sm:$0xf]
        %v1499 = vld [vmem:[%s1491 + $0x1c] sm:$0xf]
        %v1500 = vld [vmem:[%s1491 + $0x20] sm:$0xf]
        %v1501 = vld [vmem:[%s1491 + $0x24] sm:$0xf]
        %v1502 = vld [vmem:[%s1491 + $0x28] sm:$0xf]
        %v1503 = vld [vmem:[%s1491 + $0x2c] sm:$0xf]
        %v1504 = vld [vmem:[%s1491 + $0x30] sm:$0xf]
        %v1505 = vld [vmem:[%s1491 + $0x34] sm:$0xf]
        %v1506 = vld [vmem:[%s1491 + $0x38] sm:$0xf]
        %v1507 = vld [vmem:[%s1491 + $0x3c] sm:$0xf]
        %v1508 = vld [vmem:[%s1491 + $0x40] sm:$0xf]
        %v1509 = vld [vmem:[%s1491 + $0x44] sm:$0xf]
        %v1510 = vld [vmem:[%s1491 + $0x48] sm:$0xf]
        %v1511 = vld [vmem:[%s1491 + $0x4c] sm:$0xf]
        %v1512 = vld [vmem:[%s1491 + $0x50] sm:$0xf]
        %v1513 = vld [vmem:[%s1491 + $0x54] sm:$0xf]
        %v1514 = vld [vmem:[%s1491 + $0x58] sm:$0xf]
        %v1515 = vld [vmem:[%s1491 + $0x5c] sm:$0xf]
        %v1516 = vld [vmem:[%s1491 + $0x60] sm:$0xf]
        %v1517 = vld [vmem:[%s1491 + $0x64] sm:$0xf]
        %v1518 = vld [vmem:[%s1491 + $0x68] sm:$0xf]
        %v1519 = vld [vmem:[%s1491 + $0x6c] sm:$0xf]
        %v1520 = vld [vmem:[%s1491 + $0x70] sm:$0xf]
        %v1521 = vld [vmem:[%s1491 + $0x74] sm:$0xf]
        %v1522 = vld [vmem:[%s1491 + $0x78] sm:$0xf]
        %v1523 = vld [vmem:[%s1491 + $0x7c] sm:$0xf]
        %v1524 = vld [vmem:[%s1491 + $0x80] sm:$0xf]
        %v1525 = vld [vmem:[%s1491 + $0x84] sm:$0xf]
        %v1526 = vld [vmem:[%s1491 + $0x88] sm:$0xf]
        %v1527 = vld [vmem:[%s1491 + $0x8c] sm:$0xf]
        %s1528 = scalar_lea.vmem %s4, 1
        %v1529 = vld [vmem:[%s1528] sm:$0x1]
        %v1532 = vrot.slane %v1489, 3
        %v1533 = vrot.slane %v1490, 3
        %v1534 = vsel %vm1149, %v1532, %v1533
        %v1538 = vsel %vm1149, 0.0, %v1532
        %v1539 = vsel %vm1149, %v1533, 0.0
        %v1540 = vsel %vm355, %v1538, 0.0
        %v1541 = vsel %vm356, %v1534, 0.0
        %v1542 = vpack.c.bf16 %v1541, %v1540
        %v1543 = vpack.c.bf16 %v1534, %v1538
        %v1544 = vpack.c.bf16 %v1539, %v1539
        %v1547 = vrot.slane %v1538, 2
        %v1548 = vrot.slane %v1534, 2
        %v1549 = vsel %vm1165, %v1547, %v1548
        %v1550 = vrot.slane %v1539, 2
        %v1551 = vsel %vm1165, %v1548, %v1550
        %v1554 = vsel %vm357, %v1549, 0.0
        %v1555 = vsel %vm358, %v1551, 0.0
        %v1556 = vpack.c.bf16 %v1555, %v1554
        %v1557 = vrot.slane %v1538, 4
        %v1558 = vrot.slane %v1534, 4
        %v1559 = vsel %vm1176, %v1557, %v1558
        %v1560 = vrot.slane %v1539, 4
        %v1561 = vsel %vm1176, %v1558, %v1560
        %v1564 = vsel %vm355, %v1559, 0.0
        %v1565 = vsel %vm356, %v1561, 0.0
        %v1566 = vpack.c.bf16 %v1565, %v1564
        %v1567 = vrot.slane %v1538, 6
        %v1568 = vrot.slane %v1534, 6
        %v1569 = vsel %vm1187, %v1567, %v1568
        %v1570 = vrot.slane %v1539, 6
        %v1571 = vsel %vm1187, %v1568, %v1570
        %v1574 = vsel %vm357, %v1569, 0.0
        %v1575 = vsel %vm358, %v1571, 0.0
        %v1576 = vpack.c.bf16 %v1575, %v1574
        %v1577 = vsel %vm355, %v1534, 0.0
        %v1578 = vsel %vm356, %v1539, 0.0
        %v1579 = vpack.c.bf16 %v1578, %v1577
        %v1580 = vpack.c.bf16 %v1539, %v1534
        %v1581 = vsel %vm1165, %v1550, %v1204
        %v1583 = vsel %vm357, %v1551, 0.0
        %v1584 = vsel %vm358, %v1581, 0.0
        %v1585 = vpack.c.bf16 %v1584, %v1583
        %v1587 = vshrl.u32 %v1543, 16
        %v1589 = vshll.u32 %v1543, 16
        %v1591 = vrot.slane %v1589, 1
        %v1592 = vor.u32 %v1587, %v1591
        %v1594 = vshll.u32 %v1544, 16
        %v1596 = vrot.slane %v1594, 1
        %v1597 = vsel %vm1210, %v1592, %v1596
        %1598 = vrot.lane.b32.xlu0 %v1597, 32
        %v1599 = vpop.permute.xlu0 %1598
        %1601 = vrot.lane.b32.xlu0 %v1556, 64
        %v1602 = vpop.permute.xlu0 %1601
        %1604 = vrot.lane.b32.xlu0 %v1566, 96
        %v1605 = vpop.permute.xlu0 %1604
        %v1606 = vrot.slane %v1587, 2
        %v1607 = vrot.slane %v1589, 3
        %v1608 = vor.u32 %v1606, %v1607
        %v1609 = vshrl.u32 %v1544, 16
        %v1611 = vrot.slane %v1609, 2
        %v1612 = vrot.slane %v1594, 3
        %v1613 = vor.u32 %v1611, %v1612
        %v1614 = vsel %vm1231, %v1608, %v1613
        %1616 = vrot.lane.b32.xlu0 %v1576, 32
        %v1617 = vpop.permute.xlu0 %1616
        %1619 = vrot.lane.b32.xlu0 %v1579, 64
        %v1620 = vpop.permute.xlu0 %1619
        %v1622 = vshrl.u32 %v1580, 16
        %v1624 = vshll.u32 %v1580, 16
        %v1626 = vrot.slane %v1624, 1
        %v1627 = vor.u32 %v1622, %v1626
        %v1628 = vsel %vm1210, %v1627, %v1257
        %1629 = vrot.lane.b32.xlu0 %v1628, 96
        %v1630 = vpop.permute.xlu0 %1629
        %v1633 = vsel %vm1261, %v1542, %v1599
        %v1635 = vsel %vm1265, %v1633, %v1602
        %v1637 = vsel %vm1268, %v1635, %v1605
        %v1641 = vsel %vm1261, %v1614, %v1617
        %v1643 = vsel %vm1265, %v1641, %v1620
        %v1645 = vsel %vm1268, %v1643, %v1630
        %v1648 = vlaneseq
        %v1649 = vshrl.u32 %v1648, 7
        %v1650 = vsub.s32 0, %v1649
        %v1651 = vrot.slane %v1529, %v1650
        %v1689 = vunpack.c.l.b16 %v1492
        %v1690 = vunpack.c.l.b16 %v1493
        %v1691 = vunpack.c.l.b16 %v1494
        %v1692 = vunpack.c.l.b16 %v1495
        %v1693 = vunpack.c.l.b16 %v1496
        %v1694 = vunpack.c.l.b16 %v1497
        %v1695 = vunpack.c.l.b16 %v1498
        %v1696 = vunpack.c.l.b16 %v1499
        %v1697 = vunpack.c.l.b16 %v1500
        %v1698 = vunpack.c.l.b16 %v1501
        %v1699 = vunpack.c.l.b16 %v1502
        %v1700 = vunpack.c.l.b16 %v1503
        %v1701 = vunpack.c.l.b16 %v1504
        %v1702 = vunpack.c.l.b16 %v1505
        %v1703 = vunpack.c.l.b16 %v1506
        %v1704 = vunpack.c.l.b16 %v1507
        %v1705 = vunpack.c.l.b16 %v1508
        %v1706 = vunpack.c.l.b16 %v1509
        %v1707 = vunpack.c.l.b16 %v1510
        %v1708 = vunpack.c.l.b16 %v1511
        %v1709 = vunpack.c.l.b16 %v1512
        %v1710 = vunpack.c.l.b16 %v1513
        %v1711 = vunpack.c.l.b16 %v1514
        %v1712 = vunpack.c.l.b16 %v1515
        %v1713 = vunpack.c.l.b16 %v1516
        %v1714 = vunpack.c.l.b16 %v1517
        %v1715 = vunpack.c.l.b16 %v1518
        %v1716 = vunpack.c.l.b16 %v1519
        %v1717 = vunpack.c.l.b16 %v1520
        %v1718 = vunpack.c.l.b16 %v1521
        %v1719 = vunpack.c.l.b16 %v1522
        %v1720 = vunpack.c.l.b16 %v1523
        %v1721 = vunpack.c.l.b16 %v1524
        %v1722 = vunpack.c.l.b16 %v1525
        %v1723 = vunpack.c.l.b16 %v1526
        %v1724 = vunpack.c.l.b16 %v1527
        %v1725 = vpack.c.b16 %v1690, %v1689
        %v1726 = vpack.c.b16 %v1692, %v1691
        %v1727 = vpack.c.b16 %v1694, %v1693
        %v1728 = vpack.c.b16 %v1696, %v1695
        %v1729 = vpack.c.b16 %v1698, %v1697
        %v1730 = vpack.c.b16 %v1700, %v1699
        %v1731 = vpack.c.b16 %v1702, %v1701
        %v1732 = vpack.c.b16 %v1704, %v1703
        %v1733 = vpack.c.b16 %v1706, %v1705
        %v1734 = vpack.c.b16 %v1708, %v1707
        %v1735 = vpack.c.b16 %v1710, %v1709
        %v1736 = vpack.c.b16 %v1712, %v1711
        %v1737 = vpack.c.b16 %v1714, %v1713
        %v1738 = vpack.c.b16 %v1716, %v1715
        %v1739 = vpack.c.b16 %v1718, %v1717
        %v1740 = vpack.c.b16 %v1720, %v1719
        %v1741 = vpack.c.b16 %v1722, %v1721
        %v1742 = vpack.c.b16 %v1724, %v1723
        %v1762 = vsel %vm1261, %v1585, 0
        %1764 = vmatprep.subr.bf16.mxu0 0
        %1765 = vmatpush1.bf16.msra.mxu0 %v1725
        %1766 = vmatprep.subr.bf16.mxu0 0
        %1767 = vmatpush1.bf16.msra.mxu0 %v1726
        %1768 = vmatprep.subr.bf16.mxu0 0
        %1769 = vmatpush1.bf16.msra.mxu0 %v1727
        %1770 = vmatprep.subr.bf16.mxu0 0
        %1771 = vmatpush1.bf16.msra.mxu0 %v1728
        %1772 = vmatprep.subr.bf16.mxu0 0
        %1773 = vmatpush1.bf16.msra.mxu0 %v1729
        %1774 = vmatprep.subr.bf16.mxu0 0
        %1775 = vmatpush1.bf16.msra.mxu0 %v1730
        %1776 = vmatprep.subr.bf16.mxu0 0
        %1777 = vmatpush1.bf16.msra.mxu0 %v1731
        %1778 = vmatprep.subr.bf16.mxu0 0
        %1779 = vmatpush1.bf16.msra.mxu0 %v1732
        %1780 = vmatprep.subr.bf16.mxu0 0
        %1781 = vmatpush1.bf16.msra.mxu0 %v1733
        %1782 = vmatprep.subr.bf16.mxu0 0
        %1783 = vmatpush1.bf16.msra.mxu0 %v1734
        %1784 = vmatprep.subr.bf16.mxu0 0
        %1785 = vmatpush1.bf16.msra.mxu0 %v1735
        %1786 = vmatprep.subr.bf16.mxu0 0
        %1787 = vmatpush1.bf16.msra.mxu0 %v1736
        %1788 = vmatprep.subr.bf16.mxu0 0
        %1789 = vmatpush1.bf16.msra.mxu0 %v1737
        %1790 = vmatprep.subr.bf16.mxu0 0
        %1791 = vmatpush1.bf16.msra.mxu0 %v1738
        %1792 = vmatprep.subr.bf16.mxu0 0
        %1793 = vmatpush1.bf16.msra.mxu0 %v1739
        %1794 = vmatprep.subr.bf16.mxu0 0
        %1795 = vmatpush1.bf16.msra.mxu0 %v1740
        %1796 = vmatprep.mubr.bf16.mxu0 %v1645
        %1797 = vmatmul.mubr.bf16.gmra.mrb[0].mxu0 %v1637
        %v1798 = vpop.f32.mrb[0].mxu0
        %v1799 = vadd.f32 %v1651, %v1798
        %v1800 = vpop.f32.mrb[0].mxu0
        %v1801 = vpop.f32.mrb[0].mxu0
        %v1802 = vadd.f32 %v1651, %v1801
        %v1803 = vpop.f32.mrb[0].mxu0
        %1804 = vdwg.mxu0
        %1805 = vmatprep.subr.bf16.mxu0 0
        %1806 = vmatpush1.bf16.msra.mxu0 %v1741
        %1807 = vmatprep.subr.bf16.mxu0 0
        %1808 = vmatpush1.bf16.msra.mxu0 %v1742
        %1809 = vmatprep.subr.bf16.mxu0 0
        %1810 = vmatpush1.bf16.msra.mxu0 0
        %1811 = vmatprep.subr.bf16.mxu0 0
        %1812 = vmatpush1.bf16.msra.mxu0 0
        %1813 = vmatprep.subr.bf16.mxu0 0
        %1814 = vmatpush1.bf16.msra.mxu0 0
        %1815 = vmatprep.subr.bf16.mxu0 0
        %1816 = vmatpush1.bf16.msra.mxu0 0
        %1817 = vmatprep.subr.bf16.mxu0 0
        %1818 = vmatpush1.bf16.msra.mxu0 0
        %1819 = vmatprep.subr.bf16.mxu0 0
        %1820 = vmatpush1.bf16.msra.mxu0 0
        %1821 = vmatprep.subr.bf16.mxu0 0
        %1822 = vmatpush1.bf16.msra.mxu0 0
        %1823 = vmatprep.subr.bf16.mxu0 0
        %1824 = vmatpush1.bf16.msra.mxu0 0
        %1825 = vmatprep.subr.bf16.mxu0 0
        %1826 = vmatpush1.bf16.msra.mxu0 0
        %1827 = vmatprep.subr.bf16.mxu0 0
        %1828 = vmatpush1.bf16.msra.mxu0 0
        %1829 = vmatprep.subr.bf16.mxu0 0
        %1830 = vmatpush1.bf16.msra.mxu0 0
        %1831 = vmatprep.subr.bf16.mxu0 0
        %1832 = vmatpush1.bf16.msra.mxu0 0
        %1833 = vmatprep.subr.bf16.mxu0 0
        %1834 = vmatpush1.bf16.msra.mxu0 0
        %1835 = vmatprep.subr.bf16.mxu0 0
        %1836 = vmatpush1.bf16.msra.mxu0 0
        %1837 = vmatprep.mubr.bf16.mxu0 0
        %1838 = vmatmul.mubr.bf16.gmra.mrb[0].mxu0 %v1762
        %v1839 = vpop.f32.mrb[0].mxu0
        %v1840 = vadd.f32 %v1799, %v1839
        %v1841 = vpop.f32.mrb[0].mxu0
        %v1842 = vpop.f32.mrb[0].mxu0
        %v1843 = vadd.f32 %v1802, %v1842
        %v1844 = vpop.f32.mrb[0].mxu0
        %1845 = vdwg.mxu0
        %vm1846 = vcmp.gt.f32.partialorder %v1840, 0.0
        %vm1847 = vcmp.gt.f32.partialorder %v1843, 0.0
        %v1848 = vmin.f32 %v1840, 0.0
        %v1849 = vmin.f32 %v1843, 0.0
        %v1850 = vmul.f32 %v1848, 1.442695
        %v1851 = vpow.pop %v1850
        %v1852 = vmul.f32 %v1849, 1.442695
        %v1853 = vpow.pop %v1852
        %v1854 = vsub.f32 %v1851, 1.0
        %v1855 = vsub.f32 %v1853, 1.0
        %v1856 = vsel %vm1846, %v1840, %v1854
        %v1857 = vsel %vm1847, %v1843, %v1855
        %v1858 = vld [vmem:[%s7] sm:$0xf]
        %v1859 = vld [vmem:[%s7 + $0x4] sm:$0xf]
        %v1860 = vld [vmem:[%s7 + $0x8] sm:$0xf]
        %v1861 = vld [vmem:[%s7 + $0xc] sm:$0xf]
        %v1862 = vld [vmem:[%s7 + $0x10] sm:$0xf]
        %v1863 = vld [vmem:[%s7 + $0x14] sm:$0xf]
        %v1864 = vld [vmem:[%s7 + $0x18] sm:$0xf]
        %v1865 = vld [vmem:[%s7 + $0x1c] sm:$0xf]
        %v1866 = vpack.c.bf16 %v1857, %v1856
        %v1875 = vunpack.c.l.b16 %v1858
        %v1876 = vunpack.c.l.b16 %v1859
        %v1877 = vunpack.c.l.b16 %v1860
        %v1878 = vunpack.c.l.b16 %v1861
        %v1879 = vunpack.c.l.b16 %v1862
        %v1880 = vunpack.c.l.b16 %v1863
        %v1881 = vunpack.c.l.b16 %v1864
        %v1882 = vunpack.c.l.b16 %v1865
        %v1883 = vpack.c.b16 %v1876, %v1875
        %v1884 = vpack.c.b16 %v1878, %v1877
        %v1885 = vpack.c.b16 %v1880, %v1879
        %v1886 = vpack.c.b16 %v1882, %v1881
        %vm1887 = vcmask 130048
        %v1889 = vsel %vm1887, %v1883, 0
        %v1892 = vsel %vm1887, %v1884, 0
        %v1895 = vsel %vm1887, %v1885, 0
        %v1898 = vsel %vm1887, %v1886, 0
        %1900 = vmatprep.subr.bf16.mxu0 0
        %1901 = vmatpush1.bf16.msra.mxu0 %v1866
        %1902 = vmatprep.subr.bf16.mxu0 0
        %1903 = vmatpush1.bf16.msra.mxu0 0
        %1904 = vmatprep.subr.bf16.mxu0 0
        %1905 = vmatpush1.bf16.msra.mxu0 0
        %1906 = vmatprep.subr.bf16.mxu0 0
        %1907 = vmatpush1.bf16.msra.mxu0 0
        %1908 = vmatprep.subr.bf16.mxu0 0
        %1909 = vmatpush1.bf16.msra.mxu0 0
        %1910 = vmatprep.subr.bf16.mxu0 0
        %1911 = vmatpush1.bf16.msra.mxu0 0
        %1912 = vmatprep.subr.bf16.mxu0 0
        %1913 = vmatpush1.bf16.msra.mxu0 0
        %1914 = vmatprep.subr.bf16.mxu0 0
        %1915 = vmatpush1.bf16.msra.mxu0 0
        %1916 = vmatprep.subr.bf16.mxu0 0
        %1917 = vmatpush1.bf16.msra.mxu0 0
        %1918 = vmatprep.subr.bf16.mxu0 0
        %1919 = vmatpush1.bf16.msra.mxu0 0
        %1920 = vmatprep.subr.bf16.mxu0 0
        %1921 = vmatpush1.bf16.msra.mxu0 0
        %1922 = vmatprep.subr.bf16.mxu0 0
        %1923 = vmatpush1.bf16.msra.mxu0 0
        %1924 = vmatprep.subr.bf16.mxu0 0
        %1925 = vmatpush1.bf16.msra.mxu0 0
        %1926 = vmatprep.subr.bf16.mxu0 0
        %1927 = vmatpush1.bf16.msra.mxu0 0
        %1928 = vmatprep.subr.bf16.mxu0 0
        %1929 = vmatpush1.bf16.msra.mxu0 0
        %1930 = vmatprep.subr.bf16.mxu0 0
        %1931 = vmatpush1.bf16.msra.mxu0 0
        %1932 = vmatprep.mubr.bf16.mxu0 0
        %1933 = vmatmul.mubr.bf16.gmra.mrb[0].mxu0 %v1889
        %v1934 = vpop.f32.mrb[0].mxu0
        %v1935 = vadd.f32 0.0, %v1934
        %v1936 = vpop.f32.mrb[0].mxu0
        %v1937 = vpop.f32.mrb[0].mxu0
        %v1938 = vadd.f32 0.0, %v1937
        %v1939 = vpop.f32.mrb[0].mxu0
        %1940 = vmatprep.mubr.bf16.mxu0 0
        %1941 = vmatmul.mubr.bf16.gmra.mrb[0].mxu0 %v1892
        %v1942 = vpop.f32.mrb[0].mxu0
        %v1943 = vadd.f32 0.0, %v1942
        %v1944 = vpop.f32.mrb[0].mxu0
        %v1945 = vpop.f32.mrb[0].mxu0
        %v1946 = vadd.f32 0.0, %v1945
        %v1947 = vpop.f32.mrb[0].mxu0
        %1948 = vmatprep.mubr.bf16.mxu0 0
        %1949 = vmatmul.mubr.bf16.gmra.mrb[0].mxu0 %v1895
        %v1950 = vpop.f32.mrb[0].mxu0
        %v1951 = vadd.f32 0.0, %v1950
        %v1952 = vpop.f32.mrb[0].mxu0
        %v1953 = vpop.f32.mrb[0].mxu0
        %v1954 = vadd.f32 0.0, %v1953
        %v1955 = vpop.f32.mrb[0].mxu0
        %1956 = vmatprep.mubr.bf16.mxu0 0
        %1957 = vmatmul.mubr.bf16.gmra.mrb[0].mxu0 %v1898
        %v1958 = vpop.f32.mrb[0].mxu0
        %v1959 = vadd.f32 0.0, %v1958
        %v1960 = vpop.f32.mrb[0].mxu0
        %v1961 = vpop.f32.mrb[0].mxu0
        %v1962 = vadd.f32 0.0, %v1961
        %v1963 = vpop.f32.mrb[0].mxu0
        %1964 = vdwg.mxu0
        %s1965 = scalar_lea.vmem %s3, 288
        %v1966 = vld [vmem:[%s1965] sm:$0xf]
        %v1967 = vld [vmem:[%s1965 + $0x4] sm:$0xf]
        %v1968 = vld [vmem:[%s1965 + $0x8] sm:$0xf]
        %v1969 = vld [vmem:[%s1965 + $0xc] sm:$0xf]
        %v1970 = vld [vmem:[%s1965 + $0x10] sm:$0xf]
        %v1971 = vld [vmem:[%s1965 + $0x14] sm:$0xf]
        %v1972 = vld [vmem:[%s1965 + $0x18] sm:$0xf]
        %v1973 = vld [vmem:[%s1965 + $0x1c] sm:$0xf]
        %v1974 = vld [vmem:[%s1965 + $0x20] sm:$0xf]
        %v1975 = vld [vmem:[%s1965 + $0x24] sm:$0xf]
        %v1976 = vld [vmem:[%s1965 + $0x28] sm:$0xf]
        %v1977 = vld [vmem:[%s1965 + $0x2c] sm:$0xf]
        %v1978 = vld [vmem:[%s1965 + $0x30] sm:$0xf]
        %v1979 = vld [vmem:[%s1965 + $0x34] sm:$0xf]
        %v1980 = vld [vmem:[%s1965 + $0x38] sm:$0xf]
        %v1981 = vld [vmem:[%s1965 + $0x3c] sm:$0xf]
        %v1982 = vld [vmem:[%s1965 + $0x40] sm:$0xf]
        %v1983 = vld [vmem:[%s1965 + $0x44] sm:$0xf]
        %v1984 = vld [vmem:[%s1965 + $0x48] sm:$0xf]
        %v1985 = vld [vmem:[%s1965 + $0x4c] sm:$0xf]
        %v1986 = vld [vmem:[%s1965 + $0x50] sm:$0xf]
        %v1987 = vld [vmem:[%s1965 + $0x54] sm:$0xf]
        %v1988 = vld [vmem:[%s1965 + $0x58] sm:$0xf]
        %v1989 = vld [vmem:[%s1965 + $0x5c] sm:$0xf]
        %v1990 = vld [vmem:[%s1965 + $0x60] sm:$0xf]
        %v1991 = vld [vmem:[%s1965 + $0x64] sm:$0xf]
        %v1992 = vld [vmem:[%s1965 + $0x68] sm:$0xf]
        %v1993 = vld [vmem:[%s1965 + $0x6c] sm:$0xf]
        %v1994 = vld [vmem:[%s1965 + $0x70] sm:$0xf]
        %v1995 = vld [vmem:[%s1965 + $0x74] sm:$0xf]
        %v1996 = vld [vmem:[%s1965 + $0x78] sm:$0xf]
        %v1997 = vld [vmem:[%s1965 + $0x7c] sm:$0xf]
        %v1998 = vld [vmem:[%s1965 + $0x80] sm:$0xf]
        %v1999 = vld [vmem:[%s1965 + $0x84] sm:$0xf]
        %v2000 = vld [vmem:[%s1965 + $0x88] sm:$0xf]
        %v2001 = vld [vmem:[%s1965 + $0x8c] sm:$0xf]
        %s2002 = scalar_lea.vmem %s4, 2
        %v2003 = vld [vmem:[%s2002] sm:$0x1]
        %vm2012 = vcmask 1040384
        %v2013 = vrot.slane %v1935, 7
        %v2014 = vrot.slane %v1938, 7
        %v2015 = vsel %vm2012, %v2013, %v2014
        %v2016 = vrot.slane %v1943, 7
        %v2017 = vsel %vm2012, %v2014, %v2016
        %v2018 = vrot.slane %v1946, 7
        %v2019 = vsel %vm2012, %v2016, %v2018
        %v2020 = vrot.slane %v1951, 7
        %v2021 = vsel %vm2012, %v2018, %v2020
        %v2022 = vrot.slane %v1954, 7
        %v2023 = vsel %vm2012, %v2020, %v2022
        %v2024 = vrot.slane %v1959, 7
        %v2025 = vsel %vm2012, %v2022, %v2024
        %v2026 = vrot.slane %v1962, 7
        %v2027 = vsel %vm2012, %v2024, %v2026
        %v2037 = vsel %vm2012, 0.0, %v2013
        %v2038 = vsel %vm2012, %v2026, 0.0
        %v2039 = vsel %vm462, %v2037, 0.0
        %v2040 = vsel %vm463, %v2015, 0.0
        %v2041 = vsel %vm464, %v2017, 0.0
        %v2042 = vsel %vm465, %v2019, 0.0
        %v2043 = vsel %vm466, %v2021, 0.0
        %v2044 = vsel %vm467, %v2023, 0.0
        %v2045 = vsel %vm468, %v2025, 0.0
        %v2046 = vpack.c.bf16 %v2039, 0.0
        %v2047 = vpack.c.bf16 %v2041, %v2040
        %v2048 = vpack.c.bf16 %v2043, %v2042
        %v2049 = vpack.c.bf16 %v2045, %v2044
        %v2050 = vpack.c.bf16 %v2037, 0.0
        %v2051 = vpack.c.bf16 %v2017, %v2015
        %v2052 = vpack.c.bf16 %v2021, %v2019
        %v2053 = vpack.c.bf16 %v2025, %v2023
        %v2054 = vpack.c.bf16 %v2027, %v2027
        %v2056 = vrot.slane %v2037, 2
        %v2057 = vsel %vm1165, %v1204, %v2056
        %v2058 = vrot.slane %v2015, 2
        %v2059 = vsel %vm1165, %v2056, %v2058
        %v2060 = vrot.slane %v2017, 2
        %v2061 = vsel %vm1165, %v2058, %v2060
        %v2062 = vrot.slane %v2019, 2
        %v2063 = vsel %vm1165, %v2060, %v2062
        %v2064 = vrot.slane %v2021, 2
        %v2065 = vsel %vm1165, %v2062, %v2064
        %v2066 = vrot.slane %v2023, 2
        %v2067 = vsel %vm1165, %v2064, %v2066
        %v2068 = vrot.slane %v2025, 2
        %v2069 = vsel %vm1165, %v2066, %v2068
        %v2070 = vrot.slane %v2027, 2
        %v2071 = vsel %vm1165, %v2068, %v2070
        %v2080 = vsel %vm469, %v2057, 0.0
        %v2081 = vsel %vm470, %v2059, 0.0
        %v2082 = vsel %vm471, %v2061, 0.0
        %v2083 = vsel %vm472, %v2063, 0.0
        %v2084 = vsel %vm473, %v2065, 0.0
        %v2085 = vsel %vm474, %v2067, 0.0
        %v2086 = vsel %vm475, %v2069, 0.0
        %v2087 = vsel %vm476, %v2071, 0.0
        %v2088 = vpack.c.bf16 %v2081, %v2080
        %v2089 = vpack.c.bf16 %v2083, %v2082
        %v2090 = vpack.c.bf16 %v2085, %v2084
        %v2091 = vpack.c.bf16 %v2087, %v2086
        %v2092 = vsel %vm461, %v2037, 0.0
        %v2093 = vsel %vm462, %v2015, 0.0
        %v2094 = vsel %vm463, %v2017, 0.0
        %v2095 = vsel %vm464, %v2019, 0.0
        %v2096 = vsel %vm465, %v2021, 0.0
        %v2097 = vsel %vm466, %v2023, 0.0
        %v2098 = vsel %vm467, %v2025, 0.0
        %v2099 = vsel %vm468, %v2027, 0.0
        %v2100 = vpack.c.bf16 %v2093, %v2092
        %v2101 = vpack.c.bf16 %v2095, %v2094
        %v2102 = vpack.c.bf16 %v2097, %v2096
        %v2103 = vpack.c.bf16 %v2099, %v2098
        %v2104 = vpack.c.bf16 %v2015, %v2037
        %v2105 = vpack.c.bf16 %v2019, %v2017
        %v2106 = vpack.c.bf16 %v2023, %v2021
        %v2107 = vpack.c.bf16 %v2027, %v2025
        %v2108 = vpack.c.bf16 %v2038, %v2038
        %v2110 = vrot.slane %v2038, 2
        %v2111 = vsel %vm1165, %v2070, %v2110
        %v2113 = vsel %vm469, %v2059, 0.0
        %v2114 = vsel %vm470, %v2061, 0.0
        %v2115 = vsel %vm471, %v2063, 0.0
        %v2116 = vsel %vm472, %v2065, 0.0
        %v2117 = vsel %vm473, %v2067, 0.0
        %v2118 = vsel %vm474, %v2069, 0.0
        %v2119 = vsel %vm475, %v2071, 0.0
        %v2120 = vsel %vm476, %v2111, 0.0
        %v2121 = vpack.c.bf16 %v2114, %v2113
        %v2122 = vpack.c.bf16 %v2116, %v2115
        %v2123 = vpack.c.bf16 %v2118, %v2117
        %v2124 = vpack.c.bf16 %v2120, %v2119
        %v2125 = vsel %vm461, %v2015, 0.0
        %v2126 = vsel %vm462, %v2017, 0.0
        %v2127 = vsel %vm463, %v2019, 0.0
        %v2128 = vsel %vm464, %v2021, 0.0
        %v2129 = vsel %vm465, %v2023, 0.0
        %v2130 = vsel %vm466, %v2025, 0.0
        %v2131 = vsel %vm467, %v2027, 0.0
        %v2132 = vsel %vm468, %v2038, 0.0
        %v2133 = vpack.c.bf16 %v2126, %v2125
        %v2134 = vpack.c.bf16 %v2128, %v2127
        %v2135 = vpack.c.bf16 %v2130, %v2129
        %v2136 = vpack.c.bf16 %v2132, %v2131
        %v2137 = vpack.c.bf16 %v2038, %v2027
        %v2138 = vsel %vm1165, %v2110, %v1204
        %v2140 = vsel %vm469, %v2061, 0.0
        %v2141 = vsel %vm470, %v2063, 0.0
        %v2142 = vsel %vm471, %v2065, 0.0
        %v2143 = vsel %vm472, %v2067, 0.0
        %v2144 = vsel %vm473, %v2069, 0.0
        %v2145 = vsel %vm474, %v2071, 0.0
        %v2146 = vsel %vm475, %v2111, 0.0
        %v2147 = vsel %vm476, %v2138, 0.0
        %v2148 = vpack.c.bf16 %v2141, %v2140
        %v2149 = vpack.c.bf16 %v2143, %v2142
        %v2150 = vpack.c.bf16 %v2145, %v2144
        %v2151 = vpack.c.bf16 %v2147, %v2146
        %v2153 = vshrl.u32 %v2050, 16
        %v2155 = vshll.u32 %v2050, 16
        %v2157 = vrot.slane %v2155, 1
        %v2158 = vor.u32 %v2153, %v2157
        %v2160 = vshll.u32 %v2051, 16
        %v2162 = vrot.slane %v2160, 1
        %v2163 = vsel %vm1210, %v2158, %v2162
        %v2164 = vshrl.u32 %v2051, 16
        %v2166 = vor.u32 %v2164, %v2162
        %v2168 = vshll.u32 %v2052, 16
        %v2170 = vrot.slane %v2168, 1
        %v2171 = vsel %vm1210, %v2166, %v2170
        %v2172 = vshrl.u32 %v2052, 16
        %v2174 = vor.u32 %v2172, %v2170
        %v2176 = vshll.u32 %v2053, 16
        %v2178 = vrot.slane %v2176, 1
        %v2179 = vsel %vm1210, %v2174, %v2178
        %v2180 = vshrl.u32 %v2053, 16
        %v2182 = vor.u32 %v2180, %v2178
        %v2184 = vshll.u32 %v2054, 16
        %v2186 = vrot.slane %v2184, 1
        %v2187 = vsel %vm1210, %v2182, %v2186
        %2188 = vrot.lane.b32.xlu0 %v2163, 32
        %v2189 = vpop.permute.xlu0 %2188
        %2190 = vrot.lane.b32.xlu0 %v2171, 32
        %v2191 = vpop.permute.xlu0 %2190
        %2192 = vrot.lane.b32.xlu0 %v2179, 32
        %v2193 = vpop.permute.xlu0 %2192
        %2194 = vrot.lane.b32.xlu0 %v2187, 32
        %v2195 = vpop.permute.xlu0 %2194
        %2200 = vrot.lane.b32.xlu0 %v2088, 64
        %v2201 = vpop.permute.xlu0 %2200
        %2202 = vrot.lane.b32.xlu0 %v2089, 64
        %v2203 = vpop.permute.xlu0 %2202
        %2204 = vrot.lane.b32.xlu0 %v2090, 64
        %v2205 = vpop.permute.xlu0 %2204
        %2206 = vrot.lane.b32.xlu0 %v2091, 64
        %v2207 = vpop.permute.xlu0 %2206
        %2212 = vrot.lane.b32.xlu0 %v2100, 96
        %v2213 = vpop.permute.xlu0 %2212
        %2214 = vrot.lane.b32.xlu0 %v2101, 96
        %v2215 = vpop.permute.xlu0 %2214
        %2216 = vrot.lane.b32.xlu0 %v2102, 96
        %v2217 = vpop.permute.xlu0 %2216
        %2218 = vrot.lane.b32.xlu0 %v2103, 96
        %v2219 = vpop.permute.xlu0 %2218
        %v2221 = vshrl.u32 %v2104, 16
        %v2223 = vshll.u32 %v2104, 16
        %v2225 = vrot.slane %v2223, 1
        %v2226 = vor.u32 %v2221, %v2225
        %v2228 = vshll.u32 %v2105, 16
        %v2230 = vrot.slane %v2228, 1
        %v2231 = vsel %vm1210, %v2226, %v2230
        %v2232 = vshrl.u32 %v2105, 16
        %v2234 = vor.u32 %v2232, %v2230
        %v2236 = vshll.u32 %v2106, 16
        %v2238 = vrot.slane %v2236, 1
        %v2239 = vsel %vm1210, %v2234, %v2238
        %v2240 = vshrl.u32 %v2106, 16
        %v2242 = vor.u32 %v2240, %v2238
        %v2244 = vshll.u32 %v2107, 16
        %v2246 = vrot.slane %v2244, 1
        %v2247 = vsel %vm1210, %v2242, %v2246
        %v2248 = vshrl.u32 %v2107, 16
        %v2250 = vor.u32 %v2248, %v2246
        %v2252 = vshll.u32 %v2108, 16
        %v2254 = vrot.slane %v2252, 1
        %v2255 = vsel %vm1210, %v2250, %v2254
        %2260 = vrot.lane.b32.xlu0 %v2121, 32
        %v2261 = vpop.permute.xlu0 %2260
        %2262 = vrot.lane.b32.xlu0 %v2122, 32
        %v2263 = vpop.permute.xlu0 %2262
        %2264 = vrot.lane.b32.xlu0 %v2123, 32
        %v2265 = vpop.permute.xlu0 %2264
        %2266 = vrot.lane.b32.xlu0 %v2124, 32
        %v2267 = vpop.permute.xlu0 %2266
        %2272 = vrot.lane.b32.xlu0 %v2133, 64
        %v2273 = vpop.permute.xlu0 %2272
        %2274 = vrot.lane.b32.xlu0 %v2134, 64
        %v2275 = vpop.permute.xlu0 %2274
        %2276 = vrot.lane.b32.xlu0 %v2135, 64
        %v2277 = vpop.permute.xlu0 %2276
        %2278 = vrot.lane.b32.xlu0 %v2136, 64
        %v2279 = vpop.permute.xlu0 %2278
        %v2281 = vshll.u32 %v2137, 16
        %v2283 = vrot.slane %v2281, 1
        %v2284 = vsel %vm1210, %v2182, %v2283
        %v2285 = vshrl.u32 %v2137, 16
        %v2287 = vor.u32 %v2285, %v2283
        %v2288 = vsel %vm1210, %v2287, %v1257
        %2289 = vrot.lane.b32.xlu0 %v2171, 96
        %v2290 = vpop.permute.xlu0 %2289
        %2291 = vrot.lane.b32.xlu0 %v2179, 96
        %v2292 = vpop.permute.xlu0 %2291
        %2293 = vrot.lane.b32.xlu0 %v2284, 96
        %v2294 = vpop.permute.xlu0 %2293
        %2295 = vrot.lane.b32.xlu0 %v2288, 96
        %v2296 = vpop.permute.xlu0 %2295
        %v2299 = vsel %vm1261, %v2046, %v2189
        %v2302 = vsel %vm1261, %v2047, %v2191
        %v2305 = vsel %vm1261, %v2048, %v2193
        %v2308 = vsel %vm1261, %v2049, %v2195
        %v2310 = vsel %vm1265, %v2299, %v2201
        %v2312 = vsel %vm1265, %v2302, %v2203
        %v2314 = vsel %vm1265, %v2305, %v2205
        %v2316 = vsel %vm1265, %v2308, %v2207
        %v2318 = vsel %vm1268, %v2310, %v2213
        %v2321 = vsel %vm1268, %v2312, %v2215
        %v2324 = vsel %vm1268, %v2314, %v2217
        %v2327 = vsel %vm1268, %v2316, %v2219
        %v2331 = vsel %vm1261, %v2231, %v2261
        %v2334 = vsel %vm1261, %v2239, %v2263
        %v2337 = vsel %vm1261, %v2247, %v2265
        %v2340 = vsel %vm1261, %v2255, %v2267
        %v2342 = vsel %vm1265, %v2331, %v2273
        %v2344 = vsel %vm1265, %v2334, %v2275
        %v2346 = vsel %vm1265, %v2337, %v2277
        %v2348 = vsel %vm1265, %v2340, %v2279
        %v2350 = vsel %vm1268, %v2342, %v2290
        %v2353 = vsel %vm1268, %v2344, %v2292
        %v2356 = vsel %vm1268, %v2346, %v2294
        %v2359 = vsel %vm1268, %v2348, %v2296
        %v2362 = vlaneseq
        %v2363 = vshrl.u32 %v2362, 7
        %v2364 = vsub.s32 0, %v2363
        %v2365 = vrot.slane %v2003, %v2364
        %v2403 = vunpack.c.l.b16 %v1966
        %v2404 = vunpack.c.l.b16 %v1967
        %v2405 = vunpack.c.l.b16 %v1968
        %v2406 = vunpack.c.l.b16 %v1969
        %v2407 = vunpack.c.l.b16 %v1970
        %v2408 = vunpack.c.l.b16 %v1971
        %v2409 = vunpack.c.l.b16 %v1972
        %v2410 = vunpack.c.l.b16 %v1973
        %v2411 = vunpack.c.l.b16 %v1974
        %v2412 = vunpack.c.l.b16 %v1975
        %v2413 = vunpack.c.l.b16 %v1976
        %v2414 = vunpack.c.l.b16 %v1977
        %v2415 = vunpack.c.l.b16 %v1978
        %v2416 = vunpack.c.l.b16 %v1979
        %v2417 = vunpack.c.l.b16 %v1980
        %v2418 = vunpack.c.l.b16 %v1981
        %v2419 = vunpack.c.l.b16 %v1982
        %v2420 = vunpack.c.l.b16 %v1983
        %v2421 = vunpack.c.l.b16 %v1984
        %v2422 = vunpack.c.l.b16 %v1985
        %v2423 = vunpack.c.l.b16 %v1986
        %v2424 = vunpack.c.l.b16 %v1987
        %v2425 = vunpack.c.l.b16 %v1988
        %v2426 = vunpack.c.l.b16 %v1989
        %v2427 = vunpack.c.l.b16 %v1990
        %v2428 = vunpack.c.l.b16 %v1991
        %v2429 = vunpack.c.l.b16 %v1992
        %v2430 = vunpack.c.l.b16 %v1993
        %v2431 = vunpack.c.l.b16 %v1994
        %v2432 = vunpack.c.l.b16 %v1995
        %v2433 = vunpack.c.l.b16 %v1996
        %v2434 = vunpack.c.l.b16 %v1997
        %v2435 = vunpack.c.l.b16 %v1998
        %v2436 = vunpack.c.l.b16 %v1999
        %v2437 = vunpack.c.l.b16 %v2000
        %v2438 = vunpack.c.l.b16 %v2001
        %v2439 = vpack.c.b16 %v2404, %v2403
        %v2440 = vpack.c.b16 %v2406, %v2405
        %v2441 = vpack.c.b16 %v2408, %v2407
        %v2442 = vpack.c.b16 %v2410, %v2409
        %v2443 = vpack.c.b16 %v2412, %v2411
        %v2444 = vpack.c.b16 %v2414, %v2413
        %v2445 = vpack.c.b16 %v2416, %v2415
        %v2446 = vpack.c.b16 %v2418, %v2417
        %v2447 = vpack.c.b16 %v2420, %v2419
        %v2448 = vpack.c.b16 %v2422, %v2421
        %v2449 = vpack.c.b16 %v2424, %v2423
        %v2450 = vpack.c.b16 %v2426, %v2425
        %v2451 = vpack.c.b16 %v2428, %v2427
        %v2452 = vpack.c.b16 %v2430, %v2429
        %v2453 = vpack.c.b16 %v2432, %v2431
        %v2454 = vpack.c.b16 %v2434, %v2433
        %v2455 = vpack.c.b16 %v2436, %v2435
        %v2456 = vpack.c.b16 %v2438, %v2437
        %v2476 = vsel %vm1261, %v2148, 0
        %v2479 = vsel %vm1261, %v2149, 0
        %v2482 = vsel %vm1261, %v2150, 0
        %v2485 = vsel %vm1261, %v2151, 0
        %2487 = vmatprep.subr.bf16.mxu0 0
        %2488 = vmatpush1.bf16.msra.mxu0 %v2439
        %2489 = vmatprep.subr.bf16.mxu0 0
        %2490 = vmatpush1.bf16.msra.mxu0 %v2440
        %2491 = vmatprep.subr.bf16.mxu0 0
        %2492 = vmatpush1.bf16.msra.mxu0 %v2441
        %2493 = vmatprep.subr.bf16.mxu0 0
        %2494 = vmatpush1.bf16.msra.mxu0 %v2442
        %2495 = vmatprep.subr.bf16.mxu0 0
        %2496 = vmatpush1.bf16.msra.mxu0 %v2443
        %2497 = vmatprep.subr.bf16.mxu0 0
        %2498 = vmatpush1.bf16.msra.mxu0 %v2444
        %2499 = vmatprep.subr.bf16.mxu0 0
        %2500 = vmatpush1.bf16.msra.mxu0 %v2445
        %2501 = vmatprep.subr.bf16.mxu0 0
        %2502 = vmatpush1.bf16.msra.mxu0 %v2446
        %2503 = vmatprep.subr.bf16.mxu0 0
        %2504 = vmatpush1.bf16.msra.mxu0 %v2447
        %2505 = vmatprep.subr.bf16.mxu0 0
        %2506 = vmatpush1.bf16.msra.mxu0 %v2448
        %2507 = vmatprep.subr.bf16.mxu0 0
        %2508 = vmatpush1.bf16.msra.mxu0 %v2449
        %2509 = vmatprep.subr.bf16.mxu0 0
        %2510 = vmatpush1.bf16.msra.mxu0 %v2450
        %2511 = vmatprep.subr.bf16.mxu0 0
        %2512 = vmatpush1.bf16.msra.mxu0 %v2451
        %2513 = vmatprep.subr.bf16.mxu0 0
        %2514 = vmatpush1.bf16.msra.mxu0 %v2452
        %2515 = vmatprep.subr.bf16.mxu0 0
        %2516 = vmatpush1.bf16.msra.mxu0 %v2453
        %2517 = vmatprep.subr.bf16.mxu0 0
        %2518 = vmatpush1.bf16.msra.mxu0 %v2454
        %2519 = vmatprep.mubr.bf16.mxu0 %v2350
        %2520 = vmatmul.mubr.bf16.gmra.mrb[0].mxu0 %v2318
        %v2521 = vpop.f32.mrb[0].mxu0
        %v2522 = vadd.f32 %v2365, %v2521
        %v2523 = vpop.f32.mrb[0].mxu0
        %v2524 = vpop.f32.mrb[0].mxu0
        %v2525 = vadd.f32 %v2365, %v2524
        %v2526 = vpop.f32.mrb[0].mxu0
        %2527 = vmatprep.mubr.bf16.mxu0 %v2353
        %2528 = vmatmul.mubr.bf16.gmra.mrb[0].mxu0 %v2321
        %v2529 = vpop.f32.mrb[0].mxu0
        %v2530 = vadd.f32 %v2365, %v2529
        %v2531 = vpop.f32.mrb[0].mxu0
        %v2532 = vpop.f32.mrb[0].mxu0
        %v2533 = vadd.f32 %v2365, %v2532
        %v2534 = vpop.f32.mrb[0].mxu0
        %2535 = vmatprep.mubr.bf16.mxu0 %v2356
        %2536 = vmatmul.mubr.bf16.gmra.mrb[0].mxu0 %v2324
        %v2537 = vpop.f32.mrb[0].mxu0
        %v2538 = vadd.f32 %v2365, %v2537
        %v2539 = vpop.f32.mrb[0].mxu0
        %v2540 = vpop.f32.mrb[0].mxu0
        %v2541 = vadd.f32 %v2365, %v2540
        %v2542 = vpop.f32.mrb[0].mxu0
        %2543 = vmatprep.mubr.bf16.mxu0 %v2359
        %2544 = vmatmul.mubr.bf16.gmra.mrb[0].mxu0 %v2327
        %v2545 = vpop.f32.mrb[0].mxu0
        %v2546 = vadd.f32 %v2365, %v2545
        %v2547 = vpop.f32.mrb[0].mxu0
        %v2548 = vpop.f32.mrb[0].mxu0
        %v2549 = vadd.f32 %v2365, %v2548
        %v2550 = vpop.f32.mrb[0].mxu0
        %2551 = vdwg.mxu0
        %2552 = vmatprep.subr.bf16.mxu0 0
        %2553 = vmatpush1.bf16.msra.mxu0 %v2455
        %2554 = vmatprep.subr.bf16.mxu0 0
        %2555 = vmatpush1.bf16.msra.mxu0 %v2456
        %2556 = vmatprep.subr.bf16.mxu0 0
        %2557 = vmatpush1.bf16.msra.mxu0 0
        %2558 = vmatprep.subr.bf16.mxu0 0
        %2559 = vmatpush1.bf16.msra.mxu0 0
        %2560 = vmatprep.subr.bf16.mxu0 0
        %2561 = vmatpush1.bf16.msra.mxu0 0
        %2562 = vmatprep.subr.bf16.mxu0 0
        %2563 = vmatpush1.bf16.msra.mxu0 0
        %2564 = vmatprep.subr.bf16.mxu0 0
        %2565 = vmatpush1.bf16.msra.mxu0 0
        %2566 = vmatprep.subr.bf16.mxu0 0
        %2567 = vmatpush1.bf16.msra.mxu0 0
        %2568 = vmatprep.subr.bf16.mxu0 0
        %2569 = vmatpush1.bf16.msra.mxu0 0
        %2570 = vmatprep.subr.bf16.mxu0 0
        %2571 = vmatpush1.bf16.msra.mxu0 0
        %2572 = vmatprep.subr.bf16.mxu0 0
        %2573 = vmatpush1.bf16.msra.mxu0 0
        %2574 = vmatprep.subr.bf16.mxu0 0
        %2575 = vmatpush1.bf16.msra.mxu0 0
        %2576 = vmatprep.subr.bf16.mxu0 0
        %2577 = vmatpush1.bf16.msra.mxu0 0
        %2578 = vmatprep.subr.bf16.mxu0 0
        %2579 = vmatpush1.bf16.msra.mxu0 0
        %2580 = vmatprep.subr.bf16.mxu0 0
        %2581 = vmatpush1.bf16.msra.mxu0 0
        %2582 = vmatprep.subr.bf16.mxu0 0
        %2583 = vmatpush1.bf16.msra.mxu0 0
        %2584 = vmatprep.mubr.bf16.mxu0 0
        %2585 = vmatmul.mubr.bf16.gmra.mrb[0].mxu0 %v2476
        %v2586 = vpop.f32.mrb[0].mxu0
        %v2587 = vadd.f32 %v2522, %v2586
        %v2588 = vpop.f32.mrb[0].mxu0
        %v2589 = vpop.f32.mrb[0].mxu0
        %v2590 = vadd.f32 %v2525, %v2589
        %v2591 = vpop.f32.mrb[0].mxu0
        %2592 = vmatprep.mubr.bf16.mxu0 0
        %2593 = vmatmul.mubr.bf16.gmra.mrb[0].mxu0 %v2479
        %v2594 = vpop.f32.mrb[0].mxu0
        %v2595 = vadd.f32 %v2530, %v2594
        %v2596 = vpop.f32.mrb[0].mxu0
        %v2597 = vpop.f32.mrb[0].mxu0
        %v2598 = vadd.f32 %v2533, %v2597
        %v2599 = vpop.f32.mrb[0].mxu0
        %2600 = vmatprep.mubr.bf16.mxu0 0
        %2601 = vmatmul.mubr.bf16.gmra.mrb[0].mxu0 %v2482
        %v2602 = vpop.f32.mrb[0].mxu0
        %v2603 = vadd.f32 %v2538, %v2602
        %v2604 = vpop.f32.mrb[0].mxu0
        %v2605 = vpop.f32.mrb[0].mxu0
        %v2606 = vadd.f32 %v2541, %v2605
        %v2607 = vpop.f32.mrb[0].mxu0
        %2608 = vmatprep.mubr.bf16.mxu0 0
        %2609 = vmatmul.mubr.bf16.gmra.mrb[0].mxu0 %v2485
        %v2610 = vpop.f32.mrb[0].mxu0
        %v2611 = vadd.f32 %v2546, %v2610
        %v2612 = vpop.f32.mrb[0].mxu0
        %v2613 = vpop.f32.mrb[0].mxu0
        %v2614 = vadd.f32 %v2549, %v2613
        %v2615 = vpop.f32.mrb[0].mxu0
        %2616 = vdwg.mxu0
        %vm2617 = vcmp.gt.f32.partialorder %v2587, 0.0
        %vm2618 = vcmp.gt.f32.partialorder %v2590, 0.0
        %vm2619 = vcmp.gt.f32.partialorder %v2595, 0.0
        %vm2620 = vcmp.gt.f32.partialorder %v2598, 0.0
        %vm2621 = vcmp.gt.f32.partialorder %v2603, 0.0
        %vm2622 = vcmp.gt.f32.partialorder %v2606, 0.0
        %vm2623 = vcmp.gt.f32.partialorder %v2611, 0.0
        %vm2624 = vcmp.gt.f32.partialorder %v2614, 0.0
        %v2625 = vmin.f32 %v2587, 0.0
        %v2626 = vmin.f32 %v2590, 0.0
        %v2627 = vmin.f32 %v2595, 0.0
        %v2628 = vmin.f32 %v2598, 0.0
        %v2629 = vmin.f32 %v2603, 0.0
        %v2630 = vmin.f32 %v2606, 0.0
        %v2631 = vmin.f32 %v2611, 0.0
        %v2632 = vmin.f32 %v2614, 0.0
        %v2633 = vmul.f32 %v2625, 1.442695
        %v2634 = vpow.pop %v2633
        %v2635 = vmul.f32 %v2626, 1.442695
        %v2636 = vpow.pop %v2635
        %v2637 = vmul.f32 %v2627, 1.442695
        %v2638 = vpow.pop %v2637
        %v2639 = vmul.f32 %v2628, 1.442695
        %v2640 = vpow.pop %v2639
        %v2641 = vmul.f32 %v2629, 1.442695
        %v2642 = vpow.pop %v2641
        %v2643 = vmul.f32 %v2630, 1.442695
        %v2644 = vpow.pop %v2643
        %v2645 = vmul.f32 %v2631, 1.442695
        %v2646 = vpow.pop %v2645
        %v2647 = vmul.f32 %v2632, 1.442695
        %v2648 = vpow.pop %v2647
        %v2649 = vsub.f32 %v2634, 1.0
        %v2650 = vsub.f32 %v2636, 1.0
        %v2651 = vsub.f32 %v2638, 1.0
        %v2652 = vsub.f32 %v2640, 1.0
        %v2653 = vsub.f32 %v2642, 1.0
        %v2654 = vsub.f32 %v2644, 1.0
        %v2655 = vsub.f32 %v2646, 1.0
        %v2656 = vsub.f32 %v2648, 1.0
        %v2657 = vsel %vm2617, %v2587, %v2649
        %v2658 = vsel %vm2618, %v2590, %v2650
        %v2659 = vsel %vm2619, %v2595, %v2651
        %v2660 = vsel %vm2620, %v2598, %v2652
        %v2661 = vsel %vm2621, %v2603, %v2653
        %v2662 = vsel %vm2622, %v2606, %v2654
        %v2663 = vsel %vm2623, %v2611, %v2655
        %v2664 = vsel %vm2624, %v2614, %v2656
        %s2665 = scalar_lea.vmem %s3, 432
        %v2666 = vld [vmem:[%s2665] sm:$0xf]
        %v2667 = vld [vmem:[%s2665 + $0x4] sm:$0xf]
        %v2668 = vld [vmem:[%s2665 + $0x8] sm:$0xf]
        %v2669 = vld [vmem:[%s2665 + $0xc] sm:$0xf]
        %v2670 = vld [vmem:[%s2665 + $0x10] sm:$0xf]
        %v2671 = vld [vmem:[%s2665 + $0x14] sm:$0xf]
        %v2672 = vld [vmem:[%s2665 + $0x18] sm:$0xf]
        %v2673 = vld [vmem:[%s2665 + $0x1c] sm:$0xf]
        %v2674 = vld [vmem:[%s2665 + $0x20] sm:$0xf]
        %v2675 = vld [vmem:[%s2665 + $0x24] sm:$0xf]
        %v2676 = vld [vmem:[%s2665 + $0x28] sm:$0xf]
        %v2677 = vld [vmem:[%s2665 + $0x2c] sm:$0xf]
        %v2678 = vld [vmem:[%s2665 + $0x30] sm:$0xf]
        %v2679 = vld [vmem:[%s2665 + $0x34] sm:$0xf]
        %v2680 = vld [vmem:[%s2665 + $0x38] sm:$0xf]
        %v2681 = vld [vmem:[%s2665 + $0x3c] sm:$0xf]
        %v2682 = vld [vmem:[%s2665 + $0x40] sm:$0xf]
        %v2683 = vld [vmem:[%s2665 + $0x44] sm:$0xf]
        %v2684 = vld [vmem:[%s2665 + $0x48] sm:$0xf]
        %v2685 = vld [vmem:[%s2665 + $0x4c] sm:$0xf]
        %v2686 = vld [vmem:[%s2665 + $0x50] sm:$0xf]
        %v2687 = vld [vmem:[%s2665 + $0x54] sm:$0xf]
        %v2688 = vld [vmem:[%s2665 + $0x58] sm:$0xf]
        %v2689 = vld [vmem:[%s2665 + $0x5c] sm:$0xf]
        %v2690 = vld [vmem:[%s2665 + $0x60] sm:$0xf]
        %v2691 = vld [vmem:[%s2665 + $0x64] sm:$0xf]
        %v2692 = vld [vmem:[%s2665 + $0x68] sm:$0xf]
        %v2693 = vld [vmem:[%s2665 + $0x6c] sm:$0xf]
        %v2694 = vld [vmem:[%s2665 + $0x70] sm:$0xf]
        %v2695 = vld [vmem:[%s2665 + $0x74] sm:$0xf]
        %v2696 = vld [vmem:[%s2665 + $0x78] sm:$0xf]
        %v2697 = vld [vmem:[%s2665 + $0x7c] sm:$0xf]
        %v2698 = vld [vmem:[%s2665 + $0x80] sm:$0xf]
        %v2699 = vld [vmem:[%s2665 + $0x84] sm:$0xf]
        %v2700 = vld [vmem:[%s2665 + $0x88] sm:$0xf]
        %v2701 = vld [vmem:[%s2665 + $0x8c] sm:$0xf]
        %s2702 = scalar_lea.vmem %s4, 3
        %v2703 = vld [vmem:[%s2702] sm:$0x1]
        %v2712 = vrot.slane %v2657, 7
        %v2713 = vrot.slane %v2658, 7
        %v2714 = vsel %vm2012, %v2712, %v2713
        %v2715 = vrot.slane %v2659, 7
        %v2716 = vsel %vm2012, %v2713, %v2715
        %v2717 = vrot.slane %v2660, 7
        %v2718 = vsel %vm2012, %v2715, %v2717
        %v2719 = vrot.slane %v2661, 7
        %v2720 = vsel %vm2012, %v2717, %v2719
        %v2721 = vrot.slane %v2662, 7
        %v2722 = vsel %vm2012, %v2719, %v2721
        %v2723 = vrot.slane %v2663, 7
        %v2724 = vsel %vm2012, %v2721, %v2723
        %v2725 = vrot.slane %v2664, 7
        %v2726 = vsel %vm2012, %v2723, %v2725
        %v2736 = vsel %vm2012, 0.0, %v2712
        %v2737 = vsel %vm2012, %v2725, 0.0
        %v2738 = vsel %vm462, %v2736, 0.0
        %v2739 = vsel %vm463, %v2714, 0.0
        %v2740 = vsel %vm464, %v2716, 0.0
        %v2741 = vsel %vm465, %v2718, 0.0
        %v2742 = vsel %vm466, %v2720, 0.0
        %v2743 = vsel %vm467, %v2722, 0.0
        %v2744 = vsel %vm468, %v2724, 0.0
        %v2745 = vpack.c.bf16 %v2738, 0.0
        %v2746 = vpack.c.bf16 %v2740, %v2739
        %v2747 = vpack.c.bf16 %v2742, %v2741
        %v2748 = vpack.c.bf16 %v2744, %v2743
        %v2749 = vpack.c.bf16 %v2736, 0.0
        %v2750 = vpack.c.bf16 %v2716, %v2714
        %v2751 = vpack.c.bf16 %v2720, %v2718
        %v2752 = vpack.c.bf16 %v2724, %v2722
        %v2753 = vpack.c.bf16 %v2726, %v2726
        %v2755 = vrot.slane %v2736, 2
        %v2756 = vsel %vm1165, %v1204, %v2755
        %v2757 = vrot.slane %v2714, 2
        %v2758 = vsel %vm1165, %v2755, %v2757
        %v2759 = vrot.slane %v2716, 2
        %v2760 = vsel %vm1165, %v2757, %v2759
        %v2761 = vrot.slane %v2718, 2
        %v2762 = vsel %vm1165, %v2759, %v2761
        %v2763 = vrot.slane %v2720, 2
        %v2764 = vsel %vm1165, %v2761, %v2763
        %v2765 = vrot.slane %v2722, 2
        %v2766 = vsel %vm1165, %v2763, %v2765
        %v2767 = vrot.slane %v2724, 2
        %v2768 = vsel %vm1165, %v2765, %v2767
        %v2769 = vrot.slane %v2726, 2
        %v2770 = vsel %vm1165, %v2767, %v2769
        %v2779 = vsel %vm469, %v2756, 0.0
        %v2780 = vsel %vm470, %v2758, 0.0
        %v2781 = vsel %vm471, %v2760, 0.0
        %v2782 = vsel %vm472, %v2762, 0.0
        %v2783 = vsel %vm473, %v2764, 0.0
        %v2784 = vsel %vm474, %v2766, 0.0
        %v2785 = vsel %vm475, %v2768, 0.0
        %v2786 = vsel %vm476, %v2770, 0.0
        %v2787 = vpack.c.bf16 %v2780, %v2779
        %v2788 = vpack.c.bf16 %v2782, %v2781
        %v2789 = vpack.c.bf16 %v2784, %v2783
        %v2790 = vpack.c.bf16 %v2786, %v2785
        %v2791 = vsel %vm461, %v2736, 0.0
        %v2792 = vsel %vm462, %v2714, 0.0
        %v2793 = vsel %vm463, %v2716, 0.0
        %v2794 = vsel %vm464, %v2718, 0.0
        %v2795 = vsel %vm465, %v2720, 0.0
        %v2796 = vsel %vm466, %v2722, 0.0
        %v2797 = vsel %vm467, %v2724, 0.0
        %v2798 = vsel %vm468, %v2726, 0.0
        %v2799 = vpack.c.bf16 %v2792, %v2791
        %v2800 = vpack.c.bf16 %v2794, %v2793
        %v2801 = vpack.c.bf16 %v2796, %v2795
        %v2802 = vpack.c.bf16 %v2798, %v2797
        %v2803 = vpack.c.bf16 %v2714, %v2736
        %v2804 = vpack.c.bf16 %v2718, %v2716
        %v2805 = vpack.c.bf16 %v2722, %v2720
        %v2806 = vpack.c.bf16 %v2726, %v2724
        %v2807 = vpack.c.bf16 %v2737, %v2737
        %v2809 = vrot.slane %v2737, 2
        %v2810 = vsel %vm1165, %v2769, %v2809
        %v2812 = vsel %vm469, %v2758, 0.0
        %v2813 = vsel %vm470, %v2760, 0.0
        %v2814 = vsel %vm471, %v2762, 0.0
        %v2815 = vsel %vm472, %v2764, 0.0
        %v2816 = vsel %vm473, %v2766, 0.0
        %v2817 = vsel %vm474, %v2768, 0.0
        %v2818 = vsel %vm475, %v2770, 0.0
        %v2819 = vsel %vm476, %v2810, 0.0
        %v2820 = vpack.c.bf16 %v2813, %v2812
        %v2821 = vpack.c.bf16 %v2815, %v2814
        %v2822 = vpack.c.bf16 %v2817, %v2816
        %v2823 = vpack.c.bf16 %v2819, %v2818
        %v2824 = vsel %vm461, %v2714, 0.0
        %v2825 = vsel %vm462, %v2716, 0.0
        %v2826 = vsel %vm463, %v2718, 0.0
        %v2827 = vsel %vm464, %v2720, 0.0
        %v2828 = vsel %vm465, %v2722, 0.0
        %v2829 = vsel %vm466, %v2724, 0.0
        %v2830 = vsel %vm467, %v2726, 0.0
        %v2831 = vsel %vm468, %v2737, 0.0
        %v2832 = vpack.c.bf16 %v2825, %v2824
        %v2833 = vpack.c.bf16 %v2827, %v2826
        %v2834 = vpack.c.bf16 %v2829, %v2828
        %v2835 = vpack.c.bf16 %v2831, %v2830
        %v2836 = vpack.c.bf16 %v2737, %v2726
        %v2837 = vsel %vm1165, %v2809, %v1204
        %v2839 = vsel %vm469, %v2760, 0.0
        %v2840 = vsel %vm470, %v2762, 0.0
        %v2841 = vsel %vm471, %v2764, 0.0
        %v2842 = vsel %vm472, %v2766, 0.0
        %v2843 = vsel %vm473, %v2768, 0.0
        %v2844 = vsel %vm474, %v2770, 0.0
        %v2845 = vsel %vm475, %v2810, 0.0
        %v2846 = vsel %vm476, %v2837, 0.0
        %v2847 = vpack.c.bf16 %v2840, %v2839
        %v2848 = vpack.c.bf16 %v2842, %v2841
        %v2849 = vpack.c.bf16 %v2844, %v2843
        %v2850 = vpack.c.bf16 %v2846, %v2845
        %v2852 = vshrl.u32 %v2749, 16
        %v2854 = vshll.u32 %v2749, 16
        %v2856 = vrot.slane %v2854, 1
        %v2857 = vor.u32 %v2852, %v2856
        %v2859 = vshll.u32 %v2750, 16
        %v2861 = vrot.slane %v2859, 1
        %v2862 = vsel %vm1210, %v2857, %v2861
        %v2863 = vshrl.u32 %v2750, 16
        %v2865 = vor.u32 %v2863, %v2861
        %v2867 = vshll.u32 %v2751, 16
        %v2869 = vrot.slane %v2867, 1
        %v2870 = vsel %vm1210, %v2865, %v2869
        %v2871 = vshrl.u32 %v2751, 16
        %v2873 = vor.u32 %v2871, %v2869
        %v2875 = vshll.u32 %v2752, 16
        %v2877 = vrot.slane %v2875, 1
        %v2878 = vsel %vm1210, %v2873, %v2877
        %v2879 = vshrl.u32 %v2752, 16
        %v2881 = vor.u32 %v2879, %v2877
        %v2883 = vshll.u32 %v2753, 16
        %v2885 = vrot.slane %v2883, 1
        %v2886 = vsel %vm1210, %v2881, %v2885
        %2887 = vrot.lane.b32.xlu0 %v2862, 32
        %v2888 = vpop.permute.xlu0 %2887
        %2889 = vrot.lane.b32.xlu0 %v2870, 32
        %v2890 = vpop.permute.xlu0 %2889
        %2891 = vrot.lane.b32.xlu0 %v2878, 32
        %v2892 = vpop.permute.xlu0 %2891
        %2893 = vrot.lane.b32.xlu0 %v2886, 32
        %v2894 = vpop.permute.xlu0 %2893
        %2899 = vrot.lane.b32.xlu0 %v2787, 64
        %v2900 = vpop.permute.xlu0 %2899
        %2901 = vrot.lane.b32.xlu0 %v2788, 64
        %v2902 = vpop.permute.xlu0 %2901
        %2903 = vrot.lane.b32.xlu0 %v2789, 64
        %v2904 = vpop.permute.xlu0 %2903
        %2905 = vrot.lane.b32.xlu0 %v2790, 64
        %v2906 = vpop.permute.xlu0 %2905
        %2911 = vrot.lane.b32.xlu0 %v2799, 96
        %v2912 = vpop.permute.xlu0 %2911
        %2913 = vrot.lane.b32.xlu0 %v2800, 96
        %v2914 = vpop.permute.xlu0 %2913
        %2915 = vrot.lane.b32.xlu0 %v2801, 96
        %v2916 = vpop.permute.xlu0 %2915
        %2917 = vrot.lane.b32.xlu0 %v2802, 96
        %v2918 = vpop.permute.xlu0 %2917
        %v2920 = vshrl.u32 %v2803, 16
        %v2922 = vshll.u32 %v2803, 16
        %v2924 = vrot.slane %v2922, 1
        %v2925 = vor.u32 %v2920, %v2924
        %v2927 = vshll.u32 %v2804, 16
        %v2929 = vrot.slane %v2927, 1
        %v2930 = vsel %vm1210, %v2925, %v2929
        %v2931 = vshrl.u32 %v2804, 16
        %v2933 = vor.u32 %v2931, %v2929
        %v2935 = vshll.u32 %v2805, 16
        %v2937 = vrot.slane %v2935, 1
        %v2938 = vsel %vm1210, %v2933, %v2937
        %v2939 = vshrl.u32 %v2805, 16
        %v2941 = vor.u32 %v2939, %v2937
        %v2943 = vshll.u32 %v2806, 16
        %v2945 = vrot.slane %v2943, 1
        %v2946 = vsel %vm1210, %v2941, %v2945
        %v2947 = vshrl.u32 %v2806, 16
        %v2949 = vor.u32 %v2947, %v2945
        %v2951 = vshll.u32 %v2807, 16
        %v2953 = vrot.slane %v2951, 1
        %v2954 = vsel %vm1210, %v2949, %v2953
        %2959 = vrot.lane.b32.xlu0 %v2820, 32
        %v2960 = vpop.permute.xlu0 %2959
        %2961 = vrot.lane.b32.xlu0 %v2821, 32
        %v2962 = vpop.permute.xlu0 %2961
        %2963 = vrot.lane.b32.xlu0 %v2822, 32
        %v2964 = vpop.permute.xlu0 %2963
        %2965 = vrot.lane.b32.xlu0 %v2823, 32
        %v2966 = vpop.permute.xlu0 %2965
        %2971 = vrot.lane.b32.xlu0 %v2832, 64
        %v2972 = vpop.permute.xlu0 %2971
        %2973 = vrot.lane.b32.xlu0 %v2833, 64
        %v2974 = vpop.permute.xlu0 %2973
        %2975 = vrot.lane.b32.xlu0 %v2834, 64
        %v2976 = vpop.permute.xlu0 %2975
        %2977 = vrot.lane.b32.xlu0 %v2835, 64
        %v2978 = vpop.permute.xlu0 %2977
        %v2980 = vshll.u32 %v2836, 16
        %v2982 = vrot.slane %v2980, 1
        %v2983 = vsel %vm1210, %v2881, %v2982
        %v2984 = vshrl.u32 %v2836, 16
        %v2986 = vor.u32 %v2984, %v2982
        %v2987 = vsel %vm1210, %v2986, %v1257
        %2988 = vrot.lane.b32.xlu0 %v2870, 96
        %v2989 = vpop.permute.xlu0 %2988
        %2990 = vrot.lane.b32.xlu0 %v2878, 96
        %v2991 = vpop.permute.xlu0 %2990
        %2992 = vrot.lane.b32.xlu0 %v2983, 96
        %v2993 = vpop.permute.xlu0 %2992
        %2994 = vrot.lane.b32.xlu0 %v2987, 96
        %v2995 = vpop.permute.xlu0 %2994
        %v2998 = vsel %vm1261, %v2745, %v2888
        %v3001 = vsel %vm1261, %v2746, %v2890
        %v3004 = vsel %vm1261, %v2747, %v2892
        %v3007 = vsel %vm1261, %v2748, %v2894
        %v3009 = vsel %vm1265, %v2998, %v2900
        %v3011 = vsel %vm1265, %v3001, %v2902
        %v3013 = vsel %vm1265, %v3004, %v2904
        %v3015 = vsel %vm1265, %v3007, %v2906
        %v3017 = vsel %vm1268, %v3009, %v2912
        %v3020 = vsel %vm1268, %v3011, %v2914
        %v3023 = vsel %vm1268, %v3013, %v2916
        %v3026 = vsel %vm1268, %v3015, %v2918
        %v3030 = vsel %vm1261, %v2930, %v2960
        %v3033 = vsel %vm1261, %v2938, %v2962
        %v3036 = vsel %vm1261, %v2946, %v2964
        %v3039 = vsel %vm1261, %v2954, %v2966
        %v3041 = vsel %vm1265, %v3030, %v2972
        %v3043 = vsel %vm1265, %v3033, %v2974
        %v3045 = vsel %vm1265, %v3036, %v2976
        %v3047 = vsel %vm1265, %v3039, %v2978
        %v3049 = vsel %vm1268, %v3041, %v2989
        %v3052 = vsel %vm1268, %v3043, %v2991
        %v3055 = vsel %vm1268, %v3045, %v2993
        %v3058 = vsel %vm1268, %v3047, %v2995
        %v3061 = vlaneseq
        %v3062 = vshrl.u32 %v3061, 7
        %v3063 = vsub.s32 0, %v3062
        %v3064 = vrot.slane %v2703, %v3063
        %v3102 = vunpack.c.l.b16 %v2666
        %v3103 = vunpack.c.l.b16 %v2667
        %v3104 = vunpack.c.l.b16 %v2668
        %v3105 = vunpack.c.l.b16 %v2669
        %v3106 = vunpack.c.l.b16 %v2670
        %v3107 = vunpack.c.l.b16 %v2671
        %v3108 = vunpack.c.l.b16 %v2672
        %v3109 = vunpack.c.l.b16 %v2673
        %v3110 = vunpack.c.l.b16 %v2674
        %v3111 = vunpack.c.l.b16 %v2675
        %v3112 = vunpack.c.l.b16 %v2676
        %v3113 = vunpack.c.l.b16 %v2677
        %v3114 = vunpack.c.l.b16 %v2678
        %v3115 = vunpack.c.l.b16 %v2679
        %v3116 = vunpack.c.l.b16 %v2680
        %v3117 = vunpack.c.l.b16 %v2681
        %v3118 = vunpack.c.l.b16 %v2682
        %v3119 = vunpack.c.l.b16 %v2683
        %v3120 = vunpack.c.l.b16 %v2684
        %v3121 = vunpack.c.l.b16 %v2685
        %v3122 = vunpack.c.l.b16 %v2686
        %v3123 = vunpack.c.l.b16 %v2687
        %v3124 = vunpack.c.l.b16 %v2688
        %v3125 = vunpack.c.l.b16 %v2689
        %v3126 = vunpack.c.l.b16 %v2690
        %v3127 = vunpack.c.l.b16 %v2691
        %v3128 = vunpack.c.l.b16 %v2692
        %v3129 = vunpack.c.l.b16 %v2693
        %v3130 = vunpack.c.l.b16 %v2694
        %v3131 = vunpack.c.l.b16 %v2695
        %v3132 = vunpack.c.l.b16 %v2696
        %v3133 = vunpack.c.l.b16 %v2697
        %v3134 = vunpack.c.l.b16 %v2698
        %v3135 = vunpack.c.l.b16 %v2699
        %v3136 = vunpack.c.l.b16 %v2700
        %v3137 = vunpack.c.l.b16 %v2701
        %v3138 = vpack.c.b16 %v3103, %v3102
        %v3139 = vpack.c.b16 %v3105, %v3104
        %v3140 = vpack.c.b16 %v3107, %v3106
        %v3141 = vpack.c.b16 %v3109, %v3108
        %v3142 = vpack.c.b16 %v3111, %v3110
        %v3143 = vpack.c.b16 %v3113, %v3112
        %v3144 = vpack.c.b16 %v3115, %v3114
        %v3145 = vpack.c.b16 %v3117, %v3116
        %v3146 = vpack.c.b16 %v3119, %v3118
        %v3147 = vpack.c.b16 %v3121, %v3120
        %v3148 = vpack.c.b16 %v3123, %v3122
        %v3149 = vpack.c.b16 %v3125, %v3124
        %v3150 = vpack.c.b16 %v3127, %v3126
        %v3151 = vpack.c.b16 %v3129, %v3128
        %v3152 = vpack.c.b16 %v3131, %v3130
        %v3153 = vpack.c.b16 %v3133, %v3132
        %v3154 = vpack.c.b16 %v3135, %v3134
        %v3155 = vpack.c.b16 %v3137, %v3136
        %v3175 = vsel %vm1261, %v2847, 0
        %v3178 = vsel %vm1261, %v2848, 0
        %v3181 = vsel %vm1261, %v2849, 0
        %v3184 = vsel %vm1261, %v2850, 0
        %3186 = vmatprep.subr.bf16.mxu0 0
        %3187 = vmatpush1.bf16.msra.mxu0 %v3138
        %3188 = vmatprep.subr.bf16.mxu0 0
        %3189 = vmatpush1.bf16.msra.mxu0 %v3139
        %3190 = vmatprep.subr.bf16.mxu0 0
        %3191 = vmatpush1.bf16.msra.mxu0 %v3140
        %3192 = vmatprep.subr.bf16.mxu0 0
        %3193 = vmatpush1.bf16.msra.mxu0 %v3141
        %3194 = vmatprep.subr.bf16.mxu0 0
        %3195 = vmatpush1.bf16.msra.mxu0 %v3142
        %3196 = vmatprep.subr.bf16.mxu0 0
        %3197 = vmatpush1.bf16.msra.mxu0 %v3143
        %3198 = vmatprep.subr.bf16.mxu0 0
        %3199 = vmatpush1.bf16.msra.mxu0 %v3144
        %3200 = vmatprep.subr.bf16.mxu0 0
        %3201 = vmatpush1.bf16.msra.mxu0 %v3145
        %3202 = vmatprep.subr.bf16.mxu0 0
        %3203 = vmatpush1.bf16.msra.mxu0 %v3146
        %3204 = vmatprep.subr.bf16.mxu0 0
        %3205 = vmatpush1.bf16.msra.mxu0 %v3147
        %3206 = vmatprep.subr.bf16.mxu0 0
        %3207 = vmatpush1.bf16.msra.mxu0 %v3148
        %3208 = vmatprep.subr.bf16.mxu0 0
        %3209 = vmatpush1.bf16.msra.mxu0 %v3149
        %3210 = vmatprep.subr.bf16.mxu0 0
        %3211 = vmatpush1.bf16.msra.mxu0 %v3150
        %3212 = vmatprep.subr.bf16.mxu0 0
        %3213 = vmatpush1.bf16.msra.mxu0 %v3151
        %3214 = vmatprep.subr.bf16.mxu0 0
        %3215 = vmatpush1.bf16.msra.mxu0 %v3152
        %3216 = vmatprep.subr.bf16.mxu0 0
        %3217 = vmatpush1.bf16.msra.mxu0 %v3153
        %3218 = vmatprep.mubr.bf16.mxu0 %v3049
        %3219 = vmatmul.mubr.bf16.gmra.mrb[0].mxu0 %v3017
        %v3220 = vpop.f32.mrb[0].mxu0
        %v3221 = vadd.f32 %v3064, %v3220
        %v3222 = vpop.f32.mrb[0].mxu0
        %v3223 = vpop.f32.mrb[0].mxu0
        %v3224 = vadd.f32 %v3064, %v3223
        %v3225 = vpop.f32.mrb[0].mxu0
        %3226 = vmatprep.mubr.bf16.mxu0 %v3052
        %3227 = vmatmul.mubr.bf16.gmra.mrb[0].mxu0 %v3020
        %v3228 = vpop.f32.mrb[0].mxu0
        %v3229 = vadd.f32 %v3064, %v3228
        %v3230 = vpop.f32.mrb[0].mxu0
        %v3231 = vpop.f32.mrb[0].mxu0
        %v3232 = vadd.f32 %v3064, %v3231
        %v3233 = vpop.f32.mrb[0].mxu0
        %3234 = vmatprep.mubr.bf16.mxu0 %v3055
        %3235 = vmatmul.mubr.bf16.gmra.mrb[0].mxu0 %v3023
        %v3236 = vpop.f32.mrb[0].mxu0
        %v3237 = vadd.f32 %v3064, %v3236
        %v3238 = vpop.f32.mrb[0].mxu0
        %v3239 = vpop.f32.mrb[0].mxu0
        %v3240 = vadd.f32 %v3064, %v3239
        %v3241 = vpop.f32.mrb[0].mxu0
        %3242 = vmatprep.mubr.bf16.mxu0 %v3058
        %3243 = vmatmul.mubr.bf16.gmra.mrb[0].mxu0 %v3026
        %v3244 = vpop.f32.mrb[0].mxu0
        %v3245 = vadd.f32 %v3064, %v3244
        %v3246 = vpop.f32.mrb[0].mxu0
        %v3247 = vpop.f32.mrb[0].mxu0
        %v3248 = vadd.f32 %v3064, %v3247
        %v3249 = vpop.f32.mrb[0].mxu0
        %3250 = vdwg.mxu0
        %3251 = vmatprep.subr.bf16.mxu0 0
        %3252 = vmatpush1.bf16.msra.mxu0 %v3154
        %3253 = vmatprep.subr.bf16.mxu0 0
        %3254 = vmatpush1.bf16.msra.mxu0 %v3155
        %3255 = vmatprep.subr.bf16.mxu0 0
        %3256 = vmatpush1.bf16.msra.mxu0 0
        %3257 = vmatprep.subr.bf16.mxu0 0
        %3258 = vmatpush1.bf16.msra.mxu0 0
        %3259 = vmatprep.subr.bf16.mxu0 0
        %3260 = vmatpush1.bf16.msra.mxu0 0
        %3261 = vmatprep.subr.bf16.mxu0 0
        %3262 = vmatpush1.bf16.msra.mxu0 0
        %3263 = vmatprep.subr.bf16.mxu0 0
        %3264 = vmatpush1.bf16.msra.mxu0 0
        %3265 = vmatprep.subr.bf16.mxu0 0
        %3266 = vmatpush1.bf16.msra.mxu0 0
        %3267 = vmatprep.subr.bf16.mxu0 0
        %3268 = vmatpush1.bf16.msra.mxu0 0
        %3269 = vmatprep.subr.bf16.mxu0 0
        %3270 = vmatpush1.bf16.msra.mxu0 0
        %3271 = vmatprep.subr.bf16.mxu0 0
        %3272 = vmatpush1.bf16.msra.mxu0 0
        %3273 = vmatprep.subr.bf16.mxu0 0
        %3274 = vmatpush1.bf16.msra.mxu0 0
        %3275 = vmatprep.subr.bf16.mxu0 0
        %3276 = vmatpush1.bf16.msra.mxu0 0
        %3277 = vmatprep.subr.bf16.mxu0 0
        %3278 = vmatpush1.bf16.msra.mxu0 0
        %3279 = vmatprep.subr.bf16.mxu0 0
        %3280 = vmatpush1.bf16.msra.mxu0 0
        %3281 = vmatprep.subr.bf16.mxu0 0
        %3282 = vmatpush1.bf16.msra.mxu0 0
        %3283 = vmatprep.mubr.bf16.mxu0 0
        %3284 = vmatmul.mubr.bf16.gmra.mrb[0].mxu0 %v3175
        %v3285 = vpop.f32.mrb[0].mxu0
        %v3286 = vadd.f32 %v3221, %v3285
        %v3287 = vpop.f32.mrb[0].mxu0
        %v3288 = vpop.f32.mrb[0].mxu0
        %v3289 = vadd.f32 %v3224, %v3288
        %v3290 = vpop.f32.mrb[0].mxu0
        %3291 = vmatprep.mubr.bf16.mxu0 0
        %3292 = vmatmul.mubr.bf16.gmra.mrb[0].mxu0 %v3178
        %v3293 = vpop.f32.mrb[0].mxu0
        %v3294 = vadd.f32 %v3229, %v3293
        %v3295 = vpop.f32.mrb[0].mxu0
        %v3296 = vpop.f32.mrb[0].mxu0
        %v3297 = vadd.f32 %v3232, %v3296
        %v3298 = vpop.f32.mrb[0].mxu0
        %3299 = vmatprep.mubr.bf16.mxu0 0
        %3300 = vmatmul.mubr.bf16.gmra.mrb[0].mxu0 %v3181
        %v3301 = vpop.f32.mrb[0].mxu0
        %v3302 = vadd.f32 %v3237, %v3301
        %v3303 = vpop.f32.mrb[0].mxu0
        %v3304 = vpop.f32.mrb[0].mxu0
        %v3305 = vadd.f32 %v3240, %v3304
        %v3306 = vpop.f32.mrb[0].mxu0
        %3307 = vmatprep.mubr.bf16.mxu0 0
        %3308 = vmatmul.mubr.bf16.gmra.mrb[0].mxu0 %v3184
        %v3309 = vpop.f32.mrb[0].mxu0
        %v3310 = vadd.f32 %v3245, %v3309
        %v3311 = vpop.f32.mrb[0].mxu0
        %v3312 = vpop.f32.mrb[0].mxu0
        %v3313 = vadd.f32 %v3248, %v3312
        %v3314 = vpop.f32.mrb[0].mxu0
        %3315 = vdwg.mxu0
        %vm3316 = vcmp.gt.f32.partialorder %v3286, 0.0
        %vm3317 = vcmp.gt.f32.partialorder %v3289, 0.0
        %vm3318 = vcmp.gt.f32.partialorder %v3294, 0.0
        %vm3319 = vcmp.gt.f32.partialorder %v3297, 0.0
        %vm3320 = vcmp.gt.f32.partialorder %v3302, 0.0
        %vm3321 = vcmp.gt.f32.partialorder %v3305, 0.0
        %vm3322 = vcmp.gt.f32.partialorder %v3310, 0.0
        %vm3323 = vcmp.gt.f32.partialorder %v3313, 0.0
        %v3324 = vmin.f32 %v3286, 0.0
        %v3325 = vmin.f32 %v3289, 0.0
        %v3326 = vmin.f32 %v3294, 0.0
        %v3327 = vmin.f32 %v3297, 0.0
        %v3328 = vmin.f32 %v3302, 0.0
        %v3329 = vmin.f32 %v3305, 0.0
        %v3330 = vmin.f32 %v3310, 0.0
        %v3331 = vmin.f32 %v3313, 0.0
        %v3332 = vmul.f32 %v3324, 1.442695
        %v3333 = vpow.pop %v3332
        %v3334 = vmul.f32 %v3325, 1.442695
        %v3335 = vpow.pop %v3334
        %v3336 = vmul.f32 %v3326, 1.442695
        %v3337 = vpow.pop %v3336
        %v3338 = vmul.f32 %v3327, 1.442695
        %v3339 = vpow.pop %v3338
        %v3340 = vmul.f32 %v3328, 1.442695
        %v3341 = vpow.pop %v3340
        %v3342 = vmul.f32 %v3329, 1.442695
        %v3343 = vpow.pop %v3342
        %v3344 = vmul.f32 %v3330, 1.442695
        %v3345 = vpow.pop %v3344
        %v3346 = vmul.f32 %v3331, 1.442695
        %v3347 = vpow.pop %v3346
        %v3348 = vsub.f32 %v3333, 1.0
        %v3349 = vsub.f32 %v3335, 1.0
        %v3350 = vsub.f32 %v3337, 1.0
        %v3351 = vsub.f32 %v3339, 1.0
        %v3352 = vsub.f32 %v3341, 1.0
        %v3353 = vsub.f32 %v3343, 1.0
        %v3354 = vsub.f32 %v3345, 1.0
        %v3355 = vsub.f32 %v3347, 1.0
        %v3356 = vsel %vm3316, %v3286, %v3348
        %v3357 = vsel %vm3317, %v3289, %v3349
        %v3358 = vsel %vm3318, %v3294, %v3350
        %v3359 = vsel %vm3319, %v3297, %v3351
        %v3360 = vsel %vm3320, %v3302, %v3352
        %v3361 = vsel %vm3321, %v3305, %v3353
        %v3362 = vsel %vm3322, %v3310, %v3354
        %v3363 = vsel %vm3323, %v3313, %v3355
        %v3364 = vld [vmem:[%s8] sm:$0xf]
        %v3365 = vld [vmem:[%s8 + $0x4] sm:$0xf]
        %v3366 = vld [vmem:[%s8 + $0x8] sm:$0xf]
        %v3367 = vld [vmem:[%s8 + $0xc] sm:$0xf]
        %v3368 = vld [vmem:[%s8 + $0x10] sm:$0xf]
        %v3369 = vld [vmem:[%s8 + $0x14] sm:$0xf]
        %v3370 = vld [vmem:[%s8 + $0x18] sm:$0xf]
        %v3371 = vld [vmem:[%s8 + $0x1c] sm:$0xf]
        %v3372 = vld [vmem:[%s8 + $0x20] sm:$0xf]
        %v3373 = vld [vmem:[%s8 + $0x24] sm:$0xf]
        %v3374 = vld [vmem:[%s8 + $0x28] sm:$0xf]
        %v3375 = vld [vmem:[%s8 + $0x2c] sm:$0xf]
        %v3376 = vld [vmem:[%s8 + $0x30] sm:$0xf]
        %v3377 = vld [vmem:[%s8 + $0x34] sm:$0xf]
        %v3378 = vld [vmem:[%s8 + $0x38] sm:$0xf]
        %v3379 = vld [vmem:[%s8 + $0x3c] sm:$0xf]
        %v3380 = vld [vmem:[%s8 + $0x40] sm:$0xf]
        %v3381 = vld [vmem:[%s8 + $0x44] sm:$0xf]
        %v3382 = vld [vmem:[%s8 + $0x48] sm:$0xf]
        %v3383 = vld [vmem:[%s8 + $0x4c] sm:$0xf]
        %v3384 = vld [vmem:[%s8 + $0x50] sm:$0xf]
        %v3385 = vld [vmem:[%s8 + $0x54] sm:$0xf]
        %v3386 = vld [vmem:[%s8 + $0x58] sm:$0xf]
        %v3387 = vld [vmem:[%s8 + $0x5c] sm:$0xf]
        %v3388 = vld [vmem:[%s8 + $0x60] sm:$0xf]
        %v3389 = vld [vmem:[%s8 + $0x64] sm:$0xf]
        %v3390 = vld [vmem:[%s8 + $0x68] sm:$0xf]
        %v3391 = vld [vmem:[%s8 + $0x6c] sm:$0xf]
        %v3392 = vld [vmem:[%s8 + $0x70] sm:$0xf]
        %v3393 = vld [vmem:[%s8 + $0x74] sm:$0xf]
        %v3394 = vld [vmem:[%s8 + $0x78] sm:$0xf]
        %v3395 = vld [vmem:[%s8 + $0x7c] sm:$0xf]
        %v3396 = vpack.c.bf16 %v3357, %v3356
        %v3397 = vpack.c.bf16 %v3359, %v3358
        %v3398 = vpack.c.bf16 %v3361, %v3360
        %v3399 = vpack.c.bf16 %v3363, %v3362
        %v3432 = vunpack.c.l.b16 %v3364
        %v3433 = vunpack.c.l.b16 %v3365
        %v3434 = vunpack.c.l.b16 %v3366
        %v3435 = vunpack.c.l.b16 %v3367
        %v3436 = vunpack.c.l.b16 %v3368
        %v3437 = vunpack.c.l.b16 %v3369
        %v3438 = vunpack.c.l.b16 %v3370
        %v3439 = vunpack.c.l.b16 %v3371
        %v3440 = vunpack.c.l.b16 %v3372
        %v3441 = vunpack.c.l.b16 %v3373
        %v3442 = vunpack.c.l.b16 %v3374
        %v3443 = vunpack.c.l.b16 %v3375
        %v3444 = vunpack.c.l.b16 %v3376
        %v3445 = vunpack.c.l.b16 %v3377
        %v3446 = vunpack.c.l.b16 %v3378
        %v3447 = vunpack.c.l.b16 %v3379
        %v3448 = vunpack.c.l.b16 %v3380
        %v3449 = vunpack.c.l.b16 %v3381
        %v3450 = vunpack.c.l.b16 %v3382
        %v3451 = vunpack.c.l.b16 %v3383
        %v3452 = vunpack.c.l.b16 %v3384
        %v3453 = vunpack.c.l.b16 %v3385
        %v3454 = vunpack.c.l.b16 %v3386
        %v3455 = vunpack.c.l.b16 %v3387
        %v3456 = vunpack.c.l.b16 %v3388
        %v3457 = vunpack.c.l.b16 %v3389
        %v3458 = vunpack.c.l.b16 %v3390
        %v3459 = vunpack.c.l.b16 %v3391
        %v3460 = vunpack.c.l.b16 %v3392
        %v3461 = vunpack.c.l.b16 %v3393
        %v3462 = vunpack.c.l.b16 %v3394
        %v3463 = vunpack.c.l.b16 %v3395
        %v3464 = vpack.c.b16 %v3433, %v3432
        %v3465 = vpack.c.b16 %v3435, %v3434
        %v3466 = vpack.c.b16 %v3437, %v3436
        %v3467 = vpack.c.b16 %v3439, %v3438
        %v3468 = vpack.c.b16 %v3441, %v3440
        %v3469 = vpack.c.b16 %v3443, %v3442
        %v3470 = vpack.c.b16 %v3445, %v3444
        %v3471 = vpack.c.b16 %v3447, %v3446
        %v3472 = vpack.c.b16 %v3449, %v3448
        %v3473 = vpack.c.b16 %v3451, %v3450
        %v3474 = vpack.c.b16 %v3453, %v3452
        %v3475 = vpack.c.b16 %v3455, %v3454
        %v3476 = vpack.c.b16 %v3457, %v3456
        %v3477 = vpack.c.b16 %v3459, %v3458
        %v3478 = vpack.c.b16 %v3461, %v3460
        %v3479 = vpack.c.b16 %v3463, %v3462
        %v3481 = vsel %vm1265, %v3464, 0
        %v3484 = vsel %vm1265, %v3465, 0
        %v3487 = vsel %vm1265, %v3466, 0
        %v3490 = vsel %vm1265, %v3467, 0
        %v3493 = vsel %vm1265, %v3468, 0
        %v3496 = vsel %vm1265, %v3469, 0
        %v3499 = vsel %vm1265, %v3470, 0
        %v3502 = vsel %vm1265, %v3471, 0
        %v3505 = vsel %vm1265, %v3472, 0
        %v3508 = vsel %vm1265, %v3473, 0
        %v3511 = vsel %vm1265, %v3474, 0
        %v3514 = vsel %vm1265, %v3475, 0
        %v3517 = vsel %vm1265, %v3476, 0
        %v3520 = vsel %vm1265, %v3477, 0
        %v3523 = vsel %vm1265, %v3478, 0
        %v3526 = vsel %vm1265, %v3479, 0
        %3528 = vmatprep.subr.bf16.mxu0 0
        %3529 = vmatpush1.bf16.msra.mxu0 %v3396
        %3530 = vmatprep.subr.bf16.mxu0 0
        %3531 = vmatpush1.bf16.msra.mxu0 %v3397
        %3532 = vmatprep.subr.bf16.mxu0 0
        %3533 = vmatpush1.bf16.msra.mxu0 %v3398
        %3534 = vmatprep.subr.bf16.mxu0 0
        %3535 = vmatpush1.bf16.msra.mxu0 %v3399
        %3536 = vmatprep.subr.bf16.mxu0 0
        %3537 = vmatpush1.bf16.msra.mxu0 0
        %3538 = vmatprep.subr.bf16.mxu0 0
        %3539 = vmatpush1.bf16.msra.mxu0 0
        %3540 = vmatprep.subr.bf16.mxu0 0
        %3541 = vmatpush1.bf16.msra.mxu0 0
        %3542 = vmatprep.subr.bf16.mxu0 0
        %3543 = vmatpush1.bf16.msra.mxu0 0
        %3544 = vmatprep.subr.bf16.mxu0 0
        %3545 = vmatpush1.bf16.msra.mxu0 0
        %3546 = vmatprep.subr.bf16.mxu0 0
        %3547 = vmatpush1.bf16.msra.mxu0 0
        %3548 = vmatprep.subr.bf16.mxu0 0
        %3549 = vmatpush1.bf16.msra.mxu0 0
        %3550 = vmatprep.subr.bf16.mxu0 0
        %3551 = vmatpush1.bf16.msra.mxu0 0
        %3552 = vmatprep.subr.bf16.mxu0 0
        %3553 = vmatpush1.bf16.msra.mxu0 0
        %3554 = vmatprep.subr.bf16.mxu0 0
        %3555 = vmatpush1.bf16.msra.mxu0 0
        %3556 = vmatprep.subr.bf16.mxu0 0
        %3557 = vmatpush1.bf16.msra.mxu0 0
        %3558 = vmatprep.subr.bf16.mxu0 0
        %3559 = vmatpush1.bf16.msra.mxu0 0
        %3560 = vmatprep.mubr.bf16.mxu0 0
        %3561 = vmatmul.mubr.bf16.gmra.mrb[0].mxu0 %v3481
        %v3562 = vpop.f32.mrb[0].mxu0
        %v3563 = vadd.f32 0.0, %v3562
        %v3564 = vpop.f32.mrb[0].mxu0
        %v3565 = vpop.f32.mrb[0].mxu0
        %v3566 = vadd.f32 0.0, %v3565
        %v3567 = vpop.f32.mrb[0].mxu0
        %3568 = vmatprep.mubr.bf16.mxu0 0
        %3569 = vmatmul.mubr.bf16.gmra.mrb[0].mxu0 %v3484
        %v3570 = vpop.f32.mrb[0].mxu0
        %v3571 = vadd.f32 0.0, %v3570
        %v3572 = vpop.f32.mrb[0].mxu0
        %v3573 = vpop.f32.mrb[0].mxu0
        %v3574 = vadd.f32 0.0, %v3573
        %v3575 = vpop.f32.mrb[0].mxu0
        %3576 = vmatprep.mubr.bf16.mxu0 0
        %3577 = vmatmul.mubr.bf16.gmra.mrb[0].mxu0 %v3487
        %v3578 = vpop.f32.mrb[0].mxu0
        %v3579 = vadd.f32 0.0, %v3578
        %v3580 = vpop.f32.mrb[0].mxu0
        %v3581 = vpop.f32.mrb[0].mxu0
        %v3582 = vadd.f32 0.0, %v3581
        %v3583 = vpop.f32.mrb[0].mxu0
        %3584 = vmatprep.mubr.bf16.mxu0 0
        %3585 = vmatmul.mubr.bf16.gmra.mrb[0].mxu0 %v3490
        %v3586 = vpop.f32.mrb[0].mxu0
        %v3587 = vadd.f32 0.0, %v3586
        %v3588 = vpop.f32.mrb[0].mxu0
        %v3589 = vpop.f32.mrb[0].mxu0
        %v3590 = vadd.f32 0.0, %v3589
        %v3591 = vpop.f32.mrb[0].mxu0
        %3592 = vmatprep.mubr.bf16.mxu0 0
        %3593 = vmatmul.mubr.bf16.gmra.mrb[0].mxu0 %v3493
        %v3594 = vpop.f32.mrb[0].mxu0
        %v3595 = vadd.f32 0.0, %v3594
        %v3596 = vpop.f32.mrb[0].mxu0
        %v3597 = vpop.f32.mrb[0].mxu0
        %v3598 = vadd.f32 0.0, %v3597
        %v3599 = vpop.f32.mrb[0].mxu0
        %3600 = vmatprep.mubr.bf16.mxu0 0
        %3601 = vmatmul.mubr.bf16.gmra.mrb[0].mxu0 %v3496
        %v3602 = vpop.f32.mrb[0].mxu0
        %v3603 = vadd.f32 0.0, %v3602
        %v3604 = vpop.f32.mrb[0].mxu0
        %v3605 = vpop.f32.mrb[0].mxu0
        %v3606 = vadd.f32 0.0, %v3605
        %v3607 = vpop.f32.mrb[0].mxu0
        %3608 = vmatprep.mubr.bf16.mxu0 0
        %3609 = vmatmul.mubr.bf16.gmra.mrb[0].mxu0 %v3499
        %v3610 = vpop.f32.mrb[0].mxu0
        %v3611 = vadd.f32 0.0, %v3610
        %v3612 = vpop.f32.mrb[0].mxu0
        %v3613 = vpop.f32.mrb[0].mxu0
        %v3614 = vadd.f32 0.0, %v3613
        %v3615 = vpop.f32.mrb[0].mxu0
        %3616 = vmatprep.mubr.bf16.mxu0 0
        %3617 = vmatmul.mubr.bf16.gmra.mrb[0].mxu0 %v3502
        %v3618 = vpop.f32.mrb[0].mxu0
        %v3619 = vadd.f32 0.0, %v3618
        %v3620 = vpop.f32.mrb[0].mxu0
        %v3621 = vpop.f32.mrb[0].mxu0
        %v3622 = vadd.f32 0.0, %v3621
        %v3623 = vpop.f32.mrb[0].mxu0
        %3624 = vmatprep.mubr.bf16.mxu0 0
        %3625 = vmatmul.mubr.bf16.gmra.mrb[0].mxu0 %v3505
        %v3626 = vpop.f32.mrb[0].mxu0
        %v3627 = vadd.f32 0.0, %v3626
        %v3628 = vpop.f32.mrb[0].mxu0
        %v3629 = vpop.f32.mrb[0].mxu0
        %v3630 = vadd.f32 0.0, %v3629
        %v3631 = vpop.f32.mrb[0].mxu0
        %3632 = vmatprep.mubr.bf16.mxu0 0
        %3633 = vmatmul.mubr.bf16.gmra.mrb[0].mxu0 %v3508
        %v3634 = vpop.f32.mrb[0].mxu0
        %v3635 = vadd.f32 0.0, %v3634
        %v3636 = vpop.f32.mrb[0].mxu0
        %v3637 = vpop.f32.mrb[0].mxu0
        %v3638 = vadd.f32 0.0, %v3637
        %v3639 = vpop.f32.mrb[0].mxu0
        %3640 = vmatprep.mubr.bf16.mxu0 0
        %3641 = vmatmul.mubr.bf16.gmra.mrb[0].mxu0 %v3511
        %v3642 = vpop.f32.mrb[0].mxu0
        %v3643 = vadd.f32 0.0, %v3642
        %v3644 = vpop.f32.mrb[0].mxu0
        %v3645 = vpop.f32.mrb[0].mxu0
        %v3646 = vadd.f32 0.0, %v3645
        %v3647 = vpop.f32.mrb[0].mxu0
        %3648 = vmatprep.mubr.bf16.mxu0 0
        %3649 = vmatmul.mubr.bf16.gmra.mrb[0].mxu0 %v3514
        %v3650 = vpop.f32.mrb[0].mxu0
        %v3651 = vadd.f32 0.0, %v3650
        %v3652 = vpop.f32.mrb[0].mxu0
        %v3653 = vpop.f32.mrb[0].mxu0
        %v3654 = vadd.f32 0.0, %v3653
        %v3655 = vpop.f32.mrb[0].mxu0
        %3656 = vmatprep.mubr.bf16.mxu0 0
        %3657 = vmatmul.mubr.bf16.gmra.mrb[0].mxu0 %v3517
        %v3658 = vpop.f32.mrb[0].mxu0
        %v3659 = vadd.f32 0.0, %v3658
        %v3660 = vpop.f32.mrb[0].mxu0
        %v3661 = vpop.f32.mrb[0].mxu0
        %v3662 = vadd.f32 0.0, %v3661
        %v3663 = vpop.f32.mrb[0].mxu0
        %3664 = vmatprep.mubr.bf16.mxu0 0
        %3665 = vmatmul.mubr.bf16.gmra.mrb[0].mxu0 %v3520
        %v3666 = vpop.f32.mrb[0].mxu0
        %v3667 = vadd.f32 0.0, %v3666
        %v3668 = vpop.f32.mrb[0].mxu0
        %v3669 = vpop.f32.mrb[0].mxu0
        %v3670 = vadd.f32 0.0, %v3669
        %v3671 = vpop.f32.mrb[0].mxu0
        %3672 = vmatprep.mubr.bf16.mxu0 0
        %3673 = vmatmul.mubr.bf16.gmra.mrb[0].mxu0 %v3523
        %v3674 = vpop.f32.mrb[0].mxu0
        %v3675 = vadd.f32 0.0, %v3674
        %v3676 = vpop.f32.mrb[0].mxu0
        %v3677 = vpop.f32.mrb[0].mxu0
        %v3678 = vadd.f32 0.0, %v3677
        %v3679 = vpop.f32.mrb[0].mxu0
        %3680 = vmatprep.mubr.bf16.mxu0 0
        %3681 = vmatmul.mubr.bf16.gmra.mrb[0].mxu0 %v3526
        %v3682 = vpop.f32.mrb[0].mxu0
        %v3683 = vadd.f32 0.0, %v3682
        %v3684 = vpop.f32.mrb[0].mxu0
        %v3685 = vpop.f32.mrb[0].mxu0
        %v3686 = vadd.f32 0.0, %v3685
        %v3687 = vpop.f32.mrb[0].mxu0
        %3688 = vdwg.mxu0
        %s3689 = scalar_lea.vmem %s3, 576
        %v3690 = vld [vmem:[%s3689] sm:$0xf]
        %v3691 = vld [vmem:[%s3689 + $0x4] sm:$0xf]
        %v3692 = vld [vmem:[%s3689 + $0x8] sm:$0xf]
        %v3693 = vld [vmem:[%s3689 + $0xc] sm:$0xf]
        %v3694 = vld [vmem:[%s3689 + $0x10] sm:$0xf]
        %v3695 = vld [vmem:[%s3689 + $0x14] sm:$0xf]
        %v3696 = vld [vmem:[%s3689 + $0x18] sm:$0xf]
        %v3697 = vld [vmem:[%s3689 + $0x1c] sm:$0xf]
        %v3698 = vld [vmem:[%s3689 + $0x20] sm:$0xf]
        %v3699 = vld [vmem:[%s3689 + $0x24] sm:$0xf]
        %v3700 = vld [vmem:[%s3689 + $0x28] sm:$0xf]
        %v3701 = vld [vmem:[%s3689 + $0x2c] sm:$0xf]
        %v3702 = vld [vmem:[%s3689 + $0x30] sm:$0xf]
        %v3703 = vld [vmem:[%s3689 + $0x34] sm:$0xf]
        %v3704 = vld [vmem:[%s3689 + $0x38] sm:$0xf]
        %v3705 = vld [vmem:[%s3689 + $0x3c] sm:$0xf]
        %v3706 = vld [vmem:[%s3689 + $0x40] sm:$0xf]
        %v3707 = vld [vmem:[%s3689 + $0x44] sm:$0xf]
        %v3708 = vld [vmem:[%s3689 + $0x48] sm:$0xf]
        %v3709 = vld [vmem:[%s3689 + $0x4c] sm:$0xf]
        %v3710 = vld [vmem:[%s3689 + $0x50] sm:$0xf]
        %v3711 = vld [vmem:[%s3689 + $0x54] sm:$0xf]
        %v3712 = vld [vmem:[%s3689 + $0x58] sm:$0xf]
        %v3713 = vld [vmem:[%s3689 + $0x5c] sm:$0xf]
        %v3714 = vld [vmem:[%s3689 + $0x60] sm:$0xf]
        %v3715 = vld [vmem:[%s3689 + $0x64] sm:$0xf]
        %v3716 = vld [vmem:[%s3689 + $0x68] sm:$0xf]
        %v3717 = vld [vmem:[%s3689 + $0x6c] sm:$0xf]
        %v3718 = vld [vmem:[%s3689 + $0x70] sm:$0xf]
        %v3719 = vld [vmem:[%s3689 + $0x74] sm:$0xf]
        %v3720 = vld [vmem:[%s3689 + $0x78] sm:$0xf]
        %v3721 = vld [vmem:[%s3689 + $0x7c] sm:$0xf]
        %v3722 = vld [vmem:[%s3689 + $0x80] sm:$0xf]
        %v3723 = vld [vmem:[%s3689 + $0x84] sm:$0xf]
        %v3724 = vld [vmem:[%s3689 + $0x88] sm:$0xf]
        %v3725 = vld [vmem:[%s3689 + $0x8c] sm:$0xf]
        %s3726 = scalar_lea.vmem %s4, 4
        %v3727 = vld [vmem:[%s3726] sm:$0x1]
        %v3760 = vrot.slane %v3563, 7
        %v3761 = vrot.slane %v3566, 7
        %v3762 = vsel %vm2012, %v3760, %v3761
        %v3763 = vrot.slane %v3571, 7
        %v3764 = vsel %vm2012, %v3761, %v3763
        %v3765 = vrot.slane %v3574, 7
        %v3766 = vsel %vm2012, %v3763, %v3765
        %v3767 = vrot.slane %v3579, 7
        %v3768 = vsel %vm2012, %v3765, %v3767
        %v3769 = vrot.slane %v3582, 7
        %v3770 = vsel %vm2012, %v3767, %v3769
        %v3771 = vrot.slane %v3587, 7
        %v3772 = vsel %vm2012, %v3769, %v3771
        %v3773 = vrot.slane %v3590, 7
        %v3774 = vsel %vm2012, %v3771, %v3773
        %v3775 = vrot.slane %v3595, 7
        %v3776 = vsel %vm2012, %v3773, %v3775
        %v3777 = vrot.slane %v3598, 7
        %v3778 = vsel %vm2012, %v3775, %v3777
        %v3779 = vrot.slane %v3603, 7
        %v3780 = vsel %vm2012, %v3777, %v3779
        %v3781 = vrot.slane %v3606, 7
        %v3782 = vsel %vm2012, %v3779, %v3781
        %v3783 = vrot.slane %v3611, 7
        %v3784 = vsel %vm2012, %v3781, %v3783
        %v3785 = vrot.slane %v3614, 7
        %v3786 = vsel %vm2012, %v3783, %v3785
        %v3787 = vrot.slane %v3619, 7
        %v3788 = vsel %vm2012, %v3785, %v3787
        %v3789 = vrot.slane %v3622, 7
        %v3790 = vsel %vm2012, %v3787, %v3789
        %v3791 = vrot.slane %v3627, 7
        %v3792 = vsel %vm2012, %v3789, %v3791
        %v3793 = vrot.slane %v3630, 7
        %v3794 = vsel %vm2012, %v3791, %v3793
        %v3795 = vrot.slane %v3635, 7
        %v3796 = vsel %vm2012, %v3793, %v3795
        %v3797 = vrot.slane %v3638, 7
        %v3798 = vsel %vm2012, %v3795, %v3797
        %v3799 = vrot.slane %v3643, 7
        %v3800 = vsel %vm2012, %v3797, %v3799
        %v3801 = vrot.slane %v3646, 7
        %v3802 = vsel %vm2012, %v3799, %v3801
        %v3803 = vrot.slane %v3651, 7
        %v3804 = vsel %vm2012, %v3801, %v3803
        %v3805 = vrot.slane %v3654, 7
        %v3806 = vsel %vm2012, %v3803, %v3805
        %v3807 = vrot.slane %v3659, 7
        %v3808 = vsel %vm2012, %v3805, %v3807
        %v3809 = vrot.slane %v3662, 7
        %v3810 = vsel %vm2012, %v3807, %v3809
        %v3811 = vrot.slane %v3667, 7
        %v3812 = vsel %vm2012, %v3809, %v3811
        %v3813 = vrot.slane %v3670, 7
        %v3814 = vsel %vm2012, %v3811, %v3813
        %v3815 = vrot.slane %v3675, 7
        %v3816 = vsel %vm2012, %v3813, %v3815
        %v3817 = vrot.slane %v3678, 7
        %v3818 = vsel %vm2012, %v3815, %v3817
        %v3819 = vrot.slane %v3683, 7
        %v3820 = vsel %vm2012, %v3817, %v3819
        %v3821 = vrot.slane %v3686, 7
        %v3822 = vsel %vm2012, %v3819, %v3821
        %v3856 = vsel %vm2012, 0.0, %v3760
        %v3857 = vsel %vm2012, %v3821, 0.0
        %v3858 = vsel %vm887, %v3856, 0.0
        %v3859 = vsel %vm888, %v3762, 0.0
        %v3860 = vsel %vm889, %v3764, 0.0
        %v3861 = vsel %vm890, %v3766, 0.0
        %v3862 = vsel %vm891, %v3768, 0.0
        %v3863 = vsel %vm892, %v3770, 0.0
        %v3864 = vsel %vm893, %v3772, 0.0
        %v3865 = vsel %vm894, %v3774, 0.0
        %v3866 = vsel %vm895, %v3776, 0.0
        %v3867 = vsel %vm896, %v3778, 0.0
        %v3868 = vsel %vm897, %v3780, 0.0
        %v3869 = vsel %vm898, %v3782, 0.0
        %v3870 = vsel %vm899, %v3784, 0.0
        %v3871 = vsel %vm900, %v3786, 0.0
        %v3872 = vsel %vm901, %v3788, 0.0
        %v3873 = vsel %vm902, %v3790, 0.0
        %v3874 = vsel %vm903, %v3792, 0.0
        %v3875 = vsel %vm904, %v3794, 0.0
        %v3876 = vsel %vm905, %v3796, 0.0
        %v3877 = vsel %vm906, %v3798, 0.0
        %v3878 = vsel %vm907, %v3800, 0.0
        %v3879 = vsel %vm908, %v3802, 0.0
        %v3880 = vsel %vm909, %v3804, 0.0
        %v3881 = vsel %vm910, %v3806, 0.0
        %v3882 = vsel %vm911, %v3808, 0.0
        %v3883 = vsel %vm912, %v3810, 0.0
        %v3884 = vsel %vm913, %v3812, 0.0
        %v3885 = vsel %vm914, %v3814, 0.0
        %v3886 = vsel %vm915, %v3816, 0.0
        %v3887 = vsel %vm916, %v3818, 0.0
        %v3888 = vpack.c.bf16 %v3859, %v3858
        %v3889 = vpack.c.bf16 %v3861, %v3860
        %v3890 = vpack.c.bf16 %v3863, %v3862
        %v3891 = vpack.c.bf16 %v3865, %v3864
        %v3892 = vpack.c.bf16 %v3867, %v3866
        %v3893 = vpack.c.bf16 %v3869, %v3868
        %v3894 = vpack.c.bf16 %v3871, %v3870
        %v3895 = vpack.c.bf16 %v3873, %v3872
        %v3896 = vpack.c.bf16 %v3875, %v3874
        %v3897 = vpack.c.bf16 %v3877, %v3876
        %v3898 = vpack.c.bf16 %v3879, %v3878
        %v3899 = vpack.c.bf16 %v3881, %v3880
        %v3900 = vpack.c.bf16 %v3883, %v3882
        %v3901 = vpack.c.bf16 %v3885, %v3884
        %v3902 = vpack.c.bf16 %v3887, %v3886
        %v3903 = vpack.c.bf16 %v3762, %v3856
        %v3904 = vpack.c.bf16 %v3766, %v3764
        %v3905 = vpack.c.bf16 %v3770, %v3768
        %v3906 = vpack.c.bf16 %v3774, %v3772
        %v3907 = vpack.c.bf16 %v3778, %v3776
        %v3908 = vpack.c.bf16 %v3782, %v3780
        %v3909 = vpack.c.bf16 %v3786, %v3784
        %v3910 = vpack.c.bf16 %v3790, %v3788
        %v3911 = vpack.c.bf16 %v3794, %v3792
        %v3912 = vpack.c.bf16 %v3798, %v3796
        %v3913 = vpack.c.bf16 %v3802, %v3800
        %v3914 = vpack.c.bf16 %v3806, %v3804
        %v3915 = vpack.c.bf16 %v3810, %v3808
        %v3916 = vpack.c.bf16 %v3814, %v3812
        %v3917 = vpack.c.bf16 %v3818, %v3816
        %v3918 = vpack.c.bf16 %v3820, %v3820
        %v3920 = vsel %vm1165, %v1204, %v1204
        %v3921 = vrot.slane %v3856, 2
        %v3922 = vsel %vm1165, %v1204, %v3921
        %v3923 = vrot.slane %v3762, 2
        %v3924 = vsel %vm1165, %v3921, %v3923
        %v3925 = vrot.slane %v3764, 2
        %v3926 = vsel %vm1165, %v3923, %v3925
        %v3927 = vrot.slane %v3766, 2
        %v3928 = vsel %vm1165, %v3925, %v3927
        %v3929 = vrot.slane %v3768, 2
        %v3930 = vsel %vm1165, %v3927, %v3929
        %v3931 = vrot.slane %v3770, 2
        %v3932 = vsel %vm1165, %v3929, %v3931
        %v3933 = vrot.slane %v3772, 2
        %v3934 = vsel %vm1165, %v3931, %v3933
        %v3935 = vrot.slane %v3774, 2
        %v3936 = vsel %vm1165, %v3933, %v3935
        %v3937 = vrot.slane %v3776, 2
        %v3938 = vsel %vm1165, %v3935, %v3937
        %v3939 = vrot.slane %v3778, 2
        %v3940 = vsel %vm1165, %v3937, %v3939
        %v3941 = vrot.slane %v3780, 2
        %v3942 = vsel %vm1165, %v3939, %v3941
        %v3943 = vrot.slane %v3782, 2
        %v3944 = vsel %vm1165, %v3941, %v3943
        %v3945 = vrot.slane %v3784, 2
        %v3946 = vsel %vm1165, %v3943, %v3945
        %v3947 = vrot.slane %v3786, 2
        %v3948 = vsel %vm1165, %v3945, %v3947
        %v3949 = vrot.slane %v3788, 2
        %v3950 = vsel %vm1165, %v3947, %v3949
        %v3951 = vrot.slane %v3790, 2
        %v3952 = vsel %vm1165, %v3949, %v3951
        %v3953 = vrot.slane %v3792, 2
        %v3954 = vsel %vm1165, %v3951, %v3953
        %v3955 = vrot.slane %v3794, 2
        %v3956 = vsel %vm1165, %v3953, %v3955
        %v3957 = vrot.slane %v3796, 2
        %v3958 = vsel %vm1165, %v3955, %v3957
        %v3959 = vrot.slane %v3798, 2
        %v3960 = vsel %vm1165, %v3957, %v3959
        %v3961 = vrot.slane %v3800, 2
        %v3962 = vsel %vm1165, %v3959, %v3961
        %v3963 = vrot.slane %v3802, 2
        %v3964 = vsel %vm1165, %v3961, %v3963
        %v3965 = vrot.slane %v3804, 2
        %v3966 = vsel %vm1165, %v3963, %v3965
        %v3967 = vrot.slane %v3806, 2
        %v3968 = vsel %vm1165, %v3965, %v3967
        %v3969 = vrot.slane %v3808, 2
        %v3970 = vsel %vm1165, %v3967, %v3969
        %v3971 = vrot.slane %v3810, 2
        %v3972 = vsel %vm1165, %v3969, %v3971
        %v3973 = vrot.slane %v3812, 2
        %v3974 = vsel %vm1165, %v3971, %v3973
        %v3975 = vrot.slane %v3814, 2
        %v3976 = vsel %vm1165, %v3973, %v3975
        %v3977 = vrot.slane %v3816, 2
        %v3978 = vsel %vm1165, %v3975, %v3977
        %v3979 = vrot.slane %v3818, 2
        %v3980 = vsel %vm1165, %v3977, %v3979
        %v3981 = vrot.slane %v3820, 2
        %v3982 = vsel %vm1165, %v3979, %v3981
        %v4015 = vsel %vm917, %v3920, 0.0
        %v4016 = vsel %vm918, %v3922, 0.0
        %v4017 = vsel %vm919, %v3924, 0.0
        %v4018 = vsel %vm920, %v3926, 0.0
        %v4019 = vsel %vm921, %v3928, 0.0
        %v4020 = vsel %vm922, %v3930, 0.0
        %v4021 = vsel %vm923, %v3932, 0.0
        %v4022 = vsel %vm924, %v3934, 0.0
        %v4023 = vsel %vm925, %v3936, 0.0
        %v4024 = vsel %vm926, %v3938, 0.0
        %v4025 = vsel %vm927, %v3940, 0.0
        %v4026 = vsel %vm928, %v3942, 0.0
        %v4027 = vsel %vm929, %v3944, 0.0
        %v4028 = vsel %vm930, %v3946, 0.0
        %v4029 = vsel %vm931, %v3948, 0.0
        %v4030 = vsel %vm932, %v3950, 0.0
        %v4031 = vsel %vm933, %v3952, 0.0
        %v4032 = vsel %vm934, %v3954, 0.0
        %v4033 = vsel %vm935, %v3956, 0.0
        %v4034 = vsel %vm936, %v3958, 0.0
        %v4035 = vsel %vm937, %v3960, 0.0
        %v4036 = vsel %vm938, %v3962, 0.0
        %v4037 = vsel %vm939, %v3964, 0.0
        %v4038 = vsel %vm940, %v3966, 0.0
        %v4039 = vsel %vm941, %v3968, 0.0
        %v4040 = vsel %vm942, %v3970, 0.0
        %v4041 = vsel %vm943, %v3972, 0.0
        %v4042 = vsel %vm944, %v3974, 0.0
        %v4043 = vsel %vm945, %v3976, 0.0
        %v4044 = vsel %vm946, %v3978, 0.0
        %v4045 = vsel %vm947, %v3980, 0.0
        %v4046 = vsel %vm948, %v3982, 0.0
        %v4047 = vpack.c.bf16 %v4016, %v4015
        %v4048 = vpack.c.bf16 %v4018, %v4017
        %v4049 = vpack.c.bf16 %v4020, %v4019
        %v4050 = vpack.c.bf16 %v4022, %v4021
        %v4051 = vpack.c.bf16 %v4024, %v4023
        %v4052 = vpack.c.bf16 %v4026, %v4025
        %v4053 = vpack.c.bf16 %v4028, %v4027
        %v4054 = vpack.c.bf16 %v4030, %v4029
        %v4055 = vpack.c.bf16 %v4032, %v4031
        %v4056 = vpack.c.bf16 %v4034, %v4033
        %v4057 = vpack.c.bf16 %v4036, %v4035
        %v4058 = vpack.c.bf16 %v4038, %v4037
        %v4059 = vpack.c.bf16 %v4040, %v4039
        %v4060 = vpack.c.bf16 %v4042, %v4041
        %v4061 = vpack.c.bf16 %v4044, %v4043
        %v4062 = vpack.c.bf16 %v4046, %v4045
        %v4063 = vsel %vm885, %v3856, 0.0
        %v4064 = vsel %vm886, %v3762, 0.0
        %v4065 = vsel %vm887, %v3764, 0.0
        %v4066 = vsel %vm888, %v3766, 0.0
        %v4067 = vsel %vm889, %v3768, 0.0
        %v4068 = vsel %vm890, %v3770, 0.0
        %v4069 = vsel %vm891, %v3772, 0.0
        %v4070 = vsel %vm892, %v3774, 0.0
        %v4071 = vsel %vm893, %v3776, 0.0
        %v4072 = vsel %vm894, %v3778, 0.0
        %v4073 = vsel %vm895, %v3780, 0.0
        %v4074 = vsel %vm896, %v3782, 0.0
        %v4075 = vsel %vm897, %v3784, 0.0
        %v4076 = vsel %vm898, %v3786, 0.0
        %v4077 = vsel %vm899, %v3788, 0.0
        %v4078 = vsel %vm900, %v3790, 0.0
        %v4079 = vsel %vm901, %v3792, 0.0
        %v4080 = vsel %vm902, %v3794, 0.0
        %v4081 = vsel %vm903, %v3796, 0.0
        %v4082 = vsel %vm904, %v3798, 0.0
        %v4083 = vsel %vm905, %v3800, 0.0
        %v4084 = vsel %vm906, %v3802, 0.0
        %v4085 = vsel %vm907, %v3804, 0.0
        %v4086 = vsel %vm908, %v3806, 0.0
        %v4087 = vsel %vm909, %v3808, 0.0
        %v4088 = vsel %vm910, %v3810, 0.0
        %v4089 = vsel %vm911, %v3812, 0.0
        %v4090 = vsel %vm912, %v3814, 0.0
        %v4091 = vsel %vm913, %v3816, 0.0
        %v4092 = vsel %vm914, %v3818, 0.0
        %v4093 = vsel %vm915, %v3820, 0.0
        %v4094 = vsel %vm916, %v3822, 0.0
        %v4095 = vpack.c.bf16 %v4064, %v4063
        %v4096 = vpack.c.bf16 %v4066, %v4065
        %v4097 = vpack.c.bf16 %v4068, %v4067
        %v4098 = vpack.c.bf16 %v4070, %v4069
        %v4099 = vpack.c.bf16 %v4072, %v4071
        %v4100 = vpack.c.bf16 %v4074, %v4073
        %v4101 = vpack.c.bf16 %v4076, %v4075
        %v4102 = vpack.c.bf16 %v4078, %v4077
        %v4103 = vpack.c.bf16 %v4080, %v4079
        %v4104 = vpack.c.bf16 %v4082, %v4081
        %v4105 = vpack.c.bf16 %v4084, %v4083
        %v4106 = vpack.c.bf16 %v4086, %v4085
        %v4107 = vpack.c.bf16 %v4088, %v4087
        %v4108 = vpack.c.bf16 %v4090, %v4089
        %v4109 = vpack.c.bf16 %v4092, %v4091
        %v4110 = vpack.c.bf16 %v4094, %v4093
        %v4111 = vpack.c.bf16 %v3822, %v3820
        %v4112 = vpack.c.bf16 %v3857, %v3857
        %v4114 = vrot.slane %v3822, 2
        %v4115 = vsel %vm1165, %v3981, %v4114
        %v4116 = vrot.slane %v3857, 2
        %v4117 = vsel %vm1165, %v4114, %v4116
        %v4120 = vsel %vm917, %v3924, 0.0
        %v4121 = vsel %vm918, %v3926, 0.0
        %v4122 = vsel %vm919, %v3928, 0.0
        %v4123 = vsel %vm920, %v3930, 0.0
        %v4124 = vsel %vm921, %v3932, 0.0
        %v4125 = vsel %vm922, %v3934, 0.0
        %v4126 = vsel %vm923, %v3936, 0.0
        %v4127 = vsel %vm924, %v3938, 0.0
        %v4128 = vsel %vm925, %v3940, 0.0
        %v4129 = vsel %vm926, %v3942, 0.0
        %v4130 = vsel %vm927, %v3944, 0.0
        %v4131 = vsel %vm928, %v3946, 0.0
        %v4132 = vsel %vm929, %v3948, 0.0
        %v4133 = vsel %vm930, %v3950, 0.0
        %v4134 = vsel %vm931, %v3952, 0.0
        %v4135 = vsel %vm932, %v3954, 0.0
        %v4136 = vsel %vm933, %v3956, 0.0
        %v4137 = vsel %vm934, %v3958, 0.0
        %v4138 = vsel %vm935, %v3960, 0.0
        %v4139 = vsel %vm936, %v3962, 0.0
        %v4140 = vsel %vm937, %v3964, 0.0
        %v4141 = vsel %vm938, %v3966, 0.0
        %v4142 = vsel %vm939, %v3968, 0.0
        %v4143 = vsel %vm940, %v3970, 0.0
        %v4144 = vsel %vm941, %v3972, 0.0
        %v4145 = vsel %vm942, %v3974, 0.0
        %v4146 = vsel %vm943, %v3976, 0.0
        %v4147 = vsel %vm944, %v3978, 0.0
        %v4148 = vsel %vm945, %v3980, 0.0
        %v4149 = vsel %vm946, %v3982, 0.0
        %v4150 = vsel %vm947, %v4115, 0.0
        %v4151 = vsel %vm948, %v4117, 0.0
        %v4152 = vpack.c.bf16 %v4121, %v4120
        %v4153 = vpack.c.bf16 %v4123, %v4122
        %v4154 = vpack.c.bf16 %v4125, %v4124
        %v4155 = vpack.c.bf16 %v4127, %v4126
        %v4156 = vpack.c.bf16 %v4129, %v4128
        %v4157 = vpack.c.bf16 %v4131, %v4130
        %v4158 = vpack.c.bf16 %v4133, %v4132
        %v4159 = vpack.c.bf16 %v4135, %v4134
        %v4160 = vpack.c.bf16 %v4137, %v4136
        %v4161 = vpack.c.bf16 %v4139, %v4138
        %v4162 = vpack.c.bf16 %v4141, %v4140
        %v4163 = vpack.c.bf16 %v4143, %v4142
        %v4164 = vpack.c.bf16 %v4145, %v4144
        %v4165 = vpack.c.bf16 %v4147, %v4146
        %v4166 = vpack.c.bf16 %v4149, %v4148
        %v4167 = vpack.c.bf16 %v4151, %v4150
        %v4168 = vsel %vm885, %v3764, 0.0
        %v4169 = vsel %vm886, %v3766, 0.0
        %v4170 = vsel %vm887, %v3768, 0.0
        %v4171 = vsel %vm888, %v3770, 0.0
        %v4172 = vsel %vm889, %v3772, 0.0
        %v4173 = vsel %vm890, %v3774, 0.0
        %v4174 = vsel %vm891, %v3776, 0.0
        %v4175 = vsel %vm892, %v3778, 0.0
        %v4176 = vsel %vm893, %v3780, 0.0
        %v4177 = vsel %vm894, %v3782, 0.0
        %v4178 = vsel %vm895, %v3784, 0.0
        %v4179 = vsel %vm896, %v3786, 0.0
        %v4180 = vsel %vm897, %v3788, 0.0
        %v4181 = vsel %vm898, %v3790, 0.0
        %v4182 = vsel %vm899, %v3792, 0.0
        %v4183 = vsel %vm900, %v3794, 0.0
        %v4184 = vsel %vm901, %v3796, 0.0
        %v4185 = vsel %vm902, %v3798, 0.0
        %v4186 = vsel %vm903, %v3800, 0.0
        %v4187 = vsel %vm904, %v3802, 0.0
        %v4188 = vsel %vm905, %v3804, 0.0
        %v4189 = vsel %vm906, %v3806, 0.0
        %v4190 = vsel %vm907, %v3808, 0.0
        %v4191 = vsel %vm908, %v3810, 0.0
        %v4192 = vsel %vm909, %v3812, 0.0
        %v4193 = vsel %vm910, %v3814, 0.0
        %v4194 = vsel %vm911, %v3816, 0.0
        %v4195 = vsel %vm912, %v3818, 0.0
        %v4196 = vsel %vm913, %v3820, 0.0
        %v4197 = vsel %vm914, %v3822, 0.0
        %v4198 = vsel %vm915, %v3857, 0.0
        %v4199 = vpack.c.bf16 %v4169, %v4168
        %v4200 = vpack.c.bf16 %v4171, %v4170
        %v4201 = vpack.c.bf16 %v4173, %v4172
        %v4202 = vpack.c.bf16 %v4175, %v4174
        %v4203 = vpack.c.bf16 %v4177, %v4176
        %v4204 = vpack.c.bf16 %v4179, %v4178
        %v4205 = vpack.c.bf16 %v4181, %v4180
        %v4206 = vpack.c.bf16 %v4183, %v4182
        %v4207 = vpack.c.bf16 %v4185, %v4184
        %v4208 = vpack.c.bf16 %v4187, %v4186
        %v4209 = vpack.c.bf16 %v4189, %v4188
        %v4210 = vpack.c.bf16 %v4191, %v4190
        %v4211 = vpack.c.bf16 %v4193, %v4192
        %v4212 = vpack.c.bf16 %v4195, %v4194
        %v4213 = vpack.c.bf16 %v4197, %v4196
        %v4214 = vpack.c.bf16 0.0, %v4198
        %v4215 = vpack.c.bf16 0.0, %v3857
        %v4216 = vsel %vm1165, %v4116, %v1204
        %v4218 = vsel %vm917, %v3928, 0.0
        %v4219 = vsel %vm918, %v3930, 0.0
        %v4220 = vsel %vm919, %v3932, 0.0
        %v4221 = vsel %vm920, %v3934, 0.0
        %v4222 = vsel %vm921, %v3936, 0.0
        %v4223 = vsel %vm922, %v3938, 0.0
        %v4224 = vsel %vm923, %v3940, 0.0
        %v4225 = vsel %vm924, %v3942, 0.0
        %v4226 = vsel %vm925, %v3944, 0.0
        %v4227 = vsel %vm926, %v3946, 0.0
        %v4228 = vsel %vm927, %v3948, 0.0
        %v4229 = vsel %vm928, %v3950, 0.0
        %v4230 = vsel %vm929, %v3952, 0.0
        %v4231 = vsel %vm930, %v3954, 0.0
        %v4232 = vsel %vm931, %v3956, 0.0
        %v4233 = vsel %vm932, %v3958, 0.0
        %v4234 = vsel %vm933, %v3960, 0.0
        %v4235 = vsel %vm934, %v3962, 0.0
        %v4236 = vsel %vm935, %v3964, 0.0
        %v4237 = vsel %vm936, %v3966, 0.0
        %v4238 = vsel %vm937, %v3968, 0.0
        %v4239 = vsel %vm938, %v3970, 0.0
        %v4240 = vsel %vm939, %v3972, 0.0
        %v4241 = vsel %vm940, %v3974, 0.0
        %v4242 = vsel %vm941, %v3976, 0.0
        %v4243 = vsel %vm942, %v3978, 0.0
        %v4244 = vsel %vm943, %v3980, 0.0
        %v4245 = vsel %vm944, %v3982, 0.0
        %v4246 = vsel %vm945, %v4115, 0.0
        %v4247 = vsel %vm946, %v4117, 0.0
        %v4248 = vsel %vm947, %v4216, 0.0
        %v4249 = vsel %vm948, %v3920, 0.0
        %v4250 = vpack.c.bf16 %v4219, %v4218
        %v4251 = vpack.c.bf16 %v4221, %v4220
        %v4252 = vpack.c.bf16 %v4223, %v4222
        %v4253 = vpack.c.bf16 %v4225, %v4224
        %v4254 = vpack.c.bf16 %v4227, %v4226
        %v4255 = vpack.c.bf16 %v4229, %v4228
        %v4256 = vpack.c.bf16 %v4231, %v4230
        %v4257 = vpack.c.bf16 %v4233, %v4232
        %v4258 = vpack.c.bf16 %v4235, %v4234
        %v4259 = vpack.c.bf16 %v4237, %v4236
        %v4260 = vpack.c.bf16 %v4239, %v4238
        %v4261 = vpack.c.bf16 %v4241, %v4240
        %v4262 = vpack.c.bf16 %v4243, %v4242
        %v4263 = vpack.c.bf16 %v4245, %v4244
        %v4264 = vpack.c.bf16 %v4247, %v4246
        %v4265 = vpack.c.bf16 %v4249, %v4248
        %v4266 = vshrl.u32 %v1202, 16
        %v4268 = vor.u32 %v4266, %v1257
        %v4270 = vshll.u32 %v3903, 16
        %v4272 = vrot.slane %v4270, 1
        %v4273 = vsel %vm1210, %v4268, %v4272
        %v4274 = vshrl.u32 %v3903, 16
        %v4276 = vor.u32 %v4274, %v4272
        %v4278 = vshll.u32 %v3904, 16
        %v4280 = vrot.slane %v4278, 1
        %v4281 = vsel %vm1210, %v4276, %v4280
        %v4282 = vshrl.u32 %v3904, 16
        %v4284 = vor.u32 %v4282, %v4280
        %v4286 = vshll.u32 %v3905, 16
        %v4288 = vrot.slane %v4286, 1
        %v4289 = vsel %vm1210, %v4284, %v4288
        %v4290 = vshrl.u32 %v3905, 16
        %v4292 = vor.u32 %v4290, %v4288
        %v4294 = vshll.u32 %v3906, 16
        %v4296 = vrot.slane %v4294, 1
        %v4297 = vsel %vm1210, %v4292, %v4296
        %v4298 = vshrl.u32 %v3906, 16
        %v4300 = vor.u32 %v4298, %v4296
        %v4302 = vshll.u32 %v3907, 16
        %v4304 = vrot.slane %v4302, 1
        %v4305 = vsel %vm1210, %v4300, %v4304
        %v4306 = vshrl.u32 %v3907, 16
        %v4308 = vor.u32 %v4306, %v4304
        %v4310 = vshll.u32 %v3908, 16
        %v4312 = vrot.slane %v4310, 1
        %v4313 = vsel %vm1210, %v4308, %v4312
        %v4314 = vshrl.u32 %v3908, 16
        %v4316 = vor.u32 %v4314, %v4312
        %v4318 = vshll.u32 %v3909, 16
        %v4320 = vrot.slane %v4318, 1
        %v4321 = vsel %vm1210, %v4316, %v4320
        %v4322 = vshrl.u32 %v3909, 16
        %v4324 = vor.u32 %v4322, %v4320
        %v4326 = vshll.u32 %v3910, 16
        %v4328 = vrot.slane %v4326, 1
        %v4329 = vsel %vm1210, %v4324, %v4328
        %v4330 = vshrl.u32 %v3910, 16
        %v4332 = vor.u32 %v4330, %v4328
        %v4334 = vshll.u32 %v3911, 16
        %v4336 = vrot.slane %v4334, 1
        %v4337 = vsel %vm1210, %v4332, %v4336
        %v4338 = vshrl.u32 %v3911, 16
        %v4340 = vor.u32 %v4338, %v4336
        %v4342 = vshll.u32 %v3912, 16
        %v4344 = vrot.slane %v4342, 1
        %v4345 = vsel %vm1210, %v4340, %v4344
        %v4346 = vshrl.u32 %v3912, 16
        %v4348 = vor.u32 %v4346, %v4344
        %v4350 = vshll.u32 %v3913, 16
        %v4352 = vrot.slane %v4350, 1
        %v4353 = vsel %vm1210, %v4348, %v4352
        %v4354 = vshrl.u32 %v3913, 16
        %v4356 = vor.u32 %v4354, %v4352
        %v4358 = vshll.u32 %v3914, 16
        %v4360 = vrot.slane %v4358, 1
        %v4361 = vsel %vm1210, %v4356, %v4360
        %v4362 = vshrl.u32 %v3914, 16
        %v4364 = vor.u32 %v4362, %v4360
        %v4366 = vshll.u32 %v3915, 16
        %v4368 = vrot.slane %v4366, 1
        %v4369 = vsel %vm1210, %v4364, %v4368
        %v4370 = vshrl.u32 %v3915, 16
        %v4372 = vor.u32 %v4370, %v4368
        %v4374 = vshll.u32 %v3916, 16
        %v4376 = vrot.slane %v4374, 1
        %v4377 = vsel %vm1210, %v4372, %v4376
        %v4378 = vshrl.u32 %v3916, 16
        %v4380 = vor.u32 %v4378, %v4376
        %v4382 = vshll.u32 %v3917, 16
        %v4384 = vrot.slane %v4382, 1
        %v4385 = vsel %vm1210, %v4380, %v4384
        %v4386 = vshrl.u32 %v3917, 16
        %v4388 = vor.u32 %v4386, %v4384
        %v4390 = vshll.u32 %v3918, 16
        %v4392 = vrot.slane %v4390, 1
        %v4393 = vsel %vm1210, %v4388, %v4392
        %4394 = vrot.lane.b32.xlu0 %v4273, 32
        %v4395 = vpop.permute.xlu0 %4394
        %4396 = vrot.lane.b32.xlu0 %v4281, 32
        %v4397 = vpop.permute.xlu0 %4396
        %4398 = vrot.lane.b32.xlu0 %v4289, 32
        %v4399 = vpop.permute.xlu0 %4398
        %4400 = vrot.lane.b32.xlu0 %v4297, 32
        %v4401 = vpop.permute.xlu0 %4400
        %4402 = vrot.lane.b32.xlu0 %v4305, 32
        %v4403 = vpop.permute.xlu0 %4402
        %4404 = vrot.lane.b32.xlu0 %v4313, 32
        %v4405 = vpop.permute.xlu0 %4404
        %4406 = vrot.lane.b32.xlu0 %v4321, 32
        %v4407 = vpop.permute.xlu0 %4406
        %4408 = vrot.lane.b32.xlu0 %v4329, 32
        %v4409 = vpop.permute.xlu0 %4408
        %4410 = vrot.lane.b32.xlu0 %v4337, 32
        %v4411 = vpop.permute.xlu0 %4410
        %4412 = vrot.lane.b32.xlu0 %v4345, 32
        %v4413 = vpop.permute.xlu0 %4412
        %4414 = vrot.lane.b32.xlu0 %v4353, 32
        %v4415 = vpop.permute.xlu0 %4414
        %4416 = vrot.lane.b32.xlu0 %v4361, 32
        %v4417 = vpop.permute.xlu0 %4416
        %4418 = vrot.lane.b32.xlu0 %v4369, 32
        %v4419 = vpop.permute.xlu0 %4418
        %4420 = vrot.lane.b32.xlu0 %v4377, 32
        %v4421 = vpop.permute.xlu0 %4420
        %4422 = vrot.lane.b32.xlu0 %v4385, 32
        %v4423 = vpop.permute.xlu0 %4422
        %4424 = vrot.lane.b32.xlu0 %v4393, 32
        %v4425 = vpop.permute.xlu0 %4424
        %4442 = vrot.lane.b32.xlu0 %v4047, 64
        %v4443 = vpop.permute.xlu0 %4442
        %4444 = vrot.lane.b32.xlu0 %v4048, 64
        %v4445 = vpop.permute.xlu0 %4444
        %4446 = vrot.lane.b32.xlu0 %v4049, 64
        %v4447 = vpop.permute.xlu0 %4446
        %4448 = vrot.lane.b32.xlu0 %v4050, 64
        %v4449 = vpop.permute.xlu0 %4448
        %4450 = vrot.lane.b32.xlu0 %v4051, 64
        %v4451 = vpop.permute.xlu0 %4450
        %4452 = vrot.lane.b32.xlu0 %v4052, 64
        %v4453 = vpop.permute.xlu0 %4452
        %4454 = vrot.lane.b32.xlu0 %v4053, 64
        %v4455 = vpop.permute.xlu0 %4454
        %4456 = vrot.lane.b32.xlu0 %v4054, 64
        %v4457 = vpop.permute.xlu0 %4456
        %4458 = vrot.lane.b32.xlu0 %v4055, 64
        %v4459 = vpop.permute.xlu0 %4458
        %4460 = vrot.lane.b32.xlu0 %v4056, 64
        %v4461 = vpop.permute.xlu0 %4460
        %4462 = vrot.lane.b32.xlu0 %v4057, 64
        %v4463 = vpop.permute.xlu0 %4462
        %4464 = vrot.lane.b32.xlu0 %v4058, 64
        %v4465 = vpop.permute.xlu0 %4464
        %4466 = vrot.lane.b32.xlu0 %v4059, 64
        %v4467 = vpop.permute.xlu0 %4466
        %4468 = vrot.lane.b32.xlu0 %v4060, 64
        %v4469 = vpop.permute.xlu0 %4468
        %4470 = vrot.lane.b32.xlu0 %v4061, 64
        %v4471 = vpop.permute.xlu0 %4470
        %4472 = vrot.lane.b32.xlu0 %v4062, 64
        %v4473 = vpop.permute.xlu0 %4472
        %4490 = vrot.lane.b32.xlu0 %v4095, 96
        %v4491 = vpop.permute.xlu0 %4490
        %4492 = vrot.lane.b32.xlu0 %v4096, 96
        %v4493 = vpop.permute.xlu0 %4492
        %4494 = vrot.lane.b32.xlu0 %v4097, 96
        %v4495 = vpop.permute.xlu0 %4494
        %4496 = vrot.lane.b32.xlu0 %v4098, 96
        %v4497 = vpop.permute.xlu0 %4496
        %4498 = vrot.lane.b32.xlu0 %v4099, 96
        %v4499 = vpop.permute.xlu0 %4498
        %4500 = vrot.lane.b32.xlu0 %v4100, 96
        %v4501 = vpop.permute.xlu0 %4500
        %4502 = vrot.lane.b32.xlu0 %v4101, 96
        %v4503 = vpop.permute.xlu0 %4502
        %4504 = vrot.lane.b32.xlu0 %v4102, 96
        %v4505 = vpop.permute.xlu0 %4504
        %4506 = vrot.lane.b32.xlu0 %v4103, 96
        %v4507 = vpop.permute.xlu0 %4506
        %4508 = vrot.lane.b32.xlu0 %v4104, 96
        %v4509 = vpop.permute.xlu0 %4508
        %4510 = vrot.lane.b32.xlu0 %v4105, 96
        %v4511 = vpop.permute.xlu0 %4510
        %4512 = vrot.lane.b32.xlu0 %v4106, 96
        %v4513 = vpop.permute.xlu0 %4512
        %4514 = vrot.lane.b32.xlu0 %v4107, 96
        %v4515 = vpop.permute.xlu0 %4514
        %4516 = vrot.lane.b32.xlu0 %v4108, 96
        %v4517 = vpop.permute.xlu0 %4516
        %4518 = vrot.lane.b32.xlu0 %v4109, 96
        %v4519 = vpop.permute.xlu0 %4518
        %4520 = vrot.lane.b32.xlu0 %v4110, 96
        %v4521 = vpop.permute.xlu0 %4520
        %v4523 = vshll.u32 %v4111, 16
        %v4525 = vrot.slane %v4523, 1
        %v4526 = vsel %vm1210, %v4388, %v4525
        %v4527 = vshrl.u32 %v4111, 16
        %v4529 = vor.u32 %v4527, %v4525
        %v4531 = vshll.u32 %v4112, 16
        %v4533 = vrot.slane %v4531, 1
        %v4534 = vsel %vm1210, %v4529, %v4533
        %4551 = vrot.lane.b32.xlu0 %v4152, 32
        %v4552 = vpop.permute.xlu0 %4551
        %4553 = vrot.lane.b32.xlu0 %v4153, 32
        %v4554 = vpop.permute.xlu0 %4553
        %4555 = vrot.lane.b32.xlu0 %v4154, 32
        %v4556 = vpop.permute.xlu0 %4555
        %4557 = vrot.lane.b32.xlu0 %v4155, 32
        %v4558 = vpop.permute.xlu0 %4557
        %4559 = vrot.lane.b32.xlu0 %v4156, 32
        %v4560 = vpop.permute.xlu0 %4559
        %4561 = vrot.lane.b32.xlu0 %v4157, 32
        %v4562 = vpop.permute.xlu0 %4561
        %4563 = vrot.lane.b32.xlu0 %v4158, 32
        %v4564 = vpop.permute.xlu0 %4563
        %4565 = vrot.lane.b32.xlu0 %v4159, 32
        %v4566 = vpop.permute.xlu0 %4565
        %4567 = vrot.lane.b32.xlu0 %v4160, 32
        %v4568 = vpop.permute.xlu0 %4567
        %4569 = vrot.lane.b32.xlu0 %v4161, 32
        %v4570 = vpop.permute.xlu0 %4569
        %4571 = vrot.lane.b32.xlu0 %v4162, 32
        %v4572 = vpop.permute.xlu0 %4571
        %4573 = vrot.lane.b32.xlu0 %v4163, 32
        %v4574 = vpop.permute.xlu0 %4573
        %4575 = vrot.lane.b32.xlu0 %v4164, 32
        %v4576 = vpop.permute.xlu0 %4575
        %4577 = vrot.lane.b32.xlu0 %v4165, 32
        %v4578 = vpop.permute.xlu0 %4577
        %4579 = vrot.lane.b32.xlu0 %v4166, 32
        %v4580 = vpop.permute.xlu0 %4579
        %4581 = vrot.lane.b32.xlu0 %v4167, 32
        %v4582 = vpop.permute.xlu0 %4581
        %4599 = vrot.lane.b32.xlu0 %v4199, 64
        %v4600 = vpop.permute.xlu0 %4599
        %4601 = vrot.lane.b32.xlu0 %v4200, 64
        %v4602 = vpop.permute.xlu0 %4601
        %4603 = vrot.lane.b32.xlu0 %v4201, 64
        %v4604 = vpop.permute.xlu0 %4603
        %4605 = vrot.lane.b32.xlu0 %v4202, 64
        %v4606 = vpop.permute.xlu0 %4605
        %4607 = vrot.lane.b32.xlu0 %v4203, 64
        %v4608 = vpop.permute.xlu0 %4607
        %4609 = vrot.lane.b32.xlu0 %v4204, 64
        %v4610 = vpop.permute.xlu0 %4609
        %4611 = vrot.lane.b32.xlu0 %v4205, 64
        %v4612 = vpop.permute.xlu0 %4611
        %4613 = vrot.lane.b32.xlu0 %v4206, 64
        %v4614 = vpop.permute.xlu0 %4613
        %4615 = vrot.lane.b32.xlu0 %v4207, 64
        %v4616 = vpop.permute.xlu0 %4615
        %4617 = vrot.lane.b32.xlu0 %v4208, 64
        %v4618 = vpop.permute.xlu0 %4617
        %4619 = vrot.lane.b32.xlu0 %v4209, 64
        %v4620 = vpop.permute.xlu0 %4619
        %4621 = vrot.lane.b32.xlu0 %v4210, 64
        %v4622 = vpop.permute.xlu0 %4621
        %4623 = vrot.lane.b32.xlu0 %v4211, 64
        %v4624 = vpop.permute.xlu0 %4623
        %4625 = vrot.lane.b32.xlu0 %v4212, 64
        %v4626 = vpop.permute.xlu0 %4625
        %4627 = vrot.lane.b32.xlu0 %v4213, 64
        %v4628 = vpop.permute.xlu0 %4627
        %4629 = vrot.lane.b32.xlu0 %v4214, 64
        %v4630 = vpop.permute.xlu0 %4629
        %v4632 = vshll.u32 %v4215, 16
        %v4634 = vrot.slane %v4632, 1
        %v4635 = vsel %vm1210, %v4529, %v4634
        %v4636 = vshrl.u32 %v4215, 16
        %v4638 = vor.u32 %v4636, %v4634
        %v4639 = vsel %vm1210, %v4638, %v1257
        %4640 = vrot.lane.b32.xlu0 %v4289, 96
        %v4641 = vpop.permute.xlu0 %4640
        %4642 = vrot.lane.b32.xlu0 %v4297, 96
        %v4643 = vpop.permute.xlu0 %4642
        %4644 = vrot.lane.b32.xlu0 %v4305, 96
        %v4645 = vpop.permute.xlu0 %4644
        %4646 = vrot.lane.b32.xlu0 %v4313, 96
        %v4647 = vpop.permute.xlu0 %4646
        %4648 = vrot.lane.b32.xlu0 %v4321, 96
        %v4649 = vpop.permute.xlu0 %4648
        %4650 = vrot.lane.b32.xlu0 %v4329, 96
        %v4651 = vpop.permute.xlu0 %4650
        %4652 = vrot.lane.b32.xlu0 %v4337, 96
        %v4653 = vpop.permute.xlu0 %4652
        %4654 = vrot.lane.b32.xlu0 %v4345, 96
        %v4655 = vpop.permute.xlu0 %4654
        %4656 = vrot.lane.b32.xlu0 %v4353, 96
        %v4657 = vpop.permute.xlu0 %4656
        %4658 = vrot.lane.b32.xlu0 %v4361, 96
        %v4659 = vpop.permute.xlu0 %4658
        %4660 = vrot.lane.b32.xlu0 %v4369, 96
        %v4661 = vpop.permute.xlu0 %4660
        %4662 = vrot.lane.b32.xlu0 %v4377, 96
        %v4663 = vpop.permute.xlu0 %4662
        %4664 = vrot.lane.b32.xlu0 %v4385, 96
        %v4665 = vpop.permute.xlu0 %4664
        %4666 = vrot.lane.b32.xlu0 %v4526, 96
        %v4667 = vpop.permute.xlu0 %4666
        %4668 = vrot.lane.b32.xlu0 %v4635, 96
        %v4669 = vpop.permute.xlu0 %4668
        %4670 = vrot.lane.b32.xlu0 %v4639, 96
        %v4671 = vpop.permute.xlu0 %4670
        %v4673 = vsel %vm1261, %v1202, %v4395
        %v4676 = vsel %vm1261, %v3888, %v4397
        %v4679 = vsel %vm1261, %v3889, %v4399
        %v4682 = vsel %vm1261, %v3890, %v4401
        %v4685 = vsel %vm1261, %v3891, %v4403
        %v4688 = vsel %vm1261, %v3892, %v4405
        %v4691 = vsel %vm1261, %v3893, %v4407
        %v4694 = vsel %vm1261, %v3894, %v4409
        %v4697 = vsel %vm1261, %v3895, %v4411
        %v4700 = vsel %vm1261, %v3896, %v4413
        %v4703 = vsel %vm1261, %v3897, %v4415
        %v4706 = vsel %vm1261, %v3898, %v4417
        %v4709 = vsel %vm1261, %v3899, %v4419
        %v4712 = vsel %vm1261, %v3900, %v4421
        %v4715 = vsel %vm1261, %v3901, %v4423
        %v4718 = vsel %vm1261, %v3902, %v4425
        %v4720 = vsel %vm1265, %v4673, %v4443
        %v4722 = vsel %vm1265, %v4676, %v4445
        %v4724 = vsel %vm1265, %v4679, %v4447
        %v4726 = vsel %vm1265, %v4682, %v4449
        %v4728 = vsel %vm1265, %v4685, %v4451
        %v4730 = vsel %vm1265, %v4688, %v4453
        %v4732 = vsel %vm1265, %v4691, %v4455
        %v4734 = vsel %vm1265, %v4694, %v4457
        %v4736 = vsel %vm1265, %v4697, %v4459
        %v4738 = vsel %vm1265, %v4700, %v4461
        %v4740 = vsel %vm1265, %v4703, %v4463
        %v4742 = vsel %vm1265, %v4706, %v4465
        %v4744 = vsel %vm1265, %v4709, %v4467
        %v4746 = vsel %vm1265, %v4712, %v4469
        %v4748 = vsel %vm1265, %v4715, %v4471
        %v4750 = vsel %vm1265, %v4718, %v4473
        %v4752 = vsel %vm1268, %v4720, %v4491
        %v4755 = vsel %vm1268, %v4722, %v4493
        %v4758 = vsel %vm1268, %v4724, %v4495
        %v4761 = vsel %vm1268, %v4726, %v4497
        %v4764 = vsel %vm1268, %v4728, %v4499
        %v4767 = vsel %vm1268, %v4730, %v4501
        %v4770 = vsel %vm1268, %v4732, %v4503
        %v4773 = vsel %vm1268, %v4734, %v4505
        %v4776 = vsel %vm1268, %v4736, %v4507
        %v4779 = vsel %vm1268, %v4738, %v4509
        %v4782 = vsel %vm1268, %v4740, %v4511
        %v4785 = vsel %vm1268, %v4742, %v4513
        %v4788 = vsel %vm1268, %v4744, %v4515
        %v4791 = vsel %vm1268, %v4746, %v4517
        %v4794 = vsel %vm1268, %v4748, %v4519
        %v4797 = vsel %vm1268, %v4750, %v4521
        %v4801 = vsel %vm1261, %v4281, %v4552
        %v4804 = vsel %vm1261, %v4289, %v4554
        %v4807 = vsel %vm1261, %v4297, %v4556
        %v4810 = vsel %vm1261, %v4305, %v4558
        %v4813 = vsel %vm1261, %v4313, %v4560
        %v4816 = vsel %vm1261, %v4321, %v4562
        %v4819 = vsel %vm1261, %v4329, %v4564
        %v4822 = vsel %vm1261, %v4337, %v4566
        %v4825 = vsel %vm1261, %v4345, %v4568
        %v4828 = vsel %vm1261, %v4353, %v4570
        %v4831 = vsel %vm1261, %v4361, %v4572
        %v4834 = vsel %vm1261, %v4369, %v4574
        %v4837 = vsel %vm1261, %v4377, %v4576
        %v4840 = vsel %vm1261, %v4385, %v4578
        %v4843 = vsel %vm1261, %v4526, %v4580
        %v4846 = vsel %vm1261, %v4534, %v4582
        %v4848 = vsel %vm1265, %v4801, %v4600
        %v4850 = vsel %vm1265, %v4804, %v4602
        %v4852 = vsel %vm1265, %v4807, %v4604
        %v4854 = vsel %vm1265, %v4810, %v4606
        %v4856 = vsel %vm1265, %v4813, %v4608
        %v4858 = vsel %vm1265, %v4816, %v4610
        %v4860 = vsel %vm1265, %v4819, %v4612
        %v4862 = vsel %vm1265, %v4822, %v4614
        %v4864 = vsel %vm1265, %v4825, %v4616
        %v4866 = vsel %vm1265, %v4828, %v4618
        %v4868 = vsel %vm1265, %v4831, %v4620
        %v4870 = vsel %vm1265, %v4834, %v4622
        %v4872 = vsel %vm1265, %v4837, %v4624
        %v4874 = vsel %vm1265, %v4840, %v4626
        %v4876 = vsel %vm1265, %v4843, %v4628
        %v4878 = vsel %vm1265, %v4846, %v4630
        %v4880 = vsel %vm1268, %v4848, %v4641
        %v4883 = vsel %vm1268, %v4850, %v4643
        %v4886 = vsel %vm1268, %v4852, %v4645
        %v4889 = vsel %vm1268, %v4854, %v4647
        %v4892 = vsel %vm1268, %v4856, %v4649
        %v4895 = vsel %vm1268, %v4858, %v4651
        %v4898 = vsel %vm1268, %v4860, %v4653
        %v4901 = vsel %vm1268, %v4862, %v4655
        %v4904 = vsel %vm1268, %v4864, %v4657
        %v4907 = vsel %vm1268, %v4866, %v4659
        %v4910 = vsel %vm1268, %v4868, %v4661
        %v4913 = vsel %vm1268, %v4870, %v4663
        %v4916 = vsel %vm1268, %v4872, %v4665
        %v4919 = vsel %vm1268, %v4874, %v4667
        %v4922 = vsel %vm1268, %v4876, %v4669
        %v4925 = vsel %vm1268, %v4878, %v4671
        %v4928 = vlaneseq
        %v4929 = vshrl.u32 %v4928, 7
        %v4930 = vsub.s32 0, %v4929
        %v4931 = vrot.slane %v3727, %v4930
        %v4969 = vunpack.c.l.b16 %v3690
        %v4970 = vunpack.c.l.b16 %v3691
        %v4971 = vunpack.c.l.b16 %v3692
        %v4972 = vunpack.c.l.b16 %v3693
        %v4973 = vunpack.c.l.b16 %v3694
        %v4974 = vunpack.c.l.b16 %v3695
        %v4975 = vunpack.c.l.b16 %v3696
        %v4976 = vunpack.c.l.b16 %v3697
        %v4977 = vunpack.c.l.b16 %v3698
        %v4978 = vunpack.c.l.b16 %v3699
        %v4979 = vunpack.c.l.b16 %v3700
        %v4980 = vunpack.c.l.b16 %v3701
        %v4981 = vunpack.c.l.b16 %v3702
        %v4982 = vunpack.c.l.b16 %v3703
        %v4983 = vunpack.c.l.b16 %v3704
        %v4984 = vunpack.c.l.b16 %v3705
        %v4985 = vunpack.c.l.b16 %v3706
        %v4986 = vunpack.c.l.b16 %v3707
        %v4987 = vunpack.c.l.b16 %v3708
        %v4988 = vunpack.c.l.b16 %v3709
        %v4989 = vunpack.c.l.b16 %v3710
        %v4990 = vunpack.c.l.b16 %v3711
        %v4991 = vunpack.c.l.b16 %v3712
        %v4992 = vunpack.c.l.b16 %v3713
        %v4993 = vunpack.c.l.b16 %v3714
        %v4994 = vunpack.c.l.b16 %v3715
        %v4995 = vunpack.c.l.b16 %v3716
        %v4996 = vunpack.c.l.b16 %v3717
        %v4997 = vunpack.c.l.b16 %v3718
        %v4998 = vunpack.c.l.b16 %v3719
        %v4999 = vunpack.c.l.b16 %v3720
        %v5000 = vunpack.c.l.b16 %v3721
        %v5001 = vunpack.c.l.b16 %v3722
        %v5002 = vunpack.c.l.b16 %v3723
        %v5003 = vunpack.c.l.b16 %v3724
        %v5004 = vunpack.c.l.b16 %v3725
        %v5005 = vpack.c.b16 %v4970, %v4969
        %v5006 = vpack.c.b16 %v4972, %v4971
        %v5007 = vpack.c.b16 %v4974, %v4973
        %v5008 = vpack.c.b16 %v4976, %v4975
        %v5009 = vpack.c.b16 %v4978, %v4977
        %v5010 = vpack.c.b16 %v4980, %v4979
        %v5011 = vpack.c.b16 %v4982, %v4981
        %v5012 = vpack.c.b16 %v4984, %v4983
        %v5013 = vpack.c.b16 %v4986, %v4985
        %v5014 = vpack.c.b16 %v4988, %v4987
        %v5015 = vpack.c.b16 %v4990, %v4989
        %v5016 = vpack.c.b16 %v4992, %v4991
        %v5017 = vpack.c.b16 %v4994, %v4993
        %v5018 = vpack.c.b16 %v4996, %v4995
        %v5019 = vpack.c.b16 %v4998, %v4997
        %v5020 = vpack.c.b16 %v5000, %v4999
        %v5021 = vpack.c.b16 %v5002, %v5001
        %v5022 = vpack.c.b16 %v5004, %v5003
        %v5042 = vsel %vm1261, %v4250, 0
        %v5045 = vsel %vm1261, %v4251, 0
        %v5048 = vsel %vm1261, %v4252, 0
        %v5051 = vsel %vm1261, %v4253, 0
        %v5054 = vsel %vm1261, %v4254, 0
        %v5057 = vsel %vm1261, %v4255, 0
        %v5060 = vsel %vm1261, %v4256, 0
        %v5063 = vsel %vm1261, %v4257, 0
        %v5066 = vsel %vm1261, %v4258, 0
        %v5069 = vsel %vm1261, %v4259, 0
        %v5072 = vsel %vm1261, %v4260, 0
        %v5075 = vsel %vm1261, %v4261, 0
        %v5078 = vsel %vm1261, %v4262, 0
        %v5081 = vsel %vm1261, %v4263, 0
        %v5084 = vsel %vm1261, %v4264, 0
        %v5087 = vsel %vm1261, %v4265, 0
        %5089 = vmatprep.subr.bf16.mxu0 0
        %5090 = vmatpush1.bf16.msra.mxu0 %v5005
        %5091 = vmatprep.subr.bf16.mxu0 0
        %5092 = vmatpush1.bf16.msra.mxu0 %v5006
        %5093 = vmatprep.subr.bf16.mxu0 0
        %5094 = vmatpush1.bf16.msra.mxu0 %v5007
        %5095 = vmatprep.subr.bf16.mxu0 0
        %5096 = vmatpush1.bf16.msra.mxu0 %v5008
        %5097 = vmatprep.subr.bf16.mxu0 0
        %5098 = vmatpush1.bf16.msra.mxu0 %v5009
        %5099 = vmatprep.subr.bf16.mxu0 0
        %5100 = vmatpush1.bf16.msra.mxu0 %v5010
        %5101 = vmatprep.subr.bf16.mxu0 0
        %5102 = vmatpush1.bf16.msra.mxu0 %v5011
        %5103 = vmatprep.subr.bf16.mxu0 0
        %5104 = vmatpush1.bf16.msra.mxu0 %v5012
        %5105 = vmatprep.subr.bf16.mxu0 0
        %5106 = vmatpush1.bf16.msra.mxu0 %v5013
        %5107 = vmatprep.subr.bf16.mxu0 0
        %5108 = vmatpush1.bf16.msra.mxu0 %v5014
        %5109 = vmatprep.subr.bf16.mxu0 0
        %5110 = vmatpush1.bf16.msra.mxu0 %v5015
        %5111 = vmatprep.subr.bf16.mxu0 0
        %5112 = vmatpush1.bf16.msra.mxu0 %v5016
        %5113 = vmatprep.subr.bf16.mxu0 0
        %5114 = vmatpush1.bf16.msra.mxu0 %v5017
        %5115 = vmatprep.subr.bf16.mxu0 0
        %5116 = vmatpush1.bf16.msra.mxu0 %v5018
        %5117 = vmatprep.subr.bf16.mxu0 0
        %5118 = vmatpush1.bf16.msra.mxu0 %v5019
        %5119 = vmatprep.subr.bf16.mxu0 0
        %5120 = vmatpush1.bf16.msra.mxu0 %v5020
        %5121 = vmatprep.mubr.bf16.mxu0 %v4880
        %5122 = vmatmul.mubr.bf16.gmra.mrb[0].mxu0 %v4752
        %v5123 = vpop.f32.mrb[0].mxu0
        %v5124 = vadd.f32 %v4931, %v5123
        %v5125 = vpop.f32.mrb[0].mxu0
        %v5126 = vpop.f32.mrb[0].mxu0
        %v5127 = vadd.f32 %v4931, %v5126
        %v5128 = vpop.f32.mrb[0].mxu0
        %5129 = vmatprep.mubr.bf16.mxu0 %v4883
        %5130 = vmatmul.mubr.bf16.gmra.mrb[0].mxu0 %v4755
        %v5131 = vpop.f32.mrb[0].mxu0
        %v5132 = vadd.f32 %v4931, %v5131
        %v5133 = vpop.f32.mrb[0].mxu0
        %v5134 = vpop.f32.mrb[0].mxu0
        %v5135 = vadd.f32 %v4931, %v5134
        %v5136 = vpop.f32.mrb[0].mxu0
        %5137 = vmatprep.mubr.bf16.mxu0 %v4886
        %5138 = vmatmul.mubr.bf16.gmra.mrb[0].mxu0 %v4758
        %v5139 = vpop.f32.mrb[0].mxu0
        %v5140 = vadd.f32 %v4931, %v5139
        %v5141 = vpop.f32.mrb[0].mxu0
        %v5142 = vpop.f32.mrb[0].mxu0
        %v5143 = vadd.f32 %v4931, %v5142
        %v5144 = vpop.f32.mrb[0].mxu0
        %5145 = vmatprep.mubr.bf16.mxu0 %v4889
        %5146 = vmatmul.mubr.bf16.gmra.mrb[0].mxu0 %v4761
        %v5147 = vpop.f32.mrb[0].mxu0
        %v5148 = vadd.f32 %v4931, %v5147
        %v5149 = vpop.f32.mrb[0].mxu0
        %v5150 = vpop.f32.mrb[0].mxu0
        %v5151 = vadd.f32 %v4931, %v5150
        %v5152 = vpop.f32.mrb[0].mxu0
        %5153 = vmatprep.mubr.bf16.mxu0 %v4892
        %5154 = vmatmul.mubr.bf16.gmra.mrb[0].mxu0 %v4764
        %v5155 = vpop.f32.mrb[0].mxu0
        %v5156 = vadd.f32 %v4931, %v5155
        %v5157 = vpop.f32.mrb[0].mxu0
        %v5158 = vpop.f32.mrb[0].mxu0
        %v5159 = vadd.f32 %v4931, %v5158
        %v5160 = vpop.f32.mrb[0].mxu0
        %5161 = vmatprep.mubr.bf16.mxu0 %v4895
        %5162 = vmatmul.mubr.bf16.gmra.mrb[0].mxu0 %v4767
        %v5163 = vpop.f32.mrb[0].mxu0
        %v5164 = vadd.f32 %v4931, %v5163
        %v5165 = vpop.f32.mrb[0].mxu0
        %v5166 = vpop.f32.mrb[0].mxu0
        %v5167 = vadd.f32 %v4931, %v5166
        %v5168 = vpop.f32.mrb[0].mxu0
        %5169 = vmatprep.mubr.bf16.mxu0 %v4898
        %5170 = vmatmul.mubr.bf16.gmra.mrb[0].mxu0 %v4770
        %v5171 = vpop.f32.mrb[0].mxu0
        %v5172 = vadd.f32 %v4931, %v5171
        %v5173 = vpop.f32.mrb[0].mxu0
        %v5174 = vpop.f32.mrb[0].mxu0
        %v5175 = vadd.f32 %v4931, %v5174
        %v5176 = vpop.f32.mrb[0].mxu0
        %5177 = vmatprep.mubr.bf16.mxu0 %v4901
        %5178 = vmatmul.mubr.bf16.gmra.mrb[0].mxu0 %v4773
        %v5179 = vpop.f32.mrb[0].mxu0
        %v5180 = vadd.f32 %v4931, %v5179
        %v5181 = vpop.f32.mrb[0].mxu0
        %v5182 = vpop.f32.mrb[0].mxu0
        %v5183 = vadd.f32 %v4931, %v5182
        %v5184 = vpop.f32.mrb[0].mxu0
        %5185 = vmatprep.mubr.bf16.mxu0 %v4904
        %5186 = vmatmul.mubr.bf16.gmra.mrb[0].mxu0 %v4776
        %v5187 = vpop.f32.mrb[0].mxu0
        %v5188 = vadd.f32 %v4931, %v5187
        %v5189 = vpop.f32.mrb[0].mxu0
        %v5190 = vpop.f32.mrb[0].mxu0
        %v5191 = vadd.f32 %v4931, %v5190
        %v5192 = vpop.f32.mrb[0].mxu0
        %5193 = vmatprep.mubr.bf16.mxu0 %v4907
        %5194 = vmatmul.mubr.bf16.gmra.mrb[0].mxu0 %v4779
        %v5195 = vpop.f32.mrb[0].mxu0
        %v5196 = vadd.f32 %v4931, %v5195
        %v5197 = vpop.f32.mrb[0].mxu0
        %v5198 = vpop.f32.mrb[0].mxu0
        %v5199 = vadd.f32 %v4931, %v5198
        %v5200 = vpop.f32.mrb[0].mxu0
        %5201 = vmatprep.mubr.bf16.mxu0 %v4910
        %5202 = vmatmul.mubr.bf16.gmra.mrb[0].mxu0 %v4782
        %v5203 = vpop.f32.mrb[0].mxu0
        %v5204 = vadd.f32 %v4931, %v5203
        %v5205 = vpop.f32.mrb[0].mxu0
        %v5206 = vpop.f32.mrb[0].mxu0
        %v5207 = vadd.f32 %v4931, %v5206
        %v5208 = vpop.f32.mrb[0].mxu0
        %5209 = vmatprep.mubr.bf16.mxu0 %v4913
        %5210 = vmatmul.mubr.bf16.gmra.mrb[0].mxu0 %v4785
        %v5211 = vpop.f32.mrb[0].mxu0
        %v5212 = vadd.f32 %v4931, %v5211
        %v5213 = vpop.f32.mrb[0].mxu0
        %v5214 = vpop.f32.mrb[0].mxu0
        %v5215 = vadd.f32 %v4931, %v5214
        %v5216 = vpop.f32.mrb[0].mxu0
        %5217 = vmatprep.mubr.bf16.mxu0 %v4916
        %5218 = vmatmul.mubr.bf16.gmra.mrb[0].mxu0 %v4788
        %v5219 = vpop.f32.mrb[0].mxu0
        %v5220 = vadd.f32 %v4931, %v5219
        %v5221 = vpop.f32.mrb[0].mxu0
        %v5222 = vpop.f32.mrb[0].mxu0
        %v5223 = vadd.f32 %v4931, %v5222
        %v5224 = vpop.f32.mrb[0].mxu0
        %5225 = vmatprep.mubr.bf16.mxu0 %v4919
        %5226 = vmatmul.mubr.bf16.gmra.mrb[0].mxu0 %v4791
        %v5227 = vpop.f32.mrb[0].mxu0
        %v5228 = vadd.f32 %v4931, %v5227
        %v5229 = vpop.f32.mrb[0].mxu0
        %v5230 = vpop.f32.mrb[0].mxu0
        %v5231 = vadd.f32 %v4931, %v5230
        %v5232 = vpop.f32.mrb[0].mxu0
        %5233 = vmatprep.mubr.bf16.mxu0 %v4922
        %5234 = vmatmul.mubr.bf16.gmra.mrb[0].mxu0 %v4794
        %v5235 = vpop.f32.mrb[0].mxu0
        %v5236 = vadd.f32 %v4931, %v5235
        %v5237 = vpop.f32.mrb[0].mxu0
        %v5238 = vpop.f32.mrb[0].mxu0
        %v5239 = vadd.f32 %v4931, %v5238
        %v5240 = vpop.f32.mrb[0].mxu0
        %5241 = vmatprep.mubr.bf16.mxu0 %v4925
        %5242 = vmatmul.mubr.bf16.gmra.mrb[0].mxu0 %v4797
        %v5243 = vpop.f32.mrb[0].mxu0
        %v5244 = vadd.f32 %v4931, %v5243
        %v5245 = vpop.f32.mrb[0].mxu0
        %v5246 = vpop.f32.mrb[0].mxu0
        %v5247 = vadd.f32 %v4931, %v5246
        %v5248 = vpop.f32.mrb[0].mxu0
        %5249 = vdwg.mxu0
        %5250 = vmatprep.subr.bf16.mxu0 0
        %5251 = vmatpush1.bf16.msra.mxu0 %v5021
        %5252 = vmatprep.subr.bf16.mxu0 0
        %5253 = vmatpush1.bf16.msra.mxu0 %v5022
        %5254 = vmatprep.subr.bf16.mxu0 0
        %5255 = vmatpush1.bf16.msra.mxu0 0
        %5256 = vmatprep.subr.bf16.mxu0 0
        %5257 = vmatpush1.bf16.msra.mxu0 0
        %5258 = vmatprep.subr.bf16.mxu0 0
        %5259 = vmatpush1.bf16.msra.mxu0 0
        %5260 = vmatprep.subr.bf16.mxu0 0
        %5261 = vmatpush1.bf16.msra.mxu0 0
        %5262 = vmatprep.subr.bf16.mxu0 0
        %5263 = vmatpush1.bf16.msra.mxu0 0
        %5264 = vmatprep.subr.bf16.mxu0 0
        %5265 = vmatpush1.bf16.msra.mxu0 0
        %5266 = vmatprep.subr.bf16.mxu0 0
        %5267 = vmatpush1.bf16.msra.mxu0 0
        %5268 = vmatprep.subr.bf16.mxu0 0
        %5269 = vmatpush1.bf16.msra.mxu0 0
        %5270 = vmatprep.subr.bf16.mxu0 0
        %5271 = vmatpush1.bf16.msra.mxu0 0
        %5272 = vmatprep.subr.bf16.mxu0 0
        %5273 = vmatpush1.bf16.msra.mxu0 0
        %5274 = vmatprep.subr.bf16.mxu0 0
        %5275 = vmatpush1.bf16.msra.mxu0 0
        %5276 = vmatprep.subr.bf16.mxu0 0
        %5277 = vmatpush1.bf16.msra.mxu0 0
        %5278 = vmatprep.subr.bf16.mxu0 0
        %5279 = vmatpush1.bf16.msra.mxu0 0
        %5280 = vmatprep.subr.bf16.mxu0 0
        %5281 = vmatpush1.bf16.msra.mxu0 0
        %5282 = vmatprep.mubr.bf16.mxu0 0
        %5283 = vmatmul.mubr.bf16.gmra.mrb[0].mxu0 %v5042
        %v5284 = vpop.f32.mrb[0].mxu0
        %v5285 = vadd.f32 %v5124, %v5284
        %v5286 = vpop.f32.mrb[0].mxu0
        %v5287 = vpop.f32.mrb[0].mxu0
        %v5288 = vadd.f32 %v5127, %v5287
        %v5289 = vpop.f32.mrb[0].mxu0
        %5290 = vmatprep.mubr.bf16.mxu0 0
        %5291 = vmatmul.mubr.bf16.gmra.mrb[0].mxu0 %v5045
        %v5292 = vpop.f32.mrb[0].mxu0
        %v5293 = vadd.f32 %v5132, %v5292
        %v5294 = vpop.f32.mrb[0].mxu0
        %v5295 = vpop.f32.mrb[0].mxu0
        %v5296 = vadd.f32 %v5135, %v5295
        %v5297 = vpop.f32.mrb[0].mxu0
        %5298 = vmatprep.mubr.bf16.mxu0 0
        %5299 = vmatmul.mubr.bf16.gmra.mrb[0].mxu0 %v5048
        %v5300 = vpop.f32.mrb[0].mxu0
        %v5301 = vadd.f32 %v5140, %v5300
        %v5302 = vpop.f32.mrb[0].mxu0
        %v5303 = vpop.f32.mrb[0].mxu0
        %v5304 = vadd.f32 %v5143, %v5303
        %v5305 = vpop.f32.mrb[0].mxu0
        %5306 = vmatprep.mubr.bf16.mxu0 0
        %5307 = vmatmul.mubr.bf16.gmra.mrb[0].mxu0 %v5051
        %v5308 = vpop.f32.mrb[0].mxu0
        %v5309 = vadd.f32 %v5148, %v5308
        %v5310 = vpop.f32.mrb[0].mxu0
        %v5311 = vpop.f32.mrb[0].mxu0
        %v5312 = vadd.f32 %v5151, %v5311
        %v5313 = vpop.f32.mrb[0].mxu0
        %5314 = vmatprep.mubr.bf16.mxu0 0
        %5315 = vmatmul.mubr.bf16.gmra.mrb[0].mxu0 %v5054
        %v5316 = vpop.f32.mrb[0].mxu0
        %v5317 = vadd.f32 %v5156, %v5316
        %v5318 = vpop.f32.mrb[0].mxu0
        %v5319 = vpop.f32.mrb[0].mxu0
        %v5320 = vadd.f32 %v5159, %v5319
        %v5321 = vpop.f32.mrb[0].mxu0
        %5322 = vmatprep.mubr.bf16.mxu0 0
        %5323 = vmatmul.mubr.bf16.gmra.mrb[0].mxu0 %v5057
        %v5324 = vpop.f32.mrb[0].mxu0
        %v5325 = vadd.f32 %v5164, %v5324
        %v5326 = vpop.f32.mrb[0].mxu0
        %v5327 = vpop.f32.mrb[0].mxu0
        %v5328 = vadd.f32 %v5167, %v5327
        %v5329 = vpop.f32.mrb[0].mxu0
        %5330 = vmatprep.mubr.bf16.mxu0 0
        %5331 = vmatmul.mubr.bf16.gmra.mrb[0].mxu0 %v5060
        %v5332 = vpop.f32.mrb[0].mxu0
        %v5333 = vadd.f32 %v5172, %v5332
        %v5334 = vpop.f32.mrb[0].mxu0
        %v5335 = vpop.f32.mrb[0].mxu0
        %v5336 = vadd.f32 %v5175, %v5335
        %v5337 = vpop.f32.mrb[0].mxu0
        %5338 = vmatprep.mubr.bf16.mxu0 0
        %5339 = vmatmul.mubr.bf16.gmra.mrb[0].mxu0 %v5063
        %v5340 = vpop.f32.mrb[0].mxu0
        %v5341 = vadd.f32 %v5180, %v5340
        %v5342 = vpop.f32.mrb[0].mxu0
        %v5343 = vpop.f32.mrb[0].mxu0
        %v5344 = vadd.f32 %v5183, %v5343
        %v5345 = vpop.f32.mrb[0].mxu0
        %5346 = vmatprep.mubr.bf16.mxu0 0
        %5347 = vmatmul.mubr.bf16.gmra.mrb[0].mxu0 %v5066
        %v5348 = vpop.f32.mrb[0].mxu0
        %v5349 = vadd.f32 %v5188, %v5348
        %v5350 = vpop.f32.mrb[0].mxu0
        %v5351 = vpop.f32.mrb[0].mxu0
        %v5352 = vadd.f32 %v5191, %v5351
        %v5353 = vpop.f32.mrb[0].mxu0
        %5354 = vmatprep.mubr.bf16.mxu0 0
        %5355 = vmatmul.mubr.bf16.gmra.mrb[0].mxu0 %v5069
        %v5356 = vpop.f32.mrb[0].mxu0
        %v5357 = vadd.f32 %v5196, %v5356
        %v5358 = vpop.f32.mrb[0].mxu0
        %v5359 = vpop.f32.mrb[0].mxu0
        %v5360 = vadd.f32 %v5199, %v5359
        %v5361 = vpop.f32.mrb[0].mxu0
        %5362 = vmatprep.mubr.bf16.mxu0 0
        %5363 = vmatmul.mubr.bf16.gmra.mrb[0].mxu0 %v5072
        %v5364 = vpop.f32.mrb[0].mxu0
        %v5365 = vadd.f32 %v5204, %v5364
        %v5366 = vpop.f32.mrb[0].mxu0
        %v5367 = vpop.f32.mrb[0].mxu0
        %v5368 = vadd.f32 %v5207, %v5367
        %v5369 = vpop.f32.mrb[0].mxu0
        %5370 = vmatprep.mubr.bf16.mxu0 0
        %5371 = vmatmul.mubr.bf16.gmra.mrb[0].mxu0 %v5075
        %v5372 = vpop.f32.mrb[0].mxu0
        %v5373 = vadd.f32 %v5212, %v5372
        %v5374 = vpop.f32.mrb[0].mxu0
        %v5375 = vpop.f32.mrb[0].mxu0
        %v5376 = vadd.f32 %v5215, %v5375
        %v5377 = vpop.f32.mrb[0].mxu0
        %5378 = vmatprep.mubr.bf16.mxu0 0
        %5379 = vmatmul.mubr.bf16.gmra.mrb[0].mxu0 %v5078
        %v5380 = vpop.f32.mrb[0].mxu0
        %v5381 = vadd.f32 %v5220, %v5380
        %v5382 = vpop.f32.mrb[0].mxu0
        %v5383 = vpop.f32.mrb[0].mxu0
        %v5384 = vadd.f32 %v5223, %v5383
        %v5385 = vpop.f32.mrb[0].mxu0
        %5386 = vmatprep.mubr.bf16.mxu0 0
        %5387 = vmatmul.mubr.bf16.gmra.mrb[0].mxu0 %v5081
        %v5388 = vpop.f32.mrb[0].mxu0
        %v5389 = vadd.f32 %v5228, %v5388
        %v5390 = vpop.f32.mrb[0].mxu0
        %v5391 = vpop.f32.mrb[0].mxu0
        %v5392 = vadd.f32 %v5231, %v5391
        %v5393 = vpop.f32.mrb[0].mxu0
        %5394 = vmatprep.mubr.bf16.mxu0 0
        %5395 = vmatmul.mubr.bf16.gmra.mrb[0].mxu0 %v5084
        %v5396 = vpop.f32.mrb[0].mxu0
        %v5397 = vadd.f32 %v5236, %v5396
        %v5398 = vpop.f32.mrb[0].mxu0
        %v5399 = vpop.f32.mrb[0].mxu0
        %v5400 = vadd.f32 %v5239, %v5399
        %v5401 = vpop.f32.mrb[0].mxu0
        %5402 = vmatprep.mubr.bf16.mxu0 0
        %5403 = vmatmul.mubr.bf16.gmra.mrb[0].mxu0 %v5087
        %v5404 = vpop.f32.mrb[0].mxu0
        %v5405 = vadd.f32 %v5244, %v5404
        %v5406 = vpop.f32.mrb[0].mxu0
        %v5407 = vpop.f32.mrb[0].mxu0
        %v5408 = vadd.f32 %v5247, %v5407
        %v5409 = vpop.f32.mrb[0].mxu0
        %5410 = vdwg.mxu0
        %vm5411 = vcmp.gt.f32.partialorder %v5285, 0.0
        %vm5412 = vcmp.gt.f32.partialorder %v5288, 0.0
        %vm5413 = vcmp.gt.f32.partialorder %v5293, 0.0
        %vm5414 = vcmp.gt.f32.partialorder %v5296, 0.0
        %vm5415 = vcmp.gt.f32.partialorder %v5301, 0.0
        %vm5416 = vcmp.gt.f32.partialorder %v5304, 0.0
        %vm5417 = vcmp.gt.f32.partialorder %v5309, 0.0
        %vm5418 = vcmp.gt.f32.partialorder %v5312, 0.0
        %vm5419 = vcmp.gt.f32.partialorder %v5317, 0.0
        %vm5420 = vcmp.gt.f32.partialorder %v5320, 0.0
        %vm5421 = vcmp.gt.f32.partialorder %v5325, 0.0
        %vm5422 = vcmp.gt.f32.partialorder %v5328, 0.0
        %vm5423 = vcmp.gt.f32.partialorder %v5333, 0.0
        %vm5424 = vcmp.gt.f32.partialorder %v5336, 0.0
        %vm5425 = vcmp.gt.f32.partialorder %v5341, 0.0
        %vm5426 = vcmp.gt.f32.partialorder %v5344, 0.0
        %vm5427 = vcmp.gt.f32.partialorder %v5349, 0.0
        %vm5428 = vcmp.gt.f32.partialorder %v5352, 0.0
        %vm5429 = vcmp.gt.f32.partialorder %v5357, 0.0
        %vm5430 = vcmp.gt.f32.partialorder %v5360, 0.0
        %vm5431 = vcmp.gt.f32.partialorder %v5365, 0.0
        %vm5432 = vcmp.gt.f32.partialorder %v5368, 0.0
        %vm5433 = vcmp.gt.f32.partialorder %v5373, 0.0
        %vm5434 = vcmp.gt.f32.partialorder %v5376, 0.0
        %vm5435 = vcmp.gt.f32.partialorder %v5381, 0.0
        %vm5436 = vcmp.gt.f32.partialorder %v5384, 0.0
        %vm5437 = vcmp.gt.f32.partialorder %v5389, 0.0
        %vm5438 = vcmp.gt.f32.partialorder %v5392, 0.0
        %vm5439 = vcmp.gt.f32.partialorder %v5397, 0.0
        %vm5440 = vcmp.gt.f32.partialorder %v5400, 0.0
        %vm5441 = vcmp.gt.f32.partialorder %v5405, 0.0
        %vm5442 = vcmp.gt.f32.partialorder %v5408, 0.0
        %v5443 = vmin.f32 %v5285, 0.0
        %v5444 = vmin.f32 %v5288, 0.0
        %v5445 = vmin.f32 %v5293, 0.0
        %v5446 = vmin.f32 %v5296, 0.0
        %v5447 = vmin.f32 %v5301, 0.0
        %v5448 = vmin.f32 %v5304, 0.0
        %v5449 = vmin.f32 %v5309, 0.0
        %v5450 = vmin.f32 %v5312, 0.0
        %v5451 = vmin.f32 %v5317, 0.0
        %v5452 = vmin.f32 %v5320, 0.0
        %v5453 = vmin.f32 %v5325, 0.0
        %v5454 = vmin.f32 %v5328, 0.0
        %v5455 = vmin.f32 %v5333, 0.0
        %v5456 = vmin.f32 %v5336, 0.0
        %v5457 = vmin.f32 %v5341, 0.0
        %v5458 = vmin.f32 %v5344, 0.0
        %v5459 = vmin.f32 %v5349, 0.0
        %v5460 = vmin.f32 %v5352, 0.0
        %v5461 = vmin.f32 %v5357, 0.0
        %v5462 = vmin.f32 %v5360, 0.0
        %v5463 = vmin.f32 %v5365, 0.0
        %v5464 = vmin.f32 %v5368, 0.0
        %v5465 = vmin.f32 %v5373, 0.0
        %v5466 = vmin.f32 %v5376, 0.0
        %v5467 = vmin.f32 %v5381, 0.0
        %v5468 = vmin.f32 %v5384, 0.0
        %v5469 = vmin.f32 %v5389, 0.0
        %v5470 = vmin.f32 %v5392, 0.0
        %v5471 = vmin.f32 %v5397, 0.0
        %v5472 = vmin.f32 %v5400, 0.0
        %v5473 = vmin.f32 %v5405, 0.0
        %v5474 = vmin.f32 %v5408, 0.0
        %v5475 = vmul.f32 %v5443, 1.442695
        %v5476 = vpow.pop %v5475
        %v5477 = vmul.f32 %v5444, 1.442695
        %v5478 = vpow.pop %v5477
        %v5479 = vmul.f32 %v5445, 1.442695
        %v5480 = vpow.pop %v5479
        %v5481 = vmul.f32 %v5446, 1.442695
        %v5482 = vpow.pop %v5481
        %v5483 = vmul.f32 %v5447, 1.442695
        %v5484 = vpow.pop %v5483
        %v5485 = vmul.f32 %v5448, 1.442695
        %v5486 = vpow.pop %v5485
        %v5487 = vmul.f32 %v5449, 1.442695
        %v5488 = vpow.pop %v5487
        %v5489 = vmul.f32 %v5450, 1.442695
        %v5490 = vpow.pop %v5489
        %v5491 = vmul.f32 %v5451, 1.442695
        %v5492 = vpow.pop %v5491
        %v5493 = vmul.f32 %v5452, 1.442695
        %v5494 = vpow.pop %v5493
        %v5495 = vmul.f32 %v5453, 1.442695
        %v5496 = vpow.pop %v5495
        %v5497 = vmul.f32 %v5454, 1.442695
        %v5498 = vpow.pop %v5497
        %v5499 = vmul.f32 %v5455, 1.442695
        %v5500 = vpow.pop %v5499
        %v5501 = vmul.f32 %v5456, 1.442695
        %v5502 = vpow.pop %v5501
        %v5503 = vmul.f32 %v5457, 1.442695
        %v5504 = vpow.pop %v5503
        %v5505 = vmul.f32 %v5458, 1.442695
        %v5506 = vpow.pop %v5505
        %v5507 = vmul.f32 %v5459, 1.442695
        %v5508 = vpow.pop %v5507
        %v5509 = vmul.f32 %v5460, 1.442695
        %v5510 = vpow.pop %v5509
        %v5511 = vmul.f32 %v5461, 1.442695
        %v5512 = vpow.pop %v5511
        %v5513 = vmul.f32 %v5462, 1.442695
        %v5514 = vpow.pop %v5513
        %v5515 = vmul.f32 %v5463, 1.442695
        %v5516 = vpow.pop %v5515
        %v5517 = vmul.f32 %v5464, 1.442695
        %v5518 = vpow.pop %v5517
        %v5519 = vmul.f32 %v5465, 1.442695
        %v5520 = vpow.pop %v5519
        %v5521 = vmul.f32 %v5466, 1.442695
        %v5522 = vpow.pop %v5521
        %v5523 = vmul.f32 %v5467, 1.442695
        %v5524 = vpow.pop %v5523
        %v5525 = vmul.f32 %v5468, 1.442695
        %v5526 = vpow.pop %v5525
        %v5527 = vmul.f32 %v5469, 1.442695
        %v5528 = vpow.pop %v5527
        %v5529 = vmul.f32 %v5470, 1.442695
        %v5530 = vpow.pop %v5529
        %v5531 = vmul.f32 %v5471, 1.442695
        %v5532 = vpow.pop %v5531
        %v5533 = vmul.f32 %v5472, 1.442695
        %v5534 = vpow.pop %v5533
        %v5535 = vmul.f32 %v5473, 1.442695
        %v5536 = vpow.pop %v5535
        %v5537 = vmul.f32 %v5474, 1.442695
        %v5538 = vpow.pop %v5537
        %v5539 = vsub.f32 %v5476, 1.0
        %v5540 = vsub.f32 %v5478, 1.0
        %v5541 = vsub.f32 %v5480, 1.0
        %v5542 = vsub.f32 %v5482, 1.0
        %v5543 = vsub.f32 %v5484, 1.0
        %v5544 = vsub.f32 %v5486, 1.0
        %v5545 = vsub.f32 %v5488, 1.0
        %v5546 = vsub.f32 %v5490, 1.0
        %v5547 = vsub.f32 %v5492, 1.0
        %v5548 = vsub.f32 %v5494, 1.0
        %v5549 = vsub.f32 %v5496, 1.0
        %v5550 = vsub.f32 %v5498, 1.0
        %v5551 = vsub.f32 %v5500, 1.0
        %v5552 = vsub.f32 %v5502, 1.0
        %v5553 = vsub.f32 %v5504, 1.0
        %v5554 = vsub.f32 %v5506, 1.0
        %v5555 = vsub.f32 %v5508, 1.0
        %v5556 = vsub.f32 %v5510, 1.0
        %v5557 = vsub.f32 %v5512, 1.0
        %v5558 = vsub.f32 %v5514, 1.0
        %v5559 = vsub.f32 %v5516, 1.0
        %v5560 = vsub.f32 %v5518, 1.0
        %v5561 = vsub.f32 %v5520, 1.0
        %v5562 = vsub.f32 %v5522, 1.0
        %v5563 = vsub.f32 %v5524, 1.0
        %v5564 = vsub.f32 %v5526, 1.0
        %v5565 = vsub.f32 %v5528, 1.0
        %v5566 = vsub.f32 %v5530, 1.0
        %v5567 = vsub.f32 %v5532, 1.0
        %v5568 = vsub.f32 %v5534, 1.0
        %v5569 = vsub.f32 %v5536, 1.0
        %v5570 = vsub.f32 %v5538, 1.0
        %v5571 = vsel %vm5411, %v5285, %v5539
        %v5572 = vsel %vm5412, %v5288, %v5540
        %v5573 = vsel %vm5413, %v5293, %v5541
        %v5574 = vsel %vm5414, %v5296, %v5542
        %v5575 = vsel %vm5415, %v5301, %v5543
        %v5576 = vsel %vm5416, %v5304, %v5544
        %v5577 = vsel %vm5417, %v5309, %v5545
        %v5578 = vsel %vm5418, %v5312, %v5546
        %v5579 = vsel %vm5419, %v5317, %v5547
        %v5580 = vsel %vm5420, %v5320, %v5548
        %v5581 = vsel %vm5421, %v5325, %v5549
        %v5582 = vsel %vm5422, %v5328, %v5550
        %v5583 = vsel %vm5423, %v5333, %v5551
        %v5584 = vsel %vm5424, %v5336, %v5552
        %v5585 = vsel %vm5425, %v5341, %v5553
        %v5586 = vsel %vm5426, %v5344, %v5554
        %v5587 = vsel %vm5427, %v5349, %v5555
        %v5588 = vsel %vm5428, %v5352, %v5556
        %v5589 = vsel %vm5429, %v5357, %v5557
        %v5590 = vsel %vm5430, %v5360, %v5558
        %v5591 = vsel %vm5431, %v5365, %v5559
        %v5592 = vsel %vm5432, %v5368, %v5560
        %v5593 = vsel %vm5433, %v5373, %v5561
        %v5594 = vsel %vm5434, %v5376, %v5562
        %v5595 = vsel %vm5435, %v5381, %v5563
        %v5596 = vsel %vm5436, %v5384, %v5564
        %v5597 = vsel %vm5437, %v5389, %v5565
        %v5598 = vsel %vm5438, %v5392, %v5566
        %v5599 = vsel %vm5439, %v5397, %v5567
        %v5600 = vsel %vm5440, %v5400, %v5568
        %v5601 = vsel %vm5441, %v5405, %v5569
        %v5602 = vsel %vm5442, %v5408, %v5570
        %s5603 = scalar_lea.vmem %s3, 720
        %v5604 = vld [vmem:[%s5603] sm:$0xf]
        %v5605 = vld [vmem:[%s5603 + $0x4] sm:$0xf]
        %v5606 = vld [vmem:[%s5603 + $0x8] sm:$0xf]
        %v5607 = vld [vmem:[%s5603 + $0xc] sm:$0xf]
        %v5608 = vld [vmem:[%s5603 + $0x10] sm:$0xf]
        %v5609 = vld [vmem:[%s5603 + $0x14] sm:$0xf]
        %v5610 = vld [vmem:[%s5603 + $0x18] sm:$0xf]
        %v5611 = vld [vmem:[%s5603 + $0x1c] sm:$0xf]
        %v5612 = vld [vmem:[%s5603 + $0x20] sm:$0xf]
        %v5613 = vld [vmem:[%s5603 + $0x24] sm:$0xf]
        %v5614 = vld [vmem:[%s5603 + $0x28] sm:$0xf]
        %v5615 = vld [vmem:[%s5603 + $0x2c] sm:$0xf]
        %v5616 = vld [vmem:[%s5603 + $0x30] sm:$0xf]
        %v5617 = vld [vmem:[%s5603 + $0x34] sm:$0xf]
        %v5618 = vld [vmem:[%s5603 + $0x38] sm:$0xf]
        %v5619 = vld [vmem:[%s5603 + $0x3c] sm:$0xf]
        %v5620 = vld [vmem:[%s5603 + $0x40] sm:$0xf]
        %v5621 = vld [vmem:[%s5603 + $0x44] sm:$0xf]
        %v5622 = vld [vmem:[%s5603 + $0x48] sm:$0xf]
        %v5623 = vld [vmem:[%s5603 + $0x4c] sm:$0xf]
        %v5624 = vld [vmem:[%s5603 + $0x50] sm:$0xf]
        %v5625 = vld [vmem:[%s5603 + $0x54] sm:$0xf]
        %v5626 = vld [vmem:[%s5603 + $0x58] sm:$0xf]
        %v5627 = vld [vmem:[%s5603 + $0x5c] sm:$0xf]
        %v5628 = vld [vmem:[%s5603 + $0x60] sm:$0xf]
        %v5629 = vld [vmem:[%s5603 + $0x64] sm:$0xf]
        %v5630 = vld [vmem:[%s5603 + $0x68] sm:$0xf]
        %v5631 = vld [vmem:[%s5603 + $0x6c] sm:$0xf]
        %v5632 = vld [vmem:[%s5603 + $0x70] sm:$0xf]
        %v5633 = vld [vmem:[%s5603 + $0x74] sm:$0xf]
        %v5634 = vld [vmem:[%s5603 + $0x78] sm:$0xf]
        %v5635 = vld [vmem:[%s5603 + $0x7c] sm:$0xf]
        %v5636 = vld [vmem:[%s5603 + $0x80] sm:$0xf]
        %v5637 = vld [vmem:[%s5603 + $0x84] sm:$0xf]
        %v5638 = vld [vmem:[%s5603 + $0x88] sm:$0xf]
        %v5639 = vld [vmem:[%s5603 + $0x8c] sm:$0xf]
        %s5640 = scalar_lea.vmem %s4, 5
        %v5641 = vld [vmem:[%s5640] sm:$0x1]
        %v5674 = vrot.slane %v5571, 7
        %v5675 = vrot.slane %v5572, 7
        %v5676 = vsel %vm2012, %v5674, %v5675
        %v5677 = vrot.slane %v5573, 7
        %v5678 = vsel %vm2012, %v5675, %v5677
        %v5679 = vrot.slane %v5574, 7
        %v5680 = vsel %vm2012, %v5677, %v5679
        %v5681 = vrot.slane %v5575, 7
        %v5682 = vsel %vm2012, %v5679, %v5681
        %v5683 = vrot.slane %v5576, 7
        %v5684 = vsel %vm2012, %v5681, %v5683
        %v5685 = vrot.slane %v5577, 7
        %v5686 = vsel %vm2012, %v5683, %v5685
        %v5687 = vrot.slane %v5578, 7
        %v5688 = vsel %vm2012, %v5685, %v5687
        %v5689 = vrot.slane %v5579, 7
        %v5690 = vsel %vm2012, %v5687, %v5689
        %v5691 = vrot.slane %v5580, 7
        %v5692 = vsel %vm2012, %v5689, %v5691
        %v5693 = vrot.slane %v5581, 7
        %v5694 = vsel %vm2012, %v5691, %v5693
        %v5695 = vrot.slane %v5582, 7
        %v5696 = vsel %vm2012, %v5693, %v5695
        %v5697 = vrot.slane %v5583, 7
        %v5698 = vsel %vm2012, %v5695, %v5697
        %v5699 = vrot.slane %v5584, 7
        %v5700 = vsel %vm2012, %v5697, %v5699
        %v5701 = vrot.slane %v5585, 7
        %v5702 = vsel %vm2012, %v5699, %v5701
        %v5703 = vrot.slane %v5586, 7
        %v5704 = vsel %vm2012, %v5701, %v5703
        %v5705 = vrot.slane %v5587, 7
        %v5706 = vsel %vm2012, %v5703, %v5705
        %v5707 = vrot.slane %v5588, 7
        %v5708 = vsel %vm2012, %v5705, %v5707
        %v5709 = vrot.slane %v5589, 7
        %v5710 = vsel %vm2012, %v5707, %v5709
        %v5711 = vrot.slane %v5590, 7
        %v5712 = vsel %vm2012, %v5709, %v5711
        %v5713 = vrot.slane %v5591, 7
        %v5714 = vsel %vm2012, %v5711, %v5713
        %v5715 = vrot.slane %v5592, 7
        %v5716 = vsel %vm2012, %v5713, %v5715
        %v5717 = vrot.slane %v5593, 7
        %v5718 = vsel %vm2012, %v5715, %v5717
        %v5719 = vrot.slane %v5594, 7
        %v5720 = vsel %vm2012, %v5717, %v5719
        %v5721 = vrot.slane %v5595, 7
        %v5722 = vsel %vm2012, %v5719, %v5721
        %v5723 = vrot.slane %v5596, 7
        %v5724 = vsel %vm2012, %v5721, %v5723
        %v5725 = vrot.slane %v5597, 7
        %v5726 = vsel %vm2012, %v5723, %v5725
        %v5727 = vrot.slane %v5598, 7
        %v5728 = vsel %vm2012, %v5725, %v5727
        %v5729 = vrot.slane %v5599, 7
        %v5730 = vsel %vm2012, %v5727, %v5729
        %v5731 = vrot.slane %v5600, 7
        %v5732 = vsel %vm2012, %v5729, %v5731
        %v5733 = vrot.slane %v5601, 7
        %v5734 = vsel %vm2012, %v5731, %v5733
        %v5735 = vrot.slane %v5602, 7
        %v5736 = vsel %vm2012, %v5733, %v5735
        %v5770 = vsel %vm2012, 0.0, %v5674
        %v5771 = vsel %vm2012, %v5735, 0.0
        %v5772 = vsel %vm887, %v5770, 0.0
        %v5773 = vsel %vm888, %v5676, 0.0
        %v5774 = vsel %vm889, %v5678, 0.0
        %v5775 = vsel %vm890, %v5680, 0.0
        %v5776 = vsel %vm891, %v5682, 0.0
        %v5777 = vsel %vm892, %v5684, 0.0
        %v5778 = vsel %vm893, %v5686, 0.0
        %v5779 = vsel %vm894, %v5688, 0.0
        %v5780 = vsel %vm895, %v5690, 0.0
        %v5781 = vsel %vm896, %v5692, 0.0
        %v5782 = vsel %vm897, %v5694, 0.0
        %v5783 = vsel %vm898, %v5696, 0.0
        %v5784 = vsel %vm899, %v5698, 0.0
        %v5785 = vsel %vm900, %v5700, 0.0
        %v5786 = vsel %vm901, %v5702, 0.0
        %v5787 = vsel %vm902, %v5704, 0.0
        %v5788 = vsel %vm903, %v5706, 0.0
        %v5789 = vsel %vm904, %v5708, 0.0
        %v5790 = vsel %vm905, %v5710, 0.0
        %v5791 = vsel %vm906, %v5712, 0.0
        %v5792 = vsel %vm907, %v5714, 0.0
        %v5793 = vsel %vm908, %v5716, 0.0
        %v5794 = vsel %vm909, %v5718, 0.0
        %v5795 = vsel %vm910, %v5720, 0.0
        %v5796 = vsel %vm911, %v5722, 0.0
        %v5797 = vsel %vm912, %v5724, 0.0
        %v5798 = vsel %vm913, %v5726, 0.0
        %v5799 = vsel %vm914, %v5728, 0.0
        %v5800 = vsel %vm915, %v5730, 0.0
        %v5801 = vsel %vm916, %v5732, 0.0
        %v5802 = vpack.c.bf16 %v5773, %v5772
        %v5803 = vpack.c.bf16 %v5775, %v5774
        %v5804 = vpack.c.bf16 %v5777, %v5776
        %v5805 = vpack.c.bf16 %v5779, %v5778
        %v5806 = vpack.c.bf16 %v5781, %v5780
        %v5807 = vpack.c.bf16 %v5783, %v5782
        %v5808 = vpack.c.bf16 %v5785, %v5784
        %v5809 = vpack.c.bf16 %v5787, %v5786
        %v5810 = vpack.c.bf16 %v5789, %v5788
        %v5811 = vpack.c.bf16 %v5791, %v5790
        %v5812 = vpack.c.bf16 %v5793, %v5792
        %v5813 = vpack.c.bf16 %v5795, %v5794
        %v5814 = vpack.c.bf16 %v5797, %v5796
        %v5815 = vpack.c.bf16 %v5799, %v5798
        %v5816 = vpack.c.bf16 %v5801, %v5800
        %v5817 = vpack.c.bf16 %v5676, %v5770
        %v5818 = vpack.c.bf16 %v5680, %v5678
        %v5819 = vpack.c.bf16 %v5684, %v5682
        %v5820 = vpack.c.bf16 %v5688, %v5686
        %v5821 = vpack.c.bf16 %v5692, %v5690
        %v5822 = vpack.c.bf16 %v5696, %v5694
        %v5823 = vpack.c.bf16 %v5700, %v5698
        %v5824 = vpack.c.bf16 %v5704, %v5702
        %v5825 = vpack.c.bf16 %v5708, %v5706
        %v5826 = vpack.c.bf16 %v5712, %v5710
        %v5827 = vpack.c.bf16 %v5716, %v5714
        %v5828 = vpack.c.bf16 %v5720, %v5718
        %v5829 = vpack.c.bf16 %v5724, %v5722
        %v5830 = vpack.c.bf16 %v5728, %v5726
        %v5831 = vpack.c.bf16 %v5732, %v5730
        %v5832 = vpack.c.bf16 %v5734, %v5734
        %v5834 = vrot.slane %v5770, 2
        %v5835 = vsel %vm1165, %v1204, %v5834
        %v5836 = vrot.slane %v5676, 2
        %v5837 = vsel %vm1165, %v5834, %v5836
        %v5838 = vrot.slane %v5678, 2
        %v5839 = vsel %vm1165, %v5836, %v5838
        %v5840 = vrot.slane %v5680, 2
        %v5841 = vsel %vm1165, %v5838, %v5840
        %v5842 = vrot.slane %v5682, 2
        %v5843 = vsel %vm1165, %v5840, %v5842
        %v5844 = vrot.slane %v5684, 2
        %v5845 = vsel %vm1165, %v5842, %v5844
        %v5846 = vrot.slane %v5686, 2
        %v5847 = vsel %vm1165, %v5844, %v5846
        %v5848 = vrot.slane %v5688, 2
        %v5849 = vsel %vm1165, %v5846, %v5848
        %v5850 = vrot.slane %v5690, 2
        %v5851 = vsel %vm1165, %v5848, %v5850
        %v5852 = vrot.slane %v5692, 2
        %v5853 = vsel %vm1165, %v5850, %v5852
        %v5854 = vrot.slane %v5694, 2
        %v5855 = vsel %vm1165, %v5852, %v5854
        %v5856 = vrot.slane %v5696, 2
        %v5857 = vsel %vm1165, %v5854, %v5856
        %v5858 = vrot.slane %v5698, 2
        %v5859 = vsel %vm1165, %v5856, %v5858
        %v5860 = vrot.slane %v5700, 2
        %v5861 = vsel %vm1165, %v5858, %v5860
        %v5862 = vrot.slane %v5702, 2
        %v5863 = vsel %vm1165, %v5860, %v5862
        %v5864 = vrot.slane %v5704, 2
        %v5865 = vsel %vm1165, %v5862, %v5864
        %v5866 = vrot.slane %v5706, 2
        %v5867 = vsel %vm1165, %v5864, %v5866
        %v5868 = vrot.slane %v5708, 2
        %v5869 = vsel %vm1165, %v5866, %v5868
        %v5870 = vrot.slane %v5710, 2
        %v5871 = vsel %vm1165, %v5868, %v5870
        %v5872 = vrot.slane %v5712, 2
        %v5873 = vsel %vm1165, %v5870, %v5872
        %v5874 = vrot.slane %v5714, 2
        %v5875 = vsel %vm1165, %v5872, %v5874
        %v5876 = vrot.slane %v5716, 2
        %v5877 = vsel %vm1165, %v5874, %v5876
        %v5878 = vrot.slane %v5718, 2
        %v5879 = vsel %vm1165, %v5876, %v5878
        %v5880 = vrot.slane %v5720, 2
        %v5881 = vsel %vm1165, %v5878, %v5880
        %v5882 = vrot.slane %v5722, 2
        %v5883 = vsel %vm1165, %v5880, %v5882
        %v5884 = vrot.slane %v5724, 2
        %v5885 = vsel %vm1165, %v5882, %v5884
        %v5886 = vrot.slane %v5726, 2
        %v5887 = vsel %vm1165, %v5884, %v5886
        %v5888 = vrot.slane %v5728, 2
        %v5889 = vsel %vm1165, %v5886, %v5888
        %v5890 = vrot.slane %v5730, 2
        %v5891 = vsel %vm1165, %v5888, %v5890
        %v5892 = vrot.slane %v5732, 2
        %v5893 = vsel %vm1165, %v5890, %v5892
        %v5894 = vrot.slane %v5734, 2
        %v5895 = vsel %vm1165, %v5892, %v5894
        %v5927 = vsel %vm918, %v5835, 0.0
        %v5928 = vsel %vm919, %v5837, 0.0
        %v5929 = vsel %vm920, %v5839, 0.0
        %v5930 = vsel %vm921, %v5841, 0.0
        %v5931 = vsel %vm922, %v5843, 0.0
        %v5932 = vsel %vm923, %v5845, 0.0
        %v5933 = vsel %vm924, %v5847, 0.0
        %v5934 = vsel %vm925, %v5849, 0.0
        %v5935 = vsel %vm926, %v5851, 0.0
        %v5936 = vsel %vm927, %v5853, 0.0
        %v5937 = vsel %vm928, %v5855, 0.0
        %v5938 = vsel %vm929, %v5857, 0.0
        %v5939 = vsel %vm930, %v5859, 0.0
        %v5940 = vsel %vm931, %v5861, 0.0
        %v5941 = vsel %vm932, %v5863, 0.0
        %v5942 = vsel %vm933, %v5865, 0.0
        %v5943 = vsel %vm934, %v5867, 0.0
        %v5944 = vsel %vm935, %v5869, 0.0
        %v5945 = vsel %vm936, %v5871, 0.0
        %v5946 = vsel %vm937, %v5873, 0.0
        %v5947 = vsel %vm938, %v5875, 0.0
        %v5948 = vsel %vm939, %v5877, 0.0
        %v5949 = vsel %vm940, %v5879, 0.0
        %v5950 = vsel %vm941, %v5881, 0.0
        %v5951 = vsel %vm942, %v5883, 0.0
        %v5952 = vsel %vm943, %v5885, 0.0
        %v5953 = vsel %vm944, %v5887, 0.0
        %v5954 = vsel %vm945, %v5889, 0.0
        %v5955 = vsel %vm946, %v5891, 0.0
        %v5956 = vsel %vm947, %v5893, 0.0
        %v5957 = vsel %vm948, %v5895, 0.0
        %v5958 = vpack.c.bf16 %v5927, %v4015
        %v5959 = vpack.c.bf16 %v5929, %v5928
        %v5960 = vpack.c.bf16 %v5931, %v5930
        %v5961 = vpack.c.bf16 %v5933, %v5932
        %v5962 = vpack.c.bf16 %v5935, %v5934
        %v5963 = vpack.c.bf16 %v5937, %v5936
        %v5964 = vpack.c.bf16 %v5939, %v5938
        %v5965 = vpack.c.bf16 %v5941, %v5940
        %v5966 = vpack.c.bf16 %v5943, %v5942
        %v5967 = vpack.c.bf16 %v5945, %v5944
        %v5968 = vpack.c.bf16 %v5947, %v5946
        %v5969 = vpack.c.bf16 %v5949, %v5948
        %v5970 = vpack.c.bf16 %v5951, %v5950
        %v5971 = vpack.c.bf16 %v5953, %v5952
        %v5972 = vpack.c.bf16 %v5955, %v5954
        %v5973 = vpack.c.bf16 %v5957, %v5956
        %v5974 = vsel %vm885, %v5770, 0.0
        %v5975 = vsel %vm886, %v5676, 0.0
        %v5976 = vsel %vm887, %v5678, 0.0
        %v5977 = vsel %vm888, %v5680, 0.0
        %v5978 = vsel %vm889, %v5682, 0.0
        %v5979 = vsel %vm890, %v5684, 0.0
        %v5980 = vsel %vm891, %v5686, 0.0
        %v5981 = vsel %vm892, %v5688, 0.0
        %v5982 = vsel %vm893, %v5690, 0.0
        %v5983 = vsel %vm894, %v5692, 0.0
        %v5984 = vsel %vm895, %v5694, 0.0
        %v5985 = vsel %vm896, %v5696, 0.0
        %v5986 = vsel %vm897, %v5698, 0.0
        %v5987 = vsel %vm898, %v5700, 0.0
        %v5988 = vsel %vm899, %v5702, 0.0
        %v5989 = vsel %vm900, %v5704, 0.0
        %v5990 = vsel %vm901, %v5706, 0.0
        %v5991 = vsel %vm902, %v5708, 0.0
        %v5992 = vsel %vm903, %v5710, 0.0
        %v5993 = vsel %vm904, %v5712, 0.0
        %v5994 = vsel %vm905, %v5714, 0.0
        %v5995 = vsel %vm906, %v5716, 0.0
        %v5996 = vsel %vm907, %v5718, 0.0
        %v5997 = vsel %vm908, %v5720, 0.0
        %v5998 = vsel %vm909, %v5722, 0.0
        %v5999 = vsel %vm910, %v5724, 0.0
        %v6000 = vsel %vm911, %v5726, 0.0
        %v6001 = vsel %vm912, %v5728, 0.0
        %v6002 = vsel %vm913, %v5730, 0.0
        %v6003 = vsel %vm914, %v5732, 0.0
        %v6004 = vsel %vm915, %v5734, 0.0
        %v6005 = vsel %vm916, %v5736, 0.0
        %v6006 = vpack.c.bf16 %v5975, %v5974
        %v6007 = vpack.c.bf16 %v5977, %v5976
        %v6008 = vpack.c.bf16 %v5979, %v5978
        %v6009 = vpack.c.bf16 %v5981, %v5980
        %v6010 = vpack.c.bf16 %v5983, %v5982
        %v6011 = vpack.c.bf16 %v5985, %v5984
        %v6012 = vpack.c.bf16 %v5987, %v5986
        %v6013 = vpack.c.bf16 %v5989, %v5988
        %v6014 = vpack.c.bf16 %v5991, %v5990
        %v6015 = vpack.c.bf16 %v5993, %v5992
        %v6016 = vpack.c.bf16 %v5995, %v5994
        %v6017 = vpack.c.bf16 %v5997, %v5996
        %v6018 = vpack.c.bf16 %v5999, %v5998
        %v6019 = vpack.c.bf16 %v6001, %v6000
        %v6020 = vpack.c.bf16 %v6003, %v6002
        %v6021 = vpack.c.bf16 %v6005, %v6004
        %v6022 = vpack.c.bf16 %v5736, %v5734
        %v6023 = vpack.c.bf16 %v5771, %v5771
        %v6025 = vrot.slane %v5736, 2
        %v6026 = vsel %vm1165, %v5894, %v6025
        %v6027 = vrot.slane %v5771, 2
        %v6028 = vsel %vm1165, %v6025, %v6027
        %v6031 = vsel %vm917, %v5837, 0.0
        %v6032 = vsel %vm918, %v5839, 0.0
        %v6033 = vsel %vm919, %v5841, 0.0
        %v6034 = vsel %vm920, %v5843, 0.0
        %v6035 = vsel %vm921, %v5845, 0.0
        %v6036 = vsel %vm922, %v5847, 0.0
        %v6037 = vsel %vm923, %v5849, 0.0
        %v6038 = vsel %vm924, %v5851, 0.0
        %v6039 = vsel %vm925, %v5853, 0.0
        %v6040 = vsel %vm926, %v5855, 0.0
        %v6041 = vsel %vm927, %v5857, 0.0
        %v6042 = vsel %vm928, %v5859, 0.0
        %v6043 = vsel %vm929, %v5861, 0.0
        %v6044 = vsel %vm930, %v5863, 0.0
        %v6045 = vsel %vm931, %v5865, 0.0
        %v6046 = vsel %vm932, %v5867, 0.0
        %v6047 = vsel %vm933, %v5869, 0.0
        %v6048 = vsel %vm934, %v5871, 0.0
        %v6049 = vsel %vm935, %v5873, 0.0
        %v6050 = vsel %vm936, %v5875, 0.0
        %v6051 = vsel %vm937, %v5877, 0.0
        %v6052 = vsel %vm938, %v5879, 0.0
        %v6053 = vsel %vm939, %v5881, 0.0
        %v6054 = vsel %vm940, %v5883, 0.0
        %v6055 = vsel %vm941, %v5885, 0.0
        %v6056 = vsel %vm942, %v5887, 0.0
        %v6057 = vsel %vm943, %v5889, 0.0
        %v6058 = vsel %vm944, %v5891, 0.0
        %v6059 = vsel %vm945, %v5893, 0.0
        %v6060 = vsel %vm946, %v5895, 0.0
        %v6061 = vsel %vm947, %v6026, 0.0
        %v6062 = vsel %vm948, %v6028, 0.0
        %v6063 = vpack.c.bf16 %v6032, %v6031
        %v6064 = vpack.c.bf16 %v6034, %v6033
        %v6065 = vpack.c.bf16 %v6036, %v6035
        %v6066 = vpack.c.bf16 %v6038, %v6037
        %v6067 = vpack.c.bf16 %v6040, %v6039
        %v6068 = vpack.c.bf16 %v6042, %v6041
        %v6069 = vpack.c.bf16 %v6044, %v6043
        %v6070 = vpack.c.bf16 %v6046, %v6045
        %v6071 = vpack.c.bf16 %v6048, %v6047
        %v6072 = vpack.c.bf16 %v6050, %v6049
        %v6073 = vpack.c.bf16 %v6052, %v6051
        %v6074 = vpack.c.bf16 %v6054, %v6053
        %v6075 = vpack.c.bf16 %v6056, %v6055
        %v6076 = vpack.c.bf16 %v6058, %v6057
        %v6077 = vpack.c.bf16 %v6060, %v6059
        %v6078 = vpack.c.bf16 %v6062, %v6061
        %v6079 = vsel %vm885, %v5678, 0.0
        %v6080 = vsel %vm886, %v5680, 0.0
        %v6081 = vsel %vm887, %v5682, 0.0
        %v6082 = vsel %vm888, %v5684, 0.0
        %v6083 = vsel %vm889, %v5686, 0.0
        %v6084 = vsel %vm890, %v5688, 0.0
        %v6085 = vsel %vm891, %v5690, 0.0
        %v6086 = vsel %vm892, %v5692, 0.0
        %v6087 = vsel %vm893, %v5694, 0.0
        %v6088 = vsel %vm894, %v5696, 0.0
        %v6089 = vsel %vm895, %v5698, 0.0
        %v6090 = vsel %vm896, %v5700, 0.0
        %v6091 = vsel %vm897, %v5702, 0.0
        %v6092 = vsel %vm898, %v5704, 0.0
        %v6093 = vsel %vm899, %v5706, 0.0
        %v6094 = vsel %vm900, %v5708, 0.0
        %v6095 = vsel %vm901, %v5710, 0.0
        %v6096 = vsel %vm902, %v5712, 0.0
        %v6097 = vsel %vm903, %v5714, 0.0
        %v6098 = vsel %vm904, %v5716, 0.0
        %v6099 = vsel %vm905, %v5718, 0.0
        %v6100 = vsel %vm906, %v5720, 0.0
        %v6101 = vsel %vm907, %v5722, 0.0
        %v6102 = vsel %vm908, %v5724, 0.0
        %v6103 = vsel %vm909, %v5726, 0.0
        %v6104 = vsel %vm910, %v5728, 0.0
        %v6105 = vsel %vm911, %v5730, 0.0
        %v6106 = vsel %vm912, %v5732, 0.0
        %v6107 = vsel %vm913, %v5734, 0.0
        %v6108 = vsel %vm914, %v5736, 0.0
        %v6109 = vsel %vm915, %v5771, 0.0
        %v6110 = vpack.c.bf16 %v6080, %v6079
        %v6111 = vpack.c.bf16 %v6082, %v6081
        %v6112 = vpack.c.bf16 %v6084, %v6083
        %v6113 = vpack.c.bf16 %v6086, %v6085
        %v6114 = vpack.c.bf16 %v6088, %v6087
        %v6115 = vpack.c.bf16 %v6090, %v6089
        %v6116 = vpack.c.bf16 %v6092, %v6091
        %v6117 = vpack.c.bf16 %v6094, %v6093
        %v6118 = vpack.c.bf16 %v6096, %v6095
        %v6119 = vpack.c.bf16 %v6098, %v6097
        %v6120 = vpack.c.bf16 %v6100, %v6099
        %v6121 = vpack.c.bf16 %v6102, %v6101
        %v6122 = vpack.c.bf16 %v6104, %v6103
        %v6123 = vpack.c.bf16 %v6106, %v6105
        %v6124 = vpack.c.bf16 %v6108, %v6107
        %v6125 = vpack.c.bf16 0.0, %v6109
        %v6126 = vpack.c.bf16 0.0, %v5771
        %v6127 = vsel %vm1165, %v6027, %v1204
        %v6129 = vsel %vm917, %v5841, 0.0
        %v6130 = vsel %vm918, %v5843, 0.0
        %v6131 = vsel %vm919, %v5845, 0.0
        %v6132 = vsel %vm920, %v5847, 0.0
        %v6133 = vsel %vm921, %v5849, 0.0
        %v6134 = vsel %vm922, %v5851, 0.0
        %v6135 = vsel %vm923, %v5853, 0.0
        %v6136 = vsel %vm924, %v5855, 0.0
        %v6137 = vsel %vm925, %v5857, 0.0
        %v6138 = vsel %vm926, %v5859, 0.0
        %v6139 = vsel %vm927, %v5861, 0.0
        %v6140 = vsel %vm928, %v5863, 0.0
        %v6141 = vsel %vm929, %v5865, 0.0
        %v6142 = vsel %vm930, %v5867, 0.0
        %v6143 = vsel %vm931, %v5869, 0.0
        %v6144 = vsel %vm932, %v5871, 0.0
        %v6145 = vsel %vm933, %v5873, 0.0
        %v6146 = vsel %vm934, %v5875, 0.0
        %v6147 = vsel %vm935, %v5877, 0.0
        %v6148 = vsel %vm936, %v5879, 0.0
        %v6149 = vsel %vm937, %v5881, 0.0
        %v6150 = vsel %vm938, %v5883, 0.0
        %v6151 = vsel %vm939, %v5885, 0.0
        %v6152 = vsel %vm940, %v5887, 0.0
        %v6153 = vsel %vm941, %v5889, 0.0
        %v6154 = vsel %vm942, %v5891, 0.0
        %v6155 = vsel %vm943, %v5893, 0.0
        %v6156 = vsel %vm944, %v5895, 0.0
        %v6157 = vsel %vm945, %v6026, 0.0
        %v6158 = vsel %vm946, %v6028, 0.0
        %v6159 = vsel %vm947, %v6127, 0.0
        %v6160 = vpack.c.bf16 %v6130, %v6129
        %v6161 = vpack.c.bf16 %v6132, %v6131
        %v6162 = vpack.c.bf16 %v6134, %v6133
        %v6163 = vpack.c.bf16 %v6136, %v6135
        %v6164 = vpack.c.bf16 %v6138, %v6137
        %v6165 = vpack.c.bf16 %v6140, %v6139
        %v6166 = vpack.c.bf16 %v6142, %v6141
        %v6167 = vpack.c.bf16 %v6144, %v6143
        %v6168 = vpack.c.bf16 %v6146, %v6145
        %v6169 = vpack.c.bf16 %v6148, %v6147
        %v6170 = vpack.c.bf16 %v6150, %v6149
        %v6171 = vpack.c.bf16 %v6152, %v6151
        %v6172 = vpack.c.bf16 %v6154, %v6153
        %v6173 = vpack.c.bf16 %v6156, %v6155
        %v6174 = vpack.c.bf16 %v6158, %v6157
        %v6175 = vpack.c.bf16 %v4249, %v6159
        %v6177 = vshll.u32 %v5817, 16
        %v6179 = vrot.slane %v6177, 1
        %v6180 = vsel %vm1210, %v4268, %v6179
        %v6181 = vshrl.u32 %v5817, 16
        %v6183 = vor.u32 %v6181, %v6179
        %v6185 = vshll.u32 %v5818, 16
        %v6187 = vrot.slane %v6185, 1
        %v6188 = vsel %vm1210, %v6183, %v6187
        %v6189 = vshrl.u32 %v5818, 16
        %v6191 = vor.u32 %v6189, %v6187
        %v6193 = vshll.u32 %v5819, 16
        %v6195 = vrot.slane %v6193, 1
        %v6196 = vsel %vm1210, %v6191, %v6195
        %v6197 = vshrl.u32 %v5819, 16
        %v6199 = vor.u32 %v6197, %v6195
        %v6201 = vshll.u32 %v5820, 16
        %v6203 = vrot.slane %v6201, 1
        %v6204 = vsel %vm1210, %v6199, %v6203
        %v6205 = vshrl.u32 %v5820, 16
        %v6207 = vor.u32 %v6205, %v6203
        %v6209 = vshll.u32 %v5821, 16
        %v6211 = vrot.slane %v6209, 1
        %v6212 = vsel %vm1210, %v6207, %v6211
        %v6213 = vshrl.u32 %v5821, 16
        %v6215 = vor.u32 %v6213, %v6211
        %v6217 = vshll.u32 %v5822, 16
        %v6219 = vrot.slane %v6217, 1
        %v6220 = vsel %vm1210, %v6215, %v6219
        %v6221 = vshrl.u32 %v5822, 16
        %v6223 = vor.u32 %v6221, %v6219
        %v6225 = vshll.u32 %v5823, 16
        %v6227 = vrot.slane %v6225, 1
        %v6228 = vsel %vm1210, %v6223, %v6227
        %v6229 = vshrl.u32 %v5823, 16
        %v6231 = vor.u32 %v6229, %v6227
        %v6233 = vshll.u32 %v5824, 16
        %v6235 = vrot.slane %v6233, 1
        %v6236 = vsel %vm1210, %v6231, %v6235
        %v6237 = vshrl.u32 %v5824, 16
        %v6239 = vor.u32 %v6237, %v6235
        %v6241 = vshll.u32 %v5825, 16
        %v6243 = vrot.slane %v6241, 1
        %v6244 = vsel %vm1210, %v6239, %v6243
        %v6245 = vshrl.u32 %v5825, 16
        %v6247 = vor.u32 %v6245, %v6243
        %v6249 = vshll.u32 %v5826, 16
        %v6251 = vrot.slane %v6249, 1
        %v6252 = vsel %vm1210, %v6247, %v6251
        %v6253 = vshrl.u32 %v5826, 16
        %v6255 = vor.u32 %v6253, %v6251
        %v6257 = vshll.u32 %v5827, 16
        %v6259 = vrot.slane %v6257, 1
        %v6260 = vsel %vm1210, %v6255, %v6259
        %v6261 = vshrl.u32 %v5827, 16
        %v6263 = vor.u32 %v6261, %v6259
        %v6265 = vshll.u32 %v5828, 16
        %v6267 = vrot.slane %v6265, 1
        %v6268 = vsel %vm1210, %v6263, %v6267
        %v6269 = vshrl.u32 %v5828, 16
        %v6271 = vor.u32 %v6269, %v6267
        %v6273 = vshll.u32 %v5829, 16
        %v6275 = vrot.slane %v6273, 1
        %v6276 = vsel %vm1210, %v6271, %v6275
        %v6277 = vshrl.u32 %v5829, 16
        %v6279 = vor.u32 %v6277, %v6275
        %v6281 = vshll.u32 %v5830, 16
        %v6283 = vrot.slane %v6281, 1
        %v6284 = vsel %vm1210, %v6279, %v6283
        %v6285 = vshrl.u32 %v5830, 16
        %v6287 = vor.u32 %v6285, %v6283
        %v6289 = vshll.u32 %v5831, 16
        %v6291 = vrot.slane %v6289, 1
        %v6292 = vsel %vm1210, %v6287, %v6291
        %v6293 = vshrl.u32 %v5831, 16
        %v6295 = vor.u32 %v6293, %v6291
        %v6297 = vshll.u32 %v5832, 16
        %v6299 = vrot.slane %v6297, 1
        %v6300 = vsel %vm1210, %v6295, %v6299
        %6301 = vrot.lane.b32.xlu0 %v6180, 32
        %v6302 = vpop.permute.xlu0 %6301
        %6303 = vrot.lane.b32.xlu0 %v6188, 32
        %v6304 = vpop.permute.xlu0 %6303
        %6305 = vrot.lane.b32.xlu0 %v6196, 32
        %v6306 = vpop.permute.xlu0 %6305
        %6307 = vrot.lane.b32.xlu0 %v6204, 32
        %v6308 = vpop.permute.xlu0 %6307
        %6309 = vrot.lane.b32.xlu0 %v6212, 32
        %v6310 = vpop.permute.xlu0 %6309
        %6311 = vrot.lane.b32.xlu0 %v6220, 32
        %v6312 = vpop.permute.xlu0 %6311
        %6313 = vrot.lane.b32.xlu0 %v6228, 32
        %v6314 = vpop.permute.xlu0 %6313
        %6315 = vrot.lane.b32.xlu0 %v6236, 32
        %v6316 = vpop.permute.xlu0 %6315
        %6317 = vrot.lane.b32.xlu0 %v6244, 32
        %v6318 = vpop.permute.xlu0 %6317
        %6319 = vrot.lane.b32.xlu0 %v6252, 32
        %v6320 = vpop.permute.xlu0 %6319
        %6321 = vrot.lane.b32.xlu0 %v6260, 32
        %v6322 = vpop.permute.xlu0 %6321
        %6323 = vrot.lane.b32.xlu0 %v6268, 32
        %v6324 = vpop.permute.xlu0 %6323
        %6325 = vrot.lane.b32.xlu0 %v6276, 32
        %v6326 = vpop.permute.xlu0 %6325
        %6327 = vrot.lane.b32.xlu0 %v6284, 32
        %v6328 = vpop.permute.xlu0 %6327
        %6329 = vrot.lane.b32.xlu0 %v6292, 32
        %v6330 = vpop.permute.xlu0 %6329
        %6331 = vrot.lane.b32.xlu0 %v6300, 32
        %v6332 = vpop.permute.xlu0 %6331
        %6349 = vrot.lane.b32.xlu0 %v5958, 64
        %v6350 = vpop.permute.xlu0 %6349
        %6351 = vrot.lane.b32.xlu0 %v5959, 64
        %v6352 = vpop.permute.xlu0 %6351
        %6353 = vrot.lane.b32.xlu0 %v5960, 64
        %v6354 = vpop.permute.xlu0 %6353
        %6355 = vrot.lane.b32.xlu0 %v5961, 64
        %v6356 = vpop.permute.xlu0 %6355
        %6357 = vrot.lane.b32.xlu0 %v5962, 64
        %v6358 = vpop.permute.xlu0 %6357
        %6359 = vrot.lane.b32.xlu0 %v5963, 64
        %v6360 = vpop.permute.xlu0 %6359
        %6361 = vrot.lane.b32.xlu0 %v5964, 64
        %v6362 = vpop.permute.xlu0 %6361
        %6363 = vrot.lane.b32.xlu0 %v5965, 64
        %v6364 = vpop.permute.xlu0 %6363
        %6365 = vrot.lane.b32.xlu0 %v5966, 64
        %v6366 = vpop.permute.xlu0 %6365
        %6367 = vrot.lane.b32.xlu0 %v5967, 64
        %v6368 = vpop.permute.xlu0 %6367
        %6369 = vrot.lane.b32.xlu0 %v5968, 64
        %v6370 = vpop.permute.xlu0 %6369
        %6371 = vrot.lane.b32.xlu0 %v5969, 64
        %v6372 = vpop.permute.xlu0 %6371
        %6373 = vrot.lane.b32.xlu0 %v5970, 64
        %v6374 = vpop.permute.xlu0 %6373
        %6375 = vrot.lane.b32.xlu0 %v5971, 64
        %v6376 = vpop.permute.xlu0 %6375
        %6377 = vrot.lane.b32.xlu0 %v5972, 64
        %v6378 = vpop.permute.xlu0 %6377
        %6379 = vrot.lane.b32.xlu0 %v5973, 64
        %v6380 = vpop.permute.xlu0 %6379
        %6397 = vrot.lane.b32.xlu0 %v6006, 96
        %v6398 = vpop.permute.xlu0 %6397
        %6399 = vrot.lane.b32.xlu0 %v6007, 96
        %v6400 = vpop.permute.xlu0 %6399
        %6401 = vrot.lane.b32.xlu0 %v6008, 96
        %v6402 = vpop.permute.xlu0 %6401
        %6403 = vrot.lane.b32.xlu0 %v6009, 96
        %v6404 = vpop.permute.xlu0 %6403
        %6405 = vrot.lane.b32.xlu0 %v6010, 96
        %v6406 = vpop.permute.xlu0 %6405
        %6407 = vrot.lane.b32.xlu0 %v6011, 96
        %v6408 = vpop.permute.xlu0 %6407
        %6409 = vrot.lane.b32.xlu0 %v6012, 96
        %v6410 = vpop.permute.xlu0 %6409
        %6411 = vrot.lane.b32.xlu0 %v6013, 96
        %v6412 = vpop.permute.xlu0 %6411
        %6413 = vrot.lane.b32.xlu0 %v6014, 96
        %v6414 = vpop.permute.xlu0 %6413
        %6415 = vrot.lane.b32.xlu0 %v6015, 96
        %v6416 = vpop.permute.xlu0 %6415
        %6417 = vrot.lane.b32.xlu0 %v6016, 96
        %v6418 = vpop.permute.xlu0 %6417
        %6419 = vrot.lane.b32.xlu0 %v6017, 96
        %v6420 = vpop.permute.xlu0 %6419
        %6421 = vrot.lane.b32.xlu0 %v6018, 96
        %v6422 = vpop.permute.xlu0 %6421
        %6423 = vrot.lane.b32.xlu0 %v6019, 96
        %v6424 = vpop.permute.xlu0 %6423
        %6425 = vrot.lane.b32.xlu0 %v6020, 96
        %v6426 = vpop.permute.xlu0 %6425
        %6427 = vrot.lane.b32.xlu0 %v6021, 96
        %v6428 = vpop.permute.xlu0 %6427
        %v6430 = vshll.u32 %v6022, 16
        %v6432 = vrot.slane %v6430, 1
        %v6433 = vsel %vm1210, %v6295, %v6432
        %v6434 = vshrl.u32 %v6022, 16
        %v6436 = vor.u32 %v6434, %v6432
        %v6438 = vshll.u32 %v6023, 16
        %v6440 = vrot.slane %v6438, 1
        %v6441 = vsel %vm1210, %v6436, %v6440
        %6458 = vrot.lane.b32.xlu0 %v6063, 32
        %v6459 = vpop.permute.xlu0 %6458
        %6460 = vrot.lane.b32.xlu0 %v6064, 32
        %v6461 = vpop.permute.xlu0 %6460
        %6462 = vrot.lane.b32.xlu0 %v6065, 32
        %v6463 = vpop.permute.xlu0 %6462
        %6464 = vrot.lane.b32.xlu0 %v6066, 32
        %v6465 = vpop.permute.xlu0 %6464
        %6466 = vrot.lane.b32.xlu0 %v6067, 32
        %v6467 = vpop.permute.xlu0 %6466
        %6468 = vrot.lane.b32.xlu0 %v6068, 32
        %v6469 = vpop.permute.xlu0 %6468
        %6470 = vrot.lane.b32.xlu0 %v6069, 32
        %v6471 = vpop.permute.xlu0 %6470
        %6472 = vrot.lane.b32.xlu0 %v6070, 32
        %v6473 = vpop.permute.xlu0 %6472
        %6474 = vrot.lane.b32.xlu0 %v6071, 32
        %v6475 = vpop.permute.xlu0 %6474
        %6476 = vrot.lane.b32.xlu0 %v6072, 32
        %v6477 = vpop.permute.xlu0 %6476
        %6478 = vrot.lane.b32.xlu0 %v6073, 32
        %v6479 = vpop.permute.xlu0 %6478
        %6480 = vrot.lane.b32.xlu0 %v6074, 32
        %v6481 = vpop.permute.xlu0 %6480
        %6482 = vrot.lane.b32.xlu0 %v6075, 32
        %v6483 = vpop.permute.xlu0 %6482
        %6484 = vrot.lane.b32.xlu0 %v6076, 32
        %v6485 = vpop.permute.xlu0 %6484
        %6486 = vrot.lane.b32.xlu0 %v6077, 32
        %v6487 = vpop.permute.xlu0 %6486
        %6488 = vrot.lane.b32.xlu0 %v6078, 32
        %v6489 = vpop.permute.xlu0 %6488
        %6506 = vrot.lane.b32.xlu0 %v6110, 64
        %v6507 = vpop.permute.xlu0 %6506
        %6508 = vrot.lane.b32.xlu0 %v6111, 64
        %v6509 = vpop.permute.xlu0 %6508
        %6510 = vrot.lane.b32.xlu0 %v6112, 64
        %v6511 = vpop.permute.xlu0 %6510
        %6512 = vrot.lane.b32.xlu0 %v6113, 64
        %v6513 = vpop.permute.xlu0 %6512
        %6514 = vrot.lane.b32.xlu0 %v6114, 64
        %v6515 = vpop.permute.xlu0 %6514
        %6516 = vrot.lane.b32.xlu0 %v6115, 64
        %v6517 = vpop.permute.xlu0 %6516
        %6518 = vrot.lane.b32.xlu0 %v6116, 64
        %v6519 = vpop.permute.xlu0 %6518
        %6520 = vrot.lane.b32.xlu0 %v6117, 64
        %v6521 = vpop.permute.xlu0 %6520
        %6522 = vrot.lane.b32.xlu0 %v6118, 64
        %v6523 = vpop.permute.xlu0 %6522
        %6524 = vrot.lane.b32.xlu0 %v6119, 64
        %v6525 = vpop.permute.xlu0 %6524
        %6526 = vrot.lane.b32.xlu0 %v6120, 64
        %v6527 = vpop.permute.xlu0 %6526
        %6528 = vrot.lane.b32.xlu0 %v6121, 64
        %v6529 = vpop.permute.xlu0 %6528
        %6530 = vrot.lane.b32.xlu0 %v6122, 64
        %v6531 = vpop.permute.xlu0 %6530
        %6532 = vrot.lane.b32.xlu0 %v6123, 64
        %v6533 = vpop.permute.xlu0 %6532
        %6534 = vrot.lane.b32.xlu0 %v6124, 64
        %v6535 = vpop.permute.xlu0 %6534
        %6536 = vrot.lane.b32.xlu0 %v6125, 64
        %v6537 = vpop.permute.xlu0 %6536
        %v6539 = vshll.u32 %v6126, 16
        %v6541 = vrot.slane %v6539, 1
        %v6542 = vsel %vm1210, %v6436, %v6541
        %v6543 = vshrl.u32 %v6126, 16
        %v6545 = vor.u32 %v6543, %v6541
        %v6546 = vsel %vm1210, %v6545, %v1257
        %6547 = vrot.lane.b32.xlu0 %v6196, 96
        %v6548 = vpop.permute.xlu0 %6547
        %6549 = vrot.lane.b32.xlu0 %v6204, 96
        %v6550 = vpop.permute.xlu0 %6549
        %6551 = vrot.lane.b32.xlu0 %v6212, 96
        %v6552 = vpop.permute.xlu0 %6551
        %6553 = vrot.lane.b32.xlu0 %v6220, 96
        %v6554 = vpop.permute.xlu0 %6553
        %6555 = vrot.lane.b32.xlu0 %v6228, 96
        %v6556 = vpop.permute.xlu0 %6555
        %6557 = vrot.lane.b32.xlu0 %v6236, 96
        %v6558 = vpop.permute.xlu0 %6557
        %6559 = vrot.lane.b32.xlu0 %v6244, 96
        %v6560 = vpop.permute.xlu0 %6559
        %6561 = vrot.lane.b32.xlu0 %v6252, 96
        %v6562 = vpop.permute.xlu0 %6561
        %6563 = vrot.lane.b32.xlu0 %v6260, 96
        %v6564 = vpop.permute.xlu0 %6563
        %6565 = vrot.lane.b32.xlu0 %v6268, 96
        %v6566 = vpop.permute.xlu0 %6565
        %6567 = vrot.lane.b32.xlu0 %v6276, 96
        %v6568 = vpop.permute.xlu0 %6567
        %6569 = vrot.lane.b32.xlu0 %v6284, 96
        %v6570 = vpop.permute.xlu0 %6569
        %6571 = vrot.lane.b32.xlu0 %v6292, 96
        %v6572 = vpop.permute.xlu0 %6571
        %6573 = vrot.lane.b32.xlu0 %v6433, 96
        %v6574 = vpop.permute.xlu0 %6573
        %6575 = vrot.lane.b32.xlu0 %v6542, 96
        %v6576 = vpop.permute.xlu0 %6575
        %6577 = vrot.lane.b32.xlu0 %v6546, 96
        %v6578 = vpop.permute.xlu0 %6577
        %v6580 = vsel %vm1261, %v1202, %v6302
        %v6583 = vsel %vm1261, %v5802, %v6304
        %v6586 = vsel %vm1261, %v5803, %v6306
        %v6589 = vsel %vm1261, %v5804, %v6308
        %v6592 = vsel %vm1261, %v5805, %v6310
        %v6595 = vsel %vm1261, %v5806, %v6312
        %v6598 = vsel %vm1261, %v5807, %v6314
        %v6601 = vsel %vm1261, %v5808, %v6316
        %v6604 = vsel %vm1261, %v5809, %v6318
        %v6607 = vsel %vm1261, %v5810, %v6320
        %v6610 = vsel %vm1261, %v5811, %v6322
        %v6613 = vsel %vm1261, %v5812, %v6324
        %v6616 = vsel %vm1261, %v5813, %v6326
        %v6619 = vsel %vm1261, %v5814, %v6328
        %v6622 = vsel %vm1261, %v5815, %v6330
        %v6625 = vsel %vm1261, %v5816, %v6332
        %v6627 = vsel %vm1265, %v6580, %v6350
        %v6629 = vsel %vm1265, %v6583, %v6352
        %v6631 = vsel %vm1265, %v6586, %v6354
        %v6633 = vsel %vm1265, %v6589, %v6356
        %v6635 = vsel %vm1265, %v6592, %v6358
        %v6637 = vsel %vm1265, %v6595, %v6360
        %v6639 = vsel %vm1265, %v6598, %v6362
        %v6641 = vsel %vm1265, %v6601, %v6364
        %v6643 = vsel %vm1265, %v6604, %v6366
        %v6645 = vsel %vm1265, %v6607, %v6368
        %v6647 = vsel %vm1265, %v6610, %v6370
        %v6649 = vsel %vm1265, %v6613, %v6372
        %v6651 = vsel %vm1265, %v6616, %v6374
        %v6653 = vsel %vm1265, %v6619, %v6376
        %v6655 = vsel %vm1265, %v6622, %v6378
        %v6657 = vsel %vm1265, %v6625, %v6380
        %v6659 = vsel %vm1268, %v6627, %v6398
        %v6662 = vsel %vm1268, %v6629, %v6400
        %v6665 = vsel %vm1268, %v6631, %v6402
        %v6668 = vsel %vm1268, %v6633, %v6404
        %v6671 = vsel %vm1268, %v6635, %v6406
        %v6674 = vsel %vm1268, %v6637, %v6408
        %v6677 = vsel %vm1268, %v6639, %v6410
        %v6680 = vsel %vm1268, %v6641, %v6412
        %v6683 = vsel %vm1268, %v6643, %v6414
        %v6686 = vsel %vm1268, %v6645, %v6416
        %v6689 = vsel %vm1268, %v6647, %v6418
        %v6692 = vsel %vm1268, %v6649, %v6420
        %v6695 = vsel %vm1268, %v6651, %v6422
        %v6698 = vsel %vm1268, %v6653, %v6424
        %v6701 = vsel %vm1268, %v6655, %v6426
        %v6704 = vsel %vm1268, %v6657, %v6428
        %v6708 = vsel %vm1261, %v6188, %v6459
        %v6711 = vsel %vm1261, %v6196, %v6461
        %v6714 = vsel %vm1261, %v6204, %v6463
        %v6717 = vsel %vm1261, %v6212, %v6465
        %v6720 = vsel %vm1261, %v6220, %v6467
        %v6723 = vsel %vm1261, %v6228, %v6469
        %v6726 = vsel %vm1261, %v6236, %v6471
        %v6729 = vsel %vm1261, %v6244, %v6473
        %v6732 = vsel %vm1261, %v6252, %v6475
        %v6735 = vsel %vm1261, %v6260, %v6477
        %v6738 = vsel %vm1261, %v6268, %v6479
        %v6741 = vsel %vm1261, %v6276, %v6481
        %v6744 = vsel %vm1261, %v6284, %v6483
        %v6747 = vsel %vm1261, %v6292, %v6485
        %v6750 = vsel %vm1261, %v6433, %v6487
        %v6753 = vsel %vm1261, %v6441, %v6489
        %v6755 = vsel %vm1265, %v6708, %v6507
        %v6757 = vsel %vm1265, %v6711, %v6509
        %v6759 = vsel %vm1265, %v6714, %v6511
        %v6761 = vsel %vm1265, %v6717, %v6513
        %v6763 = vsel %vm1265, %v6720, %v6515
        %v6765 = vsel %vm1265, %v6723, %v6517
        %v6767 = vsel %vm1265, %v6726, %v6519
        %v6769 = vsel %vm1265, %v6729, %v6521
        %v6771 = vsel %vm1265, %v6732, %v6523
        %v6773 = vsel %vm1265, %v6735, %v6525
        %v6775 = vsel %vm1265, %v6738, %v6527
        %v6777 = vsel %vm1265, %v6741, %v6529
        %v6779 = vsel %vm1265, %v6744, %v6531
        %v6781 = vsel %vm1265, %v6747, %v6533
        %v6783 = vsel %vm1265, %v6750, %v6535
        %v6785 = vsel %vm1265, %v6753, %v6537
        %v6787 = vsel %vm1268, %v6755, %v6548
        %v6790 = vsel %vm1268, %v6757, %v6550
        %v6793 = vsel %vm1268, %v6759, %v6552
        %v6796 = vsel %vm1268, %v6761, %v6554
        %v6799 = vsel %vm1268, %v6763, %v6556
        %v6802 = vsel %vm1268, %v6765, %v6558
        %v6805 = vsel %vm1268, %v6767, %v6560
        %v6808 = vsel %vm1268, %v6769, %v6562
        %v6811 = vsel %vm1268, %v6771, %v6564
        %v6814 = vsel %vm1268, %v6773, %v6566
        %v6817 = vsel %vm1268, %v6775, %v6568
        %v6820 = vsel %vm1268, %v6777, %v6570
        %v6823 = vsel %vm1268, %v6779, %v6572
        %v6826 = vsel %vm1268, %v6781, %v6574
        %v6829 = vsel %vm1268, %v6783, %v6576
        %v6832 = vsel %vm1268, %v6785, %v6578
        %v6835 = vlaneseq
        %v6836 = vshrl.u32 %v6835, 7
        %v6837 = vsub.s32 0, %v6836
        %v6838 = vrot.slane %v5641, %v6837
        %v6876 = vunpack.c.l.b16 %v5604
        %v6877 = vunpack.c.l.b16 %v5605
        %v6878 = vunpack.c.l.b16 %v5606
        %v6879 = vunpack.c.l.b16 %v5607
        %v6880 = vunpack.c.l.b16 %v5608
        %v6881 = vunpack.c.l.b16 %v5609
        %v6882 = vunpack.c.l.b16 %v5610
        %v6883 = vunpack.c.l.b16 %v5611
        %v6884 = vunpack.c.l.b16 %v5612
        %v6885 = vunpack.c.l.b16 %v5613
        %v6886 = vunpack.c.l.b16 %v5614
        %v6887 = vunpack.c.l.b16 %v5615
        %v6888 = vunpack.c.l.b16 %v5616
        %v6889 = vunpack.c.l.b16 %v5617
        %v6890 = vunpack.c.l.b16 %v5618
        %v6891 = vunpack.c.l.b16 %v5619
        %v6892 = vunpack.c.l.b16 %v5620
        %v6893 = vunpack.c.l.b16 %v5621
        %v6894 = vunpack.c.l.b16 %v5622
        %v6895 = vunpack.c.l.b16 %v5623
        %v6896 = vunpack.c.l.b16 %v5624
        %v6897 = vunpack.c.l.b16 %v5625
        %v6898 = vunpack.c.l.b16 %v5626
        %v6899 = vunpack.c.l.b16 %v5627
        %v6900 = vunpack.c.l.b16 %v5628
        %v6901 = vunpack.c.l.b16 %v5629
        %v6902 = vunpack.c.l.b16 %v5630
        %v6903 = vunpack.c.l.b16 %v5631
        %v6904 = vunpack.c.l.b16 %v5632
        %v6905 = vunpack.c.l.b16 %v5633
        %v6906 = vunpack.c.l.b16 %v5634
        %v6907 = vunpack.c.l.b16 %v5635
        %v6908 = vunpack.c.l.b16 %v5636
        %v6909 = vunpack.c.l.b16 %v5637
        %v6910 = vunpack.c.l.b16 %v5638
        %v6911 = vunpack.c.l.b16 %v5639
        %v6912 = vpack.c.b16 %v6877, %v6876
        %v6913 = vpack.c.b16 %v6879, %v6878
        %v6914 = vpack.c.b16 %v6881, %v6880
        %v6915 = vpack.c.b16 %v6883, %v6882
        %v6916 = vpack.c.b16 %v6885, %v6884
        %v6917 = vpack.c.b16 %v6887, %v6886
        %v6918 = vpack.c.b16 %v6889, %v6888
        %v6919 = vpack.c.b16 %v6891, %v6890
        %v6920 = vpack.c.b16 %v6893, %v6892
        %v6921 = vpack.c.b16 %v6895, %v6894
        %v6922 = vpack.c.b16 %v6897, %v6896
        %v6923 = vpack.c.b16 %v6899, %v6898
        %v6924 = vpack.c.b16 %v6901, %v6900
        %v6925 = vpack.c.b16 %v6903, %v6902
        %v6926 = vpack.c.b16 %v6905, %v6904
        %v6927 = vpack.c.b16 %v6907, %v6906
        %v6928 = vpack.c.b16 %v6909, %v6908
        %v6929 = vpack.c.b16 %v6911, %v6910
        %v6949 = vsel %vm1261, %v6160, 0
        %v6952 = vsel %vm1261, %v6161, 0
        %v6955 = vsel %vm1261, %v6162, 0
        %v6958 = vsel %vm1261, %v6163, 0
        %v6961 = vsel %vm1261, %v6164, 0
        %v6964 = vsel %vm1261, %v6165, 0
        %v6967 = vsel %vm1261, %v6166, 0
        %v6970 = vsel %vm1261, %v6167, 0
        %v6973 = vsel %vm1261, %v6168, 0
        %v6976 = vsel %vm1261, %v6169, 0
        %v6979 = vsel %vm1261, %v6170, 0
        %v6982 = vsel %vm1261, %v6171, 0
        %v6985 = vsel %vm1261, %v6172, 0
        %v6988 = vsel %vm1261, %v6173, 0
        %v6991 = vsel %vm1261, %v6174, 0
        %v6994 = vsel %vm1261, %v6175, 0
        %6996 = vmatprep.subr.bf16.mxu0 0
        %6997 = vmatpush1.bf16.msra.mxu0 %v6912
        %6998 = vmatprep.subr.bf16.mxu0 0
        %6999 = vmatpush1.bf16.msra.mxu0 %v6913
        %7000 = vmatprep.subr.bf16.mxu0 0
        %7001 = vmatpush1.bf16.msra.mxu0 %v6914
        %7002 = vmatprep.subr.bf16.mxu0 0
        %7003 = vmatpush1.bf16.msra.mxu0 %v6915
        %7004 = vmatprep.subr.bf16.mxu0 0
        %7005 = vmatpush1.bf16.msra.mxu0 %v6916
        %7006 = vmatprep.subr.bf16.mxu0 0
        %7007 = vmatpush1.bf16.msra.mxu0 %v6917
        %7008 = vmatprep.subr.bf16.mxu0 0
        %7009 = vmatpush1.bf16.msra.mxu0 %v6918
        %7010 = vmatprep.subr.bf16.mxu0 0
        %7011 = vmatpush1.bf16.msra.mxu0 %v6919
        %7012 = vmatprep.subr.bf16.mxu0 0
        %7013 = vmatpush1.bf16.msra.mxu0 %v6920
        %7014 = vmatprep.subr.bf16.mxu0 0
        %7015 = vmatpush1.bf16.msra.mxu0 %v6921
        %7016 = vmatprep.subr.bf16.mxu0 0
        %7017 = vmatpush1.bf16.msra.mxu0 %v6922
        %7018 = vmatprep.subr.bf16.mxu0 0
        %7019 = vmatpush1.bf16.msra.mxu0 %v6923
        %7020 = vmatprep.subr.bf16.mxu0 0
        %7021 = vmatpush1.bf16.msra.mxu0 %v6924
        %7022 = vmatprep.subr.bf16.mxu0 0
        %7023 = vmatpush1.bf16.msra.mxu0 %v6925
        %7024 = vmatprep.subr.bf16.mxu0 0
        %7025 = vmatpush1.bf16.msra.mxu0 %v6926
        %7026 = vmatprep.subr.bf16.mxu0 0
        %7027 = vmatpush1.bf16.msra.mxu0 %v6927
        %7028 = vmatprep.mubr.bf16.mxu0 %v6787
        %7029 = vmatmul.mubr.bf16.gmra.mrb[0].mxu0 %v6659
        %v7030 = vpop.f32.mrb[0].mxu0
        %v7031 = vadd.f32 %v6838, %v7030
        %v7032 = vpop.f32.mrb[0].mxu0
        %v7033 = vpop.f32.mrb[0].mxu0
        %v7034 = vadd.f32 %v6838, %v7033
        %v7035 = vpop.f32.mrb[0].mxu0
        %7036 = vmatprep.mubr.bf16.mxu0 %v6790
        %7037 = vmatmul.mubr.bf16.gmra.mrb[0].mxu0 %v6662
        %v7038 = vpop.f32.mrb[0].mxu0
        %v7039 = vadd.f32 %v6838, %v7038
        %v7040 = vpop.f32.mrb[0].mxu0
        %v7041 = vpop.f32.mrb[0].mxu0
        %v7042 = vadd.f32 %v6838, %v7041
        %v7043 = vpop.f32.mrb[0].mxu0
        %7044 = vmatprep.mubr.bf16.mxu0 %v6793
        %7045 = vmatmul.mubr.bf16.gmra.mrb[0].mxu0 %v6665
        %v7046 = vpop.f32.mrb[0].mxu0
        %v7047 = vadd.f32 %v6838, %v7046
        %v7048 = vpop.f32.mrb[0].mxu0
        %v7049 = vpop.f32.mrb[0].mxu0
        %v7050 = vadd.f32 %v6838, %v7049
        %v7051 = vpop.f32.mrb[0].mxu0
        %7052 = vmatprep.mubr.bf16.mxu0 %v6796
        %7053 = vmatmul.mubr.bf16.gmra.mrb[0].mxu0 %v6668
        %v7054 = vpop.f32.mrb[0].mxu0
        %v7055 = vadd.f32 %v6838, %v7054
        %v7056 = vpop.f32.mrb[0].mxu0
        %v7057 = vpop.f32.mrb[0].mxu0
        %v7058 = vadd.f32 %v6838, %v7057
        %v7059 = vpop.f32.mrb[0].mxu0
        %7060 = vmatprep.mubr.bf16.mxu0 %v6799
        %7061 = vmatmul.mubr.bf16.gmra.mrb[0].mxu0 %v6671
        %v7062 = vpop.f32.mrb[0].mxu0
        %v7063 = vadd.f32 %v6838, %v7062
        %v7064 = vpop.f32.mrb[0].mxu0
        %v7065 = vpop.f32.mrb[0].mxu0
        %v7066 = vadd.f32 %v6838, %v7065
        %v7067 = vpop.f32.mrb[0].mxu0
        %7068 = vmatprep.mubr.bf16.mxu0 %v6802
        %7069 = vmatmul.mubr.bf16.gmra.mrb[0].mxu0 %v6674
        %v7070 = vpop.f32.mrb[0].mxu0
        %v7071 = vadd.f32 %v6838, %v7070
        %v7072 = vpop.f32.mrb[0].mxu0
        %v7073 = vpop.f32.mrb[0].mxu0
        %v7074 = vadd.f32 %v6838, %v7073
        %v7075 = vpop.f32.mrb[0].mxu0
        %7076 = vmatprep.mubr.bf16.mxu0 %v6805
        %7077 = vmatmul.mubr.bf16.gmra.mrb[0].mxu0 %v6677
        %v7078 = vpop.f32.mrb[0].mxu0
        %v7079 = vadd.f32 %v6838, %v7078
        %v7080 = vpop.f32.mrb[0].mxu0
        %v7081 = vpop.f32.mrb[0].mxu0
        %v7082 = vadd.f32 %v6838, %v7081
        %v7083 = vpop.f32.mrb[0].mxu0
        %7084 = vmatprep.mubr.bf16.mxu0 %v6808
        %7085 = vmatmul.mubr.bf16.gmra.mrb[0].mxu0 %v6680
        %v7086 = vpop.f32.mrb[0].mxu0
        %v7087 = vadd.f32 %v6838, %v7086
        %v7088 = vpop.f32.mrb[0].mxu0
        %v7089 = vpop.f32.mrb[0].mxu0
        %v7090 = vadd.f32 %v6838, %v7089
        %v7091 = vpop.f32.mrb[0].mxu0
        %7092 = vmatprep.mubr.bf16.mxu0 %v6811
        %7093 = vmatmul.mubr.bf16.gmra.mrb[0].mxu0 %v6683
        %v7094 = vpop.f32.mrb[0].mxu0
        %v7095 = vadd.f32 %v6838, %v7094
        %v7096 = vpop.f32.mrb[0].mxu0
        %v7097 = vpop.f32.mrb[0].mxu0
        %v7098 = vadd.f32 %v6838, %v7097
        %v7099 = vpop.f32.mrb[0].mxu0
        %7100 = vmatprep.mubr.bf16.mxu0 %v6814
        %7101 = vmatmul.mubr.bf16.gmra.mrb[0].mxu0 %v6686
        %v7102 = vpop.f32.mrb[0].mxu0
        %v7103 = vadd.f32 %v6838, %v7102
        %v7104 = vpop.f32.mrb[0].mxu0
        %v7105 = vpop.f32.mrb[0].mxu0
        %v7106 = vadd.f32 %v6838, %v7105
        %v7107 = vpop.f32.mrb[0].mxu0
        %7108 = vmatprep.mubr.bf16.mxu0 %v6817
        %7109 = vmatmul.mubr.bf16.gmra.mrb[0].mxu0 %v6689
        %v7110 = vpop.f32.mrb[0].mxu0
        %v7111 = vadd.f32 %v6838, %v7110
        %v7112 = vpop.f32.mrb[0].mxu0
        %v7113 = vpop.f32.mrb[0].mxu0
        %v7114 = vadd.f32 %v6838, %v7113
        %v7115 = vpop.f32.mrb[0].mxu0
        %7116 = vmatprep.mubr.bf16.mxu0 %v6820
        %7117 = vmatmul.mubr.bf16.gmra.mrb[0].mxu0 %v6692
        %v7118 = vpop.f32.mrb[0].mxu0
        %v7119 = vadd.f32 %v6838, %v7118
        %v7120 = vpop.f32.mrb[0].mxu0
        %v7121 = vpop.f32.mrb[0].mxu0
        %v7122 = vadd.f32 %v6838, %v7121
        %v7123 = vpop.f32.mrb[0].mxu0
        %7124 = vmatprep.mubr.bf16.mxu0 %v6823
        %7125 = vmatmul.mubr.bf16.gmra.mrb[0].mxu0 %v6695
        %v7126 = vpop.f32.mrb[0].mxu0
        %v7127 = vadd.f32 %v6838, %v7126
        %v7128 = vpop.f32.mrb[0].mxu0
        %v7129 = vpop.f32.mrb[0].mxu0
        %v7130 = vadd.f32 %v6838, %v7129
        %v7131 = vpop.f32.mrb[0].mxu0
        %7132 = vmatprep.mubr.bf16.mxu0 %v6826
        %7133 = vmatmul.mubr.bf16.gmra.mrb[0].mxu0 %v6698
        %v7134 = vpop.f32.mrb[0].mxu0
        %v7135 = vadd.f32 %v6838, %v7134
        %v7136 = vpop.f32.mrb[0].mxu0
        %v7137 = vpop.f32.mrb[0].mxu0
        %v7138 = vadd.f32 %v6838, %v7137
        %v7139 = vpop.f32.mrb[0].mxu0
        %7140 = vmatprep.mubr.bf16.mxu0 %v6829
        %7141 = vmatmul.mubr.bf16.gmra.mrb[0].mxu0 %v6701
        %v7142 = vpop.f32.mrb[0].mxu0
        %v7143 = vadd.f32 %v6838, %v7142
        %v7144 = vpop.f32.mrb[0].mxu0
        %v7145 = vpop.f32.mrb[0].mxu0
        %v7146 = vadd.f32 %v6838, %v7145
        %v7147 = vpop.f32.mrb[0].mxu0
        %7148 = vmatprep.mubr.bf16.mxu0 %v6832
        %7149 = vmatmul.mubr.bf16.gmra.mrb[0].mxu0 %v6704
        %v7150 = vpop.f32.mrb[0].mxu0
        %v7151 = vadd.f32 %v6838, %v7150
        %v7152 = vpop.f32.mrb[0].mxu0
        %v7153 = vpop.f32.mrb[0].mxu0
        %v7154 = vadd.f32 %v6838, %v7153
        %v7155 = vpop.f32.mrb[0].mxu0
        %7156 = vdwg.mxu0
        %7157 = vmatprep.subr.bf16.mxu0 0
        %7158 = vmatpush1.bf16.msra.mxu0 %v6928
        %7159 = vmatprep.subr.bf16.mxu0 0
        %7160 = vmatpush1.bf16.msra.mxu0 %v6929
        %7161 = vmatprep.subr.bf16.mxu0 0
        %7162 = vmatpush1.bf16.msra.mxu0 0
        %7163 = vmatprep.subr.bf16.mxu0 0
        %7164 = vmatpush1.bf16.msra.mxu0 0
        %7165 = vmatprep.subr.bf16.mxu0 0
        %7166 = vmatpush1.bf16.msra.mxu0 0
        %7167 = vmatprep.subr.bf16.mxu0 0
        %7168 = vmatpush1.bf16.msra.mxu0 0
        %7169 = vmatprep.subr.bf16.mxu0 0
        %7170 = vmatpush1.bf16.msra.mxu0 0
        %7171 = vmatprep.subr.bf16.mxu0 0
        %7172 = vmatpush1.bf16.msra.mxu0 0
        %7173 = vmatprep.subr.bf16.mxu0 0
        %7174 = vmatpush1.bf16.msra.mxu0 0
        %7175 = vmatprep.subr.bf16.mxu0 0
        %7176 = vmatpush1.bf16.msra.mxu0 0
        %7177 = vmatprep.subr.bf16.mxu0 0
        %7178 = vmatpush1.bf16.msra.mxu0 0
        %7179 = vmatprep.subr.bf16.mxu0 0
        %7180 = vmatpush1.bf16.msra.mxu0 0
        %7181 = vmatprep.subr.bf16.mxu0 0
        %7182 = vmatpush1.bf16.msra.mxu0 0
        %7183 = vmatprep.subr.bf16.mxu0 0
        %7184 = vmatpush1.bf16.msra.mxu0 0
        %7185 = vmatprep.subr.bf16.mxu0 0
        %7186 = vmatpush1.bf16.msra.mxu0 0
        %7187 = vmatprep.subr.bf16.mxu0 0
        %7188 = vmatpush1.bf16.msra.mxu0 0
        %7189 = vmatprep.mubr.bf16.mxu0 0
        %7190 = vmatmul.mubr.bf16.gmra.mrb[0].mxu0 %v6949
        %v7191 = vpop.f32.mrb[0].mxu0
        %v7192 = vadd.f32 %v7031, %v7191
        %v7193 = vpop.f32.mrb[0].mxu0
        %v7194 = vpop.f32.mrb[0].mxu0
        %v7195 = vadd.f32 %v7034, %v7194
        %v7196 = vpop.f32.mrb[0].mxu0
        %7197 = vmatprep.mubr.bf16.mxu0 0
        %7198 = vmatmul.mubr.bf16.gmra.mrb[0].mxu0 %v6952
        %v7199 = vpop.f32.mrb[0].mxu0
        %v7200 = vadd.f32 %v7039, %v7199
        %v7201 = vpop.f32.mrb[0].mxu0
        %v7202 = vpop.f32.mrb[0].mxu0
        %v7203 = vadd.f32 %v7042, %v7202
        %v7204 = vpop.f32.mrb[0].mxu0
        %7205 = vmatprep.mubr.bf16.mxu0 0
        %7206 = vmatmul.mubr.bf16.gmra.mrb[0].mxu0 %v6955
        %v7207 = vpop.f32.mrb[0].mxu0
        %v7208 = vadd.f32 %v7047, %v7207
        %v7209 = vpop.f32.mrb[0].mxu0
        %v7210 = vpop.f32.mrb[0].mxu0
        %v7211 = vadd.f32 %v7050, %v7210
        %v7212 = vpop.f32.mrb[0].mxu0
        %7213 = vmatprep.mubr.bf16.mxu0 0
        %7214 = vmatmul.mubr.bf16.gmra.mrb[0].mxu0 %v6958
        %v7215 = vpop.f32.mrb[0].mxu0
        %v7216 = vadd.f32 %v7055, %v7215
        %v7217 = vpop.f32.mrb[0].mxu0
        %v7218 = vpop.f32.mrb[0].mxu0
        %v7219 = vadd.f32 %v7058, %v7218
        %v7220 = vpop.f32.mrb[0].mxu0
        %7221 = vmatprep.mubr.bf16.mxu0 0
        %7222 = vmatmul.mubr.bf16.gmra.mrb[0].mxu0 %v6961
        %v7223 = vpop.f32.mrb[0].mxu0
        %v7224 = vadd.f32 %v7063, %v7223
        %v7225 = vpop.f32.mrb[0].mxu0
        %v7226 = vpop.f32.mrb[0].mxu0
        %v7227 = vadd.f32 %v7066, %v7226
        %v7228 = vpop.f32.mrb[0].mxu0
        %7229 = vmatprep.mubr.bf16.mxu0 0
        %7230 = vmatmul.mubr.bf16.gmra.mrb[0].mxu0 %v6964
        %v7231 = vpop.f32.mrb[0].mxu0
        %v7232 = vadd.f32 %v7071, %v7231
        %v7233 = vpop.f32.mrb[0].mxu0
        %v7234 = vpop.f32.mrb[0].mxu0
        %v7235 = vadd.f32 %v7074, %v7234
        %v7236 = vpop.f32.mrb[0].mxu0
        %7237 = vmatprep.mubr.bf16.mxu0 0
        %7238 = vmatmul.mubr.bf16.gmra.mrb[0].mxu0 %v6967
        %v7239 = vpop.f32.mrb[0].mxu0
        %v7240 = vadd.f32 %v7079, %v7239
        %v7241 = vpop.f32.mrb[0].mxu0
        %v7242 = vpop.f32.mrb[0].mxu0
        %v7243 = vadd.f32 %v7082, %v7242
        %v7244 = vpop.f32.mrb[0].mxu0
        %7245 = vmatprep.mubr.bf16.mxu0 0
        %7246 = vmatmul.mubr.bf16.gmra.mrb[0].mxu0 %v6970
        %v7247 = vpop.f32.mrb[0].mxu0
        %v7248 = vadd.f32 %v7087, %v7247
        %v7249 = vpop.f32.mrb[0].mxu0
        %v7250 = vpop.f32.mrb[0].mxu0
        %v7251 = vadd.f32 %v7090, %v7250
        %v7252 = vpop.f32.mrb[0].mxu0
        %7253 = vmatprep.mubr.bf16.mxu0 0
        %7254 = vmatmul.mubr.bf16.gmra.mrb[0].mxu0 %v6973
        %v7255 = vpop.f32.mrb[0].mxu0
        %v7256 = vadd.f32 %v7095, %v7255
        %v7257 = vpop.f32.mrb[0].mxu0
        %v7258 = vpop.f32.mrb[0].mxu0
        %v7259 = vadd.f32 %v7098, %v7258
        %v7260 = vpop.f32.mrb[0].mxu0
        %7261 = vmatprep.mubr.bf16.mxu0 0
        %7262 = vmatmul.mubr.bf16.gmra.mrb[0].mxu0 %v6976
        %v7263 = vpop.f32.mrb[0].mxu0
        %v7264 = vadd.f32 %v7103, %v7263
        %v7265 = vpop.f32.mrb[0].mxu0
        %v7266 = vpop.f32.mrb[0].mxu0
        %v7267 = vadd.f32 %v7106, %v7266
        %v7268 = vpop.f32.mrb[0].mxu0
        %7269 = vmatprep.mubr.bf16.mxu0 0
        %7270 = vmatmul.mubr.bf16.gmra.mrb[0].mxu0 %v6979
        %v7271 = vpop.f32.mrb[0].mxu0
        %v7272 = vadd.f32 %v7111, %v7271
        %v7273 = vpop.f32.mrb[0].mxu0
        %v7274 = vpop.f32.mrb[0].mxu0
        %v7275 = vadd.f32 %v7114, %v7274
        %v7276 = vpop.f32.mrb[0].mxu0
        %7277 = vmatprep.mubr.bf16.mxu0 0
        %7278 = vmatmul.mubr.bf16.gmra.mrb[0].mxu0 %v6982
        %v7279 = vpop.f32.mrb[0].mxu0
        %v7280 = vadd.f32 %v7119, %v7279
        %v7281 = vpop.f32.mrb[0].mxu0
        %v7282 = vpop.f32.mrb[0].mxu0
        %v7283 = vadd.f32 %v7122, %v7282
        %v7284 = vpop.f32.mrb[0].mxu0
        %7285 = vmatprep.mubr.bf16.mxu0 0
        %7286 = vmatmul.mubr.bf16.gmra.mrb[0].mxu0 %v6985
        %v7287 = vpop.f32.mrb[0].mxu0
        %v7288 = vadd.f32 %v7127, %v7287
        %v7289 = vpop.f32.mrb[0].mxu0
        %v7290 = vpop.f32.mrb[0].mxu0
        %v7291 = vadd.f32 %v7130, %v7290
        %v7292 = vpop.f32.mrb[0].mxu0
        %7293 = vmatprep.mubr.bf16.mxu0 0
        %7294 = vmatmul.mubr.bf16.gmra.mrb[0].mxu0 %v6988
        %v7295 = vpop.f32.mrb[0].mxu0
        %v7296 = vadd.f32 %v7135, %v7295
        %v7297 = vpop.f32.mrb[0].mxu0
        %v7298 = vpop.f32.mrb[0].mxu0
        %v7299 = vadd.f32 %v7138, %v7298
        %v7300 = vpop.f32.mrb[0].mxu0
        %7301 = vmatprep.mubr.bf16.mxu0 0
        %7302 = vmatmul.mubr.bf16.gmra.mrb[0].mxu0 %v6991
        %v7303 = vpop.f32.mrb[0].mxu0
        %v7304 = vadd.f32 %v7143, %v7303
        %v7305 = vpop.f32.mrb[0].mxu0
        %v7306 = vpop.f32.mrb[0].mxu0
        %v7307 = vadd.f32 %v7146, %v7306
        %v7308 = vpop.f32.mrb[0].mxu0
        %7309 = vmatprep.mubr.bf16.mxu0 0
        %7310 = vmatmul.mubr.bf16.gmra.mrb[0].mxu0 %v6994
        %v7311 = vpop.f32.mrb[0].mxu0
        %v7312 = vadd.f32 %v7151, %v7311
        %v7313 = vpop.f32.mrb[0].mxu0
        %v7314 = vpop.f32.mrb[0].mxu0
        %v7315 = vadd.f32 %v7154, %v7314
        %v7316 = vpop.f32.mrb[0].mxu0
        %7317 = vdwg.mxu0
        %vm7318 = vcmp.gt.f32.partialorder %v7192, 0.0
        %vm7319 = vcmp.gt.f32.partialorder %v7195, 0.0
        %vm7320 = vcmp.gt.f32.partialorder %v7200, 0.0
        %vm7321 = vcmp.gt.f32.partialorder %v7203, 0.0
        %vm7322 = vcmp.gt.f32.partialorder %v7208, 0.0
        %vm7323 = vcmp.gt.f32.partialorder %v7211, 0.0
        %vm7324 = vcmp.gt.f32.partialorder %v7216, 0.0
        %vm7325 = vcmp.gt.f32.partialorder %v7219, 0.0
        %vm7326 = vcmp.gt.f32.partialorder %v7224, 0.0
        %vm7327 = vcmp.gt.f32.partialorder %v7227, 0.0
        %vm7328 = vcmp.gt.f32.partialorder %v7232, 0.0
        %vm7329 = vcmp.gt.f32.partialorder %v7235, 0.0
        %vm7330 = vcmp.gt.f32.partialorder %v7240, 0.0
        %vm7331 = vcmp.gt.f32.partialorder %v7243, 0.0
        %vm7332 = vcmp.gt.f32.partialorder %v7248, 0.0
        %vm7333 = vcmp.gt.f32.partialorder %v7251, 0.0
        %vm7334 = vcmp.gt.f32.partialorder %v7256, 0.0
        %vm7335 = vcmp.gt.f32.partialorder %v7259, 0.0
        %vm7336 = vcmp.gt.f32.partialorder %v7264, 0.0
        %vm7337 = vcmp.gt.f32.partialorder %v7267, 0.0
        %vm7338 = vcmp.gt.f32.partialorder %v7272, 0.0
        %vm7339 = vcmp.gt.f32.partialorder %v7275, 0.0
        %vm7340 = vcmp.gt.f32.partialorder %v7280, 0.0
        %vm7341 = vcmp.gt.f32.partialorder %v7283, 0.0
        %vm7342 = vcmp.gt.f32.partialorder %v7288, 0.0
        %vm7343 = vcmp.gt.f32.partialorder %v7291, 0.0
        %vm7344 = vcmp.gt.f32.partialorder %v7296, 0.0
        %vm7345 = vcmp.gt.f32.partialorder %v7299, 0.0
        %vm7346 = vcmp.gt.f32.partialorder %v7304, 0.0
        %vm7347 = vcmp.gt.f32.partialorder %v7307, 0.0
        %vm7348 = vcmp.gt.f32.partialorder %v7312, 0.0
        %vm7349 = vcmp.gt.f32.partialorder %v7315, 0.0
        %v7350 = vmin.f32 %v7192, 0.0
        %v7351 = vmin.f32 %v7195, 0.0
        %v7352 = vmin.f32 %v7200, 0.0
        %v7353 = vmin.f32 %v7203, 0.0
        %v7354 = vmin.f32 %v7208, 0.0
        %v7355 = vmin.f32 %v7211, 0.0
        %v7356 = vmin.f32 %v7216, 0.0
        %v7357 = vmin.f32 %v7219, 0.0
        %v7358 = vmin.f32 %v7224, 0.0
        %v7359 = vmin.f32 %v7227, 0.0
        %v7360 = vmin.f32 %v7232, 0.0
        %v7361 = vmin.f32 %v7235, 0.0
        %v7362 = vmin.f32 %v7240, 0.0
        %v7363 = vmin.f32 %v7243, 0.0
        %v7364 = vmin.f32 %v7248, 0.0
        %v7365 = vmin.f32 %v7251, 0.0
        %v7366 = vmin.f32 %v7256, 0.0
        %v7367 = vmin.f32 %v7259, 0.0
        %v7368 = vmin.f32 %v7264, 0.0
        %v7369 = vmin.f32 %v7267, 0.0
        %v7370 = vmin.f32 %v7272, 0.0
        %v7371 = vmin.f32 %v7275, 0.0
        %v7372 = vmin.f32 %v7280, 0.0
        %v7373 = vmin.f32 %v7283, 0.0
        %v7374 = vmin.f32 %v7288, 0.0
        %v7375 = vmin.f32 %v7291, 0.0
        %v7376 = vmin.f32 %v7296, 0.0
        %v7377 = vmin.f32 %v7299, 0.0
        %v7378 = vmin.f32 %v7304, 0.0
        %v7379 = vmin.f32 %v7307, 0.0
        %v7380 = vmin.f32 %v7312, 0.0
        %v7381 = vmin.f32 %v7315, 0.0
        %v7382 = vmul.f32 %v7350, 1.442695
        %v7383 = vpow.pop %v7382
        %v7384 = vmul.f32 %v7351, 1.442695
        %v7385 = vpow.pop %v7384
        %v7386 = vmul.f32 %v7352, 1.442695
        %v7387 = vpow.pop %v7386
        %v7388 = vmul.f32 %v7353, 1.442695
        %v7389 = vpow.pop %v7388
        %v7390 = vmul.f32 %v7354, 1.442695
        %v7391 = vpow.pop %v7390
        %v7392 = vmul.f32 %v7355, 1.442695
        %v7393 = vpow.pop %v7392
        %v7394 = vmul.f32 %v7356, 1.442695
        %v7395 = vpow.pop %v7394
        %v7396 = vmul.f32 %v7357, 1.442695
        %v7397 = vpow.pop %v7396
        %v7398 = vmul.f32 %v7358, 1.442695
        %v7399 = vpow.pop %v7398
        %v7400 = vmul.f32 %v7359, 1.442695
        %v7401 = vpow.pop %v7400
        %v7402 = vmul.f32 %v7360, 1.442695
        %v7403 = vpow.pop %v7402
        %v7404 = vmul.f32 %v7361, 1.442695
        %v7405 = vpow.pop %v7404
        %v7406 = vmul.f32 %v7362, 1.442695
        %v7407 = vpow.pop %v7406
        %v7408 = vmul.f32 %v7363, 1.442695
        %v7409 = vpow.pop %v7408
        %v7410 = vmul.f32 %v7364, 1.442695
        %v7411 = vpow.pop %v7410
        %v7412 = vmul.f32 %v7365, 1.442695
        %v7413 = vpow.pop %v7412
        %v7414 = vmul.f32 %v7366, 1.442695
        %v7415 = vpow.pop %v7414
        %v7416 = vmul.f32 %v7367, 1.442695
        %v7417 = vpow.pop %v7416
        %v7418 = vmul.f32 %v7368, 1.442695
        %v7419 = vpow.pop %v7418
        %v7420 = vmul.f32 %v7369, 1.442695
        %v7421 = vpow.pop %v7420
        %v7422 = vmul.f32 %v7370, 1.442695
        %v7423 = vpow.pop %v7422
        %v7424 = vmul.f32 %v7371, 1.442695
        %v7425 = vpow.pop %v7424
        %v7426 = vmul.f32 %v7372, 1.442695
        %v7427 = vpow.pop %v7426
        %v7428 = vmul.f32 %v7373, 1.442695
        %v7429 = vpow.pop %v7428
        %v7430 = vmul.f32 %v7374, 1.442695
        %v7431 = vpow.pop %v7430
        %v7432 = vmul.f32 %v7375, 1.442695
        %v7433 = vpow.pop %v7432
        %v7434 = vmul.f32 %v7376, 1.442695
        %v7435 = vpow.pop %v7434
        %v7436 = vmul.f32 %v7377, 1.442695
        %v7437 = vpow.pop %v7436
        %v7438 = vmul.f32 %v7378, 1.442695
        %v7439 = vpow.pop %v7438
        %v7440 = vmul.f32 %v7379, 1.442695
        %v7441 = vpow.pop %v7440
        %v7442 = vmul.f32 %v7380, 1.442695
        %v7443 = vpow.pop %v7442
        %v7444 = vmul.f32 %v7381, 1.442695
        %v7445 = vpow.pop %v7444
        %v7446 = vsub.f32 %v7383, 1.0
        %v7447 = vsub.f32 %v7385, 1.0
        %v7448 = vsub.f32 %v7387, 1.0
        %v7449 = vsub.f32 %v7389, 1.0
        %v7450 = vsub.f32 %v7391, 1.0
        %v7451 = vsub.f32 %v7393, 1.0
        %v7452 = vsub.f32 %v7395, 1.0
        %v7453 = vsub.f32 %v7397, 1.0
        %v7454 = vsub.f32 %v7399, 1.0
        %v7455 = vsub.f32 %v7401, 1.0
        %v7456 = vsub.f32 %v7403, 1.0
        %v7457 = vsub.f32 %v7405, 1.0
        %v7458 = vsub.f32 %v7407, 1.0
        %v7459 = vsub.f32 %v7409, 1.0
        %v7460 = vsub.f32 %v7411, 1.0
        %v7461 = vsub.f32 %v7413, 1.0
        %v7462 = vsub.f32 %v7415, 1.0
        %v7463 = vsub.f32 %v7417, 1.0
        %v7464 = vsub.f32 %v7419, 1.0
        %v7465 = vsub.f32 %v7421, 1.0
        %v7466 = vsub.f32 %v7423, 1.0
        %v7467 = vsub.f32 %v7425, 1.0
        %v7468 = vsub.f32 %v7427, 1.0
        %v7469 = vsub.f32 %v7429, 1.0
        %v7470 = vsub.f32 %v7431, 1.0
        %v7471 = vsub.f32 %v7433, 1.0
        %v7472 = vsub.f32 %v7435, 1.0
        %v7473 = vsub.f32 %v7437, 1.0
        %v7474 = vsub.f32 %v7439, 1.0
        %v7475 = vsub.f32 %v7441, 1.0
        %v7476 = vsub.f32 %v7443, 1.0
        %v7477 = vsub.f32 %v7445, 1.0
        %v7478 = vsel %vm7318, %v7192, %v7446
        %v7479 = vsel %vm7319, %v7195, %v7447
        %v7480 = vsel %vm7320, %v7200, %v7448
        %v7481 = vsel %vm7321, %v7203, %v7449
        %v7482 = vsel %vm7322, %v7208, %v7450
        %v7483 = vsel %vm7323, %v7211, %v7451
        %v7484 = vsel %vm7324, %v7216, %v7452
        %v7485 = vsel %vm7325, %v7219, %v7453
        %v7486 = vsel %vm7326, %v7224, %v7454
        %v7487 = vsel %vm7327, %v7227, %v7455
        %v7488 = vsel %vm7328, %v7232, %v7456
        %v7489 = vsel %vm7329, %v7235, %v7457
        %v7490 = vsel %vm7330, %v7240, %v7458
        %v7491 = vsel %vm7331, %v7243, %v7459
        %v7492 = vsel %vm7332, %v7248, %v7460
        %v7493 = vsel %vm7333, %v7251, %v7461
        %v7494 = vsel %vm7334, %v7256, %v7462
        %v7495 = vsel %vm7335, %v7259, %v7463
        %v7496 = vsel %vm7336, %v7264, %v7464
        %v7497 = vsel %vm7337, %v7267, %v7465
        %v7498 = vsel %vm7338, %v7272, %v7466
        %v7499 = vsel %vm7339, %v7275, %v7467
        %v7500 = vsel %vm7340, %v7280, %v7468
        %v7501 = vsel %vm7341, %v7283, %v7469
        %v7502 = vsel %vm7342, %v7288, %v7470
        %v7503 = vsel %vm7343, %v7291, %v7471
        %v7504 = vsel %vm7344, %v7296, %v7472
        %v7505 = vsel %vm7345, %v7299, %v7473
        %v7506 = vsel %vm7346, %v7304, %v7474
        %v7507 = vsel %vm7347, %v7307, %v7475
        %v7508 = vsel %vm7348, %v7312, %v7476
        %v7509 = vsel %vm7349, %v7315, %v7477
        %v7510 = vld [vmem:[%s5] sm:$0xf]
        %v7511 = vld [vmem:[%s5 + $0x4] sm:$0xf]
        %v7512 = vld [vmem:[%s5 + $0x8] sm:$0xf]
        %v7513 = vld [vmem:[%s5 + $0xc] sm:$0xf]
        %v7514 = vld [vmem:[%s5 + $0x10] sm:$0xf]
        %v7515 = vld [vmem:[%s5 + $0x14] sm:$0xf]
        %v7516 = vld [vmem:[%s5 + $0x18] sm:$0xf]
        %v7517 = vld [vmem:[%s5 + $0x1c] sm:$0xf]
        %v7518 = vld [vmem:[%s5 + $0x20] sm:$0xf]
        %v7519 = vld [vmem:[%s5 + $0x24] sm:$0xf]
        %v7520 = vld [vmem:[%s5 + $0x28] sm:$0xf]
        %v7521 = vld [vmem:[%s5 + $0x2c] sm:$0xf]
        %v7522 = vld [vmem:[%s5 + $0x30] sm:$0xf]
        %v7523 = vld [vmem:[%s5 + $0x34] sm:$0xf]
        %v7524 = vld [vmem:[%s5 + $0x38] sm:$0xf]
        %v7525 = vld [vmem:[%s5 + $0x3c] sm:$0xf]
        %v7526 = vld [vmem:[%s5 + $0x40] sm:$0xf]
        %v7527 = vld [vmem:[%s5 + $0x44] sm:$0xf]
        %v7528 = vld [vmem:[%s5 + $0x48] sm:$0xf]
        %v7529 = vld [vmem:[%s5 + $0x4c] sm:$0xf]
        %v7530 = vld [vmem:[%s5 + $0x50] sm:$0xf]
        %v7531 = vld [vmem:[%s5 + $0x54] sm:$0xf]
        %v7532 = vld [vmem:[%s5 + $0x58] sm:$0xf]
        %v7533 = vld [vmem:[%s5 + $0x5c] sm:$0xf]
        %v7534 = vld [vmem:[%s5 + $0x60] sm:$0xf]
        %v7535 = vld [vmem:[%s5 + $0x64] sm:$0xf]
        %v7536 = vld [vmem:[%s5 + $0x68] sm:$0xf]
        %v7537 = vld [vmem:[%s5 + $0x6c] sm:$0xf]
        %v7538 = vld [vmem:[%s5 + $0x70] sm:$0xf]
        %v7539 = vld [vmem:[%s5 + $0x74] sm:$0xf]
        %v7540 = vld [vmem:[%s5 + $0x78] sm:$0xf]
        %v7541 = vld [vmem:[%s5 + $0x7c] sm:$0xf]
        %v7542 = vld [vmem:[%s5 + $0x80] sm:$0xf]
        %v7543 = vld [vmem:[%s5 + $0x84] sm:$0xf]
        %v7544 = vld [vmem:[%s5 + $0x88] sm:$0xf]
        %v7545 = vld [vmem:[%s5 + $0x8c] sm:$0xf]
        %v7546 = vld [vmem:[%s6] sm:$0x1]
        %v7579 = vrot.slane %v7478, 7
        %v7580 = vrot.slane %v7479, 7
        %v7581 = vsel %vm2012, %v7579, %v7580
        %v7582 = vrot.slane %v7480, 7
        %v7583 = vsel %vm2012, %v7580, %v7582
        %v7584 = vrot.slane %v7481, 7
        %v7585 = vsel %vm2012, %v7582, %v7584
        %v7586 = vrot.slane %v7482, 7
        %v7587 = vsel %vm2012, %v7584, %v7586
        %v7588 = vrot.slane %v7483, 7
        %v7589 = vsel %vm2012, %v7586, %v7588
        %v7590 = vrot.slane %v7484, 7
        %v7591 = vsel %vm2012, %v7588, %v7590
        %v7592 = vrot.slane %v7485, 7
        %v7593 = vsel %vm2012, %v7590, %v7592
        %v7594 = vrot.slane %v7486, 7
        %v7595 = vsel %vm2012, %v7592, %v7594
        %v7596 = vrot.slane %v7487, 7
        %v7597 = vsel %vm2012, %v7594, %v7596
        %v7598 = vrot.slane %v7488, 7
        %v7599 = vsel %vm2012, %v7596, %v7598
        %v7600 = vrot.slane %v7489, 7
        %v7601 = vsel %vm2012, %v7598, %v7600
        %v7602 = vrot.slane %v7490, 7
        %v7603 = vsel %vm2012, %v7600, %v7602
        %v7604 = vrot.slane %v7491, 7
        %v7605 = vsel %vm2012, %v7602, %v7604
        %v7606 = vrot.slane %v7492, 7
        %v7607 = vsel %vm2012, %v7604, %v7606
        %v7608 = vrot.slane %v7493, 7
        %v7609 = vsel %vm2012, %v7606, %v7608
        %v7610 = vrot.slane %v7494, 7
        %v7611 = vsel %vm2012, %v7608, %v7610
        %v7612 = vrot.slane %v7495, 7
        %v7613 = vsel %vm2012, %v7610, %v7612
        %v7614 = vrot.slane %v7496, 7
        %v7615 = vsel %vm2012, %v7612, %v7614
        %v7616 = vrot.slane %v7497, 7
        %v7617 = vsel %vm2012, %v7614, %v7616
        %v7618 = vrot.slane %v7498, 7
        %v7619 = vsel %vm2012, %v7616, %v7618
        %v7620 = vrot.slane %v7499, 7
        %v7621 = vsel %vm2012, %v7618, %v7620
        %v7622 = vrot.slane %v7500, 7
        %v7623 = vsel %vm2012, %v7620, %v7622
        %v7624 = vrot.slane %v7501, 7
        %v7625 = vsel %vm2012, %v7622, %v7624
        %v7626 = vrot.slane %v7502, 7
        %v7627 = vsel %vm2012, %v7624, %v7626
        %v7628 = vrot.slane %v7503, 7
        %v7629 = vsel %vm2012, %v7626, %v7628
        %v7630 = vrot.slane %v7504, 7
        %v7631 = vsel %vm2012, %v7628, %v7630
        %v7632 = vrot.slane %v7505, 7
        %v7633 = vsel %vm2012, %v7630, %v7632
        %v7634 = vrot.slane %v7506, 7
        %v7635 = vsel %vm2012, %v7632, %v7634
        %v7636 = vrot.slane %v7507, 7
        %v7637 = vsel %vm2012, %v7634, %v7636
        %v7638 = vrot.slane %v7508, 7
        %v7639 = vsel %vm2012, %v7636, %v7638
        %v7640 = vrot.slane %v7509, 7
        %v7641 = vsel %vm2012, %v7638, %v7640
        %v7675 = vsel %vm2012, 0.0, %v7579
        %v7676 = vsel %vm2012, %v7640, 0.0
        %v7677 = vsel %vm887, %v7675, 0.0
        %v7678 = vsel %vm888, %v7581, 0.0
        %v7679 = vsel %vm889, %v7583, 0.0
        %v7680 = vsel %vm890, %v7585, 0.0
        %v7681 = vsel %vm891, %v7587, 0.0
        %v7682 = vsel %vm892, %v7589, 0.0
        %v7683 = vsel %vm893, %v7591, 0.0
        %v7684 = vsel %vm894, %v7593, 0.0
        %v7685 = vsel %vm895, %v7595, 0.0
        %v7686 = vsel %vm896, %v7597, 0.0
        %v7687 = vsel %vm897, %v7599, 0.0
        %v7688 = vsel %vm898, %v7601, 0.0
        %v7689 = vsel %vm899, %v7603, 0.0
        %v7690 = vsel %vm900, %v7605, 0.0
        %v7691 = vsel %vm901, %v7607, 0.0
        %v7692 = vsel %vm902, %v7609, 0.0
        %v7693 = vsel %vm903, %v7611, 0.0
        %v7694 = vsel %vm904, %v7613, 0.0
        %v7695 = vsel %vm905, %v7615, 0.0
        %v7696 = vsel %vm906, %v7617, 0.0
        %v7697 = vsel %vm907, %v7619, 0.0
        %v7698 = vsel %vm908, %v7621, 0.0
        %v7699 = vsel %vm909, %v7623, 0.0
        %v7700 = vsel %vm910, %v7625, 0.0
        %v7701 = vsel %vm911, %v7627, 0.0
        %v7702 = vsel %vm912, %v7629, 0.0
        %v7703 = vsel %vm913, %v7631, 0.0
        %v7704 = vsel %vm914, %v7633, 0.0
        %v7705 = vsel %vm915, %v7635, 0.0
        %v7706 = vsel %vm916, %v7637, 0.0
        %v7707 = vpack.c.bf16 %v7678, %v7677
        %v7708 = vpack.c.bf16 %v7680, %v7679
        %v7709 = vpack.c.bf16 %v7682, %v7681
        %v7710 = vpack.c.bf16 %v7684, %v7683
        %v7711 = vpack.c.bf16 %v7686, %v7685
        %v7712 = vpack.c.bf16 %v7688, %v7687
        %v7713 = vpack.c.bf16 %v7690, %v7689
        %v7714 = vpack.c.bf16 %v7692, %v7691
        %v7715 = vpack.c.bf16 %v7694, %v7693
        %v7716 = vpack.c.bf16 %v7696, %v7695
        %v7717 = vpack.c.bf16 %v7698, %v7697
        %v7718 = vpack.c.bf16 %v7700, %v7699
        %v7719 = vpack.c.bf16 %v7702, %v7701
        %v7720 = vpack.c.bf16 %v7704, %v7703
        %v7721 = vpack.c.bf16 %v7706, %v7705
        %v7722 = vpack.c.bf16 %v7581, %v7675
        %v7723 = vpack.c.bf16 %v7585, %v7583
        %v7724 = vpack.c.bf16 %v7589, %v7587
        %v7725 = vpack.c.bf16 %v7593, %v7591
        %v7726 = vpack.c.bf16 %v7597, %v7595
        %v7727 = vpack.c.bf16 %v7601, %v7599
        %v7728 = vpack.c.bf16 %v7605, %v7603
        %v7729 = vpack.c.bf16 %v7609, %v7607
        %v7730 = vpack.c.bf16 %v7613, %v7611
        %v7731 = vpack.c.bf16 %v7617, %v7615
        %v7732 = vpack.c.bf16 %v7621, %v7619
        %v7733 = vpack.c.bf16 %v7625, %v7623
        %v7734 = vpack.c.bf16 %v7629, %v7627
        %v7735 = vpack.c.bf16 %v7633, %v7631
        %v7736 = vpack.c.bf16 %v7637, %v7635
        %v7737 = vpack.c.bf16 %v7639, %v7639
        %v7739 = vrot.slane %v7675, 2
        %v7740 = vsel %vm1165, %v1204, %v7739
        %v7741 = vrot.slane %v7581, 2
        %v7742 = vsel %vm1165, %v7739, %v7741
        %v7743 = vrot.slane %v7583, 2
        %v7744 = vsel %vm1165, %v7741, %v7743
        %v7745 = vrot.slane %v7585, 2
        %v7746 = vsel %vm1165, %v7743, %v7745
        %v7747 = vrot.slane %v7587, 2
        %v7748 = vsel %vm1165, %v7745, %v7747
        %v7749 = vrot.slane %v7589, 2
        %v7750 = vsel %vm1165, %v7747, %v7749
        %v7751 = vrot.slane %v7591, 2
        %v7752 = vsel %vm1165, %v7749, %v7751
        %v7753 = vrot.slane %v7593, 2
        %v7754 = vsel %vm1165, %v7751, %v7753
        %v7755 = vrot.slane %v7595, 2
        %v7756 = vsel %vm1165, %v7753, %v7755
        %v7757 = vrot.slane %v7597, 2
        %v7758 = vsel %vm1165, %v7755, %v7757
        %v7759 = vrot.slane %v7599, 2
        %v7760 = vsel %vm1165, %v7757, %v7759
        %v7761 = vrot.slane %v7601, 2
        %v7762 = vsel %vm1165, %v7759, %v7761
        %v7763 = vrot.slane %v7603, 2
        %v7764 = vsel %vm1165, %v7761, %v7763
        %v7765 = vrot.slane %v7605, 2
        %v7766 = vsel %vm1165, %v7763, %v7765
        %v7767 = vrot.slane %v7607, 2
        %v7768 = vsel %vm1165, %v7765, %v7767
        %v7769 = vrot.slane %v7609, 2
        %v7770 = vsel %vm1165, %v7767, %v7769
        %v7771 = vrot.slane %v7611, 2
        %v7772 = vsel %vm1165, %v7769, %v7771
        %v7773 = vrot.slane %v7613, 2
        %v7774 = vsel %vm1165, %v7771, %v7773
        %v7775 = vrot.slane %v7615, 2
        %v7776 = vsel %vm1165, %v7773, %v7775
        %v7777 = vrot.slane %v7617, 2
        %v7778 = vsel %vm1165, %v7775, %v7777
        %v7779 = vrot.slane %v7619, 2
        %v7780 = vsel %vm1165, %v7777, %v7779
        %v7781 = vrot.slane %v7621, 2
        %v7782 = vsel %vm1165, %v7779, %v7781
        %v7783 = vrot.slane %v7623, 2
        %v7784 = vsel %vm1165, %v7781, %v7783
        %v7785 = vrot.slane %v7625, 2
        %v7786 = vsel %vm1165, %v7783, %v7785
        %v7787 = vrot.slane %v7627, 2
        %v7788 = vsel %vm1165, %v7785, %v7787
        %v7789 = vrot.slane %v7629, 2
        %v7790 = vsel %vm1165, %v7787, %v7789
        %v7791 = vrot.slane %v7631, 2
        %v7792 = vsel %vm1165, %v7789, %v7791
        %v7793 = vrot.slane %v7633, 2
        %v7794 = vsel %vm1165, %v7791, %v7793
        %v7795 = vrot.slane %v7635, 2
        %v7796 = vsel %vm1165, %v7793, %v7795
        %v7797 = vrot.slane %v7637, 2
        %v7798 = vsel %vm1165, %v7795, %v7797
        %v7799 = vrot.slane %v7639, 2
        %v7800 = vsel %vm1165, %v7797, %v7799
        %v7832 = vsel %vm918, %v7740, 0.0
        %v7833 = vsel %vm919, %v7742, 0.0
        %v7834 = vsel %vm920, %v7744, 0.0
        %v7835 = vsel %vm921, %v7746, 0.0
        %v7836 = vsel %vm922, %v7748, 0.0
        %v7837 = vsel %vm923, %v7750, 0.0
        %v7838 = vsel %vm924, %v7752, 0.0
        %v7839 = vsel %vm925, %v7754, 0.0
        %v7840 = vsel %vm926, %v7756, 0.0
        %v7841 = vsel %vm927, %v7758, 0.0
        %v7842 = vsel %vm928, %v7760, 0.0
        %v7843 = vsel %vm929, %v7762, 0.0
        %v7844 = vsel %vm930, %v7764, 0.0
        %v7845 = vsel %vm931, %v7766, 0.0
        %v7846 = vsel %vm932, %v7768, 0.0
        %v7847 = vsel %vm933, %v7770, 0.0
        %v7848 = vsel %vm934, %v7772, 0.0
        %v7849 = vsel %vm935, %v7774, 0.0
        %v7850 = vsel %vm936, %v7776, 0.0
        %v7851 = vsel %vm937, %v7778, 0.0
        %v7852 = vsel %vm938, %v7780, 0.0
        %v7853 = vsel %vm939, %v7782, 0.0
        %v7854 = vsel %vm940, %v7784, 0.0
        %v7855 = vsel %vm941, %v7786, 0.0
        %v7856 = vsel %vm942, %v7788, 0.0
        %v7857 = vsel %vm943, %v7790, 0.0
        %v7858 = vsel %vm944, %v7792, 0.0
        %v7859 = vsel %vm945, %v7794, 0.0
        %v7860 = vsel %vm946, %v7796, 0.0
        %v7861 = vsel %vm947, %v7798, 0.0
        %v7862 = vsel %vm948, %v7800, 0.0
        %v7863 = vpack.c.bf16 %v7832, %v4015
        %v7864 = vpack.c.bf16 %v7834, %v7833
        %v7865 = vpack.c.bf16 %v7836, %v7835
        %v7866 = vpack.c.bf16 %v7838, %v7837
        %v7867 = vpack.c.bf16 %v7840, %v7839
        %v7868 = vpack.c.bf16 %v7842, %v7841
        %v7869 = vpack.c.bf16 %v7844, %v7843
        %v7870 = vpack.c.bf16 %v7846, %v7845
        %v7871 = vpack.c.bf16 %v7848, %v7847
        %v7872 = vpack.c.bf16 %v7850, %v7849
        %v7873 = vpack.c.bf16 %v7852, %v7851
        %v7874 = vpack.c.bf16 %v7854, %v7853
        %v7875 = vpack.c.bf16 %v7856, %v7855
        %v7876 = vpack.c.bf16 %v7858, %v7857
        %v7877 = vpack.c.bf16 %v7860, %v7859
        %v7878 = vpack.c.bf16 %v7862, %v7861
        %v7879 = vsel %vm885, %v7675, 0.0
        %v7880 = vsel %vm886, %v7581, 0.0
        %v7881 = vsel %vm887, %v7583, 0.0
        %v7882 = vsel %vm888, %v7585, 0.0
        %v7883 = vsel %vm889, %v7587, 0.0
        %v7884 = vsel %vm890, %v7589, 0.0
        %v7885 = vsel %vm891, %v7591, 0.0
        %v7886 = vsel %vm892, %v7593, 0.0
        %v7887 = vsel %vm893, %v7595, 0.0
        %v7888 = vsel %vm894, %v7597, 0.0
        %v7889 = vsel %vm895, %v7599, 0.0
        %v7890 = vsel %vm896, %v7601, 0.0
        %v7891 = vsel %vm897, %v7603, 0.0
        %v7892 = vsel %vm898, %v7605, 0.0
        %v7893 = vsel %vm899, %v7607, 0.0
        %v7894 = vsel %vm900, %v7609, 0.0
        %v7895 = vsel %vm901, %v7611, 0.0
        %v7896 = vsel %vm902, %v7613, 0.0
        %v7897 = vsel %vm903, %v7615, 0.0
        %v7898 = vsel %vm904, %v7617, 0.0
        %v7899 = vsel %vm905, %v7619, 0.0
        %v7900 = vsel %vm906, %v7621, 0.0
        %v7901 = vsel %vm907, %v7623, 0.0
        %v7902 = vsel %vm908, %v7625, 0.0
        %v7903 = vsel %vm909, %v7627, 0.0
        %v7904 = vsel %vm910, %v7629, 0.0
        %v7905 = vsel %vm911, %v7631, 0.0
        %v7906 = vsel %vm912, %v7633, 0.0
        %v7907 = vsel %vm913, %v7635, 0.0
        %v7908 = vsel %vm914, %v7637, 0.0
        %v7909 = vsel %vm915, %v7639, 0.0
        %v7910 = vsel %vm916, %v7641, 0.0
        %v7911 = vpack.c.bf16 %v7880, %v7879
        %v7912 = vpack.c.bf16 %v7882, %v7881
        %v7913 = vpack.c.bf16 %v7884, %v7883
        %v7914 = vpack.c.bf16 %v7886, %v7885
        %v7915 = vpack.c.bf16 %v7888, %v7887
        %v7916 = vpack.c.bf16 %v7890, %v7889
        %v7917 = vpack.c.bf16 %v7892, %v7891
        %v7918 = vpack.c.bf16 %v7894, %v7893
        %v7919 = vpack.c.bf16 %v7896, %v7895
        %v7920 = vpack.c.bf16 %v7898, %v7897
        %v7921 = vpack.c.bf16 %v7900, %v7899
        %v7922 = vpack.c.bf16 %v7902, %v7901
        %v7923 = vpack.c.bf16 %v7904, %v7903
        %v7924 = vpack.c.bf16 %v7906, %v7905
        %v7925 = vpack.c.bf16 %v7908, %v7907
        %v7926 = vpack.c.bf16 %v7910, %v7909
        %v7927 = vpack.c.bf16 %v7641, %v7639
        %v7928 = vpack.c.bf16 %v7676, %v7676
        %v7930 = vrot.slane %v7641, 2
        %v7931 = vsel %vm1165, %v7799, %v7930
        %v7932 = vrot.slane %v7676, 2
        %v7933 = vsel %vm1165, %v7930, %v7932
        %v7936 = vsel %vm917, %v7742, 0.0
        %v7937 = vsel %vm918, %v7744, 0.0
        %v7938 = vsel %vm919, %v7746, 0.0
        %v7939 = vsel %vm920, %v7748, 0.0
        %v7940 = vsel %vm921, %v7750, 0.0
        %v7941 = vsel %vm922, %v7752, 0.0
        %v7942 = vsel %vm923, %v7754, 0.0
        %v7943 = vsel %vm924, %v7756, 0.0
        %v7944 = vsel %vm925, %v7758, 0.0
        %v7945 = vsel %vm926, %v7760, 0.0
        %v7946 = vsel %vm927, %v7762, 0.0
        %v7947 = vsel %vm928, %v7764, 0.0
        %v7948 = vsel %vm929, %v7766, 0.0
        %v7949 = vsel %vm930, %v7768, 0.0
        %v7950 = vsel %vm931, %v7770, 0.0
        %v7951 = vsel %vm932, %v7772, 0.0
        %v7952 = vsel %vm933, %v7774, 0.0
        %v7953 = vsel %vm934, %v7776, 0.0
        %v7954 = vsel %vm935, %v7778, 0.0
        %v7955 = vsel %vm936, %v7780, 0.0
        %v7956 = vsel %vm937, %v7782, 0.0
        %v7957 = vsel %vm938, %v7784, 0.0
        %v7958 = vsel %vm939, %v7786, 0.0
        %v7959 = vsel %vm940, %v7788, 0.0
        %v7960 = vsel %vm941, %v7790, 0.0
        %v7961 = vsel %vm942, %v7792, 0.0
        %v7962 = vsel %vm943, %v7794, 0.0
        %v7963 = vsel %vm944, %v7796, 0.0
        %v7964 = vsel %vm945, %v7798, 0.0
        %v7965 = vsel %vm946, %v7800, 0.0
        %v7966 = vsel %vm947, %v7931, 0.0
        %v7967 = vsel %vm948, %v7933, 0.0
        %v7968 = vpack.c.bf16 %v7937, %v7936
        %v7969 = vpack.c.bf16 %v7939, %v7938
        %v7970 = vpack.c.bf16 %v7941, %v7940
        %v7971 = vpack.c.bf16 %v7943, %v7942
        %v7972 = vpack.c.bf16 %v7945, %v7944
        %v7973 = vpack.c.bf16 %v7947, %v7946
        %v7974 = vpack.c.bf16 %v7949, %v7948
        %v7975 = vpack.c.bf16 %v7951, %v7950
        %v7976 = vpack.c.bf16 %v7953, %v7952
        %v7977 = vpack.c.bf16 %v7955, %v7954
        %v7978 = vpack.c.bf16 %v7957, %v7956
        %v7979 = vpack.c.bf16 %v7959, %v7958
        %v7980 = vpack.c.bf16 %v7961, %v7960
        %v7981 = vpack.c.bf16 %v7963, %v7962
        %v7982 = vpack.c.bf16 %v7965, %v7964
        %v7983 = vpack.c.bf16 %v7967, %v7966
        %v7984 = vsel %vm885, %v7583, 0.0
        %v7985 = vsel %vm886, %v7585, 0.0
        %v7986 = vsel %vm887, %v7587, 0.0
        %v7987 = vsel %vm888, %v7589, 0.0
        %v7988 = vsel %vm889, %v7591, 0.0
        %v7989 = vsel %vm890, %v7593, 0.0
        %v7990 = vsel %vm891, %v7595, 0.0
        %v7991 = vsel %vm892, %v7597, 0.0
        %v7992 = vsel %vm893, %v7599, 0.0
        %v7993 = vsel %vm894, %v7601, 0.0
        %v7994 = vsel %vm895, %v7603, 0.0
        %v7995 = vsel %vm896, %v7605, 0.0
        %v7996 = vsel %vm897, %v7607, 0.0
        %v7997 = vsel %vm898, %v7609, 0.0
        %v7998 = vsel %vm899, %v7611, 0.0
        %v7999 = vsel %vm900, %v7613, 0.0
        %v8000 = vsel %vm901, %v7615, 0.0
        %v8001 = vsel %vm902, %v7617, 0.0
        %v8002 = vsel %vm903, %v7619, 0.0
        %v8003 = vsel %vm904, %v7621, 0.0
        %v8004 = vsel %vm905, %v7623, 0.0
        %v8005 = vsel %vm906, %v7625, 0.0
        %v8006 = vsel %vm907, %v7627, 0.0
        %v8007 = vsel %vm908, %v7629, 0.0
        %v8008 = vsel %vm909, %v7631, 0.0
        %v8009 = vsel %vm910, %v7633, 0.0
        %v8010 = vsel %vm911, %v7635, 0.0
        %v8011 = vsel %vm912, %v7637, 0.0
        %v8012 = vsel %vm913, %v7639, 0.0
        %v8013 = vsel %vm914, %v7641, 0.0
        %v8014 = vsel %vm915, %v7676, 0.0
        %v8015 = vpack.c.bf16 %v7985, %v7984
        %v8016 = vpack.c.bf16 %v7987, %v7986
        %v8017 = vpack.c.bf16 %v7989, %v7988
        %v8018 = vpack.c.bf16 %v7991, %v7990
        %v8019 = vpack.c.bf16 %v7993, %v7992
        %v8020 = vpack.c.bf16 %v7995, %v7994
        %v8021 = vpack.c.bf16 %v7997, %v7996
        %v8022 = vpack.c.bf16 %v7999, %v7998
        %v8023 = vpack.c.bf16 %v8001, %v8000
        %v8024 = vpack.c.bf16 %v8003, %v8002
        %v8025 = vpack.c.bf16 %v8005, %v8004
        %v8026 = vpack.c.bf16 %v8007, %v8006
        %v8027 = vpack.c.bf16 %v8009, %v8008
        %v8028 = vpack.c.bf16 %v8011, %v8010
        %v8029 = vpack.c.bf16 %v8013, %v8012
        %v8030 = vpack.c.bf16 0.0, %v8014
        %v8031 = vpack.c.bf16 0.0, %v7676
        %v8032 = vsel %vm1165, %v7932, %v1204
        %v8034 = vsel %vm917, %v7746, 0.0
        %v8035 = vsel %vm918, %v7748, 0.0
        %v8036 = vsel %vm919, %v7750, 0.0
        %v8037 = vsel %vm920, %v7752, 0.0
        %v8038 = vsel %vm921, %v7754, 0.0
        %v8039 = vsel %vm922, %v7756, 0.0
        %v8040 = vsel %vm923, %v7758, 0.0
        %v8041 = vsel %vm924, %v7760, 0.0
        %v8042 = vsel %vm925, %v7762, 0.0
        %v8043 = vsel %vm926, %v7764, 0.0
        %v8044 = vsel %vm927, %v7766, 0.0
        %v8045 = vsel %vm928, %v7768, 0.0
        %v8046 = vsel %vm929, %v7770, 0.0
        %v8047 = vsel %vm930, %v7772, 0.0
        %v8048 = vsel %vm931, %v7774, 0.0
        %v8049 = vsel %vm932, %v7776, 0.0
        %v8050 = vsel %vm933, %v7778, 0.0
        %v8051 = vsel %vm934, %v7780, 0.0
        %v8052 = vsel %vm935, %v7782, 0.0
        %v8053 = vsel %vm936, %v7784, 0.0
        %v8054 = vsel %vm937, %v7786, 0.0
        %v8055 = vsel %vm938, %v7788, 0.0
        %v8056 = vsel %vm939, %v7790, 0.0
        %v8057 = vsel %vm940, %v7792, 0.0
        %v8058 = vsel %vm941, %v7794, 0.0
        %v8059 = vsel %vm942, %v7796, 0.0
        %v8060 = vsel %vm943, %v7798, 0.0
        %v8061 = vsel %vm944, %v7800, 0.0
        %v8062 = vsel %vm945, %v7931, 0.0
        %v8063 = vsel %vm946, %v7933, 0.0
        %v8064 = vsel %vm947, %v8032, 0.0
        %v8065 = vpack.c.bf16 %v8035, %v8034
        %v8066 = vpack.c.bf16 %v8037, %v8036
        %v8067 = vpack.c.bf16 %v8039, %v8038
        %v8068 = vpack.c.bf16 %v8041, %v8040
        %v8069 = vpack.c.bf16 %v8043, %v8042
        %v8070 = vpack.c.bf16 %v8045, %v8044
        %v8071 = vpack.c.bf16 %v8047, %v8046
        %v8072 = vpack.c.bf16 %v8049, %v8048
        %v8073 = vpack.c.bf16 %v8051, %v8050
        %v8074 = vpack.c.bf16 %v8053, %v8052
        %v8075 = vpack.c.bf16 %v8055, %v8054
        %v8076 = vpack.c.bf16 %v8057, %v8056
        %v8077 = vpack.c.bf16 %v8059, %v8058
        %v8078 = vpack.c.bf16 %v8061, %v8060
        %v8079 = vpack.c.bf16 %v8063, %v8062
        %v8080 = vpack.c.bf16 %v4249, %v8064
        %v8082 = vshll.u32 %v7722, 16
        %v8084 = vrot.slane %v8082, 1
        %v8085 = vsel %vm1210, %v4268, %v8084
        %v8086 = vshrl.u32 %v7722, 16
        %v8088 = vor.u32 %v8086, %v8084
        %v8090 = vshll.u32 %v7723, 16
        %v8092 = vrot.slane %v8090, 1
        %v8093 = vsel %vm1210, %v8088, %v8092
        %v8094 = vshrl.u32 %v7723, 16
        %v8096 = vor.u32 %v8094, %v8092
        %v8098 = vshll.u32 %v7724, 16
        %v8100 = vrot.slane %v8098, 1
        %v8101 = vsel %vm1210, %v8096, %v8100
        %v8102 = vshrl.u32 %v7724, 16
        %v8104 = vor.u32 %v8102, %v8100
        %v8106 = vshll.u32 %v7725, 16
        %v8108 = vrot.slane %v8106, 1
        %v8109 = vsel %vm1210, %v8104, %v8108
        %v8110 = vshrl.u32 %v7725, 16
        %v8112 = vor.u32 %v8110, %v8108
        %v8114 = vshll.u32 %v7726, 16
        %v8116 = vrot.slane %v8114, 1
        %v8117 = vsel %vm1210, %v8112, %v8116
        %v8118 = vshrl.u32 %v7726, 16
        %v8120 = vor.u32 %v8118, %v8116
        %v8122 = vshll.u32 %v7727, 16
        %v8124 = vrot.slane %v8122, 1
        %v8125 = vsel %vm1210, %v8120, %v8124
        %v8126 = vshrl.u32 %v7727, 16
        %v8128 = vor.u32 %v8126, %v8124
        %v8130 = vshll.u32 %v7728, 16
        %v8132 = vrot.slane %v8130, 1
        %v8133 = vsel %vm1210, %v8128, %v8132
        %v8134 = vshrl.u32 %v7728, 16
        %v8136 = vor.u32 %v8134, %v8132
        %v8138 = vshll.u32 %v7729, 16
        %v8140 = vrot.slane %v8138, 1
        %v8141 = vsel %vm1210, %v8136, %v8140
        %v8142 = vshrl.u32 %v7729, 16
        %v8144 = vor.u32 %v8142, %v8140
        %v8146 = vshll.u32 %v7730, 16
        %v8148 = vrot.slane %v8146, 1
        %v8149 = vsel %vm1210, %v8144, %v8148
        %v8150 = vshrl.u32 %v7730, 16
        %v8152 = vor.u32 %v8150, %v8148
        %v8154 = vshll.u32 %v7731, 16
        %v8156 = vrot.slane %v8154, 1
        %v8157 = vsel %vm1210, %v8152, %v8156
        %v8158 = vshrl.u32 %v7731, 16
        %v8160 = vor.u32 %v8158, %v8156
        %v8162 = vshll.u32 %v7732, 16
        %v8164 = vrot.slane %v8162, 1
        %v8165 = vsel %vm1210, %v8160, %v8164
        %v8166 = vshrl.u32 %v7732, 16
        %v8168 = vor.u32 %v8166, %v8164
        %v8170 = vshll.u32 %v7733, 16
        %v8172 = vrot.slane %v8170, 1
        %v8173 = vsel %vm1210, %v8168, %v8172
        %v8174 = vshrl.u32 %v7733, 16
        %v8176 = vor.u32 %v8174, %v8172
        %v8178 = vshll.u32 %v7734, 16
        %v8180 = vrot.slane %v8178, 1
        %v8181 = vsel %vm1210, %v8176, %v8180
        %v8182 = vshrl.u32 %v7734, 16
        %v8184 = vor.u32 %v8182, %v8180
        %v8186 = vshll.u32 %v7735, 16
        %v8188 = vrot.slane %v8186, 1
        %v8189 = vsel %vm1210, %v8184, %v8188
        %v8190 = vshrl.u32 %v7735, 16
        %v8192 = vor.u32 %v8190, %v8188
        %v8194 = vshll.u32 %v7736, 16
        %v8196 = vrot.slane %v8194, 1
        %v8197 = vsel %vm1210, %v8192, %v8196
        %v8198 = vshrl.u32 %v7736, 16
        %v8200 = vor.u32 %v8198, %v8196
        %v8202 = vshll.u32 %v7737, 16
        %v8204 = vrot.slane %v8202, 1
        %v8205 = vsel %vm1210, %v8200, %v8204
        %8206 = vrot.lane.b32.xlu0 %v8085, 32
        %v8207 = vpop.permute.xlu0 %8206
        %8208 = vrot.lane.b32.xlu0 %v8093, 32
        %v8209 = vpop.permute.xlu0 %8208
        %8210 = vrot.lane.b32.xlu0 %v8101, 32
        %v8211 = vpop.permute.xlu0 %8210
        %8212 = vrot.lane.b32.xlu0 %v8109, 32
        %v8213 = vpop.permute.xlu0 %8212
        %8214 = vrot.lane.b32.xlu0 %v8117, 32
        %v8215 = vpop.permute.xlu0 %8214
        %8216 = vrot.lane.b32.xlu0 %v8125, 32
        %v8217 = vpop.permute.xlu0 %8216
        %8218 = vrot.lane.b32.xlu0 %v8133, 32
        %v8219 = vpop.permute.xlu0 %8218
        %8220 = vrot.lane.b32.xlu0 %v8141, 32
        %v8221 = vpop.permute.xlu0 %8220
        %8222 = vrot.lane.b32.xlu0 %v8149, 32
        %v8223 = vpop.permute.xlu0 %8222
        %8224 = vrot.lane.b32.xlu0 %v8157, 32
        %v8225 = vpop.permute.xlu0 %8224
        %8226 = vrot.lane.b32.xlu0 %v8165, 32
        %v8227 = vpop.permute.xlu0 %8226
        %8228 = vrot.lane.b32.xlu0 %v8173, 32
        %v8229 = vpop.permute.xlu0 %8228
        %8230 = vrot.lane.b32.xlu0 %v8181, 32
        %v8231 = vpop.permute.xlu0 %8230
        %8232 = vrot.lane.b32.xlu0 %v8189, 32
        %v8233 = vpop.permute.xlu0 %8232
        %8234 = vrot.lane.b32.xlu0 %v8197, 32
        %v8235 = vpop.permute.xlu0 %8234
        %8236 = vrot.lane.b32.xlu0 %v8205, 32
        %v8237 = vpop.permute.xlu0 %8236
        %8254 = vrot.lane.b32.xlu0 %v7863, 64
        %v8255 = vpop.permute.xlu0 %8254
        %8256 = vrot.lane.b32.xlu0 %v7864, 64
        %v8257 = vpop.permute.xlu0 %8256
        %8258 = vrot.lane.b32.xlu0 %v7865, 64
        %v8259 = vpop.permute.xlu0 %8258
        %8260 = vrot.lane.b32.xlu0 %v7866, 64
        %v8261 = vpop.permute.xlu0 %8260
        %8262 = vrot.lane.b32.xlu0 %v7867, 64
        %v8263 = vpop.permute.xlu0 %8262
        %8264 = vrot.lane.b32.xlu0 %v7868, 64
        %v8265 = vpop.permute.xlu0 %8264
        %8266 = vrot.lane.b32.xlu0 %v7869, 64
        %v8267 = vpop.permute.xlu0 %8266
        %8268 = vrot.lane.b32.xlu0 %v7870, 64
        %v8269 = vpop.permute.xlu0 %8268
        %8270 = vrot.lane.b32.xlu0 %v7871, 64
        %v8271 = vpop.permute.xlu0 %8270
        %8272 = vrot.lane.b32.xlu0 %v7872, 64
        %v8273 = vpop.permute.xlu0 %8272
        %8274 = vrot.lane.b32.xlu0 %v7873, 64
        %v8275 = vpop.permute.xlu0 %8274
        %8276 = vrot.lane.b32.xlu0 %v7874, 64
        %v8277 = vpop.permute.xlu0 %8276
        %8278 = vrot.lane.b32.xlu0 %v7875, 64
        %v8279 = vpop.permute.xlu0 %8278
        %8280 = vrot.lane.b32.xlu0 %v7876, 64
        %v8281 = vpop.permute.xlu0 %8280
        %8282 = vrot.lane.b32.xlu0 %v7877, 64
        %v8283 = vpop.permute.xlu0 %8282
        %8284 = vrot.lane.b32.xlu0 %v7878, 64
        %v8285 = vpop.permute.xlu0 %8284
        %8302 = vrot.lane.b32.xlu0 %v7911, 96
        %v8303 = vpop.permute.xlu0 %8302
        %8304 = vrot.lane.b32.xlu0 %v7912, 96
        %v8305 = vpop.permute.xlu0 %8304
        %8306 = vrot.lane.b32.xlu0 %v7913, 96
        %v8307 = vpop.permute.xlu0 %8306
        %8308 = vrot.lane.b32.xlu0 %v7914, 96
        %v8309 = vpop.permute.xlu0 %8308
        %8310 = vrot.lane.b32.xlu0 %v7915, 96
        %v8311 = vpop.permute.xlu0 %8310
        %8312 = vrot.lane.b32.xlu0 %v7916, 96
        %v8313 = vpop.permute.xlu0 %8312
        %8314 = vrot.lane.b32.xlu0 %v7917, 96
        %v8315 = vpop.permute.xlu0 %8314
        %8316 = vrot.lane.b32.xlu0 %v7918, 96
        %v8317 = vpop.permute.xlu0 %8316
        %8318 = vrot.lane.b32.xlu0 %v7919, 96
        %v8319 = vpop.permute.xlu0 %8318
        %8320 = vrot.lane.b32.xlu0 %v7920, 96
        %v8321 = vpop.permute.xlu0 %8320
        %8322 = vrot.lane.b32.xlu0 %v7921, 96
        %v8323 = vpop.permute.xlu0 %8322
        %8324 = vrot.lane.b32.xlu0 %v7922, 96
        %v8325 = vpop.permute.xlu0 %8324
        %8326 = vrot.lane.b32.xlu0 %v7923, 96
        %v8327 = vpop.permute.xlu0 %8326
        %8328 = vrot.lane.b32.xlu0 %v7924, 96
        %v8329 = vpop.permute.xlu0 %8328
        %8330 = vrot.lane.b32.xlu0 %v7925, 96
        %v8331 = vpop.permute.xlu0 %8330
        %8332 = vrot.lane.b32.xlu0 %v7926, 96
        %v8333 = vpop.permute.xlu0 %8332
        %v8335 = vshll.u32 %v7927, 16
        %v8337 = vrot.slane %v8335, 1
        %v8338 = vsel %vm1210, %v8200, %v8337
        %v8339 = vshrl.u32 %v7927, 16
        %v8341 = vor.u32 %v8339, %v8337
        %v8343 = vshll.u32 %v7928, 16
        %v8345 = vrot.slane %v8343, 1
        %v8346 = vsel %vm1210, %v8341, %v8345
        %8363 = vrot.lane.b32.xlu0 %v7968, 32
        %v8364 = vpop.permute.xlu0 %8363
        %8365 = vrot.lane.b32.xlu0 %v7969, 32
        %v8366 = vpop.permute.xlu0 %8365
        %8367 = vrot.lane.b32.xlu0 %v7970, 32
        %v8368 = vpop.permute.xlu0 %8367
        %8369 = vrot.lane.b32.xlu0 %v7971, 32
        %v8370 = vpop.permute.xlu0 %8369
        %8371 = vrot.lane.b32.xlu0 %v7972, 32
        %v8372 = vpop.permute.xlu0 %8371
        %8373 = vrot.lane.b32.xlu0 %v7973, 32
        %v8374 = vpop.permute.xlu0 %8373
        %8375 = vrot.lane.b32.xlu0 %v7974, 32
        %v8376 = vpop.permute.xlu0 %8375
        %8377 = vrot.lane.b32.xlu0 %v7975, 32
        %v8378 = vpop.permute.xlu0 %8377
        %8379 = vrot.lane.b32.xlu0 %v7976, 32
        %v8380 = vpop.permute.xlu0 %8379
        %8381 = vrot.lane.b32.xlu0 %v7977, 32
        %v8382 = vpop.permute.xlu0 %8381
        %8383 = vrot.lane.b32.xlu0 %v7978, 32
        %v8384 = vpop.permute.xlu0 %8383
        %8385 = vrot.lane.b32.xlu0 %v7979, 32
        %v8386 = vpop.permute.xlu0 %8385
        %8387 = vrot.lane.b32.xlu0 %v7980, 32
        %v8388 = vpop.permute.xlu0 %8387
        %8389 = vrot.lane.b32.xlu0 %v7981, 32
        %v8390 = vpop.permute.xlu0 %8389
        %8391 = vrot.lane.b32.xlu0 %v7982, 32
        %v8392 = vpop.permute.xlu0 %8391
        %8393 = vrot.lane.b32.xlu0 %v7983, 32
        %v8394 = vpop.permute.xlu0 %8393
        %8411 = vrot.lane.b32.xlu0 %v8015, 64
        %v8412 = vpop.permute.xlu0 %8411
        %8413 = vrot.lane.b32.xlu0 %v8016, 64
        %v8414 = vpop.permute.xlu0 %8413
        %8415 = vrot.lane.b32.xlu0 %v8017, 64
        %v8416 = vpop.permute.xlu0 %8415
        %8417 = vrot.lane.b32.xlu0 %v8018, 64
        %v8418 = vpop.permute.xlu0 %8417
        %8419 = vrot.lane.b32.xlu0 %v8019, 64
        %v8420 = vpop.permute.xlu0 %8419
        %8421 = vrot.lane.b32.xlu0 %v8020, 64
        %v8422 = vpop.permute.xlu0 %8421
        %8423 = vrot.lane.b32.xlu0 %v8021, 64
        %v8424 = vpop.permute.xlu0 %8423
        %8425 = vrot.lane.b32.xlu0 %v8022, 64
        %v8426 = vpop.permute.xlu0 %8425
        %8427 = vrot.lane.b32.xlu0 %v8023, 64
        %v8428 = vpop.permute.xlu0 %8427
        %8429 = vrot.lane.b32.xlu0 %v8024, 64
        %v8430 = vpop.permute.xlu0 %8429
        %8431 = vrot.lane.b32.xlu0 %v8025, 64
        %v8432 = vpop.permute.xlu0 %8431
        %8433 = vrot.lane.b32.xlu0 %v8026, 64
        %v8434 = vpop.permute.xlu0 %8433
        %8435 = vrot.lane.b32.xlu0 %v8027, 64
        %v8436 = vpop.permute.xlu0 %8435
        %8437 = vrot.lane.b32.xlu0 %v8028, 64
        %v8438 = vpop.permute.xlu0 %8437
        %8439 = vrot.lane.b32.xlu0 %v8029, 64
        %v8440 = vpop.permute.xlu0 %8439
        %8441 = vrot.lane.b32.xlu0 %v8030, 64
        %v8442 = vpop.permute.xlu0 %8441
        %v8444 = vshll.u32 %v8031, 16
        %v8446 = vrot.slane %v8444, 1
        %v8447 = vsel %vm1210, %v8341, %v8446
        %v8448 = vshrl.u32 %v8031, 16
        %v8450 = vor.u32 %v8448, %v8446
        %v8451 = vsel %vm1210, %v8450, %v1257
        %8452 = vrot.lane.b32.xlu0 %v8101, 96
        %v8453 = vpop.permute.xlu0 %8452
        %8454 = vrot.lane.b32.xlu0 %v8109, 96
        %v8455 = vpop.permute.xlu0 %8454
        %8456 = vrot.lane.b32.xlu0 %v8117, 96
        %v8457 = vpop.permute.xlu0 %8456
        %8458 = vrot.lane.b32.xlu0 %v8125, 96
        %v8459 = vpop.permute.xlu0 %8458
        %8460 = vrot.lane.b32.xlu0 %v8133, 96
        %v8461 = vpop.permute.xlu0 %8460
        %8462 = vrot.lane.b32.xlu0 %v8141, 96
        %v8463 = vpop.permute.xlu0 %8462
        %8464 = vrot.lane.b32.xlu0 %v8149, 96
        %v8465 = vpop.permute.xlu0 %8464
        %8466 = vrot.lane.b32.xlu0 %v8157, 96
        %v8467 = vpop.permute.xlu0 %8466
        %8468 = vrot.lane.b32.xlu0 %v8165, 96
        %v8469 = vpop.permute.xlu0 %8468
        %8470 = vrot.lane.b32.xlu0 %v8173, 96
        %v8471 = vpop.permute.xlu0 %8470
        %8472 = vrot.lane.b32.xlu0 %v8181, 96
        %v8473 = vpop.permute.xlu0 %8472
        %8474 = vrot.lane.b32.xlu0 %v8189, 96
        %v8475 = vpop.permute.xlu0 %8474
        %8476 = vrot.lane.b32.xlu0 %v8197, 96
        %v8477 = vpop.permute.xlu0 %8476
        %8478 = vrot.lane.b32.xlu0 %v8338, 96
        %v8479 = vpop.permute.xlu0 %8478
        %8480 = vrot.lane.b32.xlu0 %v8447, 96
        %v8481 = vpop.permute.xlu0 %8480
        %8482 = vrot.lane.b32.xlu0 %v8451, 96
        %v8483 = vpop.permute.xlu0 %8482
        %v8485 = vsel %vm1261, %v1202, %v8207
        %v8488 = vsel %vm1261, %v7707, %v8209
        %v8491 = vsel %vm1261, %v7708, %v8211
        %v8494 = vsel %vm1261, %v7709, %v8213
        %v8497 = vsel %vm1261, %v7710, %v8215
        %v8500 = vsel %vm1261, %v7711, %v8217
        %v8503 = vsel %vm1261, %v7712, %v8219
        %v8506 = vsel %vm1261, %v7713, %v8221
        %v8509 = vsel %vm1261, %v7714, %v8223
        %v8512 = vsel %vm1261, %v7715, %v8225
        %v8515 = vsel %vm1261, %v7716, %v8227
        %v8518 = vsel %vm1261, %v7717, %v8229
        %v8521 = vsel %vm1261, %v7718, %v8231
        %v8524 = vsel %vm1261, %v7719, %v8233
        %v8527 = vsel %vm1261, %v7720, %v8235
        %v8530 = vsel %vm1261, %v7721, %v8237
        %v8532 = vsel %vm1265, %v8485, %v8255
        %v8534 = vsel %vm1265, %v8488, %v8257
        %v8536 = vsel %vm1265, %v8491, %v8259
        %v8538 = vsel %vm1265, %v8494, %v8261
        %v8540 = vsel %vm1265, %v8497, %v8263
        %v8542 = vsel %vm1265, %v8500, %v8265
        %v8544 = vsel %vm1265, %v8503, %v8267
        %v8546 = vsel %vm1265, %v8506, %v8269
        %v8548 = vsel %vm1265, %v8509, %v8271
        %v8550 = vsel %vm1265, %v8512, %v8273
        %v8552 = vsel %vm1265, %v8515, %v8275
        %v8554 = vsel %vm1265, %v8518, %v8277
        %v8556 = vsel %vm1265, %v8521, %v8279
        %v8558 = vsel %vm1265, %v8524, %v8281
        %v8560 = vsel %vm1265, %v8527, %v8283
        %v8562 = vsel %vm1265, %v8530, %v8285
        %v8564 = vsel %vm1268, %v8532, %v8303
        %v8567 = vsel %vm1268, %v8534, %v8305
        %v8570 = vsel %vm1268, %v8536, %v8307
        %v8573 = vsel %vm1268, %v8538, %v8309
        %v8576 = vsel %vm1268, %v8540, %v8311
        %v8579 = vsel %vm1268, %v8542, %v8313
        %v8582 = vsel %vm1268, %v8544, %v8315
        %v8585 = vsel %vm1268, %v8546, %v8317
        %v8588 = vsel %vm1268, %v8548, %v8319
        %v8591 = vsel %vm1268, %v8550, %v8321
        %v8594 = vsel %vm1268, %v8552, %v8323
        %v8597 = vsel %vm1268, %v8554, %v8325
        %v8600 = vsel %vm1268, %v8556, %v8327
        %v8603 = vsel %vm1268, %v8558, %v8329
        %v8606 = vsel %vm1268, %v8560, %v8331
        %v8609 = vsel %vm1268, %v8562, %v8333
        %v8613 = vsel %vm1261, %v8093, %v8364
        %v8616 = vsel %vm1261, %v8101, %v8366
        %v8619 = vsel %vm1261, %v8109, %v8368
        %v8622 = vsel %vm1261, %v8117, %v8370
        %v8625 = vsel %vm1261, %v8125, %v8372
        %v8628 = vsel %vm1261, %v8133, %v8374
        %v8631 = vsel %vm1261, %v8141, %v8376
        %v8634 = vsel %vm1261, %v8149, %v8378
        %v8637 = vsel %vm1261, %v8157, %v8380
        %v8640 = vsel %vm1261, %v8165, %v8382
        %v8643 = vsel %vm1261, %v8173, %v8384
        %v8646 = vsel %vm1261, %v8181, %v8386
        %v8649 = vsel %vm1261, %v8189, %v8388
        %v8652 = vsel %vm1261, %v8197, %v8390
        %v8655 = vsel %vm1261, %v8338, %v8392
        %v8658 = vsel %vm1261, %v8346, %v8394
        %v8660 = vsel %vm1265, %v8613, %v8412
        %v8662 = vsel %vm1265, %v8616, %v8414
        %v8664 = vsel %vm1265, %v8619, %v8416
        %v8666 = vsel %vm1265, %v8622, %v8418
        %v8668 = vsel %vm1265, %v8625, %v8420
        %v8670 = vsel %vm1265, %v8628, %v8422
        %v8672 = vsel %vm1265, %v8631, %v8424
        %v8674 = vsel %vm1265, %v8634, %v8426
        %v8676 = vsel %vm1265, %v8637, %v8428
        %v8678 = vsel %vm1265, %v8640, %v8430
        %v8680 = vsel %vm1265, %v8643, %v8432
        %v8682 = vsel %vm1265, %v8646, %v8434
        %v8684 = vsel %vm1265, %v8649, %v8436
        %v8686 = vsel %vm1265, %v8652, %v8438
        %v8688 = vsel %vm1265, %v8655, %v8440
        %v8690 = vsel %vm1265, %v8658, %v8442
        %v8692 = vsel %vm1268, %v8660, %v8453
        %v8695 = vsel %vm1268, %v8662, %v8455
        %v8698 = vsel %vm1268, %v8664, %v8457
        %v8701 = vsel %vm1268, %v8666, %v8459
        %v8704 = vsel %vm1268, %v8668, %v8461
        %v8707 = vsel %vm1268, %v8670, %v8463
        %v8710 = vsel %vm1268, %v8672, %v8465
        %v8713 = vsel %vm1268, %v8674, %v8467
        %v8716 = vsel %vm1268, %v8676, %v8469
        %v8719 = vsel %vm1268, %v8678, %v8471
        %v8722 = vsel %vm1268, %v8680, %v8473
        %v8725 = vsel %vm1268, %v8682, %v8475
        %v8728 = vsel %vm1268, %v8684, %v8477
        %v8731 = vsel %vm1268, %v8686, %v8479
        %v8734 = vsel %vm1268, %v8688, %v8481
        %v8737 = vsel %vm1268, %v8690, %v8483
        %v8740 = vlaneseq
        %v8741 = vshrl.u32 %v8740, 7
        %v8742 = vsub.s32 0, %v8741
        %v8743 = vrot.slane %v7546, %v8742
        %v8781 = vunpack.c.l.b16 %v7510
        %v8782 = vunpack.c.l.b16 %v7511
        %v8783 = vunpack.c.l.b16 %v7512
        %v8784 = vunpack.c.l.b16 %v7513
        %v8785 = vunpack.c.l.b16 %v7514
        %v8786 = vunpack.c.l.b16 %v7515
        %v8787 = vunpack.c.l.b16 %v7516
        %v8788 = vunpack.c.l.b16 %v7517
        %v8789 = vunpack.c.l.b16 %v7518
        %v8790 = vunpack.c.l.b16 %v7519
        %v8791 = vunpack.c.l.b16 %v7520
        %v8792 = vunpack.c.l.b16 %v7521
        %v8793 = vunpack.c.l.b16 %v7522
        %v8794 = vunpack.c.l.b16 %v7523
        %v8795 = vunpack.c.l.b16 %v7524
        %v8796 = vunpack.c.l.b16 %v7525
        %v8797 = vunpack.c.l.b16 %v7526
        %v8798 = vunpack.c.l.b16 %v7527
        %v8799 = vunpack.c.l.b16 %v7528
        %v8800 = vunpack.c.l.b16 %v7529
        %v8801 = vunpack.c.l.b16 %v7530
        %v8802 = vunpack.c.l.b16 %v7531
        %v8803 = vunpack.c.l.b16 %v7532
        %v8804 = vunpack.c.l.b16 %v7533
        %v8805 = vunpack.c.l.b16 %v7534
        %v8806 = vunpack.c.l.b16 %v7535
        %v8807 = vunpack.c.l.b16 %v7536
        %v8808 = vunpack.c.l.b16 %v7537
        %v8809 = vunpack.c.l.b16 %v7538
        %v8810 = vunpack.c.l.b16 %v7539
        %v8811 = vunpack.c.l.b16 %v7540
        %v8812 = vunpack.c.l.b16 %v7541
        %v8813 = vunpack.c.l.b16 %v7542
        %v8814 = vunpack.c.l.b16 %v7543
        %v8815 = vunpack.c.l.b16 %v7544
        %v8816 = vunpack.c.l.b16 %v7545
        %v8817 = vpack.c.b16 %v8782, %v8781
        %v8818 = vpack.c.b16 %v8784, %v8783
        %v8819 = vpack.c.b16 %v8786, %v8785
        %v8820 = vpack.c.b16 %v8788, %v8787
        %v8821 = vpack.c.b16 %v8790, %v8789
        %v8822 = vpack.c.b16 %v8792, %v8791
        %v8823 = vpack.c.b16 %v8794, %v8793
        %v8824 = vpack.c.b16 %v8796, %v8795
        %v8825 = vpack.c.b16 %v8798, %v8797
        %v8826 = vpack.c.b16 %v8800, %v8799
        %v8827 = vpack.c.b16 %v8802, %v8801
        %v8828 = vpack.c.b16 %v8804, %v8803
        %v8829 = vpack.c.b16 %v8806, %v8805
        %v8830 = vpack.c.b16 %v8808, %v8807
        %v8831 = vpack.c.b16 %v8810, %v8809
        %v8832 = vpack.c.b16 %v8812, %v8811
        %v8833 = vpack.c.b16 %v8814, %v8813
        %v8834 = vpack.c.b16 %v8816, %v8815
        %v8854 = vsel %vm1261, %v8065, 0
        %v8857 = vsel %vm1261, %v8066, 0
        %v8860 = vsel %vm1261, %v8067, 0
        %v8863 = vsel %vm1261, %v8068, 0
        %v8866 = vsel %vm1261, %v8069, 0
        %v8869 = vsel %vm1261, %v8070, 0
        %v8872 = vsel %vm1261, %v8071, 0
        %v8875 = vsel %vm1261, %v8072, 0
        %v8878 = vsel %vm1261, %v8073, 0
        %v8881 = vsel %vm1261, %v8074, 0
        %v8884 = vsel %vm1261, %v8075, 0
        %v8887 = vsel %vm1261, %v8076, 0
        %v8890 = vsel %vm1261, %v8077, 0
        %v8893 = vsel %vm1261, %v8078, 0
        %v8896 = vsel %vm1261, %v8079, 0
        %v8899 = vsel %vm1261, %v8080, 0
        %8901 = vmatprep.subr.bf16.mxu0 0
        %8902 = vmatpush1.bf16.msra.mxu0 %v8817
        %8903 = vmatprep.subr.bf16.mxu0 0
        %8904 = vmatpush1.bf16.msra.mxu0 %v8818
        %8905 = vmatprep.subr.bf16.mxu0 0
        %8906 = vmatpush1.bf16.msra.mxu0 %v8819
        %8907 = vmatprep.subr.bf16.mxu0 0
        %8908 = vmatpush1.bf16.msra.mxu0 %v8820
        %8909 = vmatprep.subr.bf16.mxu0 0
        %8910 = vmatpush1.bf16.msra.mxu0 %v8821
        %8911 = vmatprep.subr.bf16.mxu0 0
        %8912 = vmatpush1.bf16.msra.mxu0 %v8822
        %8913 = vmatprep.subr.bf16.mxu0 0
        %8914 = vmatpush1.bf16.msra.mxu0 %v8823
        %8915 = vmatprep.subr.bf16.mxu0 0
        %8916 = vmatpush1.bf16.msra.mxu0 %v8824
        %8917 = vmatprep.subr.bf16.mxu0 0
        %8918 = vmatpush1.bf16.msra.mxu0 %v8825
        %8919 = vmatprep.subr.bf16.mxu0 0
        %8920 = vmatpush1.bf16.msra.mxu0 %v8826
        %8921 = vmatprep.subr.bf16.mxu0 0
        %8922 = vmatpush1.bf16.msra.mxu0 %v8827
        %8923 = vmatprep.subr.bf16.mxu0 0
        %8924 = vmatpush1.bf16.msra.mxu0 %v8828
        %8925 = vmatprep.subr.bf16.mxu0 0
        %8926 = vmatpush1.bf16.msra.mxu0 %v8829
        %8927 = vmatprep.subr.bf16.mxu0 0
        %8928 = vmatpush1.bf16.msra.mxu0 %v8830
        %8929 = vmatprep.subr.bf16.mxu0 0
        %8930 = vmatpush1.bf16.msra.mxu0 %v8831
        %8931 = vmatprep.subr.bf16.mxu0 0
        %8932 = vmatpush1.bf16.msra.mxu0 %v8832
        %8933 = vmatprep.mubr.bf16.mxu0 %v8692
        %8934 = vmatmul.mubr.bf16.gmra.mrb[0].mxu0 %v8564
        %v8935 = vpop.f32.mrb[0].mxu0
        %v8936 = vadd.f32 %v8743, %v8935
        %v8937 = vpop.f32.mrb[0].mxu0
        %v8938 = vpop.f32.mrb[0].mxu0
        %v8939 = vadd.f32 %v8743, %v8938
        %v8940 = vpop.f32.mrb[0].mxu0
        %8941 = vmatprep.mubr.bf16.mxu0 %v8695
        %8942 = vmatmul.mubr.bf16.gmra.mrb[0].mxu0 %v8567
        %v8943 = vpop.f32.mrb[0].mxu0
        %v8944 = vadd.f32 %v8743, %v8943
        %v8945 = vpop.f32.mrb[0].mxu0
        %v8946 = vpop.f32.mrb[0].mxu0
        %v8947 = vadd.f32 %v8743, %v8946
        %v8948 = vpop.f32.mrb[0].mxu0
        %8949 = vmatprep.mubr.bf16.mxu0 %v8698
        %8950 = vmatmul.mubr.bf16.gmra.mrb[0].mxu0 %v8570
        %v8951 = vpop.f32.mrb[0].mxu0
        %v8952 = vadd.f32 %v8743, %v8951
        %v8953 = vpop.f32.mrb[0].mxu0
        %v8954 = vpop.f32.mrb[0].mxu0
        %v8955 = vadd.f32 %v8743, %v8954
        %v8956 = vpop.f32.mrb[0].mxu0
        %8957 = vmatprep.mubr.bf16.mxu0 %v8701
        %8958 = vmatmul.mubr.bf16.gmra.mrb[0].mxu0 %v8573
        %v8959 = vpop.f32.mrb[0].mxu0
        %v8960 = vadd.f32 %v8743, %v8959
        %v8961 = vpop.f32.mrb[0].mxu0
        %v8962 = vpop.f32.mrb[0].mxu0
        %v8963 = vadd.f32 %v8743, %v8962
        %v8964 = vpop.f32.mrb[0].mxu0
        %8965 = vmatprep.mubr.bf16.mxu0 %v8704
        %8966 = vmatmul.mubr.bf16.gmra.mrb[0].mxu0 %v8576
        %v8967 = vpop.f32.mrb[0].mxu0
        %v8968 = vadd.f32 %v8743, %v8967
        %v8969 = vpop.f32.mrb[0].mxu0
        %v8970 = vpop.f32.mrb[0].mxu0
        %v8971 = vadd.f32 %v8743, %v8970
        %v8972 = vpop.f32.mrb[0].mxu0
        %8973 = vmatprep.mubr.bf16.mxu0 %v8707
        %8974 = vmatmul.mubr.bf16.gmra.mrb[0].mxu0 %v8579
        %v8975 = vpop.f32.mrb[0].mxu0
        %v8976 = vadd.f32 %v8743, %v8975
        %v8977 = vpop.f32.mrb[0].mxu0
        %v8978 = vpop.f32.mrb[0].mxu0
        %v8979 = vadd.f32 %v8743, %v8978
        %v8980 = vpop.f32.mrb[0].mxu0
        %8981 = vmatprep.mubr.bf16.mxu0 %v8710
        %8982 = vmatmul.mubr.bf16.gmra.mrb[0].mxu0 %v8582
        %v8983 = vpop.f32.mrb[0].mxu0
        %v8984 = vadd.f32 %v8743, %v8983
        %v8985 = vpop.f32.mrb[0].mxu0
        %v8986 = vpop.f32.mrb[0].mxu0
        %v8987 = vadd.f32 %v8743, %v8986
        %v8988 = vpop.f32.mrb[0].mxu0
        %8989 = vmatprep.mubr.bf16.mxu0 %v8713
        %8990 = vmatmul.mubr.bf16.gmra.mrb[0].mxu0 %v8585
        %v8991 = vpop.f32.mrb[0].mxu0
        %v8992 = vadd.f32 %v8743, %v8991
        %v8993 = vpop.f32.mrb[0].mxu0
        %v8994 = vpop.f32.mrb[0].mxu0
        %v8995 = vadd.f32 %v8743, %v8994
        %v8996 = vpop.f32.mrb[0].mxu0
        %8997 = vmatprep.mubr.bf16.mxu0 %v8716
        %8998 = vmatmul.mubr.bf16.gmra.mrb[0].mxu0 %v8588
        %v8999 = vpop.f32.mrb[0].mxu0
        %v9000 = vadd.f32 %v8743, %v8999
        %v9001 = vpop.f32.mrb[0].mxu0
        %v9002 = vpop.f32.mrb[0].mxu0
        %v9003 = vadd.f32 %v8743, %v9002
        %v9004 = vpop.f32.mrb[0].mxu0
        %9005 = vmatprep.mubr.bf16.mxu0 %v8719
        %9006 = vmatmul.mubr.bf16.gmra.mrb[0].mxu0 %v8591
        %v9007 = vpop.f32.mrb[0].mxu0
        %v9008 = vadd.f32 %v8743, %v9007
        %v9009 = vpop.f32.mrb[0].mxu0
        %v9010 = vpop.f32.mrb[0].mxu0
        %v9011 = vadd.f32 %v8743, %v9010
        %v9012 = vpop.f32.mrb[0].mxu0
        %9013 = vmatprep.mubr.bf16.mxu0 %v8722
        %9014 = vmatmul.mubr.bf16.gmra.mrb[0].mxu0 %v8594
        %v9015 = vpop.f32.mrb[0].mxu0
        %v9016 = vadd.f32 %v8743, %v9015
        %v9017 = vpop.f32.mrb[0].mxu0
        %v9018 = vpop.f32.mrb[0].mxu0
        %v9019 = vadd.f32 %v8743, %v9018
        %v9020 = vpop.f32.mrb[0].mxu0
        %9021 = vmatprep.mubr.bf16.mxu0 %v8725
        %9022 = vmatmul.mubr.bf16.gmra.mrb[0].mxu0 %v8597
        %v9023 = vpop.f32.mrb[0].mxu0
        %v9024 = vadd.f32 %v8743, %v9023
        %v9025 = vpop.f32.mrb[0].mxu0
        %v9026 = vpop.f32.mrb[0].mxu0
        %v9027 = vadd.f32 %v8743, %v9026
        %v9028 = vpop.f32.mrb[0].mxu0
        %9029 = vmatprep.mubr.bf16.mxu0 %v8728
        %9030 = vmatmul.mubr.bf16.gmra.mrb[0].mxu0 %v8600
        %v9031 = vpop.f32.mrb[0].mxu0
        %v9032 = vadd.f32 %v8743, %v9031
        %v9033 = vpop.f32.mrb[0].mxu0
        %v9034 = vpop.f32.mrb[0].mxu0
        %v9035 = vadd.f32 %v8743, %v9034
        %v9036 = vpop.f32.mrb[0].mxu0
        %9037 = vmatprep.mubr.bf16.mxu0 %v8731
        %9038 = vmatmul.mubr.bf16.gmra.mrb[0].mxu0 %v8603
        %v9039 = vpop.f32.mrb[0].mxu0
        %v9040 = vadd.f32 %v8743, %v9039
        %v9041 = vpop.f32.mrb[0].mxu0
        %v9042 = vpop.f32.mrb[0].mxu0
        %v9043 = vadd.f32 %v8743, %v9042
        %v9044 = vpop.f32.mrb[0].mxu0
        %9045 = vmatprep.mubr.bf16.mxu0 %v8734
        %9046 = vmatmul.mubr.bf16.gmra.mrb[0].mxu0 %v8606
        %v9047 = vpop.f32.mrb[0].mxu0
        %v9048 = vadd.f32 %v8743, %v9047
        %v9049 = vpop.f32.mrb[0].mxu0
        %v9050 = vpop.f32.mrb[0].mxu0
        %v9051 = vadd.f32 %v8743, %v9050
        %v9052 = vpop.f32.mrb[0].mxu0
        %9053 = vmatprep.mubr.bf16.mxu0 %v8737
        %9054 = vmatmul.mubr.bf16.gmra.mrb[0].mxu0 %v8609
        %v9055 = vpop.f32.mrb[0].mxu0
        %v9056 = vadd.f32 %v8743, %v9055
        %v9057 = vpop.f32.mrb[0].mxu0
        %v9058 = vpop.f32.mrb[0].mxu0
        %v9059 = vadd.f32 %v8743, %v9058
        %v9060 = vpop.f32.mrb[0].mxu0
        %9061 = vdwg.mxu0
        %9062 = vmatprep.subr.bf16.mxu0 0
        %9063 = vmatpush1.bf16.msra.mxu0 %v8833
        %9064 = vmatprep.subr.bf16.mxu0 0
        %9065 = vmatpush1.bf16.msra.mxu0 %v8834
        %9066 = vmatprep.subr.bf16.mxu0 0
        %9067 = vmatpush1.bf16.msra.mxu0 0
        %9068 = vmatprep.subr.bf16.mxu0 0
        %9069 = vmatpush1.bf16.msra.mxu0 0
        %9070 = vmatprep.subr.bf16.mxu0 0
        %9071 = vmatpush1.bf16.msra.mxu0 0
        %9072 = vmatprep.subr.bf16.mxu0 0
        %9073 = vmatpush1.bf16.msra.mxu0 0
        %9074 = vmatprep.subr.bf16.mxu0 0
        %9075 = vmatpush1.bf16.msra.mxu0 0
        %9076 = vmatprep.subr.bf16.mxu0 0
        %9077 = vmatpush1.bf16.msra.mxu0 0
        %9078 = vmatprep.subr.bf16.mxu0 0
        %9079 = vmatpush1.bf16.msra.mxu0 0
        %9080 = vmatprep.subr.bf16.mxu0 0
        %9081 = vmatpush1.bf16.msra.mxu0 0
        %9082 = vmatprep.subr.bf16.mxu0 0
        %9083 = vmatpush1.bf16.msra.mxu0 0
        %9084 = vmatprep.subr.bf16.mxu0 0
        %9085 = vmatpush1.bf16.msra.mxu0 0
        %9086 = vmatprep.subr.bf16.mxu0 0
        %9087 = vmatpush1.bf16.msra.mxu0 0
        %9088 = vmatprep.subr.bf16.mxu0 0
        %9089 = vmatpush1.bf16.msra.mxu0 0
        %9090 = vmatprep.subr.bf16.mxu0 0
        %9091 = vmatpush1.bf16.msra.mxu0 0
        %9092 = vmatprep.subr.bf16.mxu0 0
        %9093 = vmatpush1.bf16.msra.mxu0 0
        %9094 = vmatprep.mubr.bf16.mxu0 0
        %9095 = vmatmul.mubr.bf16.gmra.mrb[0].mxu0 %v8854
        %v9096 = vpop.f32.mrb[0].mxu0
        %v9097 = vadd.f32 %v8936, %v9096
        %v9098 = vpop.f32.mrb[0].mxu0
        %v9099 = vpop.f32.mrb[0].mxu0
        %v9100 = vadd.f32 %v8939, %v9099
        %v9101 = vpop.f32.mrb[0].mxu0
        %9102 = vmatprep.mubr.bf16.mxu0 0
        %9103 = vmatmul.mubr.bf16.gmra.mrb[0].mxu0 %v8857
        %v9104 = vpop.f32.mrb[0].mxu0
        %v9105 = vadd.f32 %v8944, %v9104
        %v9106 = vpop.f32.mrb[0].mxu0
        %v9107 = vpop.f32.mrb[0].mxu0
        %v9108 = vadd.f32 %v8947, %v9107
        %v9109 = vpop.f32.mrb[0].mxu0
        %9110 = vmatprep.mubr.bf16.mxu0 0
        %9111 = vmatmul.mubr.bf16.gmra.mrb[0].mxu0 %v8860
        %v9112 = vpop.f32.mrb[0].mxu0
        %v9113 = vadd.f32 %v8952, %v9112
        %v9114 = vpop.f32.mrb[0].mxu0
        %v9115 = vpop.f32.mrb[0].mxu0
        %v9116 = vadd.f32 %v8955, %v9115
        %v9117 = vpop.f32.mrb[0].mxu0
        %9118 = vmatprep.mubr.bf16.mxu0 0
        %9119 = vmatmul.mubr.bf16.gmra.mrb[0].mxu0 %v8863
        %v9120 = vpop.f32.mrb[0].mxu0
        %v9121 = vadd.f32 %v8960, %v9120
        %v9122 = vpop.f32.mrb[0].mxu0
        %v9123 = vpop.f32.mrb[0].mxu0
        %v9124 = vadd.f32 %v8963, %v9123
        %v9125 = vpop.f32.mrb[0].mxu0
        %9126 = vmatprep.mubr.bf16.mxu0 0
        %9127 = vmatmul.mubr.bf16.gmra.mrb[0].mxu0 %v8866
        %v9128 = vpop.f32.mrb[0].mxu0
        %v9129 = vadd.f32 %v8968, %v9128
        %v9130 = vpop.f32.mrb[0].mxu0
        %v9131 = vpop.f32.mrb[0].mxu0
        %v9132 = vadd.f32 %v8971, %v9131
        %v9133 = vpop.f32.mrb[0].mxu0
        %9134 = vmatprep.mubr.bf16.mxu0 0
        %9135 = vmatmul.mubr.bf16.gmra.mrb[0].mxu0 %v8869
        %v9136 = vpop.f32.mrb[0].mxu0
        %v9137 = vadd.f32 %v8976, %v9136
        %v9138 = vpop.f32.mrb[0].mxu0
        %v9139 = vpop.f32.mrb[0].mxu0
        %v9140 = vadd.f32 %v8979, %v9139
        %v9141 = vpop.f32.mrb[0].mxu0
        %9142 = vmatprep.mubr.bf16.mxu0 0
        %9143 = vmatmul.mubr.bf16.gmra.mrb[0].mxu0 %v8872
        %v9144 = vpop.f32.mrb[0].mxu0
        %v9145 = vadd.f32 %v8984, %v9144
        %v9146 = vpop.f32.mrb[0].mxu0
        %v9147 = vpop.f32.mrb[0].mxu0
        %v9148 = vadd.f32 %v8987, %v9147
        %v9149 = vpop.f32.mrb[0].mxu0
        %9150 = vmatprep.mubr.bf16.mxu0 0
        %9151 = vmatmul.mubr.bf16.gmra.mrb[0].mxu0 %v8875
        %v9152 = vpop.f32.mrb[0].mxu0
        %v9153 = vadd.f32 %v8992, %v9152
        %v9154 = vpop.f32.mrb[0].mxu0
        %v9155 = vpop.f32.mrb[0].mxu0
        %v9156 = vadd.f32 %v8995, %v9155
        %v9157 = vpop.f32.mrb[0].mxu0
        %9158 = vmatprep.mubr.bf16.mxu0 0
        %9159 = vmatmul.mubr.bf16.gmra.mrb[0].mxu0 %v8878
        %v9160 = vpop.f32.mrb[0].mxu0
        %v9161 = vadd.f32 %v9000, %v9160
        %v9162 = vpop.f32.mrb[0].mxu0
        %v9163 = vpop.f32.mrb[0].mxu0
        %v9164 = vadd.f32 %v9003, %v9163
        %v9165 = vpop.f32.mrb[0].mxu0
        %9166 = vmatprep.mubr.bf16.mxu0 0
        %9167 = vmatmul.mubr.bf16.gmra.mrb[0].mxu0 %v8881
        %v9168 = vpop.f32.mrb[0].mxu0
        %v9169 = vadd.f32 %v9008, %v9168
        %v9170 = vpop.f32.mrb[0].mxu0
        %v9171 = vpop.f32.mrb[0].mxu0
        %v9172 = vadd.f32 %v9011, %v9171
        %v9173 = vpop.f32.mrb[0].mxu0
        %9174 = vmatprep.mubr.bf16.mxu0 0
        %9175 = vmatmul.mubr.bf16.gmra.mrb[0].mxu0 %v8884
        %v9176 = vpop.f32.mrb[0].mxu0
        %v9177 = vadd.f32 %v9016, %v9176
        %v9178 = vpop.f32.mrb[0].mxu0
        %v9179 = vpop.f32.mrb[0].mxu0
        %v9180 = vadd.f32 %v9019, %v9179
        %v9181 = vpop.f32.mrb[0].mxu0
        %9182 = vmatprep.mubr.bf16.mxu0 0
        %9183 = vmatmul.mubr.bf16.gmra.mrb[0].mxu0 %v8887
        %v9184 = vpop.f32.mrb[0].mxu0
        %v9185 = vadd.f32 %v9024, %v9184
        %v9186 = vpop.f32.mrb[0].mxu0
        %v9187 = vpop.f32.mrb[0].mxu0
        %v9188 = vadd.f32 %v9027, %v9187
        %v9189 = vpop.f32.mrb[0].mxu0
        %9190 = vmatprep.mubr.bf16.mxu0 0
        %9191 = vmatmul.mubr.bf16.gmra.mrb[0].mxu0 %v8890
        %v9192 = vpop.f32.mrb[0].mxu0
        %v9193 = vadd.f32 %v9032, %v9192
        %v9194 = vpop.f32.mrb[0].mxu0
        %v9195 = vpop.f32.mrb[0].mxu0
        %v9196 = vadd.f32 %v9035, %v9195
        %v9197 = vpop.f32.mrb[0].mxu0
        %9198 = vmatprep.mubr.bf16.mxu0 0
        %9199 = vmatmul.mubr.bf16.gmra.mrb[0].mxu0 %v8893
        %v9200 = vpop.f32.mrb[0].mxu0
        %v9201 = vadd.f32 %v9040, %v9200
        %v9202 = vpop.f32.mrb[0].mxu0
        %v9203 = vpop.f32.mrb[0].mxu0
        %v9204 = vadd.f32 %v9043, %v9203
        %v9205 = vpop.f32.mrb[0].mxu0
        %9206 = vmatprep.mubr.bf16.mxu0 0
        %9207 = vmatmul.mubr.bf16.gmra.mrb[0].mxu0 %v8896
        %v9208 = vpop.f32.mrb[0].mxu0
        %v9209 = vadd.f32 %v9048, %v9208
        %v9210 = vpop.f32.mrb[0].mxu0
        %v9211 = vpop.f32.mrb[0].mxu0
        %v9212 = vadd.f32 %v9051, %v9211
        %v9213 = vpop.f32.mrb[0].mxu0
        %9214 = vmatprep.mubr.bf16.mxu0 0
        %9215 = vmatmul.mubr.bf16.gmra.mrb[0].mxu0 %v8899
        %v9216 = vpop.f32.mrb[0].mxu0
        %v9217 = vadd.f32 %v9056, %v9216
        %v9218 = vpop.f32.mrb[0].mxu0
        %v9219 = vpop.f32.mrb[0].mxu0
        %v9220 = vadd.f32 %v9059, %v9219
        %v9221 = vpop.f32.mrb[0].mxu0
        %9222 = vdwg.mxu0
        %v9223 = vtanh.pop %v9097
        %v9224 = vtanh.pop %v9100
        %v9225 = vtanh.pop %v9105
        %v9226 = vtanh.pop %v9108
        %v9227 = vtanh.pop %v9113
        %v9228 = vtanh.pop %v9116
        %v9229 = vtanh.pop %v9121
        %v9230 = vtanh.pop %v9124
        %v9231 = vtanh.pop %v9129
        %v9232 = vtanh.pop %v9132
        %v9233 = vtanh.pop %v9137
        %v9234 = vtanh.pop %v9140
        %v9235 = vtanh.pop %v9145
        %v9236 = vtanh.pop %v9148
        %v9237 = vtanh.pop %v9153
        %v9238 = vtanh.pop %v9156
        %v9239 = vtanh.pop %v9161
        %v9240 = vtanh.pop %v9164
        %v9241 = vtanh.pop %v9169
        %v9242 = vtanh.pop %v9172
        %v9243 = vtanh.pop %v9177
        %v9244 = vtanh.pop %v9180
        %v9245 = vtanh.pop %v9185
        %v9246 = vtanh.pop %v9188
        %v9247 = vtanh.pop %v9193
        %v9248 = vtanh.pop %v9196
        %v9249 = vtanh.pop %v9201
        %v9250 = vtanh.pop %v9204
        %v9251 = vtanh.pop %v9209
        %v9252 = vtanh.pop %v9212
        %v9253 = vtanh.pop %v9217
        %v9254 = vtanh.pop %v9220
        %9255 = vst [vmem:[%s326] sm:$0xff] %v9223
        %9256 = vst [vmem:[%s326 + $0x8] sm:$0xff] %v9224
        %9257 = vst [vmem:[%s326 + $0x10] sm:$0xff] %v9225
        %9258 = vst [vmem:[%s326 + $0x18] sm:$0xff] %v9226
        %9259 = vst [vmem:[%s326 + $0x20] sm:$0xff] %v9227
        %9260 = vst [vmem:[%s326 + $0x28] sm:$0xff] %v9228
        %9261 = vst [vmem:[%s326 + $0x30] sm:$0xff] %v9229
        %9262 = vst [vmem:[%s326 + $0x38] sm:$0xff] %v9230
        %9263 = vst [vmem:[%s326 + $0x40] sm:$0xff] %v9231
        %9264 = vst [vmem:[%s326 + $0x48] sm:$0xff] %v9232
        %9265 = vst [vmem:[%s326 + $0x50] sm:$0xff] %v9233
        %9266 = vst [vmem:[%s326 + $0x58] sm:$0xff] %v9234
        %9267 = vst [vmem:[%s326 + $0x60] sm:$0xff] %v9235
        %9268 = vst [vmem:[%s326 + $0x68] sm:$0xff] %v9236
        %9269 = vst [vmem:[%s326 + $0x70] sm:$0xff] %v9237
        %9270 = vst [vmem:[%s326 + $0x78] sm:$0xff] %v9238
        %9271 = vst [vmem:[%s326 + $0x80] sm:$0xff] %v9239
        %9272 = vst [vmem:[%s326 + $0x88] sm:$0xff] %v9240
        %9273 = vst [vmem:[%s326 + $0x90] sm:$0xff] %v9241
        %9274 = vst [vmem:[%s326 + $0x98] sm:$0xff] %v9242
        %9275 = vst [vmem:[%s326 + $0xa0] sm:$0xff] %v9243
        %9276 = vst [vmem:[%s326 + $0xa8] sm:$0xff] %v9244
        %9277 = vst [vmem:[%s326 + $0xb0] sm:$0xff] %v9245
        %9278 = vst [vmem:[%s326 + $0xb8] sm:$0xff] %v9246
        %9279 = vst [vmem:[%s326 + $0xc0] sm:$0xff] %v9247
        %9280 = vst [vmem:[%s326 + $0xc8] sm:$0xff] %v9248
        %9281 = vst [vmem:[%s326 + $0xd0] sm:$0xff] %v9249
        %9282 = vst [vmem:[%s326 + $0xd8] sm:$0xff] %v9250
        %9283 = vst [vmem:[%s326 + $0xe0] sm:$0xff] %v9251
        %9284 = vst [vmem:[%s326 + $0xe8] sm:$0xff] %v9252
        %9285 = vst [vmem:[%s326 + $0xf0] sm:$0xff] %v9253
        %9286 = vst [vmem:[%s326 + $0xf8] sm:$0xff] %v9254
        %p9287 = scmp.lt.s32.totalorder %s21, 1
        %s9288 = scalar_select %p9287, %s21, 1
        %s9289 = smul.addr %s9288, 32
        %s9290 = smul.addr %s9289, 8
        %s9291 = scalar_lea.vmem %s9, %s9290
        // Predicated region
        $region61: #{decoder_forward.1} parent=55 // pred_check
          %p9292 = pneg %p228
        $region62: #{decoder_forward.1} parent=55 // pred_check_branch
          %9294 = sbr.rel (%p9292) target = $region64
        $region63: #{decoder_forward.1} parent=55 // pred_region
          _
        $region64: #{decoder_forward.1} parent=55 // pred_fallthru
          _
      $region56: #{decoder_forward.1} parent=5 // pred_fallthru
        _
      %p9295 = scmp.le.s32.totalorder 2, %s16
      // Predicated region
      $region65: #{decoder_forward.1} parent=5 // pred_check
        %p9296 = pneg %p9295
      $region66: #{decoder_forward.1} parent=5 // pred_check_branch
        %9298 = sbr.rel (%p9296) target = $region68
      $region67: #{decoder_forward.1} parent=5 // pred_region
        %s9299 = ssub.s32 %s16, 2
        // Predicated region
        $region69: #{decoder_forward.1} parent=67 // pred_check
          %p9300 = pneg %p234
        $region70: #{decoder_forward.1} parent=67 // pred_check_branch
          %9302 = sbr.rel (%p9300) target = $region72
        $region71: #{decoder_forward.1} parent=67 // pred_region
          %p9303 = scmp.lt.s32.totalorder %s22, 1
          %s9304 = scalar_select %p9303, %s22, 1
          %s9305 = smul.addr %s9304, 32
          %s9306 = smul.addr %s9305, 8
          %s9307 = scalar_lea.vmem %s9, %s9306
        $region72: #{decoder_forward.1} parent=67 // pred_fallthru
          _
      $region68: #{decoder_forward.1} parent=5 // pred_fallthru
        _
    $region6: #{decoder_forward.1} parent=1 // loop_footer
      %s20 = sadd.s32 1, %s16
    $region7: #{decoder_forward.1} parent=1 // loop_footer_branch
      %15 = sbr.rel target = $region3
    $region8: #{decoder_forward.1} parent=1 // loop_exit
      _
    %9308 = vsyncpa [#allocation3], 1
    %s9309 = scalar_lea.sflag [#allocation3], 1
    %9310 = vsyncpa %s9309, 1

</llo_original>
